<compile_context>
chip_gen: v7x
topology: tpu7x:2x2x1
jax: 0.10.0
libtpu: 0.0.40
codegen_flags: <defaults>
</compile_context>

<pallas_src>
import jax
import jax.numpy as jnp
from jax.experimental import pallas as pl
from jax.experimental.pallas import tpu as pltpu

C_OUT = 16                       # conv1 output channels
KH = KW = 3                      # conv kernel size
H_IN, W_IN = 20, 10              # input spatial size implied by fc1 (16*9*4)
H_C, W_C = H_IN - 2, W_IN - 2    # 18, 8  (VALID conv)
H_P, W_P = H_C // 2, W_C // 2    # 9, 4   (2x2 max pool)
LANE = 128                       # TPU lane width; batch tile granularity


def _round_up(n, m):
    return ((n + m - 1) // m) * m


def prepare_params(params):
    """One-time weight re-layout (outside the forward; zero per-step cost)."""
    # conv1 weight [16,1,3,3] -> flat scalar table [144] (index c*9 + kh*3 + kw), SMEM.
    w1 = params["conv_w"].reshape(C_OUT * KH * KW).astype(jnp.float32)
    b1 = params["conv_b"].reshape(C_OUT).astype(jnp.float32)
    # fc1 weight [1,576] in PyTorch NCHW-flatten order -> [16,9,4] (c,h,w), then
    # zero-expanded along the W'=7 pairwise-max axis: entry 2w holds fcw[c,h,w],
    # odd entries are 0 so un-pooled neighbour columns never contribute.
    fcw = params["fc1_w"].reshape(C_OUT, H_P, W_P).astype(jnp.float32)       # [16,9,4]
    fcw_exp = jnp.zeros((C_OUT, H_P, W_C - 1), jnp.float32)
    fcw_exp = fcw_exp.at[:, :, 0::2].set(fcw)                                # [16,9,7]
    fcw_exp = fcw_exp[..., None]                                             # [16,9,7,1]
    fcb = params["fc1_b"].reshape(1).astype(jnp.float32)
    return {"w1": w1, "b1": b1, "fcw": fcw_exp, "fcb": fcb}


def _fused_kernel(x_ref, w1_ref, b1_ref, fcw_ref, fcb_ref, o_ref):
    # x_ref:  VMEM [20, 10, BT]   (batch on lanes)
    # w1_ref: SMEM [144]  b1_ref: SMEM [16]  fcb_ref: SMEM [1]
    # fcw_ref: VMEM [16, 9, 7, 1]
    # o_ref:  VMEM [1, BT]
    bt = x_ref.shape[-1]

    # 9 shifted conv input windows, hoisted once and shared by all 16 channels.
    # W shifts are memory-side (ref) slices; H shifts are free leading-dim slices.
    xw = [x_ref[:, dw:dw + W_C, :] for dw in range(KW)]            # 3 x [20, 8, BT]
    xs = [xw[dw][dh:dh + H_C] for dh in range(KH) for dw in range(KW)]  # 9 x [18,8,BT]

    fcw = fcw_ref[...]                                             # [16, 9, 7, 1]

    acc_fc = jnp.zeros((H_P, W_C - 1, bt), jnp.float32)            # [9, 7, BT]
    for c in range(C_OUT):
        # conv1: output-stationary 9-tap scalar*vector FMA chain on the VPU.
        base = c * KH * KW
        acc = xs[0] * w1_ref[base]
        for t in range(1, KH * KW):
            acc = acc + xs[t] * w1_ref[base + t]                   # [18, 8, BT]
        conv_c = jnp.maximum(acc + b1_ref[c], 0.0)                 # bias + relu

        # 2x2 max-pool, H direction: pure leading-dim reshape + max (no relayout).
        r = conv_c.reshape(H_P, 2, W_C, bt)
        m1 = jnp.maximum(r[:, 0], r[:, 1])                         # [9, 8, BT]

        # W-direction pool fused into fc1: pairwise max of W-shifted slabs;
        # the pre-zeroed fc weights pick only the valid (even) pair positions.
        pmax = jnp.maximum(m1[:, 0:W_C - 1, :], m1[:, 1:W_C, :])   # [9, 7, BT]
        acc_fc = acc_fc + pmax * fcw[c]                            # [9, 7, BT]

    # Reduce pooled rows (leading dim, unrolled VALU adds), then one cross-sublane
    # reduce over the 7-wide W' axis; output stays batch-on-lanes [1, BT].
    s = acc_fc[0]
    for h in range(1, H_P):
        s = s + acc_fc[h]                                          # [7, BT]
    z = jnp.sum(s, axis=0, keepdims=True) + fcb_ref[0]             # [1, BT]
    o_ref[...] = jax.nn.sigmoid(z)


def simple_cnn2_forward(x_nchw, prep, *, b_tile_max=512):
    """Fused forward. b_tile_max: batch tile (multiple of 128); 512 fits every
    TPU generation's scoped-VMEM default with headroom (raise vmem_limit_bytes
    via pltpu.CompilerParams only if you push it to 2048+)."""
    B, C, H, W = x_nchw.shape
    assert C == 1 and H == H_IN and W == W_IN
    assert b_tile_max % LANE == 0

    b_tile = min(_round_up(B, LANE), b_tile_max)
    b_pad = _round_up(B, b_tile)
    num_blocks = b_pad // b_tile

    # Layout plumbing in the wrapper: [B,1,20,10] -> [20,10,B_pad] (batch on lanes).
    x_t = jnp.transpose(x_nchw.reshape(B, H_IN, W_IN), (1, 2, 0)).astype(jnp.float32)
    x_t = jnp.pad(x_t, ((0, 0), (0, 0), (0, b_pad - B)))

    out = pl.pallas_call(
        _fused_kernel,
        out_shape=jax.ShapeDtypeStruct((1, b_pad), jnp.float32),
        grid=(num_blocks,),
        in_specs=[
            pl.BlockSpec((H_IN, W_IN, b_tile), lambda i: (0, 0, i)),      # x block
            pl.BlockSpec(memory_space=pltpu.MemorySpace.SMEM),            # w1 [144]
            pl.BlockSpec(memory_space=pltpu.MemorySpace.SMEM),            # b1 [16]
            pl.BlockSpec((C_OUT, H_P, W_C - 1, 1), lambda i: (0, 0, 0, 0)),  # fcw
            pl.BlockSpec(memory_space=pltpu.MemorySpace.SMEM),            # fcb [1]
        ],
        out_specs=pl.BlockSpec((1, b_tile), lambda i: (0, i)),
        compiler_params=pltpu.CompilerParams(
            dimension_semantics=("parallel",)),   # shards batch blocks on v7x megacore
    )(x_t, prep["w1"], prep["b1"], prep["fcw"], prep["fcb"])
    return out[0, :B].reshape(B, 1)


def reference_forward(x_nchw, params):
    """Pure-JAX (non-Pallas) reference in full f32 precision."""
    B = x_nchw.shape[0]
    y = jax.lax.conv_general_dilated(
        x_nchw, params["conv_w"], window_strides=(1, 1), padding="VALID",
        dimension_numbers=("NCHW", "OIHW", "NCHW"),
        precision=jax.lax.Precision.HIGHEST)
    y = jnp.maximum(y + params["conv_b"].reshape(1, C_OUT, 1, 1), 0.0)   # [B,16,18,8]
    y = y.reshape(B, C_OUT, H_P, 2, W_P, 2).max(axis=(3, 5))             # [B,16,9,4]
    flat = y.reshape(B, C_OUT * H_P * W_P)                               # NCHW flatten
    z = jnp.dot(flat, params["fc1_w"].T,
                precision=jax.lax.Precision.HIGHEST) + params["fc1_b"]
    return jax.nn.sigmoid(z)                                             # [B, 1]


def init_params(key):
    k1, k2, k3, k4 = jax.random.split(key, 4)
    return {
        "conv_w": 0.1 * jax.random.normal(k1, (C_OUT, 1, KH, KW), jnp.float32),
        "conv_b": 0.1 * jax.random.normal(k2, (C_OUT,), jnp.float32),
        "fc1_w": 0.05 * jax.random.normal(k3, (1, C_OUT * H_P * W_P), jnp.float32),
        "fc1_b": 0.05 * jax.random.normal(k4, (1,), jnp.float32),
    }


if __name__ == "__main__":
    key = jax.random.PRNGKey(0)
    kx, kp = jax.random.split(key)
    params = init_params(kp)
    prep = prepare_params(params)          # one-time weight re-layout

    # Small demo batch (B=2): single 128-lane block, grid=(1,).
    x = jax.random.normal(kx, (2, 1, H_IN, W_IN), jnp.float32)
    fwd = jax.jit(simple_cnn2_forward)
    out = jax.block_until_ready(fwd(x, prep))
    ref = jax.block_until_ready(reference_forward(x, params))
    assert out.shape == (2, 1)
    assert bool(jnp.all(jnp.isfinite(out)))
    assert bool(jnp.allclose(out, ref, rtol=1e-4, atol=1e-5)), (out, ref)

    # Multi-block path (batch grid axis + lane padding): B=200, B_TILE=128 -> grid=(2,).
    x2 = jax.random.normal(jax.random.PRNGKey(1), (200, 1, H_IN, W_IN), jnp.float32)
    fwd2 = jax.jit(lambda xx, pp: simple_cnn2_forward(xx, pp, b_tile_max=128))
    out2 = jax.block_until_ready(fwd2(x2, prep))
    ref2 = jax.block_until_ready(reference_forward(x2, params))
    assert out2.shape == (200, 1)
    assert bool(jnp.allclose(out2, ref2, rtol=1e-4, atol=1e-5))

    print("KERNEL_OK")
</pallas_src>

<mosaic_0001>
module attributes {stable_mosaic.version = 11 : i64} {
  func.func @_fused_kernel(%arg0: i32, %arg1: memref<20x10x128xf32, #tpu.memory_space<vmem>>, %arg2: memref<144xf32, #tpu.memory_space<smem>>, %arg3: memref<16xf32, #tpu.memory_space<smem>>, %arg4: memref<16x9x7x1xf32, #tpu.memory_space<vmem>>, %arg5: memref<1xf32, #tpu.memory_space<smem>>, %arg6: memref<1x128xf32, #tpu.memory_space<vmem>>) attributes {dimension_semantics = [#tpu.dimension_semantics<parallel>], iteration_bounds = array<i64: 1>, scalar_prefetch = 0 : i64, scratch_operands = 0 : i64, tpu.core_type = #tpu.core_type<tc>, window_params = [{transform_indices = @transform_0, window_bounds = array<i64: 20, 10, 128>}, {transform_indices = @transform_1, window_bounds = array<i64: 144>}, {transform_indices = @transform_2, window_bounds = array<i64: 16>}, {pipeline_mode = #tpu.pipeline_mode<synchronous>, transform_indices = @transform_3, window_bounds = array<i64: 16, 9, 7, 1>}, {transform_indices = @transform_4, window_bounds = array<i64: 1>}, {transform_indices = @transform_5, window_bounds = array<i64: 1, 128>}]} {
    %c0 = arith.constant 0 : index
    %c0_0 = arith.constant 0 : index
    %c0_1 = arith.constant 0 : index
    %0 = vector.load %arg1[%c0, %c0_0, %c0_1] : memref<20x10x128xf32, #tpu.memory_space<vmem>>, vector<20x8x128xf32>
    %c0_2 = arith.constant 0 : index
    %c1 = arith.constant 1 : index
    %c0_3 = arith.constant 0 : index
    %1 = vector.load %arg1[%c0_2, %c1, %c0_3] : memref<20x10x128xf32, #tpu.memory_space<vmem>>, vector<20x8x128xf32>
    %c0_4 = arith.constant 0 : index
    %c2 = arith.constant 2 : index
    %c0_5 = arith.constant 0 : index
    %2 = vector.load %arg1[%c0_4, %c2, %c0_5] : memref<20x10x128xf32, #tpu.memory_space<vmem>>, vector<20x8x128xf32>
    %3 = vector.extract_strided_slice %0 {offsets = [0, 0, 0], sizes = [18, 8, 128], strides = [1, 1, 1]} : vector<20x8x128xf32> to vector<18x8x128xf32>
    %4 = vector.extract_strided_slice %1 {offsets = [0, 0, 0], sizes = [18, 8, 128], strides = [1, 1, 1]} : vector<20x8x128xf32> to vector<18x8x128xf32>
    %5 = vector.extract_strided_slice %2 {offsets = [0, 0, 0], sizes = [18, 8, 128], strides = [1, 1, 1]} : vector<20x8x128xf32> to vector<18x8x128xf32>
    %6 = vector.extract_strided_slice %0 {offsets = [1, 0, 0], sizes = [18, 8, 128], strides = [1, 1, 1]} : vector<20x8x128xf32> to vector<18x8x128xf32>
    %7 = vector.extract_strided_slice %1 {offsets = [1, 0, 0], sizes = [18, 8, 128], strides = [1, 1, 1]} : vector<20x8x128xf32> to vector<18x8x128xf32>
    %8 = vector.extract_strided_slice %2 {offsets = [1, 0, 0], sizes = [18, 8, 128], strides = [1, 1, 1]} : vector<20x8x128xf32> to vector<18x8x128xf32>
    %9 = vector.extract_strided_slice %0 {offsets = [2, 0, 0], sizes = [18, 8, 128], strides = [1, 1, 1]} : vector<20x8x128xf32> to vector<18x8x128xf32>
    %10 = vector.extract_strided_slice %1 {offsets = [2, 0, 0], sizes = [18, 8, 128], strides = [1, 1, 1]} : vector<20x8x128xf32> to vector<18x8x128xf32>
    %11 = vector.extract_strided_slice %2 {offsets = [2, 0, 0], sizes = [18, 8, 128], strides = [1, 1, 1]} : vector<20x8x128xf32> to vector<18x8x128xf32>
    %c0_6 = arith.constant 0 : index
    %c0_7 = arith.constant 0 : index
    %c0_8 = arith.constant 0 : index
    %c0_9 = arith.constant 0 : index
    %12 = vector.load %arg4[%c0_6, %c0_7, %c0_8, %c0_9] : memref<16x9x7x1xf32, #tpu.memory_space<vmem>>, vector<16x9x7x1xf32>
    %cst = arith.constant 0.000000e+00 : f32
    %13 = vector.broadcast %cst : f32 to vector<9x7x128xf32>
    %c0_10 = arith.constant 0 : index
    %14 = memref.load %arg2[%c0_10] : memref<144xf32, #tpu.memory_space<smem>>
    %15 = vector.broadcast %14 : f32 to vector<18x8x128xf32>
    %16 = arith.mulf %3, %15 : vector<18x8x128xf32>
    %c1_11 = arith.constant 1 : index
    %17 = memref.load %arg2[%c1_11] : memref<144xf32, #tpu.memory_space<smem>>
    %18 = vector.broadcast %17 : f32 to vector<18x8x128xf32>
    %19 = arith.mulf %4, %18 : vector<18x8x128xf32>
    %20 = arith.addf %16, %19 : vector<18x8x128xf32>
    %c2_12 = arith.constant 2 : index
    %21 = memref.load %arg2[%c2_12] : memref<144xf32, #tpu.memory_space<smem>>
    %22 = vector.broadcast %21 : f32 to vector<18x8x128xf32>
    %23 = arith.mulf %5, %22 : vector<18x8x128xf32>
    %24 = arith.addf %20, %23 : vector<18x8x128xf32>
    %c3 = arith.constant 3 : index
    %25 = memref.load %arg2[%c3] : memref<144xf32, #tpu.memory_space<smem>>
    %26 = vector.broadcast %25 : f32 to vector<18x8x128xf32>
    %27 = arith.mulf %6, %26 : vector<18x8x128xf32>
    %28 = arith.addf %24, %27 : vector<18x8x128xf32>
    %c4 = arith.constant 4 : index
    %29 = memref.load %arg2[%c4] : memref<144xf32, #tpu.memory_space<smem>>
    %30 = vector.broadcast %29 : f32 to vector<18x8x128xf32>
    %31 = arith.mulf %7, %30 : vector<18x8x128xf32>
    %32 = arith.addf %28, %31 : vector<18x8x128xf32>
    %c5 = arith.constant 5 : index
    %33 = memref.load %arg2[%c5] : memref<144xf32, #tpu.memory_space<smem>>
    %34 = vector.broadcast %33 : f32 to vector<18x8x128xf32>
    %35 = arith.mulf %8, %34 : vector<18x8x128xf32>
    %36 = arith.addf %32, %35 : vector<18x8x128xf32>
    %c6 = arith.constant 6 : index
    %37 = memref.load %arg2[%c6] : memref<144xf32, #tpu.memory_space<smem>>
    %38 = vector.broadcast %37 : f32 to vector<18x8x128xf32>
    %39 = arith.mulf %9, %38 : vector<18x8x128xf32>
    %40 = arith.addf %36, %39 : vector<18x8x128xf32>
    %c7 = arith.constant 7 : index
    %41 = memref.load %arg2[%c7] : memref<144xf32, #tpu.memory_space<smem>>
    %42 = vector.broadcast %41 : f32 to vector<18x8x128xf32>
    %43 = arith.mulf %10, %42 : vector<18x8x128xf32>
    %44 = arith.addf %40, %43 : vector<18x8x128xf32>
    %c8 = arith.constant 8 : index
    %45 = memref.load %arg2[%c8] : memref<144xf32, #tpu.memory_space<smem>>
    %46 = vector.broadcast %45 : f32 to vector<18x8x128xf32>
    %47 = arith.mulf %11, %46 : vector<18x8x128xf32>
    %48 = arith.addf %44, %47 : vector<18x8x128xf32>
    %c0_13 = arith.constant 0 : index
    %49 = memref.load %arg3[%c0_13] : memref<16xf32, #tpu.memory_space<smem>>
    %50 = vector.broadcast %49 : f32 to vector<18x8x128xf32>
    %51 = arith.addf %48, %50 : vector<18x8x128xf32>
    %cst_14 = arith.constant 0.000000e+00 : f32
    %52 = vector.broadcast %cst_14 : f32 to vector<18x8x128xf32>
    %53 = arith.maximumf %51, %52 : vector<18x8x128xf32>
    %54 = vector.shape_cast %53 : vector<18x8x128xf32> to vector<9x2x8x128xf32>
    %55 = vector.extract_strided_slice %54 {offsets = [0, 0, 0, 0], sizes = [9, 1, 8, 128], strides = [1, 1, 1, 1]} : vector<9x2x8x128xf32> to vector<9x1x8x128xf32>
    %56 = vector.shape_cast %55 : vector<9x1x8x128xf32> to vector<9x8x128xf32>
    %57 = vector.extract_strided_slice %54 {offsets = [0, 1, 0, 0], sizes = [9, 1, 8, 128], strides = [1, 1, 1, 1]} : vector<9x2x8x128xf32> to vector<9x1x8x128xf32>
    %58 = vector.shape_cast %57 : vector<9x1x8x128xf32> to vector<9x8x128xf32>
    %59 = arith.maximumf %56, %58 : vector<9x8x128xf32>
    %60 = vector.extract_strided_slice %59 {offsets = [0, 0, 0], sizes = [9, 7, 128], strides = [1, 1, 1]} : vector<9x8x128xf32> to vector<9x7x128xf32>
    %61 = vector.extract_strided_slice %59 {offsets = [0, 1, 0], sizes = [9, 7, 128], strides = [1, 1, 1]} : vector<9x8x128xf32> to vector<9x7x128xf32>
    %62 = arith.maximumf %60, %61 : vector<9x7x128xf32>
    %63 = vector.extract_strided_slice %12 {offsets = [0, 0, 0, 0], sizes = [1, 9, 7, 1], strides = [1, 1, 1, 1]} : vector<16x9x7x1xf32> to vector<1x9x7x1xf32>
    %64 = vector.shape_cast %63 : vector<1x9x7x1xf32> to vector<9x7x1xf32>
    %65 = vector.broadcast %64 : vector<9x7x1xf32> to vector<9x7x128xf32>
    %66 = arith.mulf %62, %65 : vector<9x7x128xf32>
    %67 = arith.addf %13, %66 : vector<9x7x128xf32>
    %c9 = arith.constant 9 : index
    %68 = memref.load %arg2[%c9] : memref<144xf32, #tpu.memory_space<smem>>
    %69 = vector.broadcast %68 : f32 to vector<18x8x128xf32>
    %70 = arith.mulf %3, %69 : vector<18x8x128xf32>
    %c10 = arith.constant 10 : index
    %71 = memref.load %arg2[%c10] : memref<144xf32, #tpu.memory_space<smem>>
    %72 = vector.broadcast %71 : f32 to vector<18x8x128xf32>
    %73 = arith.mulf %4, %72 : vector<18x8x128xf32>
    %74 = arith.addf %70, %73 : vector<18x8x128xf32>
    %c11 = arith.constant 11 : index
    %75 = memref.load %arg2[%c11] : memref<144xf32, #tpu.memory_space<smem>>
    %76 = vector.broadcast %75 : f32 to vector<18x8x128xf32>
    %77 = arith.mulf %5, %76 : vector<18x8x128xf32>
    %78 = arith.addf %74, %77 : vector<18x8x128xf32>
    %c12 = arith.constant 12 : index
    %79 = memref.load %arg2[%c12] : memref<144xf32, #tpu.memory_space<smem>>
    %80 = vector.broadcast %79 : f32 to vector<18x8x128xf32>
    %81 = arith.mulf %6, %80 : vector<18x8x128xf32>
    %82 = arith.addf %78, %81 : vector<18x8x128xf32>
    %c13 = arith.constant 13 : index
    %83 = memref.load %arg2[%c13] : memref<144xf32, #tpu.memory_space<smem>>
    %84 = vector.broadcast %83 : f32 to vector<18x8x128xf32>
    %85 = arith.mulf %7, %84 : vector<18x8x128xf32>
    %86 = arith.addf %82, %85 : vector<18x8x128xf32>
    %c14 = arith.constant 14 : index
    %87 = memref.load %arg2[%c14] : memref<144xf32, #tpu.memory_space<smem>>
    %88 = vector.broadcast %87 : f32 to vector<18x8x128xf32>
    %89 = arith.mulf %8, %88 : vector<18x8x128xf32>
    %90 = arith.addf %86, %89 : vector<18x8x128xf32>
    %c15 = arith.constant 15 : index
    %91 = memref.load %arg2[%c15] : memref<144xf32, #tpu.memory_space<smem>>
    %92 = vector.broadcast %91 : f32 to vector<18x8x128xf32>
    %93 = arith.mulf %9, %92 : vector<18x8x128xf32>
    %94 = arith.addf %90, %93 : vector<18x8x128xf32>
    %c16 = arith.constant 16 : index
    %95 = memref.load %arg2[%c16] : memref<144xf32, #tpu.memory_space<smem>>
    %96 = vector.broadcast %95 : f32 to vector<18x8x128xf32>
    %97 = arith.mulf %10, %96 : vector<18x8x128xf32>
    %98 = arith.addf %94, %97 : vector<18x8x128xf32>
    %c17 = arith.constant 17 : index
    %99 = memref.load %arg2[%c17] : memref<144xf32, #tpu.memory_space<smem>>
    %100 = vector.broadcast %99 : f32 to vector<18x8x128xf32>
    %101 = arith.mulf %11, %100 : vector<18x8x128xf32>
    %102 = arith.addf %98, %101 : vector<18x8x128xf32>
    %c1_15 = arith.constant 1 : index
    %103 = memref.load %arg3[%c1_15] : memref<16xf32, #tpu.memory_space<smem>>
    %104 = vector.broadcast %103 : f32 to vector<18x8x128xf32>
    %105 = arith.addf %102, %104 : vector<18x8x128xf32>
    %cst_16 = arith.constant 0.000000e+00 : f32
    %106 = vector.broadcast %cst_16 : f32 to vector<18x8x128xf32>
    %107 = arith.maximumf %105, %106 : vector<18x8x128xf32>
    %108 = vector.shape_cast %107 : vector<18x8x128xf32> to vector<9x2x8x128xf32>
    %109 = vector.extract_strided_slice %108 {offsets = [0, 0, 0, 0], sizes = [9, 1, 8, 128], strides = [1, 1, 1, 1]} : vector<9x2x8x128xf32> to vector<9x1x8x128xf32>
    %110 = vector.shape_cast %109 : vector<9x1x8x128xf32> to vector<9x8x128xf32>
    %111 = vector.extract_strided_slice %108 {offsets = [0, 1, 0, 0], sizes = [9, 1, 8, 128], strides = [1, 1, 1, 1]} : vector<9x2x8x128xf32> to vector<9x1x8x128xf32>
    %112 = vector.shape_cast %111 : vector<9x1x8x128xf32> to vector<9x8x128xf32>
    %113 = arith.maximumf %110, %112 : vector<9x8x128xf32>
    %114 = vector.extract_strided_slice %113 {offsets = [0, 0, 0], sizes = [9, 7, 128], strides = [1, 1, 1]} : vector<9x8x128xf32> to vector<9x7x128xf32>
    %115 = vector.extract_strided_slice %113 {offsets = [0, 1, 0], sizes = [9, 7, 128], strides = [1, 1, 1]} : vector<9x8x128xf32> to vector<9x7x128xf32>
    %116 = arith.maximumf %114, %115 : vector<9x7x128xf32>
    %117 = vector.extract_strided_slice %12 {offsets = [1, 0, 0, 0], sizes = [1, 9, 7, 1], strides = [1, 1, 1, 1]} : vector<16x9x7x1xf32> to vector<1x9x7x1xf32>
    %118 = vector.shape_cast %117 : vector<1x9x7x1xf32> to vector<9x7x1xf32>
    %119 = vector.broadcast %118 : vector<9x7x1xf32> to vector<9x7x128xf32>
    %120 = arith.mulf %116, %119 : vector<9x7x128xf32>
    %121 = arith.addf %67, %120 : vector<9x7x128xf32>
    %c18 = arith.constant 18 : index
    %122 = memref.load %arg2[%c18] : memref<144xf32, #tpu.memory_space<smem>>
    %123 = vector.broadcast %122 : f32 to vector<18x8x128xf32>
    %124 = arith.mulf %3, %123 : vector<18x8x128xf32>
    %c19 = arith.constant 19 : index
    %125 = memref.load %arg2[%c19] : memref<144xf32, #tpu.memory_space<smem>>
    %126 = vector.broadcast %125 : f32 to vector<18x8x128xf32>
    %127 = arith.mulf %4, %126 : vector<18x8x128xf32>
    %128 = arith.addf %124, %127 : vector<18x8x128xf32>
    %c20 = arith.constant 20 : index
    %129 = memref.load %arg2[%c20] : memref<144xf32, #tpu.memory_space<smem>>
    %130 = vector.broadcast %129 : f32 to vector<18x8x128xf32>
    %131 = arith.mulf %5, %130 : vector<18x8x128xf32>
    %132 = arith.addf %128, %131 : vector<18x8x128xf32>
    %c21 = arith.constant 21 : index
    %133 = memref.load %arg2[%c21] : memref<144xf32, #tpu.memory_space<smem>>
    %134 = vector.broadcast %133 : f32 to vector<18x8x128xf32>
    %135 = arith.mulf %6, %134 : vector<18x8x128xf32>
    %136 = arith.addf %132, %135 : vector<18x8x128xf32>
    %c22 = arith.constant 22 : index
    %137 = memref.load %arg2[%c22] : memref<144xf32, #tpu.memory_space<smem>>
    %138 = vector.broadcast %137 : f32 to vector<18x8x128xf32>
    %139 = arith.mulf %7, %138 : vector<18x8x128xf32>
    %140 = arith.addf %136, %139 : vector<18x8x128xf32>
    %c23 = arith.constant 23 : index
    %141 = memref.load %arg2[%c23] : memref<144xf32, #tpu.memory_space<smem>>
    %142 = vector.broadcast %141 : f32 to vector<18x8x128xf32>
    %143 = arith.mulf %8, %142 : vector<18x8x128xf32>
    %144 = arith.addf %140, %143 : vector<18x8x128xf32>
    %c24 = arith.constant 24 : index
    %145 = memref.load %arg2[%c24] : memref<144xf32, #tpu.memory_space<smem>>
    %146 = vector.broadcast %145 : f32 to vector<18x8x128xf32>
    %147 = arith.mulf %9, %146 : vector<18x8x128xf32>
    %148 = arith.addf %144, %147 : vector<18x8x128xf32>
    %c25 = arith.constant 25 : index
    %149 = memref.load %arg2[%c25] : memref<144xf32, #tpu.memory_space<smem>>
    %150 = vector.broadcast %149 : f32 to vector<18x8x128xf32>
    %151 = arith.mulf %10, %150 : vector<18x8x128xf32>
    %152 = arith.addf %148, %151 : vector<18x8x128xf32>
    %c26 = arith.constant 26 : index
    %153 = memref.load %arg2[%c26] : memref<144xf32, #tpu.memory_space<smem>>
    %154 = vector.broadcast %153 : f32 to vector<18x8x128xf32>
    %155 = arith.mulf %11, %154 : vector<18x8x128xf32>
    %156 = arith.addf %152, %155 : vector<18x8x128xf32>
    %c2_17 = arith.constant 2 : index
    %157 = memref.load %arg3[%c2_17] : memref<16xf32, #tpu.memory_space<smem>>
    %158 = vector.broadcast %157 : f32 to vector<18x8x128xf32>
    %159 = arith.addf %156, %158 : vector<18x8x128xf32>
    %cst_18 = arith.constant 0.000000e+00 : f32
    %160 = vector.broadcast %cst_18 : f32 to vector<18x8x128xf32>
    %161 = arith.maximumf %159, %160 : vector<18x8x128xf32>
    %162 = vector.shape_cast %161 : vector<18x8x128xf32> to vector<9x2x8x128xf32>
    %163 = vector.extract_strided_slice %162 {offsets = [0, 0, 0, 0], sizes = [9, 1, 8, 128], strides = [1, 1, 1, 1]} : vector<9x2x8x128xf32> to vector<9x1x8x128xf32>
    %164 = vector.shape_cast %163 : vector<9x1x8x128xf32> to vector<9x8x128xf32>
    %165 = vector.extract_strided_slice %162 {offsets = [0, 1, 0, 0], sizes = [9, 1, 8, 128], strides = [1, 1, 1, 1]} : vector<9x2x8x128xf32> to vector<9x1x8x128xf32>
    %166 = vector.shape_cast %165 : vector<9x1x8x128xf32> to vector<9x8x128xf32>
    %167 = arith.maximumf %164, %166 : vector<9x8x128xf32>
    %168 = vector.extract_strided_slice %167 {offsets = [0, 0, 0], sizes = [9, 7, 128], strides = [1, 1, 1]} : vector<9x8x128xf32> to vector<9x7x128xf32>
    %169 = vector.extract_strided_slice %167 {offsets = [0, 1, 0], sizes = [9, 7, 128], strides = [1, 1, 1]} : vector<9x8x128xf32> to vector<9x7x128xf32>
    %170 = arith.maximumf %168, %169 : vector<9x7x128xf32>
    %171 = vector.extract_strided_slice %12 {offsets = [2, 0, 0, 0], sizes = [1, 9, 7, 1], strides = [1, 1, 1, 1]} : vector<16x9x7x1xf32> to vector<1x9x7x1xf32>
    %172 = vector.shape_cast %171 : vector<1x9x7x1xf32> to vector<9x7x1xf32>
    %173 = vector.broadcast %172 : vector<9x7x1xf32> to vector<9x7x128xf32>
    %174 = arith.mulf %170, %173 : vector<9x7x128xf32>
    %175 = arith.addf %121, %174 : vector<9x7x128xf32>
    %c27 = arith.constant 27 : index
    %176 = memref.load %arg2[%c27] : memref<144xf32, #tpu.memory_space<smem>>
    %177 = vector.broadcast %176 : f32 to vector<18x8x128xf32>
    %178 = arith.mulf %3, %177 : vector<18x8x128xf32>
    %c28 = arith.constant 28 : index
    %179 = memref.load %arg2[%c28] : memref<144xf32, #tpu.memory_space<smem>>
    %180 = vector.broadcast %179 : f32 to vector<18x8x128xf32>
    %181 = arith.mulf %4, %180 : vector<18x8x128xf32>
    %182 = arith.addf %178, %181 : vector<18x8x128xf32>
    %c29 = arith.constant 29 : index
    %183 = memref.load %arg2[%c29] : memref<144xf32, #tpu.memory_space<smem>>
    %184 = vector.broadcast %183 : f32 to vector<18x8x128xf32>
    %185 = arith.mulf %5, %184 : vector<18x8x128xf32>
    %186 = arith.addf %182, %185 : vector<18x8x128xf32>
    %c30 = arith.constant 30 : index
    %187 = memref.load %arg2[%c30] : memref<144xf32, #tpu.memory_space<smem>>
    %188 = vector.broadcast %187 : f32 to vector<18x8x128xf32>
    %189 = arith.mulf %6, %188 : vector<18x8x128xf32>
    %190 = arith.addf %186, %189 : vector<18x8x128xf32>
    %c31 = arith.constant 31 : index
    %191 = memref.load %arg2[%c31] : memref<144xf32, #tpu.memory_space<smem>>
    %192 = vector.broadcast %191 : f32 to vector<18x8x128xf32>
    %193 = arith.mulf %7, %192 : vector<18x8x128xf32>
    %194 = arith.addf %190, %193 : vector<18x8x128xf32>
    %c32 = arith.constant 32 : index
    %195 = memref.load %arg2[%c32] : memref<144xf32, #tpu.memory_space<smem>>
    %196 = vector.broadcast %195 : f32 to vector<18x8x128xf32>
    %197 = arith.mulf %8, %196 : vector<18x8x128xf32>
    %198 = arith.addf %194, %197 : vector<18x8x128xf32>
    %c33 = arith.constant 33 : index
    %199 = memref.load %arg2[%c33] : memref<144xf32, #tpu.memory_space<smem>>
    %200 = vector.broadcast %199 : f32 to vector<18x8x128xf32>
    %201 = arith.mulf %9, %200 : vector<18x8x128xf32>
    %202 = arith.addf %198, %201 : vector<18x8x128xf32>
    %c34 = arith.constant 34 : index
    %203 = memref.load %arg2[%c34] : memref<144xf32, #tpu.memory_space<smem>>
    %204 = vector.broadcast %203 : f32 to vector<18x8x128xf32>
    %205 = arith.mulf %10, %204 : vector<18x8x128xf32>
    %206 = arith.addf %202, %205 : vector<18x8x128xf32>
    %c35 = arith.constant 35 : index
    %207 = memref.load %arg2[%c35] : memref<144xf32, #tpu.memory_space<smem>>
    %208 = vector.broadcast %207 : f32 to vector<18x8x128xf32>
    %209 = arith.mulf %11, %208 : vector<18x8x128xf32>
    %210 = arith.addf %206, %209 : vector<18x8x128xf32>
    %c3_19 = arith.constant 3 : index
    %211 = memref.load %arg3[%c3_19] : memref<16xf32, #tpu.memory_space<smem>>
    %212 = vector.broadcast %211 : f32 to vector<18x8x128xf32>
    %213 = arith.addf %210, %212 : vector<18x8x128xf32>
    %cst_20 = arith.constant 0.000000e+00 : f32
    %214 = vector.broadcast %cst_20 : f32 to vector<18x8x128xf32>
    %215 = arith.maximumf %213, %214 : vector<18x8x128xf32>
    %216 = vector.shape_cast %215 : vector<18x8x128xf32> to vector<9x2x8x128xf32>
    %217 = vector.extract_strided_slice %216 {offsets = [0, 0, 0, 0], sizes = [9, 1, 8, 128], strides = [1, 1, 1, 1]} : vector<9x2x8x128xf32> to vector<9x1x8x128xf32>
    %218 = vector.shape_cast %217 : vector<9x1x8x128xf32> to vector<9x8x128xf32>
    %219 = vector.extract_strided_slice %216 {offsets = [0, 1, 0, 0], sizes = [9, 1, 8, 128], strides = [1, 1, 1, 1]} : vector<9x2x8x128xf32> to vector<9x1x8x128xf32>
    %220 = vector.shape_cast %219 : vector<9x1x8x128xf32> to vector<9x8x128xf32>
    %221 = arith.maximumf %218, %220 : vector<9x8x128xf32>
    %222 = vector.extract_strided_slice %221 {offsets = [0, 0, 0], sizes = [9, 7, 128], strides = [1, 1, 1]} : vector<9x8x128xf32> to vector<9x7x128xf32>
    %223 = vector.extract_strided_slice %221 {offsets = [0, 1, 0], sizes = [9, 7, 128], strides = [1, 1, 1]} : vector<9x8x128xf32> to vector<9x7x128xf32>
    %224 = arith.maximumf %222, %223 : vector<9x7x128xf32>
    %225 = vector.extract_strided_slice %12 {offsets = [3, 0, 0, 0], sizes = [1, 9, 7, 1], strides = [1, 1, 1, 1]} : vector<16x9x7x1xf32> to vector<1x9x7x1xf32>
    %226 = vector.shape_cast %225 : vector<1x9x7x1xf32> to vector<9x7x1xf32>
    %227 = vector.broadcast %226 : vector<9x7x1xf32> to vector<9x7x128xf32>
    %228 = arith.mulf %224, %227 : vector<9x7x128xf32>
    %229 = arith.addf %175, %228 : vector<9x7x128xf32>
    %c36 = arith.constant 36 : index
    %230 = memref.load %arg2[%c36] : memref<144xf32, #tpu.memory_space<smem>>
    %231 = vector.broadcast %230 : f32 to vector<18x8x128xf32>
    %232 = arith.mulf %3, %231 : vector<18x8x128xf32>
    %c37 = arith.constant 37 : index
    %233 = memref.load %arg2[%c37] : memref<144xf32, #tpu.memory_space<smem>>
    %234 = vector.broadcast %233 : f32 to vector<18x8x128xf32>
    %235 = arith.mulf %4, %234 : vector<18x8x128xf32>
    %236 = arith.addf %232, %235 : vector<18x8x128xf32>
    %c38 = arith.constant 38 : index
    %237 = memref.load %arg2[%c38] : memref<144xf32, #tpu.memory_space<smem>>
    %238 = vector.broadcast %237 : f32 to vector<18x8x128xf32>
    %239 = arith.mulf %5, %238 : vector<18x8x128xf32>
    %240 = arith.addf %236, %239 : vector<18x8x128xf32>
    %c39 = arith.constant 39 : index
    %241 = memref.load %arg2[%c39] : memref<144xf32, #tpu.memory_space<smem>>
    %242 = vector.broadcast %241 : f32 to vector<18x8x128xf32>
    %243 = arith.mulf %6, %242 : vector<18x8x128xf32>
    %244 = arith.addf %240, %243 : vector<18x8x128xf32>
    %c40 = arith.constant 40 : index
    %245 = memref.load %arg2[%c40] : memref<144xf32, #tpu.memory_space<smem>>
    %246 = vector.broadcast %245 : f32 to vector<18x8x128xf32>
    %247 = arith.mulf %7, %246 : vector<18x8x128xf32>
    %248 = arith.addf %244, %247 : vector<18x8x128xf32>
    %c41 = arith.constant 41 : index
    %249 = memref.load %arg2[%c41] : memref<144xf32, #tpu.memory_space<smem>>
    %250 = vector.broadcast %249 : f32 to vector<18x8x128xf32>
    %251 = arith.mulf %8, %250 : vector<18x8x128xf32>
    %252 = arith.addf %248, %251 : vector<18x8x128xf32>
    %c42 = arith.constant 42 : index
    %253 = memref.load %arg2[%c42] : memref<144xf32, #tpu.memory_space<smem>>
    %254 = vector.broadcast %253 : f32 to vector<18x8x128xf32>
    %255 = arith.mulf %9, %254 : vector<18x8x128xf32>
    %256 = arith.addf %252, %255 : vector<18x8x128xf32>
    %c43 = arith.constant 43 : index
    %257 = memref.load %arg2[%c43] : memref<144xf32, #tpu.memory_space<smem>>
    %258 = vector.broadcast %257 : f32 to vector<18x8x128xf32>
    %259 = arith.mulf %10, %258 : vector<18x8x128xf32>
    %260 = arith.addf %256, %259 : vector<18x8x128xf32>
    %c44 = arith.constant 44 : index
    %261 = memref.load %arg2[%c44] : memref<144xf32, #tpu.memory_space<smem>>
    %262 = vector.broadcast %261 : f32 to vector<18x8x128xf32>
    %263 = arith.mulf %11, %262 : vector<18x8x128xf32>
    %264 = arith.addf %260, %263 : vector<18x8x128xf32>
    %c4_21 = arith.constant 4 : index
    %265 = memref.load %arg3[%c4_21] : memref<16xf32, #tpu.memory_space<smem>>
    %266 = vector.broadcast %265 : f32 to vector<18x8x128xf32>
    %267 = arith.addf %264, %266 : vector<18x8x128xf32>
    %cst_22 = arith.constant 0.000000e+00 : f32
    %268 = vector.broadcast %cst_22 : f32 to vector<18x8x128xf32>
    %269 = arith.maximumf %267, %268 : vector<18x8x128xf32>
    %270 = vector.shape_cast %269 : vector<18x8x128xf32> to vector<9x2x8x128xf32>
    %271 = vector.extract_strided_slice %270 {offsets = [0, 0, 0, 0], sizes = [9, 1, 8, 128], strides = [1, 1, 1, 1]} : vector<9x2x8x128xf32> to vector<9x1x8x128xf32>
    %272 = vector.shape_cast %271 : vector<9x1x8x128xf32> to vector<9x8x128xf32>
    %273 = vector.extract_strided_slice %270 {offsets = [0, 1, 0, 0], sizes = [9, 1, 8, 128], strides = [1, 1, 1, 1]} : vector<9x2x8x128xf32> to vector<9x1x8x128xf32>
    %274 = vector.shape_cast %273 : vector<9x1x8x128xf32> to vector<9x8x128xf32>
    %275 = arith.maximumf %272, %274 : vector<9x8x128xf32>
    %276 = vector.extract_strided_slice %275 {offsets = [0, 0, 0], sizes = [9, 7, 128], strides = [1, 1, 1]} : vector<9x8x128xf32> to vector<9x7x128xf32>
    %277 = vector.extract_strided_slice %275 {offsets = [0, 1, 0], sizes = [9, 7, 128], strides = [1, 1, 1]} : vector<9x8x128xf32> to vector<9x7x128xf32>
    %278 = arith.maximumf %276, %277 : vector<9x7x128xf32>
    %279 = vector.extract_strided_slice %12 {offsets = [4, 0, 0, 0], sizes = [1, 9, 7, 1], strides = [1, 1, 1, 1]} : vector<16x9x7x1xf32> to vector<1x9x7x1xf32>
    %280 = vector.shape_cast %279 : vector<1x9x7x1xf32> to vector<9x7x1xf32>
    %281 = vector.broadcast %280 : vector<9x7x1xf32> to vector<9x7x128xf32>
    %282 = arith.mulf %278, %281 : vector<9x7x128xf32>
    %283 = arith.addf %229, %282 : vector<9x7x128xf32>
    %c45 = arith.constant 45 : index
    %284 = memref.load %arg2[%c45] : memref<144xf32, #tpu.memory_space<smem>>
    %285 = vector.broadcast %284 : f32 to vector<18x8x128xf32>
    %286 = arith.mulf %3, %285 : vector<18x8x128xf32>
    %c46 = arith.constant 46 : index
    %287 = memref.load %arg2[%c46] : memref<144xf32, #tpu.memory_space<smem>>
    %288 = vector.broadcast %287 : f32 to vector<18x8x128xf32>
    %289 = arith.mulf %4, %288 : vector<18x8x128xf32>
    %290 = arith.addf %286, %289 : vector<18x8x128xf32>
    %c47 = arith.constant 47 : index
    %291 = memref.load %arg2[%c47] : memref<144xf32, #tpu.memory_space<smem>>
    %292 = vector.broadcast %291 : f32 to vector<18x8x128xf32>
    %293 = arith.mulf %5, %292 : vector<18x8x128xf32>
    %294 = arith.addf %290, %293 : vector<18x8x128xf32>
    %c48 = arith.constant 48 : index
    %295 = memref.load %arg2[%c48] : memref<144xf32, #tpu.memory_space<smem>>
    %296 = vector.broadcast %295 : f32 to vector<18x8x128xf32>
    %297 = arith.mulf %6, %296 : vector<18x8x128xf32>
    %298 = arith.addf %294, %297 : vector<18x8x128xf32>
    %c49 = arith.constant 49 : index
    %299 = memref.load %arg2[%c49] : memref<144xf32, #tpu.memory_space<smem>>
    %300 = vector.broadcast %299 : f32 to vector<18x8x128xf32>
    %301 = arith.mulf %7, %300 : vector<18x8x128xf32>
    %302 = arith.addf %298, %301 : vector<18x8x128xf32>
    %c50 = arith.constant 50 : index
    %303 = memref.load %arg2[%c50] : memref<144xf32, #tpu.memory_space<smem>>
    %304 = vector.broadcast %303 : f32 to vector<18x8x128xf32>
    %305 = arith.mulf %8, %304 : vector<18x8x128xf32>
    %306 = arith.addf %302, %305 : vector<18x8x128xf32>
    %c51 = arith.constant 51 : index
    %307 = memref.load %arg2[%c51] : memref<144xf32, #tpu.memory_space<smem>>
    %308 = vector.broadcast %307 : f32 to vector<18x8x128xf32>
    %309 = arith.mulf %9, %308 : vector<18x8x128xf32>
    %310 = arith.addf %306, %309 : vector<18x8x128xf32>
    %c52 = arith.constant 52 : index
    %311 = memref.load %arg2[%c52] : memref<144xf32, #tpu.memory_space<smem>>
    %312 = vector.broadcast %311 : f32 to vector<18x8x128xf32>
    %313 = arith.mulf %10, %312 : vector<18x8x128xf32>
    %314 = arith.addf %310, %313 : vector<18x8x128xf32>
    %c53 = arith.constant 53 : index
    %315 = memref.load %arg2[%c53] : memref<144xf32, #tpu.memory_space<smem>>
    %316 = vector.broadcast %315 : f32 to vector<18x8x128xf32>
    %317 = arith.mulf %11, %316 : vector<18x8x128xf32>
    %318 = arith.addf %314, %317 : vector<18x8x128xf32>
    %c5_23 = arith.constant 5 : index
    %319 = memref.load %arg3[%c5_23] : memref<16xf32, #tpu.memory_space<smem>>
    %320 = vector.broadcast %319 : f32 to vector<18x8x128xf32>
    %321 = arith.addf %318, %320 : vector<18x8x128xf32>
    %cst_24 = arith.constant 0.000000e+00 : f32
    %322 = vector.broadcast %cst_24 : f32 to vector<18x8x128xf32>
    %323 = arith.maximumf %321, %322 : vector<18x8x128xf32>
    %324 = vector.shape_cast %323 : vector<18x8x128xf32> to vector<9x2x8x128xf32>
    %325 = vector.extract_strided_slice %324 {offsets = [0, 0, 0, 0], sizes = [9, 1, 8, 128], strides = [1, 1, 1, 1]} : vector<9x2x8x128xf32> to vector<9x1x8x128xf32>
    %326 = vector.shape_cast %325 : vector<9x1x8x128xf32> to vector<9x8x128xf32>
    %327 = vector.extract_strided_slice %324 {offsets = [0, 1, 0, 0], sizes = [9, 1, 8, 128], strides = [1, 1, 1, 1]} : vector<9x2x8x128xf32> to vector<9x1x8x128xf32>
    %328 = vector.shape_cast %327 : vector<9x1x8x128xf32> to vector<9x8x128xf32>
    %329 = arith.maximumf %326, %328 : vector<9x8x128xf32>
    %330 = vector.extract_strided_slice %329 {offsets = [0, 0, 0], sizes = [9, 7, 128], strides = [1, 1, 1]} : vector<9x8x128xf32> to vector<9x7x128xf32>
    %331 = vector.extract_strided_slice %329 {offsets = [0, 1, 0], sizes = [9, 7, 128], strides = [1, 1, 1]} : vector<9x8x128xf32> to vector<9x7x128xf32>
    %332 = arith.maximumf %330, %331 : vector<9x7x128xf32>
    %333 = vector.extract_strided_slice %12 {offsets = [5, 0, 0, 0], sizes = [1, 9, 7, 1], strides = [1, 1, 1, 1]} : vector<16x9x7x1xf32> to vector<1x9x7x1xf32>
    %334 = vector.shape_cast %333 : vector<1x9x7x1xf32> to vector<9x7x1xf32>
    %335 = vector.broadcast %334 : vector<9x7x1xf32> to vector<9x7x128xf32>
    %336 = arith.mulf %332, %335 : vector<9x7x128xf32>
    %337 = arith.addf %283, %336 : vector<9x7x128xf32>
    %c54 = arith.constant 54 : index
    %338 = memref.load %arg2[%c54] : memref<144xf32, #tpu.memory_space<smem>>
    %339 = vector.broadcast %338 : f32 to vector<18x8x128xf32>
    %340 = arith.mulf %3, %339 : vector<18x8x128xf32>
    %c55 = arith.constant 55 : index
    %341 = memref.load %arg2[%c55] : memref<144xf32, #tpu.memory_space<smem>>
    %342 = vector.broadcast %341 : f32 to vector<18x8x128xf32>
    %343 = arith.mulf %4, %342 : vector<18x8x128xf32>
    %344 = arith.addf %340, %343 : vector<18x8x128xf32>
    %c56 = arith.constant 56 : index
    %345 = memref.load %arg2[%c56] : memref<144xf32, #tpu.memory_space<smem>>
    %346 = vector.broadcast %345 : f32 to vector<18x8x128xf32>
    %347 = arith.mulf %5, %346 : vector<18x8x128xf32>
    %348 = arith.addf %344, %347 : vector<18x8x128xf32>
    %c57 = arith.constant 57 : index
    %349 = memref.load %arg2[%c57] : memref<144xf32, #tpu.memory_space<smem>>
    %350 = vector.broadcast %349 : f32 to vector<18x8x128xf32>
    %351 = arith.mulf %6, %350 : vector<18x8x128xf32>
    %352 = arith.addf %348, %351 : vector<18x8x128xf32>
    %c58 = arith.constant 58 : index
    %353 = memref.load %arg2[%c58] : memref<144xf32, #tpu.memory_space<smem>>
    %354 = vector.broadcast %353 : f32 to vector<18x8x128xf32>
    %355 = arith.mulf %7, %354 : vector<18x8x128xf32>
    %356 = arith.addf %352, %355 : vector<18x8x128xf32>
    %c59 = arith.constant 59 : index
    %357 = memref.load %arg2[%c59] : memref<144xf32, #tpu.memory_space<smem>>
    %358 = vector.broadcast %357 : f32 to vector<18x8x128xf32>
    %359 = arith.mulf %8, %358 : vector<18x8x128xf32>
    %360 = arith.addf %356, %359 : vector<18x8x128xf32>
    %c60 = arith.constant 60 : index
    %361 = memref.load %arg2[%c60] : memref<144xf32, #tpu.memory_space<smem>>
    %362 = vector.broadcast %361 : f32 to vector<18x8x128xf32>
    %363 = arith.mulf %9, %362 : vector<18x8x128xf32>
    %364 = arith.addf %360, %363 : vector<18x8x128xf32>
    %c61 = arith.constant 61 : index
    %365 = memref.load %arg2[%c61] : memref<144xf32, #tpu.memory_space<smem>>
    %366 = vector.broadcast %365 : f32 to vector<18x8x128xf32>
    %367 = arith.mulf %10, %366 : vector<18x8x128xf32>
    %368 = arith.addf %364, %367 : vector<18x8x128xf32>
    %c62 = arith.constant 62 : index
    %369 = memref.load %arg2[%c62] : memref<144xf32, #tpu.memory_space<smem>>
    %370 = vector.broadcast %369 : f32 to vector<18x8x128xf32>
    %371 = arith.mulf %11, %370 : vector<18x8x128xf32>
    %372 = arith.addf %368, %371 : vector<18x8x128xf32>
    %c6_25 = arith.constant 6 : index
    %373 = memref.load %arg3[%c6_25] : memref<16xf32, #tpu.memory_space<smem>>
    %374 = vector.broadcast %373 : f32 to vector<18x8x128xf32>
    %375 = arith.addf %372, %374 : vector<18x8x128xf32>
    %cst_26 = arith.constant 0.000000e+00 : f32
    %376 = vector.broadcast %cst_26 : f32 to vector<18x8x128xf32>
    %377 = arith.maximumf %375, %376 : vector<18x8x128xf32>
    %378 = vector.shape_cast %377 : vector<18x8x128xf32> to vector<9x2x8x128xf32>
    %379 = vector.extract_strided_slice %378 {offsets = [0, 0, 0, 0], sizes = [9, 1, 8, 128], strides = [1, 1, 1, 1]} : vector<9x2x8x128xf32> to vector<9x1x8x128xf32>
    %380 = vector.shape_cast %379 : vector<9x1x8x128xf32> to vector<9x8x128xf32>
    %381 = vector.extract_strided_slice %378 {offsets = [0, 1, 0, 0], sizes = [9, 1, 8, 128], strides = [1, 1, 1, 1]} : vector<9x2x8x128xf32> to vector<9x1x8x128xf32>
    %382 = vector.shape_cast %381 : vector<9x1x8x128xf32> to vector<9x8x128xf32>
    %383 = arith.maximumf %380, %382 : vector<9x8x128xf32>
    %384 = vector.extract_strided_slice %383 {offsets = [0, 0, 0], sizes = [9, 7, 128], strides = [1, 1, 1]} : vector<9x8x128xf32> to vector<9x7x128xf32>
    %385 = vector.extract_strided_slice %383 {offsets = [0, 1, 0], sizes = [9, 7, 128], strides = [1, 1, 1]} : vector<9x8x128xf32> to vector<9x7x128xf32>
    %386 = arith.maximumf %384, %385 : vector<9x7x128xf32>
    %387 = vector.extract_strided_slice %12 {offsets = [6, 0, 0, 0], sizes = [1, 9, 7, 1], strides = [1, 1, 1, 1]} : vector<16x9x7x1xf32> to vector<1x9x7x1xf32>
    %388 = vector.shape_cast %387 : vector<1x9x7x1xf32> to vector<9x7x1xf32>
    %389 = vector.broadcast %388 : vector<9x7x1xf32> to vector<9x7x128xf32>
    %390 = arith.mulf %386, %389 : vector<9x7x128xf32>
    %391 = arith.addf %337, %390 : vector<9x7x128xf32>
    %c63 = arith.constant 63 : index
    %392 = memref.load %arg2[%c63] : memref<144xf32, #tpu.memory_space<smem>>
    %393 = vector.broadcast %392 : f32 to vector<18x8x128xf32>
    %394 = arith.mulf %3, %393 : vector<18x8x128xf32>
    %c64 = arith.constant 64 : index
    %395 = memref.load %arg2[%c64] : memref<144xf32, #tpu.memory_space<smem>>
    %396 = vector.broadcast %395 : f32 to vector<18x8x128xf32>
    %397 = arith.mulf %4, %396 : vector<18x8x128xf32>
    %398 = arith.addf %394, %397 : vector<18x8x128xf32>
    %c65 = arith.constant 65 : index
    %399 = memref.load %arg2[%c65] : memref<144xf32, #tpu.memory_space<smem>>
    %400 = vector.broadcast %399 : f32 to vector<18x8x128xf32>
    %401 = arith.mulf %5, %400 : vector<18x8x128xf32>
    %402 = arith.addf %398, %401 : vector<18x8x128xf32>
    %c66 = arith.constant 66 : index
    %403 = memref.load %arg2[%c66] : memref<144xf32, #tpu.memory_space<smem>>
    %404 = vector.broadcast %403 : f32 to vector<18x8x128xf32>
    %405 = arith.mulf %6, %404 : vector<18x8x128xf32>
    %406 = arith.addf %402, %405 : vector<18x8x128xf32>
    %c67 = arith.constant 67 : index
    %407 = memref.load %arg2[%c67] : memref<144xf32, #tpu.memory_space<smem>>
    %408 = vector.broadcast %407 : f32 to vector<18x8x128xf32>
    %409 = arith.mulf %7, %408 : vector<18x8x128xf32>
    %410 = arith.addf %406, %409 : vector<18x8x128xf32>
    %c68 = arith.constant 68 : index
    %411 = memref.load %arg2[%c68] : memref<144xf32, #tpu.memory_space<smem>>
    %412 = vector.broadcast %411 : f32 to vector<18x8x128xf32>
    %413 = arith.mulf %8, %412 : vector<18x8x128xf32>
    %414 = arith.addf %410, %413 : vector<18x8x128xf32>
    %c69 = arith.constant 69 : index
    %415 = memref.load %arg2[%c69] : memref<144xf32, #tpu.memory_space<smem>>
    %416 = vector.broadcast %415 : f32 to vector<18x8x128xf32>
    %417 = arith.mulf %9, %416 : vector<18x8x128xf32>
    %418 = arith.addf %414, %417 : vector<18x8x128xf32>
    %c70 = arith.constant 70 : index
    %419 = memref.load %arg2[%c70] : memref<144xf32, #tpu.memory_space<smem>>
    %420 = vector.broadcast %419 : f32 to vector<18x8x128xf32>
    %421 = arith.mulf %10, %420 : vector<18x8x128xf32>
    %422 = arith.addf %418, %421 : vector<18x8x128xf32>
    %c71 = arith.constant 71 : index
    %423 = memref.load %arg2[%c71] : memref<144xf32, #tpu.memory_space<smem>>
    %424 = vector.broadcast %423 : f32 to vector<18x8x128xf32>
    %425 = arith.mulf %11, %424 : vector<18x8x128xf32>
    %426 = arith.addf %422, %425 : vector<18x8x128xf32>
    %c7_27 = arith.constant 7 : index
    %427 = memref.load %arg3[%c7_27] : memref<16xf32, #tpu.memory_space<smem>>
    %428 = vector.broadcast %427 : f32 to vector<18x8x128xf32>
    %429 = arith.addf %426, %428 : vector<18x8x128xf32>
    %cst_28 = arith.constant 0.000000e+00 : f32
    %430 = vector.broadcast %cst_28 : f32 to vector<18x8x128xf32>
    %431 = arith.maximumf %429, %430 : vector<18x8x128xf32>
    %432 = vector.shape_cast %431 : vector<18x8x128xf32> to vector<9x2x8x128xf32>
    %433 = vector.extract_strided_slice %432 {offsets = [0, 0, 0, 0], sizes = [9, 1, 8, 128], strides = [1, 1, 1, 1]} : vector<9x2x8x128xf32> to vector<9x1x8x128xf32>
    %434 = vector.shape_cast %433 : vector<9x1x8x128xf32> to vector<9x8x128xf32>
    %435 = vector.extract_strided_slice %432 {offsets = [0, 1, 0, 0], sizes = [9, 1, 8, 128], strides = [1, 1, 1, 1]} : vector<9x2x8x128xf32> to vector<9x1x8x128xf32>
    %436 = vector.shape_cast %435 : vector<9x1x8x128xf32> to vector<9x8x128xf32>
    %437 = arith.maximumf %434, %436 : vector<9x8x128xf32>
    %438 = vector.extract_strided_slice %437 {offsets = [0, 0, 0], sizes = [9, 7, 128], strides = [1, 1, 1]} : vector<9x8x128xf32> to vector<9x7x128xf32>
    %439 = vector.extract_strided_slice %437 {offsets = [0, 1, 0], sizes = [9, 7, 128], strides = [1, 1, 1]} : vector<9x8x128xf32> to vector<9x7x128xf32>
    %440 = arith.maximumf %438, %439 : vector<9x7x128xf32>
    %441 = vector.extract_strided_slice %12 {offsets = [7, 0, 0, 0], sizes = [1, 9, 7, 1], strides = [1, 1, 1, 1]} : vector<16x9x7x1xf32> to vector<1x9x7x1xf32>
    %442 = vector.shape_cast %441 : vector<1x9x7x1xf32> to vector<9x7x1xf32>
    %443 = vector.broadcast %442 : vector<9x7x1xf32> to vector<9x7x128xf32>
    %444 = arith.mulf %440, %443 : vector<9x7x128xf32>
    %445 = arith.addf %391, %444 : vector<9x7x128xf32>
    %c72 = arith.constant 72 : index
    %446 = memref.load %arg2[%c72] : memref<144xf32, #tpu.memory_space<smem>>
    %447 = vector.broadcast %446 : f32 to vector<18x8x128xf32>
    %448 = arith.mulf %3, %447 : vector<18x8x128xf32>
    %c73 = arith.constant 73 : index
    %449 = memref.load %arg2[%c73] : memref<144xf32, #tpu.memory_space<smem>>
    %450 = vector.broadcast %449 : f32 to vector<18x8x128xf32>
    %451 = arith.mulf %4, %450 : vector<18x8x128xf32>
    %452 = arith.addf %448, %451 : vector<18x8x128xf32>
    %c74 = arith.constant 74 : index
    %453 = memref.load %arg2[%c74] : memref<144xf32, #tpu.memory_space<smem>>
    %454 = vector.broadcast %453 : f32 to vector<18x8x128xf32>
    %455 = arith.mulf %5, %454 : vector<18x8x128xf32>
    %456 = arith.addf %452, %455 : vector<18x8x128xf32>
    %c75 = arith.constant 75 : index
    %457 = memref.load %arg2[%c75] : memref<144xf32, #tpu.memory_space<smem>>
    %458 = vector.broadcast %457 : f32 to vector<18x8x128xf32>
    %459 = arith.mulf %6, %458 : vector<18x8x128xf32>
    %460 = arith.addf %456, %459 : vector<18x8x128xf32>
    %c76 = arith.constant 76 : index
    %461 = memref.load %arg2[%c76] : memref<144xf32, #tpu.memory_space<smem>>
    %462 = vector.broadcast %461 : f32 to vector<18x8x128xf32>
    %463 = arith.mulf %7, %462 : vector<18x8x128xf32>
    %464 = arith.addf %460, %463 : vector<18x8x128xf32>
    %c77 = arith.constant 77 : index
    %465 = memref.load %arg2[%c77] : memref<144xf32, #tpu.memory_space<smem>>
    %466 = vector.broadcast %465 : f32 to vector<18x8x128xf32>
    %467 = arith.mulf %8, %466 : vector<18x8x128xf32>
    %468 = arith.addf %464, %467 : vector<18x8x128xf32>
    %c78 = arith.constant 78 : index
    %469 = memref.load %arg2[%c78] : memref<144xf32, #tpu.memory_space<smem>>
    %470 = vector.broadcast %469 : f32 to vector<18x8x128xf32>
    %471 = arith.mulf %9, %470 : vector<18x8x128xf32>
    %472 = arith.addf %468, %471 : vector<18x8x128xf32>
    %c79 = arith.constant 79 : index
    %473 = memref.load %arg2[%c79] : memref<144xf32, #tpu.memory_space<smem>>
    %474 = vector.broadcast %473 : f32 to vector<18x8x128xf32>
    %475 = arith.mulf %10, %474 : vector<18x8x128xf32>
    %476 = arith.addf %472, %475 : vector<18x8x128xf32>
    %c80 = arith.constant 80 : index
    %477 = memref.load %arg2[%c80] : memref<144xf32, #tpu.memory_space<smem>>
    %478 = vector.broadcast %477 : f32 to vector<18x8x128xf32>
    %479 = arith.mulf %11, %478 : vector<18x8x128xf32>
    %480 = arith.addf %476, %479 : vector<18x8x128xf32>
    %c8_29 = arith.constant 8 : index
    %481 = memref.load %arg3[%c8_29] : memref<16xf32, #tpu.memory_space<smem>>
    %482 = vector.broadcast %481 : f32 to vector<18x8x128xf32>
    %483 = arith.addf %480, %482 : vector<18x8x128xf32>
    %cst_30 = arith.constant 0.000000e+00 : f32
    %484 = vector.broadcast %cst_30 : f32 to vector<18x8x128xf32>
    %485 = arith.maximumf %483, %484 : vector<18x8x128xf32>
    %486 = vector.shape_cast %485 : vector<18x8x128xf32> to vector<9x2x8x128xf32>
    %487 = vector.extract_strided_slice %486 {offsets = [0, 0, 0, 0], sizes = [9, 1, 8, 128], strides = [1, 1, 1, 1]} : vector<9x2x8x128xf32> to vector<9x1x8x128xf32>
    %488 = vector.shape_cast %487 : vector<9x1x8x128xf32> to vector<9x8x128xf32>
    %489 = vector.extract_strided_slice %486 {offsets = [0, 1, 0, 0], sizes = [9, 1, 8, 128], strides = [1, 1, 1, 1]} : vector<9x2x8x128xf32> to vector<9x1x8x128xf32>
    %490 = vector.shape_cast %489 : vector<9x1x8x128xf32> to vector<9x8x128xf32>
    %491 = arith.maximumf %488, %490 : vector<9x8x128xf32>
    %492 = vector.extract_strided_slice %491 {offsets = [0, 0, 0], sizes = [9, 7, 128], strides = [1, 1, 1]} : vector<9x8x128xf32> to vector<9x7x128xf32>
    %493 = vector.extract_strided_slice %491 {offsets = [0, 1, 0], sizes = [9, 7, 128], strides = [1, 1, 1]} : vector<9x8x128xf32> to vector<9x7x128xf32>
    %494 = arith.maximumf %492, %493 : vector<9x7x128xf32>
    %495 = vector.extract_strided_slice %12 {offsets = [8, 0, 0, 0], sizes = [1, 9, 7, 1], strides = [1, 1, 1, 1]} : vector<16x9x7x1xf32> to vector<1x9x7x1xf32>
    %496 = vector.shape_cast %495 : vector<1x9x7x1xf32> to vector<9x7x1xf32>
    %497 = vector.broadcast %496 : vector<9x7x1xf32> to vector<9x7x128xf32>
    %498 = arith.mulf %494, %497 : vector<9x7x128xf32>
    %499 = arith.addf %445, %498 : vector<9x7x128xf32>
    %c81 = arith.constant 81 : index
    %500 = memref.load %arg2[%c81] : memref<144xf32, #tpu.memory_space<smem>>
    %501 = vector.broadcast %500 : f32 to vector<18x8x128xf32>
    %502 = arith.mulf %3, %501 : vector<18x8x128xf32>
    %c82 = arith.constant 82 : index
    %503 = memref.load %arg2[%c82] : memref<144xf32, #tpu.memory_space<smem>>
    %504 = vector.broadcast %503 : f32 to vector<18x8x128xf32>
    %505 = arith.mulf %4, %504 : vector<18x8x128xf32>
    %506 = arith.addf %502, %505 : vector<18x8x128xf32>
    %c83 = arith.constant 83 : index
    %507 = memref.load %arg2[%c83] : memref<144xf32, #tpu.memory_space<smem>>
    %508 = vector.broadcast %507 : f32 to vector<18x8x128xf32>
    %509 = arith.mulf %5, %508 : vector<18x8x128xf32>
    %510 = arith.addf %506, %509 : vector<18x8x128xf32>
    %c84 = arith.constant 84 : index
    %511 = memref.load %arg2[%c84] : memref<144xf32, #tpu.memory_space<smem>>
    %512 = vector.broadcast %511 : f32 to vector<18x8x128xf32>
    %513 = arith.mulf %6, %512 : vector<18x8x128xf32>
    %514 = arith.addf %510, %513 : vector<18x8x128xf32>
    %c85 = arith.constant 85 : index
    %515 = memref.load %arg2[%c85] : memref<144xf32, #tpu.memory_space<smem>>
    %516 = vector.broadcast %515 : f32 to vector<18x8x128xf32>
    %517 = arith.mulf %7, %516 : vector<18x8x128xf32>
    %518 = arith.addf %514, %517 : vector<18x8x128xf32>
    %c86 = arith.constant 86 : index
    %519 = memref.load %arg2[%c86] : memref<144xf32, #tpu.memory_space<smem>>
    %520 = vector.broadcast %519 : f32 to vector<18x8x128xf32>
    %521 = arith.mulf %8, %520 : vector<18x8x128xf32>
    %522 = arith.addf %518, %521 : vector<18x8x128xf32>
    %c87 = arith.constant 87 : index
    %523 = memref.load %arg2[%c87] : memref<144xf32, #tpu.memory_space<smem>>
    %524 = vector.broadcast %523 : f32 to vector<18x8x128xf32>
    %525 = arith.mulf %9, %524 : vector<18x8x128xf32>
    %526 = arith.addf %522, %525 : vector<18x8x128xf32>
    %c88 = arith.constant 88 : index
    %527 = memref.load %arg2[%c88] : memref<144xf32, #tpu.memory_space<smem>>
    %528 = vector.broadcast %527 : f32 to vector<18x8x128xf32>
    %529 = arith.mulf %10, %528 : vector<18x8x128xf32>
    %530 = arith.addf %526, %529 : vector<18x8x128xf32>
    %c89 = arith.constant 89 : index
    %531 = memref.load %arg2[%c89] : memref<144xf32, #tpu.memory_space<smem>>
    %532 = vector.broadcast %531 : f32 to vector<18x8x128xf32>
    %533 = arith.mulf %11, %532 : vector<18x8x128xf32>
    %534 = arith.addf %530, %533 : vector<18x8x128xf32>
    %c9_31 = arith.constant 9 : index
    %535 = memref.load %arg3[%c9_31] : memref<16xf32, #tpu.memory_space<smem>>
    %536 = vector.broadcast %535 : f32 to vector<18x8x128xf32>
    %537 = arith.addf %534, %536 : vector<18x8x128xf32>
    %cst_32 = arith.constant 0.000000e+00 : f32
    %538 = vector.broadcast %cst_32 : f32 to vector<18x8x128xf32>
    %539 = arith.maximumf %537, %538 : vector<18x8x128xf32>
    %540 = vector.shape_cast %539 : vector<18x8x128xf32> to vector<9x2x8x128xf32>
    %541 = vector.extract_strided_slice %540 {offsets = [0, 0, 0, 0], sizes = [9, 1, 8, 128], strides = [1, 1, 1, 1]} : vector<9x2x8x128xf32> to vector<9x1x8x128xf32>
    %542 = vector.shape_cast %541 : vector<9x1x8x128xf32> to vector<9x8x128xf32>
    %543 = vector.extract_strided_slice %540 {offsets = [0, 1, 0, 0], sizes = [9, 1, 8, 128], strides = [1, 1, 1, 1]} : vector<9x2x8x128xf32> to vector<9x1x8x128xf32>
    %544 = vector.shape_cast %543 : vector<9x1x8x128xf32> to vector<9x8x128xf32>
    %545 = arith.maximumf %542, %544 : vector<9x8x128xf32>
    %546 = vector.extract_strided_slice %545 {offsets = [0, 0, 0], sizes = [9, 7, 128], strides = [1, 1, 1]} : vector<9x8x128xf32> to vector<9x7x128xf32>
    %547 = vector.extract_strided_slice %545 {offsets = [0, 1, 0], sizes = [9, 7, 128], strides = [1, 1, 1]} : vector<9x8x128xf32> to vector<9x7x128xf32>
    %548 = arith.maximumf %546, %547 : vector<9x7x128xf32>
    %549 = vector.extract_strided_slice %12 {offsets = [9, 0, 0, 0], sizes = [1, 9, 7, 1], strides = [1, 1, 1, 1]} : vector<16x9x7x1xf32> to vector<1x9x7x1xf32>
    %550 = vector.shape_cast %549 : vector<1x9x7x1xf32> to vector<9x7x1xf32>
    %551 = vector.broadcast %550 : vector<9x7x1xf32> to vector<9x7x128xf32>
    %552 = arith.mulf %548, %551 : vector<9x7x128xf32>
    %553 = arith.addf %499, %552 : vector<9x7x128xf32>
    %c90 = arith.constant 90 : index
    %554 = memref.load %arg2[%c90] : memref<144xf32, #tpu.memory_space<smem>>
    %555 = vector.broadcast %554 : f32 to vector<18x8x128xf32>
    %556 = arith.mulf %3, %555 : vector<18x8x128xf32>
    %c91 = arith.constant 91 : index
    %557 = memref.load %arg2[%c91] : memref<144xf32, #tpu.memory_space<smem>>
    %558 = vector.broadcast %557 : f32 to vector<18x8x128xf32>
    %559 = arith.mulf %4, %558 : vector<18x8x128xf32>
    %560 = arith.addf %556, %559 : vector<18x8x128xf32>
    %c92 = arith.constant 92 : index
    %561 = memref.load %arg2[%c92] : memref<144xf32, #tpu.memory_space<smem>>
    %562 = vector.broadcast %561 : f32 to vector<18x8x128xf32>
    %563 = arith.mulf %5, %562 : vector<18x8x128xf32>
    %564 = arith.addf %560, %563 : vector<18x8x128xf32>
    %c93 = arith.constant 93 : index
    %565 = memref.load %arg2[%c93] : memref<144xf32, #tpu.memory_space<smem>>
    %566 = vector.broadcast %565 : f32 to vector<18x8x128xf32>
    %567 = arith.mulf %6, %566 : vector<18x8x128xf32>
    %568 = arith.addf %564, %567 : vector<18x8x128xf32>
    %c94 = arith.constant 94 : index
    %569 = memref.load %arg2[%c94] : memref<144xf32, #tpu.memory_space<smem>>
    %570 = vector.broadcast %569 : f32 to vector<18x8x128xf32>
    %571 = arith.mulf %7, %570 : vector<18x8x128xf32>
    %572 = arith.addf %568, %571 : vector<18x8x128xf32>
    %c95 = arith.constant 95 : index
    %573 = memref.load %arg2[%c95] : memref<144xf32, #tpu.memory_space<smem>>
    %574 = vector.broadcast %573 : f32 to vector<18x8x128xf32>
    %575 = arith.mulf %8, %574 : vector<18x8x128xf32>
    %576 = arith.addf %572, %575 : vector<18x8x128xf32>
    %c96 = arith.constant 96 : index
    %577 = memref.load %arg2[%c96] : memref<144xf32, #tpu.memory_space<smem>>
    %578 = vector.broadcast %577 : f32 to vector<18x8x128xf32>
    %579 = arith.mulf %9, %578 : vector<18x8x128xf32>
    %580 = arith.addf %576, %579 : vector<18x8x128xf32>
    %c97 = arith.constant 97 : index
    %581 = memref.load %arg2[%c97] : memref<144xf32, #tpu.memory_space<smem>>
    %582 = vector.broadcast %581 : f32 to vector<18x8x128xf32>
    %583 = arith.mulf %10, %582 : vector<18x8x128xf32>
    %584 = arith.addf %580, %583 : vector<18x8x128xf32>
    %c98 = arith.constant 98 : index
    %585 = memref.load %arg2[%c98] : memref<144xf32, #tpu.memory_space<smem>>
    %586 = vector.broadcast %585 : f32 to vector<18x8x128xf32>
    %587 = arith.mulf %11, %586 : vector<18x8x128xf32>
    %588 = arith.addf %584, %587 : vector<18x8x128xf32>
    %c10_33 = arith.constant 10 : index
    %589 = memref.load %arg3[%c10_33] : memref<16xf32, #tpu.memory_space<smem>>
    %590 = vector.broadcast %589 : f32 to vector<18x8x128xf32>
    %591 = arith.addf %588, %590 : vector<18x8x128xf32>
    %cst_34 = arith.constant 0.000000e+00 : f32
    %592 = vector.broadcast %cst_34 : f32 to vector<18x8x128xf32>
    %593 = arith.maximumf %591, %592 : vector<18x8x128xf32>
    %594 = vector.shape_cast %593 : vector<18x8x128xf32> to vector<9x2x8x128xf32>
    %595 = vector.extract_strided_slice %594 {offsets = [0, 0, 0, 0], sizes = [9, 1, 8, 128], strides = [1, 1, 1, 1]} : vector<9x2x8x128xf32> to vector<9x1x8x128xf32>
    %596 = vector.shape_cast %595 : vector<9x1x8x128xf32> to vector<9x8x128xf32>
    %597 = vector.extract_strided_slice %594 {offsets = [0, 1, 0, 0], sizes = [9, 1, 8, 128], strides = [1, 1, 1, 1]} : vector<9x2x8x128xf32> to vector<9x1x8x128xf32>
    %598 = vector.shape_cast %597 : vector<9x1x8x128xf32> to vector<9x8x128xf32>
    %599 = arith.maximumf %596, %598 : vector<9x8x128xf32>
    %600 = vector.extract_strided_slice %599 {offsets = [0, 0, 0], sizes = [9, 7, 128], strides = [1, 1, 1]} : vector<9x8x128xf32> to vector<9x7x128xf32>
    %601 = vector.extract_strided_slice %599 {offsets = [0, 1, 0], sizes = [9, 7, 128], strides = [1, 1, 1]} : vector<9x8x128xf32> to vector<9x7x128xf32>
    %602 = arith.maximumf %600, %601 : vector<9x7x128xf32>
    %603 = vector.extract_strided_slice %12 {offsets = [10, 0, 0, 0], sizes = [1, 9, 7, 1], strides = [1, 1, 1, 1]} : vector<16x9x7x1xf32> to vector<1x9x7x1xf32>
    %604 = vector.shape_cast %603 : vector<1x9x7x1xf32> to vector<9x7x1xf32>
    %605 = vector.broadcast %604 : vector<9x7x1xf32> to vector<9x7x128xf32>
    %606 = arith.mulf %602, %605 : vector<9x7x128xf32>
    %607 = arith.addf %553, %606 : vector<9x7x128xf32>
    %c99 = arith.constant 99 : index
    %608 = memref.load %arg2[%c99] : memref<144xf32, #tpu.memory_space<smem>>
    %609 = vector.broadcast %608 : f32 to vector<18x8x128xf32>
    %610 = arith.mulf %3, %609 : vector<18x8x128xf32>
    %c100 = arith.constant 100 : index
    %611 = memref.load %arg2[%c100] : memref<144xf32, #tpu.memory_space<smem>>
    %612 = vector.broadcast %611 : f32 to vector<18x8x128xf32>
    %613 = arith.mulf %4, %612 : vector<18x8x128xf32>
    %614 = arith.addf %610, %613 : vector<18x8x128xf32>
    %c101 = arith.constant 101 : index
    %615 = memref.load %arg2[%c101] : memref<144xf32, #tpu.memory_space<smem>>
    %616 = vector.broadcast %615 : f32 to vector<18x8x128xf32>
    %617 = arith.mulf %5, %616 : vector<18x8x128xf32>
    %618 = arith.addf %614, %617 : vector<18x8x128xf32>
    %c102 = arith.constant 102 : index
    %619 = memref.load %arg2[%c102] : memref<144xf32, #tpu.memory_space<smem>>
    %620 = vector.broadcast %619 : f32 to vector<18x8x128xf32>
    %621 = arith.mulf %6, %620 : vector<18x8x128xf32>
    %622 = arith.addf %618, %621 : vector<18x8x128xf32>
    %c103 = arith.constant 103 : index
    %623 = memref.load %arg2[%c103] : memref<144xf32, #tpu.memory_space<smem>>
    %624 = vector.broadcast %623 : f32 to vector<18x8x128xf32>
    %625 = arith.mulf %7, %624 : vector<18x8x128xf32>
    %626 = arith.addf %622, %625 : vector<18x8x128xf32>
    %c104 = arith.constant 104 : index
    %627 = memref.load %arg2[%c104] : memref<144xf32, #tpu.memory_space<smem>>
    %628 = vector.broadcast %627 : f32 to vector<18x8x128xf32>
    %629 = arith.mulf %8, %628 : vector<18x8x128xf32>
    %630 = arith.addf %626, %629 : vector<18x8x128xf32>
    %c105 = arith.constant 105 : index
    %631 = memref.load %arg2[%c105] : memref<144xf32, #tpu.memory_space<smem>>
    %632 = vector.broadcast %631 : f32 to vector<18x8x128xf32>
    %633 = arith.mulf %9, %632 : vector<18x8x128xf32>
    %634 = arith.addf %630, %633 : vector<18x8x128xf32>
    %c106 = arith.constant 106 : index
    %635 = memref.load %arg2[%c106] : memref<144xf32, #tpu.memory_space<smem>>
    %636 = vector.broadcast %635 : f32 to vector<18x8x128xf32>
    %637 = arith.mulf %10, %636 : vector<18x8x128xf32>
    %638 = arith.addf %634, %637 : vector<18x8x128xf32>
    %c107 = arith.constant 107 : index
    %639 = memref.load %arg2[%c107] : memref<144xf32, #tpu.memory_space<smem>>
    %640 = vector.broadcast %639 : f32 to vector<18x8x128xf32>
    %641 = arith.mulf %11, %640 : vector<18x8x128xf32>
    %642 = arith.addf %638, %641 : vector<18x8x128xf32>
    %c11_35 = arith.constant 11 : index
    %643 = memref.load %arg3[%c11_35] : memref<16xf32, #tpu.memory_space<smem>>
    %644 = vector.broadcast %643 : f32 to vector<18x8x128xf32>
    %645 = arith.addf %642, %644 : vector<18x8x128xf32>
    %cst_36 = arith.constant 0.000000e+00 : f32
    %646 = vector.broadcast %cst_36 : f32 to vector<18x8x128xf32>
    %647 = arith.maximumf %645, %646 : vector<18x8x128xf32>
    %648 = vector.shape_cast %647 : vector<18x8x128xf32> to vector<9x2x8x128xf32>
    %649 = vector.extract_strided_slice %648 {offsets = [0, 0, 0, 0], sizes = [9, 1, 8, 128], strides = [1, 1, 1, 1]} : vector<9x2x8x128xf32> to vector<9x1x8x128xf32>
    %650 = vector.shape_cast %649 : vector<9x1x8x128xf32> to vector<9x8x128xf32>
    %651 = vector.extract_strided_slice %648 {offsets = [0, 1, 0, 0], sizes = [9, 1, 8, 128], strides = [1, 1, 1, 1]} : vector<9x2x8x128xf32> to vector<9x1x8x128xf32>
    %652 = vector.shape_cast %651 : vector<9x1x8x128xf32> to vector<9x8x128xf32>
    %653 = arith.maximumf %650, %652 : vector<9x8x128xf32>
    %654 = vector.extract_strided_slice %653 {offsets = [0, 0, 0], sizes = [9, 7, 128], strides = [1, 1, 1]} : vector<9x8x128xf32> to vector<9x7x128xf32>
    %655 = vector.extract_strided_slice %653 {offsets = [0, 1, 0], sizes = [9, 7, 128], strides = [1, 1, 1]} : vector<9x8x128xf32> to vector<9x7x128xf32>
    %656 = arith.maximumf %654, %655 : vector<9x7x128xf32>
    %657 = vector.extract_strided_slice %12 {offsets = [11, 0, 0, 0], sizes = [1, 9, 7, 1], strides = [1, 1, 1, 1]} : vector<16x9x7x1xf32> to vector<1x9x7x1xf32>
    %658 = vector.shape_cast %657 : vector<1x9x7x1xf32> to vector<9x7x1xf32>
    %659 = vector.broadcast %658 : vector<9x7x1xf32> to vector<9x7x128xf32>
    %660 = arith.mulf %656, %659 : vector<9x7x128xf32>
    %661 = arith.addf %607, %660 : vector<9x7x128xf32>
    %c108 = arith.constant 108 : index
    %662 = memref.load %arg2[%c108] : memref<144xf32, #tpu.memory_space<smem>>
    %663 = vector.broadcast %662 : f32 to vector<18x8x128xf32>
    %664 = arith.mulf %3, %663 : vector<18x8x128xf32>
    %c109 = arith.constant 109 : index
    %665 = memref.load %arg2[%c109] : memref<144xf32, #tpu.memory_space<smem>>
    %666 = vector.broadcast %665 : f32 to vector<18x8x128xf32>
    %667 = arith.mulf %4, %666 : vector<18x8x128xf32>
    %668 = arith.addf %664, %667 : vector<18x8x128xf32>
    %c110 = arith.constant 110 : index
    %669 = memref.load %arg2[%c110] : memref<144xf32, #tpu.memory_space<smem>>
    %670 = vector.broadcast %669 : f32 to vector<18x8x128xf32>
    %671 = arith.mulf %5, %670 : vector<18x8x128xf32>
    %672 = arith.addf %668, %671 : vector<18x8x128xf32>
    %c111 = arith.constant 111 : index
    %673 = memref.load %arg2[%c111] : memref<144xf32, #tpu.memory_space<smem>>
    %674 = vector.broadcast %673 : f32 to vector<18x8x128xf32>
    %675 = arith.mulf %6, %674 : vector<18x8x128xf32>
    %676 = arith.addf %672, %675 : vector<18x8x128xf32>
    %c112 = arith.constant 112 : index
    %677 = memref.load %arg2[%c112] : memref<144xf32, #tpu.memory_space<smem>>
    %678 = vector.broadcast %677 : f32 to vector<18x8x128xf32>
    %679 = arith.mulf %7, %678 : vector<18x8x128xf32>
    %680 = arith.addf %676, %679 : vector<18x8x128xf32>
    %c113 = arith.constant 113 : index
    %681 = memref.load %arg2[%c113] : memref<144xf32, #tpu.memory_space<smem>>
    %682 = vector.broadcast %681 : f32 to vector<18x8x128xf32>
    %683 = arith.mulf %8, %682 : vector<18x8x128xf32>
    %684 = arith.addf %680, %683 : vector<18x8x128xf32>
    %c114 = arith.constant 114 : index
    %685 = memref.load %arg2[%c114] : memref<144xf32, #tpu.memory_space<smem>>
    %686 = vector.broadcast %685 : f32 to vector<18x8x128xf32>
    %687 = arith.mulf %9, %686 : vector<18x8x128xf32>
    %688 = arith.addf %684, %687 : vector<18x8x128xf32>
    %c115 = arith.constant 115 : index
    %689 = memref.load %arg2[%c115] : memref<144xf32, #tpu.memory_space<smem>>
    %690 = vector.broadcast %689 : f32 to vector<18x8x128xf32>
    %691 = arith.mulf %10, %690 : vector<18x8x128xf32>
    %692 = arith.addf %688, %691 : vector<18x8x128xf32>
    %c116 = arith.constant 116 : index
    %693 = memref.load %arg2[%c116] : memref<144xf32, #tpu.memory_space<smem>>
    %694 = vector.broadcast %693 : f32 to vector<18x8x128xf32>
    %695 = arith.mulf %11, %694 : vector<18x8x128xf32>
    %696 = arith.addf %692, %695 : vector<18x8x128xf32>
    %c12_37 = arith.constant 12 : index
    %697 = memref.load %arg3[%c12_37] : memref<16xf32, #tpu.memory_space<smem>>
    %698 = vector.broadcast %697 : f32 to vector<18x8x128xf32>
    %699 = arith.addf %696, %698 : vector<18x8x128xf32>
    %cst_38 = arith.constant 0.000000e+00 : f32
    %700 = vector.broadcast %cst_38 : f32 to vector<18x8x128xf32>
    %701 = arith.maximumf %699, %700 : vector<18x8x128xf32>
    %702 = vector.shape_cast %701 : vector<18x8x128xf32> to vector<9x2x8x128xf32>
    %703 = vector.extract_strided_slice %702 {offsets = [0, 0, 0, 0], sizes = [9, 1, 8, 128], strides = [1, 1, 1, 1]} : vector<9x2x8x128xf32> to vector<9x1x8x128xf32>
    %704 = vector.shape_cast %703 : vector<9x1x8x128xf32> to vector<9x8x128xf32>
    %705 = vector.extract_strided_slice %702 {offsets = [0, 1, 0, 0], sizes = [9, 1, 8, 128], strides = [1, 1, 1, 1]} : vector<9x2x8x128xf32> to vector<9x1x8x128xf32>
    %706 = vector.shape_cast %705 : vector<9x1x8x128xf32> to vector<9x8x128xf32>
    %707 = arith.maximumf %704, %706 : vector<9x8x128xf32>
    %708 = vector.extract_strided_slice %707 {offsets = [0, 0, 0], sizes = [9, 7, 128], strides = [1, 1, 1]} : vector<9x8x128xf32> to vector<9x7x128xf32>
    %709 = vector.extract_strided_slice %707 {offsets = [0, 1, 0], sizes = [9, 7, 128], strides = [1, 1, 1]} : vector<9x8x128xf32> to vector<9x7x128xf32>
    %710 = arith.maximumf %708, %709 : vector<9x7x128xf32>
    %711 = vector.extract_strided_slice %12 {offsets = [12, 0, 0, 0], sizes = [1, 9, 7, 1], strides = [1, 1, 1, 1]} : vector<16x9x7x1xf32> to vector<1x9x7x1xf32>
    %712 = vector.shape_cast %711 : vector<1x9x7x1xf32> to vector<9x7x1xf32>
    %713 = vector.broadcast %712 : vector<9x7x1xf32> to vector<9x7x128xf32>
    %714 = arith.mulf %710, %713 : vector<9x7x128xf32>
    %715 = arith.addf %661, %714 : vector<9x7x128xf32>
    %c117 = arith.constant 117 : index
    %716 = memref.load %arg2[%c117] : memref<144xf32, #tpu.memory_space<smem>>
    %717 = vector.broadcast %716 : f32 to vector<18x8x128xf32>
    %718 = arith.mulf %3, %717 : vector<18x8x128xf32>
    %c118 = arith.constant 118 : index
    %719 = memref.load %arg2[%c118] : memref<144xf32, #tpu.memory_space<smem>>
    %720 = vector.broadcast %719 : f32 to vector<18x8x128xf32>
    %721 = arith.mulf %4, %720 : vector<18x8x128xf32>
    %722 = arith.addf %718, %721 : vector<18x8x128xf32>
    %c119 = arith.constant 119 : index
    %723 = memref.load %arg2[%c119] : memref<144xf32, #tpu.memory_space<smem>>
    %724 = vector.broadcast %723 : f32 to vector<18x8x128xf32>
    %725 = arith.mulf %5, %724 : vector<18x8x128xf32>
    %726 = arith.addf %722, %725 : vector<18x8x128xf32>
    %c120 = arith.constant 120 : index
    %727 = memref.load %arg2[%c120] : memref<144xf32, #tpu.memory_space<smem>>
    %728 = vector.broadcast %727 : f32 to vector<18x8x128xf32>
    %729 = arith.mulf %6, %728 : vector<18x8x128xf32>
    %730 = arith.addf %726, %729 : vector<18x8x128xf32>
    %c121 = arith.constant 121 : index
    %731 = memref.load %arg2[%c121] : memref<144xf32, #tpu.memory_space<smem>>
    %732 = vector.broadcast %731 : f32 to vector<18x8x128xf32>
    %733 = arith.mulf %7, %732 : vector<18x8x128xf32>
    %734 = arith.addf %730, %733 : vector<18x8x128xf32>
    %c122 = arith.constant 122 : index
    %735 = memref.load %arg2[%c122] : memref<144xf32, #tpu.memory_space<smem>>
    %736 = vector.broadcast %735 : f32 to vector<18x8x128xf32>
    %737 = arith.mulf %8, %736 : vector<18x8x128xf32>
    %738 = arith.addf %734, %737 : vector<18x8x128xf32>
    %c123 = arith.constant 123 : index
    %739 = memref.load %arg2[%c123] : memref<144xf32, #tpu.memory_space<smem>>
    %740 = vector.broadcast %739 : f32 to vector<18x8x128xf32>
    %741 = arith.mulf %9, %740 : vector<18x8x128xf32>
    %742 = arith.addf %738, %741 : vector<18x8x128xf32>
    %c124 = arith.constant 124 : index
    %743 = memref.load %arg2[%c124] : memref<144xf32, #tpu.memory_space<smem>>
    %744 = vector.broadcast %743 : f32 to vector<18x8x128xf32>
    %745 = arith.mulf %10, %744 : vector<18x8x128xf32>
    %746 = arith.addf %742, %745 : vector<18x8x128xf32>
    %c125 = arith.constant 125 : index
    %747 = memref.load %arg2[%c125] : memref<144xf32, #tpu.memory_space<smem>>
    %748 = vector.broadcast %747 : f32 to vector<18x8x128xf32>
    %749 = arith.mulf %11, %748 : vector<18x8x128xf32>
    %750 = arith.addf %746, %749 : vector<18x8x128xf32>
    %c13_39 = arith.constant 13 : index
    %751 = memref.load %arg3[%c13_39] : memref<16xf32, #tpu.memory_space<smem>>
    %752 = vector.broadcast %751 : f32 to vector<18x8x128xf32>
    %753 = arith.addf %750, %752 : vector<18x8x128xf32>
    %cst_40 = arith.constant 0.000000e+00 : f32
    %754 = vector.broadcast %cst_40 : f32 to vector<18x8x128xf32>
    %755 = arith.maximumf %753, %754 : vector<18x8x128xf32>
    %756 = vector.shape_cast %755 : vector<18x8x128xf32> to vector<9x2x8x128xf32>
    %757 = vector.extract_strided_slice %756 {offsets = [0, 0, 0, 0], sizes = [9, 1, 8, 128], strides = [1, 1, 1, 1]} : vector<9x2x8x128xf32> to vector<9x1x8x128xf32>
    %758 = vector.shape_cast %757 : vector<9x1x8x128xf32> to vector<9x8x128xf32>
    %759 = vector.extract_strided_slice %756 {offsets = [0, 1, 0, 0], sizes = [9, 1, 8, 128], strides = [1, 1, 1, 1]} : vector<9x2x8x128xf32> to vector<9x1x8x128xf32>
    %760 = vector.shape_cast %759 : vector<9x1x8x128xf32> to vector<9x8x128xf32>
    %761 = arith.maximumf %758, %760 : vector<9x8x128xf32>
    %762 = vector.extract_strided_slice %761 {offsets = [0, 0, 0], sizes = [9, 7, 128], strides = [1, 1, 1]} : vector<9x8x128xf32> to vector<9x7x128xf32>
    %763 = vector.extract_strided_slice %761 {offsets = [0, 1, 0], sizes = [9, 7, 128], strides = [1, 1, 1]} : vector<9x8x128xf32> to vector<9x7x128xf32>
    %764 = arith.maximumf %762, %763 : vector<9x7x128xf32>
    %765 = vector.extract_strided_slice %12 {offsets = [13, 0, 0, 0], sizes = [1, 9, 7, 1], strides = [1, 1, 1, 1]} : vector<16x9x7x1xf32> to vector<1x9x7x1xf32>
    %766 = vector.shape_cast %765 : vector<1x9x7x1xf32> to vector<9x7x1xf32>
    %767 = vector.broadcast %766 : vector<9x7x1xf32> to vector<9x7x128xf32>
    %768 = arith.mulf %764, %767 : vector<9x7x128xf32>
    %769 = arith.addf %715, %768 : vector<9x7x128xf32>
    %c126 = arith.constant 126 : index
    %770 = memref.load %arg2[%c126] : memref<144xf32, #tpu.memory_space<smem>>
    %771 = vector.broadcast %770 : f32 to vector<18x8x128xf32>
    %772 = arith.mulf %3, %771 : vector<18x8x128xf32>
    %c127 = arith.constant 127 : index
    %773 = memref.load %arg2[%c127] : memref<144xf32, #tpu.memory_space<smem>>
    %774 = vector.broadcast %773 : f32 to vector<18x8x128xf32>
    %775 = arith.mulf %4, %774 : vector<18x8x128xf32>
    %776 = arith.addf %772, %775 : vector<18x8x128xf32>
    %c128 = arith.constant 128 : index
    %777 = memref.load %arg2[%c128] : memref<144xf32, #tpu.memory_space<smem>>
    %778 = vector.broadcast %777 : f32 to vector<18x8x128xf32>
    %779 = arith.mulf %5, %778 : vector<18x8x128xf32>
    %780 = arith.addf %776, %779 : vector<18x8x128xf32>
    %c129 = arith.constant 129 : index
    %781 = memref.load %arg2[%c129] : memref<144xf32, #tpu.memory_space<smem>>
    %782 = vector.broadcast %781 : f32 to vector<18x8x128xf32>
    %783 = arith.mulf %6, %782 : vector<18x8x128xf32>
    %784 = arith.addf %780, %783 : vector<18x8x128xf32>
    %c130 = arith.constant 130 : index
    %785 = memref.load %arg2[%c130] : memref<144xf32, #tpu.memory_space<smem>>
    %786 = vector.broadcast %785 : f32 to vector<18x8x128xf32>
    %787 = arith.mulf %7, %786 : vector<18x8x128xf32>
    %788 = arith.addf %784, %787 : vector<18x8x128xf32>
    %c131 = arith.constant 131 : index
    %789 = memref.load %arg2[%c131] : memref<144xf32, #tpu.memory_space<smem>>
    %790 = vector.broadcast %789 : f32 to vector<18x8x128xf32>
    %791 = arith.mulf %8, %790 : vector<18x8x128xf32>
    %792 = arith.addf %788, %791 : vector<18x8x128xf32>
    %c132 = arith.constant 132 : index
    %793 = memref.load %arg2[%c132] : memref<144xf32, #tpu.memory_space<smem>>
    %794 = vector.broadcast %793 : f32 to vector<18x8x128xf32>
    %795 = arith.mulf %9, %794 : vector<18x8x128xf32>
    %796 = arith.addf %792, %795 : vector<18x8x128xf32>
    %c133 = arith.constant 133 : index
    %797 = memref.load %arg2[%c133] : memref<144xf32, #tpu.memory_space<smem>>
    %798 = vector.broadcast %797 : f32 to vector<18x8x128xf32>
    %799 = arith.mulf %10, %798 : vector<18x8x128xf32>
    %800 = arith.addf %796, %799 : vector<18x8x128xf32>
    %c134 = arith.constant 134 : index
    %801 = memref.load %arg2[%c134] : memref<144xf32, #tpu.memory_space<smem>>
    %802 = vector.broadcast %801 : f32 to vector<18x8x128xf32>
    %803 = arith.mulf %11, %802 : vector<18x8x128xf32>
    %804 = arith.addf %800, %803 : vector<18x8x128xf32>
    %c14_41 = arith.constant 14 : index
    %805 = memref.load %arg3[%c14_41] : memref<16xf32, #tpu.memory_space<smem>>
    %806 = vector.broadcast %805 : f32 to vector<18x8x128xf32>
    %807 = arith.addf %804, %806 : vector<18x8x128xf32>
    %cst_42 = arith.constant 0.000000e+00 : f32
    %808 = vector.broadcast %cst_42 : f32 to vector<18x8x128xf32>
    %809 = arith.maximumf %807, %808 : vector<18x8x128xf32>
    %810 = vector.shape_cast %809 : vector<18x8x128xf32> to vector<9x2x8x128xf32>
    %811 = vector.extract_strided_slice %810 {offsets = [0, 0, 0, 0], sizes = [9, 1, 8, 128], strides = [1, 1, 1, 1]} : vector<9x2x8x128xf32> to vector<9x1x8x128xf32>
    %812 = vector.shape_cast %811 : vector<9x1x8x128xf32> to vector<9x8x128xf32>
    %813 = vector.extract_strided_slice %810 {offsets = [0, 1, 0, 0], sizes = [9, 1, 8, 128], strides = [1, 1, 1, 1]} : vector<9x2x8x128xf32> to vector<9x1x8x128xf32>
    %814 = vector.shape_cast %813 : vector<9x1x8x128xf32> to vector<9x8x128xf32>
    %815 = arith.maximumf %812, %814 : vector<9x8x128xf32>
    %816 = vector.extract_strided_slice %815 {offsets = [0, 0, 0], sizes = [9, 7, 128], strides = [1, 1, 1]} : vector<9x8x128xf32> to vector<9x7x128xf32>
    %817 = vector.extract_strided_slice %815 {offsets = [0, 1, 0], sizes = [9, 7, 128], strides = [1, 1, 1]} : vector<9x8x128xf32> to vector<9x7x128xf32>
    %818 = arith.maximumf %816, %817 : vector<9x7x128xf32>
    %819 = vector.extract_strided_slice %12 {offsets = [14, 0, 0, 0], sizes = [1, 9, 7, 1], strides = [1, 1, 1, 1]} : vector<16x9x7x1xf32> to vector<1x9x7x1xf32>
    %820 = vector.shape_cast %819 : vector<1x9x7x1xf32> to vector<9x7x1xf32>
    %821 = vector.broadcast %820 : vector<9x7x1xf32> to vector<9x7x128xf32>
    %822 = arith.mulf %818, %821 : vector<9x7x128xf32>
    %823 = arith.addf %769, %822 : vector<9x7x128xf32>
    %c135 = arith.constant 135 : index
    %824 = memref.load %arg2[%c135] : memref<144xf32, #tpu.memory_space<smem>>
    %825 = vector.broadcast %824 : f32 to vector<18x8x128xf32>
    %826 = arith.mulf %3, %825 : vector<18x8x128xf32>
    %c136 = arith.constant 136 : index
    %827 = memref.load %arg2[%c136] : memref<144xf32, #tpu.memory_space<smem>>
    %828 = vector.broadcast %827 : f32 to vector<18x8x128xf32>
    %829 = arith.mulf %4, %828 : vector<18x8x128xf32>
    %830 = arith.addf %826, %829 : vector<18x8x128xf32>
    %c137 = arith.constant 137 : index
    %831 = memref.load %arg2[%c137] : memref<144xf32, #tpu.memory_space<smem>>
    %832 = vector.broadcast %831 : f32 to vector<18x8x128xf32>
    %833 = arith.mulf %5, %832 : vector<18x8x128xf32>
    %834 = arith.addf %830, %833 : vector<18x8x128xf32>
    %c138 = arith.constant 138 : index
    %835 = memref.load %arg2[%c138] : memref<144xf32, #tpu.memory_space<smem>>
    %836 = vector.broadcast %835 : f32 to vector<18x8x128xf32>
    %837 = arith.mulf %6, %836 : vector<18x8x128xf32>
    %838 = arith.addf %834, %837 : vector<18x8x128xf32>
    %c139 = arith.constant 139 : index
    %839 = memref.load %arg2[%c139] : memref<144xf32, #tpu.memory_space<smem>>
    %840 = vector.broadcast %839 : f32 to vector<18x8x128xf32>
    %841 = arith.mulf %7, %840 : vector<18x8x128xf32>
    %842 = arith.addf %838, %841 : vector<18x8x128xf32>
    %c140 = arith.constant 140 : index
    %843 = memref.load %arg2[%c140] : memref<144xf32, #tpu.memory_space<smem>>
    %844 = vector.broadcast %843 : f32 to vector<18x8x128xf32>
    %845 = arith.mulf %8, %844 : vector<18x8x128xf32>
    %846 = arith.addf %842, %845 : vector<18x8x128xf32>
    %c141 = arith.constant 141 : index
    %847 = memref.load %arg2[%c141] : memref<144xf32, #tpu.memory_space<smem>>
    %848 = vector.broadcast %847 : f32 to vector<18x8x128xf32>
    %849 = arith.mulf %9, %848 : vector<18x8x128xf32>
    %850 = arith.addf %846, %849 : vector<18x8x128xf32>
    %c142 = arith.constant 142 : index
    %851 = memref.load %arg2[%c142] : memref<144xf32, #tpu.memory_space<smem>>
    %852 = vector.broadcast %851 : f32 to vector<18x8x128xf32>
    %853 = arith.mulf %10, %852 : vector<18x8x128xf32>
    %854 = arith.addf %850, %853 : vector<18x8x128xf32>
    %c143 = arith.constant 143 : index
    %855 = memref.load %arg2[%c143] : memref<144xf32, #tpu.memory_space<smem>>
    %856 = vector.broadcast %855 : f32 to vector<18x8x128xf32>
    %857 = arith.mulf %11, %856 : vector<18x8x128xf32>
    %858 = arith.addf %854, %857 : vector<18x8x128xf32>
    %c15_43 = arith.constant 15 : index
    %859 = memref.load %arg3[%c15_43] : memref<16xf32, #tpu.memory_space<smem>>
    %860 = vector.broadcast %859 : f32 to vector<18x8x128xf32>
    %861 = arith.addf %858, %860 : vector<18x8x128xf32>
    %cst_44 = arith.constant 0.000000e+00 : f32
    %862 = vector.broadcast %cst_44 : f32 to vector<18x8x128xf32>
    %863 = arith.maximumf %861, %862 : vector<18x8x128xf32>
    %864 = vector.shape_cast %863 : vector<18x8x128xf32> to vector<9x2x8x128xf32>
    %865 = vector.extract_strided_slice %864 {offsets = [0, 0, 0, 0], sizes = [9, 1, 8, 128], strides = [1, 1, 1, 1]} : vector<9x2x8x128xf32> to vector<9x1x8x128xf32>
    %866 = vector.shape_cast %865 : vector<9x1x8x128xf32> to vector<9x8x128xf32>
    %867 = vector.extract_strided_slice %864 {offsets = [0, 1, 0, 0], sizes = [9, 1, 8, 128], strides = [1, 1, 1, 1]} : vector<9x2x8x128xf32> to vector<9x1x8x128xf32>
    %868 = vector.shape_cast %867 : vector<9x1x8x128xf32> to vector<9x8x128xf32>
    %869 = arith.maximumf %866, %868 : vector<9x8x128xf32>
    %870 = vector.extract_strided_slice %869 {offsets = [0, 0, 0], sizes = [9, 7, 128], strides = [1, 1, 1]} : vector<9x8x128xf32> to vector<9x7x128xf32>
    %871 = vector.extract_strided_slice %869 {offsets = [0, 1, 0], sizes = [9, 7, 128], strides = [1, 1, 1]} : vector<9x8x128xf32> to vector<9x7x128xf32>
    %872 = arith.maximumf %870, %871 : vector<9x7x128xf32>
    %873 = vector.extract_strided_slice %12 {offsets = [15, 0, 0, 0], sizes = [1, 9, 7, 1], strides = [1, 1, 1, 1]} : vector<16x9x7x1xf32> to vector<1x9x7x1xf32>
    %874 = vector.shape_cast %873 : vector<1x9x7x1xf32> to vector<9x7x1xf32>
    %875 = vector.broadcast %874 : vector<9x7x1xf32> to vector<9x7x128xf32>
    %876 = arith.mulf %872, %875 : vector<9x7x128xf32>
    %877 = arith.addf %823, %876 : vector<9x7x128xf32>
    %878 = vector.extract_strided_slice %877 {offsets = [0, 0, 0], sizes = [1, 7, 128], strides = [1, 1, 1]} : vector<9x7x128xf32> to vector<1x7x128xf32>
    %879 = vector.shape_cast %878 : vector<1x7x128xf32> to vector<7x128xf32>
    %880 = vector.extract_strided_slice %877 {offsets = [1, 0, 0], sizes = [1, 7, 128], strides = [1, 1, 1]} : vector<9x7x128xf32> to vector<1x7x128xf32>
    %881 = vector.shape_cast %880 : vector<1x7x128xf32> to vector<7x128xf32>
    %882 = arith.addf %879, %881 : vector<7x128xf32>
    %883 = vector.extract_strided_slice %877 {offsets = [2, 0, 0], sizes = [1, 7, 128], strides = [1, 1, 1]} : vector<9x7x128xf32> to vector<1x7x128xf32>
    %884 = vector.shape_cast %883 : vector<1x7x128xf32> to vector<7x128xf32>
    %885 = arith.addf %882, %884 : vector<7x128xf32>
    %886 = vector.extract_strided_slice %877 {offsets = [3, 0, 0], sizes = [1, 7, 128], strides = [1, 1, 1]} : vector<9x7x128xf32> to vector<1x7x128xf32>
    %887 = vector.shape_cast %886 : vector<1x7x128xf32> to vector<7x128xf32>
    %888 = arith.addf %885, %887 : vector<7x128xf32>
    %889 = vector.extract_strided_slice %877 {offsets = [4, 0, 0], sizes = [1, 7, 128], strides = [1, 1, 1]} : vector<9x7x128xf32> to vector<1x7x128xf32>
    %890 = vector.shape_cast %889 : vector<1x7x128xf32> to vector<7x128xf32>
    %891 = arith.addf %888, %890 : vector<7x128xf32>
    %892 = vector.extract_strided_slice %877 {offsets = [5, 0, 0], sizes = [1, 7, 128], strides = [1, 1, 1]} : vector<9x7x128xf32> to vector<1x7x128xf32>
    %893 = vector.shape_cast %892 : vector<1x7x128xf32> to vector<7x128xf32>
    %894 = arith.addf %891, %893 : vector<7x128xf32>
    %895 = vector.extract_strided_slice %877 {offsets = [6, 0, 0], sizes = [1, 7, 128], strides = [1, 1, 1]} : vector<9x7x128xf32> to vector<1x7x128xf32>
    %896 = vector.shape_cast %895 : vector<1x7x128xf32> to vector<7x128xf32>
    %897 = arith.addf %894, %896 : vector<7x128xf32>
    %898 = vector.extract_strided_slice %877 {offsets = [7, 0, 0], sizes = [1, 7, 128], strides = [1, 1, 1]} : vector<9x7x128xf32> to vector<1x7x128xf32>
    %899 = vector.shape_cast %898 : vector<1x7x128xf32> to vector<7x128xf32>
    %900 = arith.addf %897, %899 : vector<7x128xf32>
    %901 = vector.extract_strided_slice %877 {offsets = [8, 0, 0], sizes = [1, 7, 128], strides = [1, 1, 1]} : vector<9x7x128xf32> to vector<1x7x128xf32>
    %902 = vector.shape_cast %901 : vector<1x7x128xf32> to vector<7x128xf32>
    %903 = arith.addf %900, %902 : vector<7x128xf32>
    %cst_45 = arith.constant dense<0.000000e+00> : vector<128xf32>
    %904 = vector.multi_reduction <add>, %903, %cst_45 [0] : vector<7x128xf32> to vector<128xf32>
    %905 = vector.shape_cast %904 : vector<128xf32> to vector<1x128xf32>
    %c0_46 = arith.constant 0 : index
    %906 = memref.load %arg5[%c0_46] : memref<1xf32, #tpu.memory_space<smem>>
    %907 = vector.broadcast %906 : f32 to vector<1x128xf32>
    %908 = arith.addf %905, %907 : vector<1x128xf32>
    %909 = arith.negf %908 : vector<1x128xf32>
    %910 = math.exp %909 : vector<1x128xf32>
    %cst_47 = arith.constant 1.000000e+00 : f32
    %911 = vector.broadcast %cst_47 : f32 to vector<1x128xf32>
    %912 = arith.addf %911, %910 : vector<1x128xf32>
    %913 = arith.divf %911, %912 : vector<1x128xf32>
    %c0_48 = arith.constant 0 : index
    %c0_49 = arith.constant 0 : index
    %914 = vector.load %arg6[%c0_48, %c0_49] : memref<1x128xf32, #tpu.memory_space<vmem>>, vector<1x128xf32>
    tpu.vector_store %arg6[%c0_48, %c0_49], %913 {strides = array<i32>} : memref<1x128xf32, #tpu.memory_space<vmem>>, vector<1x128xf32>,
    return
  }
  func.func @transform_0(%arg0: i32) -> (i32, i32, i32) {
    %c0_i32 = arith.constant 0 : i32
    %c0_i32_0 = arith.constant 0 : i32
    %c0_i32_1 = arith.constant 0 : i32
    return %c0_i32, %c0_i32_0, %arg0 : i32, i32, i32
  }
  func.func @transform_1(%arg0: i32) -> i32 {
    %c0_i32 = arith.constant 0 : i32
    %c0_i32_0 = arith.constant 0 : i32
    return %c0_i32 : i32
  }
  func.func @transform_2(%arg0: i32) -> i32 {
    %c0_i32 = arith.constant 0 : i32
    %c0_i32_0 = arith.constant 0 : i32
    return %c0_i32 : i32
  }
  func.func @transform_3(%arg0: i32) -> (i32, i32, i32, i32) {
    %c0_i32 = arith.constant 0 : i32
    %c0_i32_0 = arith.constant 0 : i32
    %c0_i32_1 = arith.constant 0 : i32
    %c0_i32_2 = arith.constant 0 : i32
    %c0_i32_3 = arith.constant 0 : i32
    return %c0_i32, %c0_i32_0, %c0_i32_1, %c0_i32_2 : i32, i32, i32, i32
  }
  func.func @transform_4(%arg0: i32) -> i32 {
    %c0_i32 = arith.constant 0 : i32
    %c0_i32_0 = arith.constant 0 : i32
    return %c0_i32 : i32
  }
  func.func @transform_5(%arg0: i32) -> (i32, i32) {
    %c0_i32 = arith.constant 0 : i32
    %c0_i32_0 = arith.constant 0 : i32
    return %c0_i32, %arg0 : i32, i32
  }
}

</mosaic_0001>

<llo_original>
// kernel: simple_cnn2_forward.1
$region0: #{simple_cnn2_forward.1}
  #allocation0 [shape = 'u32[]', space=smem, size = 0x4, offset = 0x4, fixed_abs, tag = 'smem constant byte address 0x4 - core index']
  #allocation1 [shape = 'u32[144,128]{1,0:T(1,128)}', space=vmem, size = 0x12000, scoped, tag = 'internal scratch']
  #allocation2 [shape = 'f32[1]{0:T(128)S(6)}', space=smem, size = 0x200, scoped, tag = 'scoped memory for simple_cnn2_forward.1']
  %s0 = inlined_call_operand.vmem [shape: f32[20,10,128], index: 0, kind: input, shape index: {}]
  %s1 = inlined_call_operand.vmem [shape: f32[144], index: 1, kind: input, shape index: {}]
  %s2 = inlined_call_operand.vmem [shape: f32[16], index: 2, kind: input, shape index: {}]
  %s3 = inlined_call_operand.vmem [shape: f32[16,9,7,1], index: 3, kind: input, shape index: {}]
  %s4 = inlined_call_operand.<no memory space> [shape: f32[1], index: 4, kind: input, shape index: {}]
  %s5 = inlined_call_operand.vmem [shape: f32[1,128], index: 5, kind: output, shape index: {}]
  %s6 = sld [smem:[#allocation0]]
  $region38: #{simple_cnn2_forward.1} parent=0
    _
  %s8 = ssub.s32 1, %s6
  %s9 = scalar_select 0, %s8, %s6
  %10 = sst [smem:[#allocation2]] %s4
  $region1: #{simple_cnn2_forward.1} parent=0
    #allocation3 [shape = 'u8[1024]{0}', space=smem, size = 0x400, scoped, tag = 'input window, operand 1, single buffered']
    #allocation4 [shape = 's32[1]{0}', space=sflag, size = 0x4, scoped, tag = 'scoped memory for simple_cnn2_forward.1']
    #allocation5 [shape = 'u8[512]{0}', space=smem, size = 0x200, scoped, tag = 'input window, operand 2, single buffered']
    #allocation6 [shape = 's32[1]{0}', space=sflag, size = 0x4, scoped, tag = 'scoped memory for simple_cnn2_forward.1']
    %11 = vsyncpa [#allocation4], 0
    %12 = vsyncpa [#allocation6], 0
    // Predicated region
    $region2: #{simple_cnn2_forward.1} parent=1 // pred_check
      _
    $region3: #{simple_cnn2_forward.1} parent=1 // pred_check_branch
      %14 = sbr.rel (0) target = $region5
    $region4: #{simple_cnn2_forward.1} parent=1 // pred_region
      _
    $region5: #{simple_cnn2_forward.1} parent=1 // pred_fallthru
      _
    // Predicated region
    $region6: #{simple_cnn2_forward.1} parent=1 // pred_check
      _
    $region7: #{simple_cnn2_forward.1} parent=1 // pred_check_branch
      %16 = sbr.rel (0) target = $region9
    $region8: #{simple_cnn2_forward.1} parent=1 // pred_region
      %s18 = ssub.s32 32, 32
      %19 = vsyncadd [#allocation4], %s18
      %s21 = sshll.u32 %s1, 4
      %s22 = int_to_ptr.vmem [resolvable:$true] %s21
      %24 = dma.vmem_to_smem %s22, 32, [#allocation3], [#allocation4]
    $region9: #{simple_cnn2_forward.1} parent=1 // pred_fallthru
      _
    // Predicated region
    $region10: #{simple_cnn2_forward.1} parent=1 // pred_check
      _
    $region11: #{simple_cnn2_forward.1} parent=1 // pred_check_branch
      %26 = sbr.rel (0) target = $region13
    $region12: #{simple_cnn2_forward.1} parent=1 // pred_region
      %s28 = ssub.s32 16, 16
      %29 = vsyncadd [#allocation6], %s28
      %s31 = sshll.u32 %s2, 4
      %s32 = int_to_ptr.vmem [resolvable:$true] %s31
      %34 = dma.vmem_to_smem %s32, 16, [#allocation5], [#allocation6]
    $region13: #{simple_cnn2_forward.1} parent=1 // pred_fallthru
      _
    // Predicated region
    $region14: #{simple_cnn2_forward.1} parent=1 // pred_check
      _
    $region15: #{simple_cnn2_forward.1} parent=1 // pred_check_branch
      %36 = sbr.rel (0) target = $region17
    $region16: #{simple_cnn2_forward.1} parent=1 // pred_region
      _
    $region17: #{simple_cnn2_forward.1} parent=1 // pred_fallthru
      _
    // Predicated region
    $region18: #{simple_cnn2_forward.1} parent=1 // pred_check
      _
    $region19: #{simple_cnn2_forward.1} parent=1 // pred_check_branch
      %38 = sbr.rel (0) target = $region21
    $region20: #{simple_cnn2_forward.1} parent=1 // pred_region
      _
    $region21: #{simple_cnn2_forward.1} parent=1 // pred_fallthru
      _
    // Predicated region
    $region22: #{simple_cnn2_forward.1} parent=1 // pred_check
      _
    $region23: #{simple_cnn2_forward.1} parent=1 // pred_check_branch
      %40 = sbr.rel (0) target = $region25
    $region24: #{simple_cnn2_forward.1} parent=1 // pred_region
      %41 = dma.done [#allocation4], 32
    $region25: #{simple_cnn2_forward.1} parent=1 // pred_fallthru
      _
    // Predicated region
    $region26: #{simple_cnn2_forward.1} parent=1 // pred_check
      _
    $region27: #{simple_cnn2_forward.1} parent=1 // pred_check_branch
      %43 = sbr.rel (0) target = $region29
    $region28: #{simple_cnn2_forward.1} parent=1 // pred_region
      %44 = dma.done [#allocation6], 16
    $region29: #{simple_cnn2_forward.1} parent=1 // pred_fallthru
      _
    %45 = sfence
    %v46 = vld [vmem:[%s0] sm:$0xff]
    %v47 = vld [vmem:[%s0 + $0x10] sm:$0xff]
    %v48 = vld [vmem:[%s0 + $0x20] sm:$0xff]
    %v49 = vld [vmem:[%s0 + $0x30] sm:$0xff]
    %v50 = vld [vmem:[%s0 + $0x40] sm:$0xff]
    %v51 = vld [vmem:[%s0 + $0x50] sm:$0xff]
    %v52 = vld [vmem:[%s0 + $0x60] sm:$0xff]
    %v53 = vld [vmem:[%s0 + $0x70] sm:$0xff]
    %v54 = vld [vmem:[%s0 + $0x80] sm:$0xff]
    %v55 = vld [vmem:[%s0 + $0x90] sm:$0xff]
    %v56 = vld [vmem:[%s0 + $0xa0] sm:$0xff]
    %v57 = vld [vmem:[%s0 + $0xb0] sm:$0xff]
    %v58 = vld [vmem:[%s0 + $0xc0] sm:$0xff]
    %v59 = vld [vmem:[%s0 + $0xd0] sm:$0xff]
    %v60 = vld [vmem:[%s0 + $0xe0] sm:$0xff]
    %v61 = vld [vmem:[%s0 + $0xf0] sm:$0xff]
    %v62 = vld [vmem:[%s0 + $0x100] sm:$0xff]
    %v63 = vld [vmem:[%s0 + $0x110] sm:$0xff]
    %v64 = vld [vmem:[%s0 + $0x120] sm:$0xff]
    %v65 = vld [vmem:[%s0 + $0x130] sm:$0xff]
    %v66 = vld [vmem:[%s0 + $0x1] sm:$0xff]
    %v67 = vld [vmem:[%s0 + $0x11] sm:$0xff]
    %v68 = vld [vmem:[%s0 + $0x21] sm:$0xff]
    %v69 = vld [vmem:[%s0 + $0x31] sm:$0xff]
    %v70 = vld [vmem:[%s0 + $0x41] sm:$0xff]
    %v71 = vld [vmem:[%s0 + $0x51] sm:$0xff]
    %v72 = vld [vmem:[%s0 + $0x61] sm:$0xff]
    %v73 = vld [vmem:[%s0 + $0x71] sm:$0xff]
    %v74 = vld [vmem:[%s0 + $0x81] sm:$0xff]
    %v75 = vld [vmem:[%s0 + $0x91] sm:$0xff]
    %v76 = vld [vmem:[%s0 + $0xa1] sm:$0xff]
    %v77 = vld [vmem:[%s0 + $0xb1] sm:$0xff]
    %v78 = vld [vmem:[%s0 + $0xc1] sm:$0xff]
    %v79 = vld [vmem:[%s0 + $0xd1] sm:$0xff]
    %v80 = vld [vmem:[%s0 + $0xe1] sm:$0xff]
    %v81 = vld [vmem:[%s0 + $0xf1] sm:$0xff]
    %v82 = vld [vmem:[%s0 + $0x101] sm:$0xff]
    %v83 = vld [vmem:[%s0 + $0x111] sm:$0xff]
    %v84 = vld [vmem:[%s0 + $0x121] sm:$0xff]
    %v85 = vld [vmem:[%s0 + $0x131] sm:$0xff]
    %v86 = vld [vmem:[%s0 + $0x2] sm:$0xff]
    %v87 = vld [vmem:[%s0 + $0x12] sm:$0xff]
    %v88 = vld [vmem:[%s0 + $0x22] sm:$0xff]
    %v89 = vld [vmem:[%s0 + $0x32] sm:$0xff]
    %v90 = vld [vmem:[%s0 + $0x42] sm:$0xff]
    %v91 = vld [vmem:[%s0 + $0x52] sm:$0xff]
    %v92 = vld [vmem:[%s0 + $0x62] sm:$0xff]
    %v93 = vld [vmem:[%s0 + $0x72] sm:$0xff]
    %v94 = vld [vmem:[%s0 + $0x82] sm:$0xff]
    %v95 = vld [vmem:[%s0 + $0x92] sm:$0xff]
    %v96 = vld [vmem:[%s0 + $0xa2] sm:$0xff]
    %v97 = vld [vmem:[%s0 + $0xb2] sm:$0xff]
    %v98 = vld [vmem:[%s0 + $0xc2] sm:$0xff]
    %v99 = vld [vmem:[%s0 + $0xd2] sm:$0xff]
    %v100 = vld [vmem:[%s0 + $0xe2] sm:$0xff]
    %v101 = vld [vmem:[%s0 + $0xf2] sm:$0xff]
    %v102 = vld [vmem:[%s0 + $0x102] sm:$0xff]
    %v103 = vld [vmem:[%s0 + $0x112] sm:$0xff]
    %v104 = vld [vmem:[%s0 + $0x122] sm:$0xff]
    %v105 = vld [vmem:[%s0 + $0x132] sm:$0xff]
    %v106 = vld [vmem:[%s3] sm:$0x7f]
    %v107 = vld [vmem:[%s3 + $0x8] sm:$0x7f]
    %v108 = vld [vmem:[%s3 + $0x10] sm:$0x7f]
    %v109 = vld [vmem:[%s3 + $0x18] sm:$0x7f]
    %v110 = vld [vmem:[%s3 + $0x20] sm:$0x7f]
    %v111 = vld [vmem:[%s3 + $0x28] sm:$0x7f]
    %v112 = vld [vmem:[%s3 + $0x30] sm:$0x7f]
    %v113 = vld [vmem:[%s3 + $0x38] sm:$0x7f]
    %v114 = vld [vmem:[%s3 + $0x40] sm:$0x7f]
    %v115 = vld [vmem:[%s3 + $0x48] sm:$0x7f]
    %v116 = vld [vmem:[%s3 + $0x50] sm:$0x7f]
    %v117 = vld [vmem:[%s3 + $0x58] sm:$0x7f]
    %v118 = vld [vmem:[%s3 + $0x60] sm:$0x7f]
    %v119 = vld [vmem:[%s3 + $0x68] sm:$0x7f]
    %v120 = vld [vmem:[%s3 + $0x70] sm:$0x7f]
    %v121 = vld [vmem:[%s3 + $0x78] sm:$0x7f]
    %v122 = vld [vmem:[%s3 + $0x80] sm:$0x7f]
    %v123 = vld [vmem:[%s3 + $0x88] sm:$0x7f]
    %v124 = vld [vmem:[%s3 + $0x90] sm:$0x7f]
    %v125 = vld [vmem:[%s3 + $0x98] sm:$0x7f]
    %v126 = vld [vmem:[%s3 + $0xa0] sm:$0x7f]
    %v127 = vld [vmem:[%s3 + $0xa8] sm:$0x7f]
    %v128 = vld [vmem:[%s3 + $0xb0] sm:$0x7f]
    %v129 = vld [vmem:[%s3 + $0xb8] sm:$0x7f]
    %v130 = vld [vmem:[%s3 + $0xc0] sm:$0x7f]
    %v131 = vld [vmem:[%s3 + $0xc8] sm:$0x7f]
    %v132 = vld [vmem:[%s3 + $0xd0] sm:$0x7f]
    %v133 = vld [vmem:[%s3 + $0xd8] sm:$0x7f]
    %v134 = vld [vmem:[%s3 + $0xe0] sm:$0x7f]
    %v135 = vld [vmem:[%s3 + $0xe8] sm:$0x7f]
    %v136 = vld [vmem:[%s3 + $0xf0] sm:$0x7f]
    %v137 = vld [vmem:[%s3 + $0xf8] sm:$0x7f]
    %v138 = vld [vmem:[%s3 + $0x100] sm:$0x7f]
    %v139 = vld [vmem:[%s3 + $0x108] sm:$0x7f]
    %v140 = vld [vmem:[%s3 + $0x110] sm:$0x7f]
    %v141 = vld [vmem:[%s3 + $0x118] sm:$0x7f]
    %v142 = vld [vmem:[%s3 + $0x120] sm:$0x7f]
    %v143 = vld [vmem:[%s3 + $0x128] sm:$0x7f]
    %v144 = vld [vmem:[%s3 + $0x130] sm:$0x7f]
    %v145 = vld [vmem:[%s3 + $0x138] sm:$0x7f]
    %v146 = vld [vmem:[%s3 + $0x140] sm:$0x7f]
    %v147 = vld [vmem:[%s3 + $0x148] sm:$0x7f]
    %v148 = vld [vmem:[%s3 + $0x150] sm:$0x7f]
    %v149 = vld [vmem:[%s3 + $0x158] sm:$0x7f]
    %v150 = vld [vmem:[%s3 + $0x160] sm:$0x7f]
    %v151 = vld [vmem:[%s3 + $0x168] sm:$0x7f]
    %v152 = vld [vmem:[%s3 + $0x170] sm:$0x7f]
    %v153 = vld [vmem:[%s3 + $0x178] sm:$0x7f]
    %v154 = vld [vmem:[%s3 + $0x180] sm:$0x7f]
    %v155 = vld [vmem:[%s3 + $0x188] sm:$0x7f]
    %v156 = vld [vmem:[%s3 + $0x190] sm:$0x7f]
    %v157 = vld [vmem:[%s3 + $0x198] sm:$0x7f]
    %v158 = vld [vmem:[%s3 + $0x1a0] sm:$0x7f]
    %v159 = vld [vmem:[%s3 + $0x1a8] sm:$0x7f]
    %v160 = vld [vmem:[%s3 + $0x1b0] sm:$0x7f]
    %v161 = vld [vmem:[%s3 + $0x1b8] sm:$0x7f]
    %v162 = vld [vmem:[%s3 + $0x1c0] sm:$0x7f]
    %v163 = vld [vmem:[%s3 + $0x1c8] sm:$0x7f]
    %v164 = vld [vmem:[%s3 + $0x1d0] sm:$0x7f]
    %v165 = vld [vmem:[%s3 + $0x1d8] sm:$0x7f]
    %v166 = vld [vmem:[%s3 + $0x1e0] sm:$0x7f]
    %v167 = vld [vmem:[%s3 + $0x1e8] sm:$0x7f]
    %v168 = vld [vmem:[%s3 + $0x1f0] sm:$0x7f]
    %v169 = vld [vmem:[%s3 + $0x1f8] sm:$0x7f]
    %v170 = vld [vmem:[%s3 + $0x200] sm:$0x7f]
    %v171 = vld [vmem:[%s3 + $0x208] sm:$0x7f]
    %v172 = vld [vmem:[%s3 + $0x210] sm:$0x7f]
    %v173 = vld [vmem:[%s3 + $0x218] sm:$0x7f]
    %v174 = vld [vmem:[%s3 + $0x220] sm:$0x7f]
    %v175 = vld [vmem:[%s3 + $0x228] sm:$0x7f]
    %v176 = vld [vmem:[%s3 + $0x230] sm:$0x7f]
    %v177 = vld [vmem:[%s3 + $0x238] sm:$0x7f]
    %v178 = vld [vmem:[%s3 + $0x240] sm:$0x7f]
    %v179 = vld [vmem:[%s3 + $0x248] sm:$0x7f]
    %v180 = vld [vmem:[%s3 + $0x250] sm:$0x7f]
    %v181 = vld [vmem:[%s3 + $0x258] sm:$0x7f]
    %v182 = vld [vmem:[%s3 + $0x260] sm:$0x7f]
    %v183 = vld [vmem:[%s3 + $0x268] sm:$0x7f]
    %v184 = vld [vmem:[%s3 + $0x270] sm:$0x7f]
    %v185 = vld [vmem:[%s3 + $0x278] sm:$0x7f]
    %v186 = vld [vmem:[%s3 + $0x280] sm:$0x7f]
    %v187 = vld [vmem:[%s3 + $0x288] sm:$0x7f]
    %v188 = vld [vmem:[%s3 + $0x290] sm:$0x7f]
    %v189 = vld [vmem:[%s3 + $0x298] sm:$0x7f]
    %v190 = vld [vmem:[%s3 + $0x2a0] sm:$0x7f]
    %v191 = vld [vmem:[%s3 + $0x2a8] sm:$0x7f]
    %v192 = vld [vmem:[%s3 + $0x2b0] sm:$0x7f]
    %v193 = vld [vmem:[%s3 + $0x2b8] sm:$0x7f]
    %v194 = vld [vmem:[%s3 + $0x2c0] sm:$0x7f]
    %v195 = vld [vmem:[%s3 + $0x2c8] sm:$0x7f]
    %v196 = vld [vmem:[%s3 + $0x2d0] sm:$0x7f]
    %v197 = vld [vmem:[%s3 + $0x2d8] sm:$0x7f]
    %v198 = vld [vmem:[%s3 + $0x2e0] sm:$0x7f]
    %v199 = vld [vmem:[%s3 + $0x2e8] sm:$0x7f]
    %v200 = vld [vmem:[%s3 + $0x2f0] sm:$0x7f]
    %v201 = vld [vmem:[%s3 + $0x2f8] sm:$0x7f]
    %v202 = vld [vmem:[%s3 + $0x300] sm:$0x7f]
    %v203 = vld [vmem:[%s3 + $0x308] sm:$0x7f]
    %v204 = vld [vmem:[%s3 + $0x310] sm:$0x7f]
    %v205 = vld [vmem:[%s3 + $0x318] sm:$0x7f]
    %v206 = vld [vmem:[%s3 + $0x320] sm:$0x7f]
    %v207 = vld [vmem:[%s3 + $0x328] sm:$0x7f]
    %v208 = vld [vmem:[%s3 + $0x330] sm:$0x7f]
    %v209 = vld [vmem:[%s3 + $0x338] sm:$0x7f]
    %v210 = vld [vmem:[%s3 + $0x340] sm:$0x7f]
    %v211 = vld [vmem:[%s3 + $0x348] sm:$0x7f]
    %v212 = vld [vmem:[%s3 + $0x350] sm:$0x7f]
    %v213 = vld [vmem:[%s3 + $0x358] sm:$0x7f]
    %v214 = vld [vmem:[%s3 + $0x360] sm:$0x7f]
    %v215 = vld [vmem:[%s3 + $0x368] sm:$0x7f]
    %v216 = vld [vmem:[%s3 + $0x370] sm:$0x7f]
    %v217 = vld [vmem:[%s3 + $0x378] sm:$0x7f]
    %v218 = vld [vmem:[%s3 + $0x380] sm:$0x7f]
    %v219 = vld [vmem:[%s3 + $0x388] sm:$0x7f]
    %v220 = vld [vmem:[%s3 + $0x390] sm:$0x7f]
    %v221 = vld [vmem:[%s3 + $0x398] sm:$0x7f]
    %v222 = vld [vmem:[%s3 + $0x3a0] sm:$0x7f]
    %v223 = vld [vmem:[%s3 + $0x3a8] sm:$0x7f]
    %v224 = vld [vmem:[%s3 + $0x3b0] sm:$0x7f]
    %v225 = vld [vmem:[%s3 + $0x3b8] sm:$0x7f]
    %v226 = vld [vmem:[%s3 + $0x3c0] sm:$0x7f]
    %v227 = vld [vmem:[%s3 + $0x3c8] sm:$0x7f]
    %v228 = vld [vmem:[%s3 + $0x3d0] sm:$0x7f]
    %v229 = vld [vmem:[%s3 + $0x3d8] sm:$0x7f]
    %v230 = vld [vmem:[%s3 + $0x3e0] sm:$0x7f]
    %v231 = vld [vmem:[%s3 + $0x3e8] sm:$0x7f]
    %v232 = vld [vmem:[%s3 + $0x3f0] sm:$0x7f]
    %v233 = vld [vmem:[%s3 + $0x3f8] sm:$0x7f]
    %v234 = vld [vmem:[%s3 + $0x400] sm:$0x7f]
    %v235 = vld [vmem:[%s3 + $0x408] sm:$0x7f]
    %v236 = vld [vmem:[%s3 + $0x410] sm:$0x7f]
    %v237 = vld [vmem:[%s3 + $0x418] sm:$0x7f]
    %v238 = vld [vmem:[%s3 + $0x420] sm:$0x7f]
    %v239 = vld [vmem:[%s3 + $0x428] sm:$0x7f]
    %v240 = vld [vmem:[%s3 + $0x430] sm:$0x7f]
    %v241 = vld [vmem:[%s3 + $0x438] sm:$0x7f]
    %v242 = vld [vmem:[%s3 + $0x440] sm:$0x7f]
    %v243 = vld [vmem:[%s3 + $0x448] sm:$0x7f]
    %v244 = vld [vmem:[%s3 + $0x450] sm:$0x7f]
    %v245 = vld [vmem:[%s3 + $0x458] sm:$0x7f]
    %v246 = vld [vmem:[%s3 + $0x460] sm:$0x7f]
    %v247 = vld [vmem:[%s3 + $0x468] sm:$0x7f]
    %v248 = vld [vmem:[%s3 + $0x470] sm:$0x7f]
    %v249 = vld [vmem:[%s3 + $0x478] sm:$0x7f]
    %s250 = sld [smem:[#allocation3]]
    %v251 = vstv %s250
    %v252 = vmul.f32 %v46, %v251
    %v253 = vmul.f32 %v47, %v251
    %v254 = vmul.f32 %v48, %v251
    %v255 = vmul.f32 %v49, %v251
    %v256 = vmul.f32 %v50, %v251
    %v257 = vmul.f32 %v51, %v251
    %v258 = vmul.f32 %v52, %v251
    %v259 = vmul.f32 %v53, %v251
    %v260 = vmul.f32 %v54, %v251
    %v261 = vmul.f32 %v55, %v251
    %v262 = vmul.f32 %v56, %v251
    %v263 = vmul.f32 %v57, %v251
    %v264 = vmul.f32 %v58, %v251
    %v265 = vmul.f32 %v59, %v251
    %v266 = vmul.f32 %v60, %v251
    %v267 = vmul.f32 %v61, %v251
    %v268 = vmul.f32 %v62, %v251
    %v269 = vmul.f32 %v63, %v251
    %s270 = sld [smem:[#allocation3 + $0x1]]
    %v271 = vstv %s270
    %v272 = vmul.f32 %v66, %v271
    %v273 = vmul.f32 %v67, %v271
    %v274 = vmul.f32 %v68, %v271
    %v275 = vmul.f32 %v69, %v271
    %v276 = vmul.f32 %v70, %v271
    %v277 = vmul.f32 %v71, %v271
    %v278 = vmul.f32 %v72, %v271
    %v279 = vmul.f32 %v73, %v271
    %v280 = vmul.f32 %v74, %v271
    %v281 = vmul.f32 %v75, %v271
    %v282 = vmul.f32 %v76, %v271
    %v283 = vmul.f32 %v77, %v271
    %v284 = vmul.f32 %v78, %v271
    %v285 = vmul.f32 %v79, %v271
    %v286 = vmul.f32 %v80, %v271
    %v287 = vmul.f32 %v81, %v271
    %v288 = vmul.f32 %v82, %v271
    %v289 = vmul.f32 %v83, %v271
    %v290 = vadd.f32 %v252, %v272
    %v291 = vadd.f32 %v253, %v273
    %v292 = vadd.f32 %v254, %v274
    %v293 = vadd.f32 %v255, %v275
    %v294 = vadd.f32 %v256, %v276
    %v295 = vadd.f32 %v257, %v277
    %v296 = vadd.f32 %v258, %v278
    %v297 = vadd.f32 %v259, %v279
    %v298 = vadd.f32 %v260, %v280
    %v299 = vadd.f32 %v261, %v281
    %v300 = vadd.f32 %v262, %v282
    %v301 = vadd.f32 %v263, %v283
    %v302 = vadd.f32 %v264, %v284
    %v303 = vadd.f32 %v265, %v285
    %v304 = vadd.f32 %v266, %v286
    %v305 = vadd.f32 %v267, %v287
    %v306 = vadd.f32 %v268, %v288
    %v307 = vadd.f32 %v269, %v289
    %s308 = sld [smem:[#allocation3 + $0x2]]
    %v309 = vstv %s308
    %v310 = vmul.f32 %v86, %v309
    %v311 = vmul.f32 %v87, %v309
    %v312 = vmul.f32 %v88, %v309
    %v313 = vmul.f32 %v89, %v309
    %v314 = vmul.f32 %v90, %v309
    %v315 = vmul.f32 %v91, %v309
    %v316 = vmul.f32 %v92, %v309
    %v317 = vmul.f32 %v93, %v309
    %v318 = vmul.f32 %v94, %v309
    %v319 = vmul.f32 %v95, %v309
    %v320 = vmul.f32 %v96, %v309
    %v321 = vmul.f32 %v97, %v309
    %v322 = vmul.f32 %v98, %v309
    %v323 = vmul.f32 %v99, %v309
    %v324 = vmul.f32 %v100, %v309
    %v325 = vmul.f32 %v101, %v309
    %v326 = vmul.f32 %v102, %v309
    %v327 = vmul.f32 %v103, %v309
    %v328 = vadd.f32 %v290, %v310
    %v329 = vadd.f32 %v291, %v311
    %v330 = vadd.f32 %v292, %v312
    %v331 = vadd.f32 %v293, %v313
    %v332 = vadd.f32 %v294, %v314
    %v333 = vadd.f32 %v295, %v315
    %v334 = vadd.f32 %v296, %v316
    %v335 = vadd.f32 %v297, %v317
    %v336 = vadd.f32 %v298, %v318
    %v337 = vadd.f32 %v299, %v319
    %v338 = vadd.f32 %v300, %v320
    %v339 = vadd.f32 %v301, %v321
    %v340 = vadd.f32 %v302, %v322
    %v341 = vadd.f32 %v303, %v323
    %v342 = vadd.f32 %v304, %v324
    %v343 = vadd.f32 %v305, %v325
    %v344 = vadd.f32 %v306, %v326
    %v345 = vadd.f32 %v307, %v327
    %s346 = sld [smem:[#allocation3 + $0x3]]
    %v347 = vstv %s346
    %v348 = vmul.f32 %v47, %v347
    %v349 = vmul.f32 %v48, %v347
    %v350 = vmul.f32 %v49, %v347
    %v351 = vmul.f32 %v50, %v347
    %v352 = vmul.f32 %v51, %v347
    %v353 = vmul.f32 %v52, %v347
    %v354 = vmul.f32 %v53, %v347
    %v355 = vmul.f32 %v54, %v347
    %v356 = vmul.f32 %v55, %v347
    %v357 = vmul.f32 %v56, %v347
    %v358 = vmul.f32 %v57, %v347
    %v359 = vmul.f32 %v58, %v347
    %v360 = vmul.f32 %v59, %v347
    %v361 = vmul.f32 %v60, %v347
    %v362 = vmul.f32 %v61, %v347
    %v363 = vmul.f32 %v62, %v347
    %v364 = vmul.f32 %v63, %v347
    %v365 = vmul.f32 %v64, %v347
    %v366 = vadd.f32 %v328, %v348
    %v367 = vadd.f32 %v329, %v349
    %v368 = vadd.f32 %v330, %v350
    %v369 = vadd.f32 %v331, %v351
    %v370 = vadd.f32 %v332, %v352
    %v371 = vadd.f32 %v333, %v353
    %v372 = vadd.f32 %v334, %v354
    %v373 = vadd.f32 %v335, %v355
    %v374 = vadd.f32 %v336, %v356
    %v375 = vadd.f32 %v337, %v357
    %v376 = vadd.f32 %v338, %v358
    %v377 = vadd.f32 %v339, %v359
    %v378 = vadd.f32 %v340, %v360
    %v379 = vadd.f32 %v341, %v361
    %v380 = vadd.f32 %v342, %v362
    %v381 = vadd.f32 %v343, %v363
    %v382 = vadd.f32 %v344, %v364
    %v383 = vadd.f32 %v345, %v365
    %s384 = sld [smem:[#allocation3 + $0x4]]
    %v385 = vstv %s384
    %v386 = vmul.f32 %v67, %v385
    %v387 = vmul.f32 %v68, %v385
    %v388 = vmul.f32 %v69, %v385
    %v389 = vmul.f32 %v70, %v385
    %v390 = vmul.f32 %v71, %v385
    %v391 = vmul.f32 %v72, %v385
    %v392 = vmul.f32 %v73, %v385
    %v393 = vmul.f32 %v74, %v385
    %v394 = vmul.f32 %v75, %v385
    %v395 = vmul.f32 %v76, %v385
    %v396 = vmul.f32 %v77, %v385
    %v397 = vmul.f32 %v78, %v385
    %v398 = vmul.f32 %v79, %v385
    %v399 = vmul.f32 %v80, %v385
    %v400 = vmul.f32 %v81, %v385
    %v401 = vmul.f32 %v82, %v385
    %v402 = vmul.f32 %v83, %v385
    %v403 = vmul.f32 %v84, %v385
    %v404 = vadd.f32 %v366, %v386
    %v405 = vadd.f32 %v367, %v387
    %v406 = vadd.f32 %v368, %v388
    %v407 = vadd.f32 %v369, %v389
    %v408 = vadd.f32 %v370, %v390
    %v409 = vadd.f32 %v371, %v391
    %v410 = vadd.f32 %v372, %v392
    %v411 = vadd.f32 %v373, %v393
    %v412 = vadd.f32 %v374, %v394
    %v413 = vadd.f32 %v375, %v395
    %v414 = vadd.f32 %v376, %v396
    %v415 = vadd.f32 %v377, %v397
    %v416 = vadd.f32 %v378, %v398
    %v417 = vadd.f32 %v379, %v399
    %v418 = vadd.f32 %v380, %v400
    %v419 = vadd.f32 %v381, %v401
    %v420 = vadd.f32 %v382, %v402
    %v421 = vadd.f32 %v383, %v403
    %s422 = sld [smem:[#allocation3 + $0x5]]
    %v423 = vstv %s422
    %v424 = vmul.f32 %v87, %v423
    %v425 = vmul.f32 %v88, %v423
    %v426 = vmul.f32 %v89, %v423
    %v427 = vmul.f32 %v90, %v423
    %v428 = vmul.f32 %v91, %v423
    %v429 = vmul.f32 %v92, %v423
    %v430 = vmul.f32 %v93, %v423
    %v431 = vmul.f32 %v94, %v423
    %v432 = vmul.f32 %v95, %v423
    %v433 = vmul.f32 %v96, %v423
    %v434 = vmul.f32 %v97, %v423
    %v435 = vmul.f32 %v98, %v423
    %v436 = vmul.f32 %v99, %v423
    %v437 = vmul.f32 %v100, %v423
    %v438 = vmul.f32 %v101, %v423
    %v439 = vmul.f32 %v102, %v423
    %v440 = vmul.f32 %v103, %v423
    %v441 = vmul.f32 %v104, %v423
    %v442 = vadd.f32 %v404, %v424
    %v443 = vadd.f32 %v405, %v425
    %v444 = vadd.f32 %v406, %v426
    %v445 = vadd.f32 %v407, %v427
    %v446 = vadd.f32 %v408, %v428
    %v447 = vadd.f32 %v409, %v429
    %v448 = vadd.f32 %v410, %v430
    %v449 = vadd.f32 %v411, %v431
    %v450 = vadd.f32 %v412, %v432
    %v451 = vadd.f32 %v413, %v433
    %v452 = vadd.f32 %v414, %v434
    %v453 = vadd.f32 %v415, %v435
    %v454 = vadd.f32 %v416, %v436
    %v455 = vadd.f32 %v417, %v437
    %v456 = vadd.f32 %v418, %v438
    %v457 = vadd.f32 %v419, %v439
    %v458 = vadd.f32 %v420, %v440
    %v459 = vadd.f32 %v421, %v441
    %s460 = sld [smem:[#allocation3 + $0x6]]
    %v461 = vstv %s460
    %v462 = vmul.f32 %v48, %v461
    %v463 = vmul.f32 %v49, %v461
    %v464 = vmul.f32 %v50, %v461
    %v465 = vmul.f32 %v51, %v461
    %v466 = vmul.f32 %v52, %v461
    %v467 = vmul.f32 %v53, %v461
    %v468 = vmul.f32 %v54, %v461
    %v469 = vmul.f32 %v55, %v461
    %v470 = vmul.f32 %v56, %v461
    %v471 = vmul.f32 %v57, %v461
    %v472 = vmul.f32 %v58, %v461
    %v473 = vmul.f32 %v59, %v461
    %v474 = vmul.f32 %v60, %v461
    %v475 = vmul.f32 %v61, %v461
    %v476 = vmul.f32 %v62, %v461
    %v477 = vmul.f32 %v63, %v461
    %v478 = vmul.f32 %v64, %v461
    %v479 = vmul.f32 %v65, %v461
    %v480 = vadd.f32 %v442, %v462
    %v481 = vadd.f32 %v443, %v463
    %v482 = vadd.f32 %v444, %v464
    %v483 = vadd.f32 %v445, %v465
    %v484 = vadd.f32 %v446, %v466
    %v485 = vadd.f32 %v447, %v467
    %v486 = vadd.f32 %v448, %v468
    %v487 = vadd.f32 %v449, %v469
    %v488 = vadd.f32 %v450, %v470
    %v489 = vadd.f32 %v451, %v471
    %v490 = vadd.f32 %v452, %v472
    %v491 = vadd.f32 %v453, %v473
    %v492 = vadd.f32 %v454, %v474
    %v493 = vadd.f32 %v455, %v475
    %v494 = vadd.f32 %v456, %v476
    %v495 = vadd.f32 %v457, %v477
    %v496 = vadd.f32 %v458, %v478
    %v497 = vadd.f32 %v459, %v479
    %s498 = sld [smem:[#allocation3 + $0x7]]
    %v499 = vstv %s498
    %v500 = vmul.f32 %v68, %v499
    %v501 = vmul.f32 %v69, %v499
    %v502 = vmul.f32 %v70, %v499
    %v503 = vmul.f32 %v71, %v499
    %v504 = vmul.f32 %v72, %v499
    %v505 = vmul.f32 %v73, %v499
    %v506 = vmul.f32 %v74, %v499
    %v507 = vmul.f32 %v75, %v499
    %v508 = vmul.f32 %v76, %v499
    %v509 = vmul.f32 %v77, %v499
    %v510 = vmul.f32 %v78, %v499
    %v511 = vmul.f32 %v79, %v499
    %v512 = vmul.f32 %v80, %v499
    %v513 = vmul.f32 %v81, %v499
    %v514 = vmul.f32 %v82, %v499
    %v515 = vmul.f32 %v83, %v499
    %v516 = vmul.f32 %v84, %v499
    %v517 = vmul.f32 %v85, %v499
    %v518 = vadd.f32 %v480, %v500
    %v519 = vadd.f32 %v481, %v501
    %v520 = vadd.f32 %v482, %v502
    %v521 = vadd.f32 %v483, %v503
    %v522 = vadd.f32 %v484, %v504
    %v523 = vadd.f32 %v485, %v505
    %v524 = vadd.f32 %v486, %v506
    %v525 = vadd.f32 %v487, %v507
    %v526 = vadd.f32 %v488, %v508
    %v527 = vadd.f32 %v489, %v509
    %v528 = vadd.f32 %v490, %v510
    %v529 = vadd.f32 %v491, %v511
    %v530 = vadd.f32 %v492, %v512
    %v531 = vadd.f32 %v493, %v513
    %v532 = vadd.f32 %v494, %v514
    %v533 = vadd.f32 %v495, %v515
    %v534 = vadd.f32 %v496, %v516
    %v535 = vadd.f32 %v497, %v517
    %s536 = sld [smem:[#allocation3 + $0x8]]
    %v537 = vstv %s536
    %v538 = vmul.f32 %v88, %v537
    %v539 = vmul.f32 %v89, %v537
    %v540 = vmul.f32 %v90, %v537
    %v541 = vmul.f32 %v91, %v537
    %v542 = vmul.f32 %v92, %v537
    %v543 = vmul.f32 %v93, %v537
    %v544 = vmul.f32 %v94, %v537
    %v545 = vmul.f32 %v95, %v537
    %v546 = vmul.f32 %v96, %v537
    %v547 = vmul.f32 %v97, %v537
    %v548 = vmul.f32 %v98, %v537
    %v549 = vmul.f32 %v99, %v537
    %v550 = vmul.f32 %v100, %v537
    %v551 = vmul.f32 %v101, %v537
    %v552 = vmul.f32 %v102, %v537
    %v553 = vmul.f32 %v103, %v537
    %v554 = vmul.f32 %v104, %v537
    %v555 = vmul.f32 %v105, %v537
    %v556 = vadd.f32 %v518, %v538
    %v557 = vadd.f32 %v519, %v539
    %v558 = vadd.f32 %v520, %v540
    %v559 = vadd.f32 %v521, %v541
    %v560 = vadd.f32 %v522, %v542
    %v561 = vadd.f32 %v523, %v543
    %v562 = vadd.f32 %v524, %v544
    %v563 = vadd.f32 %v525, %v545
    %v564 = vadd.f32 %v526, %v546
    %v565 = vadd.f32 %v527, %v547
    %v566 = vadd.f32 %v528, %v548
    %v567 = vadd.f32 %v529, %v549
    %v568 = vadd.f32 %v530, %v550
    %v569 = vadd.f32 %v531, %v551
    %v570 = vadd.f32 %v532, %v552
    %v571 = vadd.f32 %v533, %v553
    %v572 = vadd.f32 %v534, %v554
    %v573 = vadd.f32 %v535, %v555
    %s574 = sld [smem:[#allocation5]]
    %v575 = vstv %s574
    %v576 = vadd.f32 %v556, %v575
    %v577 = vadd.f32 %v557, %v575
    %v578 = vadd.f32 %v558, %v575
    %v579 = vadd.f32 %v559, %v575
    %v580 = vadd.f32 %v560, %v575
    %v581 = vadd.f32 %v561, %v575
    %v582 = vadd.f32 %v562, %v575
    %v583 = vadd.f32 %v563, %v575
    %v584 = vadd.f32 %v564, %v575
    %v585 = vadd.f32 %v565, %v575
    %v586 = vadd.f32 %v566, %v575
    %v587 = vadd.f32 %v567, %v575
    %v588 = vadd.f32 %v568, %v575
    %v589 = vadd.f32 %v569, %v575
    %v590 = vadd.f32 %v570, %v575
    %v591 = vadd.f32 %v571, %v575
    %v592 = vadd.f32 %v572, %v575
    %v593 = vadd.f32 %v573, %v575
    %v594 = vmax.f32 %v576, 0.0
    %v595 = vmax.f32 %v577, 0.0
    %v596 = vmax.f32 %v578, 0.0
    %v597 = vmax.f32 %v579, 0.0
    %v598 = vmax.f32 %v580, 0.0
    %v599 = vmax.f32 %v581, 0.0
    %v600 = vmax.f32 %v582, 0.0
    %v601 = vmax.f32 %v583, 0.0
    %v602 = vmax.f32 %v584, 0.0
    %v603 = vmax.f32 %v585, 0.0
    %v604 = vmax.f32 %v586, 0.0
    %v605 = vmax.f32 %v587, 0.0
    %v606 = vmax.f32 %v588, 0.0
    %v607 = vmax.f32 %v589, 0.0
    %v608 = vmax.f32 %v590, 0.0
    %v609 = vmax.f32 %v591, 0.0
    %v610 = vmax.f32 %v592, 0.0
    %v611 = vmax.f32 %v593, 0.0
    %v612 = vmax.f32 %v594, %v595
    %v613 = vmax.f32 %v596, %v597
    %v614 = vmax.f32 %v598, %v599
    %v615 = vmax.f32 %v600, %v601
    %v616 = vmax.f32 %v602, %v603
    %v617 = vmax.f32 %v604, %v605
    %v618 = vmax.f32 %v606, %v607
    %v619 = vmax.f32 %v608, %v609
    %v620 = vmax.f32 %v610, %v611
    %v630 = vrot.slane %v612, 1
    %v631 = vrot.slane %v613, 1
    %v632 = vrot.slane %v614, 1
    %v633 = vrot.slane %v615, 1
    %v634 = vrot.slane %v616, 1
    %v635 = vrot.slane %v617, 1
    %v636 = vrot.slane %v618, 1
    %v637 = vrot.slane %v619, 1
    %v638 = vrot.slane %v620, 1
    %v648 = vmax.f32 %v612, %v630
    %v649 = vmax.f32 %v613, %v631
    %v650 = vmax.f32 %v614, %v632
    %v651 = vmax.f32 %v615, %v633
    %v652 = vmax.f32 %v616, %v634
    %v653 = vmax.f32 %v617, %v635
    %v654 = vmax.f32 %v618, %v636
    %v655 = vmax.f32 %v619, %v637
    %v656 = vmax.f32 %v620, %v638
    %658 = vset.pattern.permute.xlu0 0
    %659 = vperm.xlu0 %658, %v106
    %v660 = vpop.permute.xlu0 %659
    %663 = vset.pattern.permute.xlu0 0
    %664 = vperm.xlu0 %663, %v107
    %v665 = vpop.permute.xlu0 %664
    %668 = vset.pattern.permute.xlu0 0
    %669 = vperm.xlu0 %668, %v108
    %v670 = vpop.permute.xlu0 %669
    %673 = vset.pattern.permute.xlu0 0
    %674 = vperm.xlu0 %673, %v109
    %v675 = vpop.permute.xlu0 %674
    %678 = vset.pattern.permute.xlu0 0
    %679 = vperm.xlu0 %678, %v110
    %v680 = vpop.permute.xlu0 %679
    %683 = vset.pattern.permute.xlu0 0
    %684 = vperm.xlu0 %683, %v111
    %v685 = vpop.permute.xlu0 %684
    %688 = vset.pattern.permute.xlu0 0
    %689 = vperm.xlu0 %688, %v112
    %v690 = vpop.permute.xlu0 %689
    %693 = vset.pattern.permute.xlu0 0
    %694 = vperm.xlu0 %693, %v113
    %v695 = vpop.permute.xlu0 %694
    %698 = vset.pattern.permute.xlu0 0
    %699 = vperm.xlu0 %698, %v114
    %v700 = vpop.permute.xlu0 %699
    %v702 = vmul.f32 %v648, %v660
    %v703 = vmul.f32 %v649, %v665
    %v704 = vmul.f32 %v650, %v670
    %v705 = vmul.f32 %v651, %v675
    %v706 = vmul.f32 %v652, %v680
    %v707 = vmul.f32 %v653, %v685
    %v708 = vmul.f32 %v654, %v690
    %v709 = vmul.f32 %v655, %v695
    %v710 = vmul.f32 %v656, %v700
    %v711 = vadd.f32 %v702, 0.0
    %v712 = vadd.f32 %v703, 0.0
    %v713 = vadd.f32 %v704, 0.0
    %v714 = vadd.f32 %v705, 0.0
    %v715 = vadd.f32 %v706, 0.0
    %v716 = vadd.f32 %v707, 0.0
    %v717 = vadd.f32 %v708, 0.0
    %v718 = vadd.f32 %v709, 0.0
    %v719 = vadd.f32 %v710, 0.0
    %s720 = sld [smem:[#allocation3 + $0x9]]
    %v721 = vstv %s720
    %v722 = vmul.f32 %v46, %v721
    %v723 = vmul.f32 %v47, %v721
    %v724 = vmul.f32 %v48, %v721
    %v725 = vmul.f32 %v49, %v721
    %v726 = vmul.f32 %v50, %v721
    %v727 = vmul.f32 %v51, %v721
    %v728 = vmul.f32 %v52, %v721
    %v729 = vmul.f32 %v53, %v721
    %v730 = vmul.f32 %v54, %v721
    %v731 = vmul.f32 %v55, %v721
    %v732 = vmul.f32 %v56, %v721
    %v733 = vmul.f32 %v57, %v721
    %v734 = vmul.f32 %v58, %v721
    %v735 = vmul.f32 %v59, %v721
    %v736 = vmul.f32 %v60, %v721
    %v737 = vmul.f32 %v61, %v721
    %v738 = vmul.f32 %v62, %v721
    %v739 = vmul.f32 %v63, %v721
    %s740 = sld [smem:[#allocation3 + $0xa]]
    %v741 = vstv %s740
    %v742 = vmul.f32 %v66, %v741
    %v743 = vmul.f32 %v67, %v741
    %v744 = vmul.f32 %v68, %v741
    %v745 = vmul.f32 %v69, %v741
    %v746 = vmul.f32 %v70, %v741
    %v747 = vmul.f32 %v71, %v741
    %v748 = vmul.f32 %v72, %v741
    %v749 = vmul.f32 %v73, %v741
    %v750 = vmul.f32 %v74, %v741
    %v751 = vmul.f32 %v75, %v741
    %v752 = vmul.f32 %v76, %v741
    %v753 = vmul.f32 %v77, %v741
    %v754 = vmul.f32 %v78, %v741
    %v755 = vmul.f32 %v79, %v741
    %v756 = vmul.f32 %v80, %v741
    %v757 = vmul.f32 %v81, %v741
    %v758 = vmul.f32 %v82, %v741
    %v759 = vmul.f32 %v83, %v741
    %v760 = vadd.f32 %v722, %v742
    %v761 = vadd.f32 %v723, %v743
    %v762 = vadd.f32 %v724, %v744
    %v763 = vadd.f32 %v725, %v745
    %v764 = vadd.f32 %v726, %v746
    %v765 = vadd.f32 %v727, %v747
    %v766 = vadd.f32 %v728, %v748
    %v767 = vadd.f32 %v729, %v749
    %v768 = vadd.f32 %v730, %v750
    %v769 = vadd.f32 %v731, %v751
    %v770 = vadd.f32 %v732, %v752
    %v771 = vadd.f32 %v733, %v753
    %v772 = vadd.f32 %v734, %v754
    %v773 = vadd.f32 %v735, %v755
    %v774 = vadd.f32 %v736, %v756
    %v775 = vadd.f32 %v737, %v757
    %v776 = vadd.f32 %v738, %v758
    %v777 = vadd.f32 %v739, %v759
    %s778 = sld [smem:[#allocation3 + $0xb]]
    %v779 = vstv %s778
    %v780 = vmul.f32 %v86, %v779
    %v781 = vmul.f32 %v87, %v779
    %v782 = vmul.f32 %v88, %v779
    %v783 = vmul.f32 %v89, %v779
    %v784 = vmul.f32 %v90, %v779
    %v785 = vmul.f32 %v91, %v779
    %v786 = vmul.f32 %v92, %v779
    %v787 = vmul.f32 %v93, %v779
    %v788 = vmul.f32 %v94, %v779
    %v789 = vmul.f32 %v95, %v779
    %v790 = vmul.f32 %v96, %v779
    %v791 = vmul.f32 %v97, %v779
    %v792 = vmul.f32 %v98, %v779
    %v793 = vmul.f32 %v99, %v779
    %v794 = vmul.f32 %v100, %v779
    %v795 = vmul.f32 %v101, %v779
    %v796 = vmul.f32 %v102, %v779
    %v797 = vmul.f32 %v103, %v779
    %v798 = vadd.f32 %v760, %v780
    %v799 = vadd.f32 %v761, %v781
    %v800 = vadd.f32 %v762, %v782
    %v801 = vadd.f32 %v763, %v783
    %v802 = vadd.f32 %v764, %v784
    %v803 = vadd.f32 %v765, %v785
    %v804 = vadd.f32 %v766, %v786
    %v805 = vadd.f32 %v767, %v787
    %v806 = vadd.f32 %v768, %v788
    %v807 = vadd.f32 %v769, %v789
    %v808 = vadd.f32 %v770, %v790
    %v809 = vadd.f32 %v771, %v791
    %v810 = vadd.f32 %v772, %v792
    %v811 = vadd.f32 %v773, %v793
    %v812 = vadd.f32 %v774, %v794
    %v813 = vadd.f32 %v775, %v795
    %v814 = vadd.f32 %v776, %v796
    %v815 = vadd.f32 %v777, %v797
    %s816 = sld [smem:[#allocation3 + $0xc]]
    %v817 = vstv %s816
    %v818 = vmul.f32 %v47, %v817
    %v819 = vmul.f32 %v48, %v817
    %v820 = vmul.f32 %v49, %v817
    %v821 = vmul.f32 %v50, %v817
    %v822 = vmul.f32 %v51, %v817
    %v823 = vmul.f32 %v52, %v817
    %v824 = vmul.f32 %v53, %v817
    %v825 = vmul.f32 %v54, %v817
    %v826 = vmul.f32 %v55, %v817
    %v827 = vmul.f32 %v56, %v817
    %v828 = vmul.f32 %v57, %v817
    %v829 = vmul.f32 %v58, %v817
    %v830 = vmul.f32 %v59, %v817
    %v831 = vmul.f32 %v60, %v817
    %v832 = vmul.f32 %v61, %v817
    %v833 = vmul.f32 %v62, %v817
    %v834 = vmul.f32 %v63, %v817
    %v835 = vmul.f32 %v64, %v817
    %v836 = vadd.f32 %v798, %v818
    %v837 = vadd.f32 %v799, %v819
    %v838 = vadd.f32 %v800, %v820
    %v839 = vadd.f32 %v801, %v821
    %v840 = vadd.f32 %v802, %v822
    %v841 = vadd.f32 %v803, %v823
    %v842 = vadd.f32 %v804, %v824
    %v843 = vadd.f32 %v805, %v825
    %v844 = vadd.f32 %v806, %v826
    %v845 = vadd.f32 %v807, %v827
    %v846 = vadd.f32 %v808, %v828
    %v847 = vadd.f32 %v809, %v829
    %v848 = vadd.f32 %v810, %v830
    %v849 = vadd.f32 %v811, %v831
    %v850 = vadd.f32 %v812, %v832
    %v851 = vadd.f32 %v813, %v833
    %v852 = vadd.f32 %v814, %v834
    %v853 = vadd.f32 %v815, %v835
    %s854 = sld [smem:[#allocation3 + $0xd]]
    %v855 = vstv %s854
    %v856 = vmul.f32 %v67, %v855
    %v857 = vmul.f32 %v68, %v855
    %v858 = vmul.f32 %v69, %v855
    %v859 = vmul.f32 %v70, %v855
    %v860 = vmul.f32 %v71, %v855
    %v861 = vmul.f32 %v72, %v855
    %v862 = vmul.f32 %v73, %v855
    %v863 = vmul.f32 %v74, %v855
    %v864 = vmul.f32 %v75, %v855
    %v865 = vmul.f32 %v76, %v855
    %v866 = vmul.f32 %v77, %v855
    %v867 = vmul.f32 %v78, %v855
    %v868 = vmul.f32 %v79, %v855
    %v869 = vmul.f32 %v80, %v855
    %v870 = vmul.f32 %v81, %v855
    %v871 = vmul.f32 %v82, %v855
    %v872 = vmul.f32 %v83, %v855
    %v873 = vmul.f32 %v84, %v855
    %v874 = vadd.f32 %v836, %v856
    %v875 = vadd.f32 %v837, %v857
    %v876 = vadd.f32 %v838, %v858
    %v877 = vadd.f32 %v839, %v859
    %v878 = vadd.f32 %v840, %v860
    %v879 = vadd.f32 %v841, %v861
    %v880 = vadd.f32 %v842, %v862
    %v881 = vadd.f32 %v843, %v863
    %v882 = vadd.f32 %v844, %v864
    %v883 = vadd.f32 %v845, %v865
    %v884 = vadd.f32 %v846, %v866
    %v885 = vadd.f32 %v847, %v867
    %v886 = vadd.f32 %v848, %v868
    %v887 = vadd.f32 %v849, %v869
    %v888 = vadd.f32 %v850, %v870
    %v889 = vadd.f32 %v851, %v871
    %v890 = vadd.f32 %v852, %v872
    %v891 = vadd.f32 %v853, %v873
    %s892 = sld [smem:[#allocation3 + $0xe]]
    %v893 = vstv %s892
    %v894 = vmul.f32 %v87, %v893
    %v895 = vmul.f32 %v88, %v893
    %v896 = vmul.f32 %v89, %v893
    %v897 = vmul.f32 %v90, %v893
    %v898 = vmul.f32 %v91, %v893
    %v899 = vmul.f32 %v92, %v893
    %v900 = vmul.f32 %v93, %v893
    %v901 = vmul.f32 %v94, %v893
    %v902 = vmul.f32 %v95, %v893
    %v903 = vmul.f32 %v96, %v893
    %v904 = vmul.f32 %v97, %v893
    %v905 = vmul.f32 %v98, %v893
    %v906 = vmul.f32 %v99, %v893
    %v907 = vmul.f32 %v100, %v893
    %v908 = vmul.f32 %v101, %v893
    %v909 = vmul.f32 %v102, %v893
    %v910 = vmul.f32 %v103, %v893
    %v911 = vmul.f32 %v104, %v893
    %v912 = vadd.f32 %v874, %v894
    %v913 = vadd.f32 %v875, %v895
    %v914 = vadd.f32 %v876, %v896
    %v915 = vadd.f32 %v877, %v897
    %v916 = vadd.f32 %v878, %v898
    %v917 = vadd.f32 %v879, %v899
    %v918 = vadd.f32 %v880, %v900
    %v919 = vadd.f32 %v881, %v901
    %v920 = vadd.f32 %v882, %v902
    %v921 = vadd.f32 %v883, %v903
    %v922 = vadd.f32 %v884, %v904
    %v923 = vadd.f32 %v885, %v905
    %v924 = vadd.f32 %v886, %v906
    %v925 = vadd.f32 %v887, %v907
    %v926 = vadd.f32 %v888, %v908
    %v927 = vadd.f32 %v889, %v909
    %v928 = vadd.f32 %v890, %v910
    %v929 = vadd.f32 %v891, %v911
    %s930 = sld [smem:[#allocation3 + $0xf]]
    %v931 = vstv %s930
    %v932 = vmul.f32 %v48, %v931
    %v933 = vmul.f32 %v49, %v931
    %v934 = vmul.f32 %v50, %v931
    %v935 = vmul.f32 %v51, %v931
    %v936 = vmul.f32 %v52, %v931
    %v937 = vmul.f32 %v53, %v931
    %v938 = vmul.f32 %v54, %v931
    %v939 = vmul.f32 %v55, %v931
    %v940 = vmul.f32 %v56, %v931
    %v941 = vmul.f32 %v57, %v931
    %v942 = vmul.f32 %v58, %v931
    %v943 = vmul.f32 %v59, %v931
    %v944 = vmul.f32 %v60, %v931
    %v945 = vmul.f32 %v61, %v931
    %v946 = vmul.f32 %v62, %v931
    %v947 = vmul.f32 %v63, %v931
    %v948 = vmul.f32 %v64, %v931
    %v949 = vmul.f32 %v65, %v931
    %v950 = vadd.f32 %v912, %v932
    %v951 = vadd.f32 %v913, %v933
    %v952 = vadd.f32 %v914, %v934
    %v953 = vadd.f32 %v915, %v935
    %v954 = vadd.f32 %v916, %v936
    %v955 = vadd.f32 %v917, %v937
    %v956 = vadd.f32 %v918, %v938
    %v957 = vadd.f32 %v919, %v939
    %v958 = vadd.f32 %v920, %v940
    %v959 = vadd.f32 %v921, %v941
    %v960 = vadd.f32 %v922, %v942
    %v961 = vadd.f32 %v923, %v943
    %v962 = vadd.f32 %v924, %v944
    %v963 = vadd.f32 %v925, %v945
    %v964 = vadd.f32 %v926, %v946
    %v965 = vadd.f32 %v927, %v947
    %v966 = vadd.f32 %v928, %v948
    %v967 = vadd.f32 %v929, %v949
    %s968 = sld [smem:[#allocation3 + $0x10]]
    %v969 = vstv %s968
    %v970 = vmul.f32 %v68, %v969
    %v971 = vmul.f32 %v69, %v969
    %v972 = vmul.f32 %v70, %v969
    %v973 = vmul.f32 %v71, %v969
    %v974 = vmul.f32 %v72, %v969
    %v975 = vmul.f32 %v73, %v969
    %v976 = vmul.f32 %v74, %v969
    %v977 = vmul.f32 %v75, %v969
    %v978 = vmul.f32 %v76, %v969
    %v979 = vmul.f32 %v77, %v969
    %v980 = vmul.f32 %v78, %v969
    %v981 = vmul.f32 %v79, %v969
    %v982 = vmul.f32 %v80, %v969
    %v983 = vmul.f32 %v81, %v969
    %v984 = vmul.f32 %v82, %v969
    %v985 = vmul.f32 %v83, %v969
    %v986 = vmul.f32 %v84, %v969
    %v987 = vmul.f32 %v85, %v969
    %v988 = vadd.f32 %v950, %v970
    %v989 = vadd.f32 %v951, %v971
    %v990 = vadd.f32 %v952, %v972
    %v991 = vadd.f32 %v953, %v973
    %v992 = vadd.f32 %v954, %v974
    %v993 = vadd.f32 %v955, %v975
    %v994 = vadd.f32 %v956, %v976
    %v995 = vadd.f32 %v957, %v977
    %v996 = vadd.f32 %v958, %v978
    %v997 = vadd.f32 %v959, %v979
    %v998 = vadd.f32 %v960, %v980
    %v999 = vadd.f32 %v961, %v981
    %v1000 = vadd.f32 %v962, %v982
    %v1001 = vadd.f32 %v963, %v983
    %v1002 = vadd.f32 %v964, %v984
    %v1003 = vadd.f32 %v965, %v985
    %v1004 = vadd.f32 %v966, %v986
    %v1005 = vadd.f32 %v967, %v987
    %s1006 = sld [smem:[#allocation3 + $0x11]]
    %v1007 = vstv %s1006
    %v1008 = vmul.f32 %v88, %v1007
    %v1009 = vmul.f32 %v89, %v1007
    %v1010 = vmul.f32 %v90, %v1007
    %v1011 = vmul.f32 %v91, %v1007
    %v1012 = vmul.f32 %v92, %v1007
    %v1013 = vmul.f32 %v93, %v1007
    %v1014 = vmul.f32 %v94, %v1007
    %v1015 = vmul.f32 %v95, %v1007
    %v1016 = vmul.f32 %v96, %v1007
    %v1017 = vmul.f32 %v97, %v1007
    %v1018 = vmul.f32 %v98, %v1007
    %v1019 = vmul.f32 %v99, %v1007
    %v1020 = vmul.f32 %v100, %v1007
    %v1021 = vmul.f32 %v101, %v1007
    %v1022 = vmul.f32 %v102, %v1007
    %v1023 = vmul.f32 %v103, %v1007
    %v1024 = vmul.f32 %v104, %v1007
    %v1025 = vmul.f32 %v105, %v1007
    %v1026 = vadd.f32 %v988, %v1008
    %v1027 = vadd.f32 %v989, %v1009
    %v1028 = vadd.f32 %v990, %v1010
    %v1029 = vadd.f32 %v991, %v1011
    %v1030 = vadd.f32 %v992, %v1012
    %v1031 = vadd.f32 %v993, %v1013
    %v1032 = vadd.f32 %v994, %v1014
    %v1033 = vadd.f32 %v995, %v1015
    %v1034 = vadd.f32 %v996, %v1016
    %v1035 = vadd.f32 %v997, %v1017
    %v1036 = vadd.f32 %v998, %v1018
    %v1037 = vadd.f32 %v999, %v1019
    %v1038 = vadd.f32 %v1000, %v1020
    %v1039 = vadd.f32 %v1001, %v1021
    %v1040 = vadd.f32 %v1002, %v1022
    %v1041 = vadd.f32 %v1003, %v1023
    %v1042 = vadd.f32 %v1004, %v1024
    %v1043 = vadd.f32 %v1005, %v1025
    %s1044 = sld [smem:[#allocation5 + $0x1]]
    %v1045 = vstv %s1044
    %v1046 = vadd.f32 %v1026, %v1045
    %v1047 = vadd.f32 %v1027, %v1045
    %v1048 = vadd.f32 %v1028, %v1045
    %v1049 = vadd.f32 %v1029, %v1045
    %v1050 = vadd.f32 %v1030, %v1045
    %v1051 = vadd.f32 %v1031, %v1045
    %v1052 = vadd.f32 %v1032, %v1045
    %v1053 = vadd.f32 %v1033, %v1045
    %v1054 = vadd.f32 %v1034, %v1045
    %v1055 = vadd.f32 %v1035, %v1045
    %v1056 = vadd.f32 %v1036, %v1045
    %v1057 = vadd.f32 %v1037, %v1045
    %v1058 = vadd.f32 %v1038, %v1045
    %v1059 = vadd.f32 %v1039, %v1045
    %v1060 = vadd.f32 %v1040, %v1045
    %v1061 = vadd.f32 %v1041, %v1045
    %v1062 = vadd.f32 %v1042, %v1045
    %v1063 = vadd.f32 %v1043, %v1045
    %v1064 = vmax.f32 %v1046, 0.0
    %v1065 = vmax.f32 %v1047, 0.0
    %v1066 = vmax.f32 %v1048, 0.0
    %v1067 = vmax.f32 %v1049, 0.0
    %v1068 = vmax.f32 %v1050, 0.0
    %v1069 = vmax.f32 %v1051, 0.0
    %v1070 = vmax.f32 %v1052, 0.0
    %v1071 = vmax.f32 %v1053, 0.0
    %v1072 = vmax.f32 %v1054, 0.0
    %v1073 = vmax.f32 %v1055, 0.0
    %v1074 = vmax.f32 %v1056, 0.0
    %v1075 = vmax.f32 %v1057, 0.0
    %v1076 = vmax.f32 %v1058, 0.0
    %v1077 = vmax.f32 %v1059, 0.0
    %v1078 = vmax.f32 %v1060, 0.0
    %v1079 = vmax.f32 %v1061, 0.0
    %v1080 = vmax.f32 %v1062, 0.0
    %v1081 = vmax.f32 %v1063, 0.0
    %v1082 = vmax.f32 %v1064, %v1065
    %v1083 = vmax.f32 %v1066, %v1067
    %v1084 = vmax.f32 %v1068, %v1069
    %v1085 = vmax.f32 %v1070, %v1071
    %v1086 = vmax.f32 %v1072, %v1073
    %v1087 = vmax.f32 %v1074, %v1075
    %v1088 = vmax.f32 %v1076, %v1077
    %v1089 = vmax.f32 %v1078, %v1079
    %v1090 = vmax.f32 %v1080, %v1081
    %v1100 = vrot.slane %v1082, 1
    %v1101 = vrot.slane %v1083, 1
    %v1102 = vrot.slane %v1084, 1
    %v1103 = vrot.slane %v1085, 1
    %v1104 = vrot.slane %v1086, 1
    %v1105 = vrot.slane %v1087, 1
    %v1106 = vrot.slane %v1088, 1
    %v1107 = vrot.slane %v1089, 1
    %v1108 = vrot.slane %v1090, 1
    %v1118 = vmax.f32 %v1082, %v1100
    %v1119 = vmax.f32 %v1083, %v1101
    %v1120 = vmax.f32 %v1084, %v1102
    %v1121 = vmax.f32 %v1085, %v1103
    %v1122 = vmax.f32 %v1086, %v1104
    %v1123 = vmax.f32 %v1087, %v1105
    %v1124 = vmax.f32 %v1088, %v1106
    %v1125 = vmax.f32 %v1089, %v1107
    %v1126 = vmax.f32 %v1090, %v1108
    %1128 = vset.pattern.permute.xlu0 0
    %1129 = vperm.xlu0 %1128, %v115
    %v1130 = vpop.permute.xlu0 %1129
    %1133 = vset.pattern.permute.xlu0 0
    %1134 = vperm.xlu0 %1133, %v116
    %v1135 = vpop.permute.xlu0 %1134
    %1138 = vset.pattern.permute.xlu0 0
    %1139 = vperm.xlu0 %1138, %v117
    %v1140 = vpop.permute.xlu0 %1139
    %1143 = vset.pattern.permute.xlu0 0
    %1144 = vperm.xlu0 %1143, %v118
    %v1145 = vpop.permute.xlu0 %1144
    %1148 = vset.pattern.permute.xlu0 0
    %1149 = vperm.xlu0 %1148, %v119
    %v1150 = vpop.permute.xlu0 %1149
    %1153 = vset.pattern.permute.xlu0 0
    %1154 = vperm.xlu0 %1153, %v120
    %v1155 = vpop.permute.xlu0 %1154
    %1158 = vset.pattern.permute.xlu0 0
    %1159 = vperm.xlu0 %1158, %v121
    %v1160 = vpop.permute.xlu0 %1159
    %1163 = vset.pattern.permute.xlu0 0
    %1164 = vperm.xlu0 %1163, %v122
    %v1165 = vpop.permute.xlu0 %1164
    %1168 = vset.pattern.permute.xlu0 0
    %1169 = vperm.xlu0 %1168, %v123
    %v1170 = vpop.permute.xlu0 %1169
    %v1172 = vmul.f32 %v1118, %v1130
    %v1173 = vmul.f32 %v1119, %v1135
    %v1174 = vmul.f32 %v1120, %v1140
    %v1175 = vmul.f32 %v1121, %v1145
    %v1176 = vmul.f32 %v1122, %v1150
    %v1177 = vmul.f32 %v1123, %v1155
    %v1178 = vmul.f32 %v1124, %v1160
    %v1179 = vmul.f32 %v1125, %v1165
    %v1180 = vmul.f32 %v1126, %v1170
    %v1181 = vadd.f32 %v711, %v1172
    %v1182 = vadd.f32 %v712, %v1173
    %v1183 = vadd.f32 %v713, %v1174
    %v1184 = vadd.f32 %v714, %v1175
    %v1185 = vadd.f32 %v715, %v1176
    %v1186 = vadd.f32 %v716, %v1177
    %v1187 = vadd.f32 %v717, %v1178
    %v1188 = vadd.f32 %v718, %v1179
    %v1189 = vadd.f32 %v719, %v1180
    %s1190 = sld [smem:[#allocation3 + $0x12]]
    %v1191 = vstv %s1190
    %v1192 = vmul.f32 %v46, %v1191
    %v1193 = vmul.f32 %v47, %v1191
    %v1194 = vmul.f32 %v48, %v1191
    %v1195 = vmul.f32 %v49, %v1191
    %v1196 = vmul.f32 %v50, %v1191
    %v1197 = vmul.f32 %v51, %v1191
    %v1198 = vmul.f32 %v52, %v1191
    %v1199 = vmul.f32 %v53, %v1191
    %v1200 = vmul.f32 %v54, %v1191
    %v1201 = vmul.f32 %v55, %v1191
    %v1202 = vmul.f32 %v56, %v1191
    %v1203 = vmul.f32 %v57, %v1191
    %v1204 = vmul.f32 %v58, %v1191
    %v1205 = vmul.f32 %v59, %v1191
    %v1206 = vmul.f32 %v60, %v1191
    %v1207 = vmul.f32 %v61, %v1191
    %v1208 = vmul.f32 %v62, %v1191
    %v1209 = vmul.f32 %v63, %v1191
    %s1210 = sld [smem:[#allocation3 + $0x13]]
    %v1211 = vstv %s1210
    %v1212 = vmul.f32 %v66, %v1211
    %v1213 = vmul.f32 %v67, %v1211
    %v1214 = vmul.f32 %v68, %v1211
    %v1215 = vmul.f32 %v69, %v1211
    %v1216 = vmul.f32 %v70, %v1211
    %v1217 = vmul.f32 %v71, %v1211
    %v1218 = vmul.f32 %v72, %v1211
    %v1219 = vmul.f32 %v73, %v1211
    %v1220 = vmul.f32 %v74, %v1211
    %v1221 = vmul.f32 %v75, %v1211
    %v1222 = vmul.f32 %v76, %v1211
    %v1223 = vmul.f32 %v77, %v1211
    %v1224 = vmul.f32 %v78, %v1211
    %v1225 = vmul.f32 %v79, %v1211
    %v1226 = vmul.f32 %v80, %v1211
    %v1227 = vmul.f32 %v81, %v1211
    %v1228 = vmul.f32 %v82, %v1211
    %v1229 = vmul.f32 %v83, %v1211
    %v1230 = vadd.f32 %v1192, %v1212
    %v1231 = vadd.f32 %v1193, %v1213
    %v1232 = vadd.f32 %v1194, %v1214
    %v1233 = vadd.f32 %v1195, %v1215
    %v1234 = vadd.f32 %v1196, %v1216
    %v1235 = vadd.f32 %v1197, %v1217
    %v1236 = vadd.f32 %v1198, %v1218
    %v1237 = vadd.f32 %v1199, %v1219
    %v1238 = vadd.f32 %v1200, %v1220
    %v1239 = vadd.f32 %v1201, %v1221
    %v1240 = vadd.f32 %v1202, %v1222
    %v1241 = vadd.f32 %v1203, %v1223
    %v1242 = vadd.f32 %v1204, %v1224
    %v1243 = vadd.f32 %v1205, %v1225
    %v1244 = vadd.f32 %v1206, %v1226
    %v1245 = vadd.f32 %v1207, %v1227
    %v1246 = vadd.f32 %v1208, %v1228
    %v1247 = vadd.f32 %v1209, %v1229
    %s1248 = sld [smem:[#allocation3 + $0x14]]
    %v1249 = vstv %s1248
    %v1250 = vmul.f32 %v86, %v1249
    %v1251 = vmul.f32 %v87, %v1249
    %v1252 = vmul.f32 %v88, %v1249
    %v1253 = vmul.f32 %v89, %v1249
    %v1254 = vmul.f32 %v90, %v1249
    %v1255 = vmul.f32 %v91, %v1249
    %v1256 = vmul.f32 %v92, %v1249
    %v1257 = vmul.f32 %v93, %v1249
    %v1258 = vmul.f32 %v94, %v1249
    %v1259 = vmul.f32 %v95, %v1249
    %v1260 = vmul.f32 %v96, %v1249
    %v1261 = vmul.f32 %v97, %v1249
    %v1262 = vmul.f32 %v98, %v1249
    %v1263 = vmul.f32 %v99, %v1249
    %v1264 = vmul.f32 %v100, %v1249
    %v1265 = vmul.f32 %v101, %v1249
    %v1266 = vmul.f32 %v102, %v1249
    %v1267 = vmul.f32 %v103, %v1249
    %v1268 = vadd.f32 %v1230, %v1250
    %v1269 = vadd.f32 %v1231, %v1251
    %v1270 = vadd.f32 %v1232, %v1252
    %v1271 = vadd.f32 %v1233, %v1253
    %v1272 = vadd.f32 %v1234, %v1254
    %v1273 = vadd.f32 %v1235, %v1255
    %v1274 = vadd.f32 %v1236, %v1256
    %v1275 = vadd.f32 %v1237, %v1257
    %v1276 = vadd.f32 %v1238, %v1258
    %v1277 = vadd.f32 %v1239, %v1259
    %v1278 = vadd.f32 %v1240, %v1260
    %v1279 = vadd.f32 %v1241, %v1261
    %v1280 = vadd.f32 %v1242, %v1262
    %v1281 = vadd.f32 %v1243, %v1263
    %v1282 = vadd.f32 %v1244, %v1264
    %v1283 = vadd.f32 %v1245, %v1265
    %v1284 = vadd.f32 %v1246, %v1266
    %v1285 = vadd.f32 %v1247, %v1267
    %s1286 = sld [smem:[#allocation3 + $0x15]]
    %v1287 = vstv %s1286
    %v1288 = vmul.f32 %v47, %v1287
    %v1289 = vmul.f32 %v48, %v1287
    %v1290 = vmul.f32 %v49, %v1287
    %v1291 = vmul.f32 %v50, %v1287
    %v1292 = vmul.f32 %v51, %v1287
    %v1293 = vmul.f32 %v52, %v1287
    %v1294 = vmul.f32 %v53, %v1287
    %v1295 = vmul.f32 %v54, %v1287
    %v1296 = vmul.f32 %v55, %v1287
    %v1297 = vmul.f32 %v56, %v1287
    %v1298 = vmul.f32 %v57, %v1287
    %v1299 = vmul.f32 %v58, %v1287
    %v1300 = vmul.f32 %v59, %v1287
    %v1301 = vmul.f32 %v60, %v1287
    %v1302 = vmul.f32 %v61, %v1287
    %v1303 = vmul.f32 %v62, %v1287
    %v1304 = vmul.f32 %v63, %v1287
    %v1305 = vmul.f32 %v64, %v1287
    %v1306 = vadd.f32 %v1268, %v1288
    %v1307 = vadd.f32 %v1269, %v1289
    %v1308 = vadd.f32 %v1270, %v1290
    %v1309 = vadd.f32 %v1271, %v1291
    %v1310 = vadd.f32 %v1272, %v1292
    %v1311 = vadd.f32 %v1273, %v1293
    %v1312 = vadd.f32 %v1274, %v1294
    %v1313 = vadd.f32 %v1275, %v1295
    %v1314 = vadd.f32 %v1276, %v1296
    %v1315 = vadd.f32 %v1277, %v1297
    %v1316 = vadd.f32 %v1278, %v1298
    %v1317 = vadd.f32 %v1279, %v1299
    %v1318 = vadd.f32 %v1280, %v1300
    %v1319 = vadd.f32 %v1281, %v1301
    %v1320 = vadd.f32 %v1282, %v1302
    %v1321 = vadd.f32 %v1283, %v1303
    %v1322 = vadd.f32 %v1284, %v1304
    %v1323 = vadd.f32 %v1285, %v1305
    %s1324 = sld [smem:[#allocation3 + $0x16]]
    %v1325 = vstv %s1324
    %v1326 = vmul.f32 %v67, %v1325
    %v1327 = vmul.f32 %v68, %v1325
    %v1328 = vmul.f32 %v69, %v1325
    %v1329 = vmul.f32 %v70, %v1325
    %v1330 = vmul.f32 %v71, %v1325
    %v1331 = vmul.f32 %v72, %v1325
    %v1332 = vmul.f32 %v73, %v1325
    %v1333 = vmul.f32 %v74, %v1325
    %v1334 = vmul.f32 %v75, %v1325
    %v1335 = vmul.f32 %v76, %v1325
    %v1336 = vmul.f32 %v77, %v1325
    %v1337 = vmul.f32 %v78, %v1325
    %v1338 = vmul.f32 %v79, %v1325
    %v1339 = vmul.f32 %v80, %v1325
    %v1340 = vmul.f32 %v81, %v1325
    %v1341 = vmul.f32 %v82, %v1325
    %v1342 = vmul.f32 %v83, %v1325
    %v1343 = vmul.f32 %v84, %v1325
    %v1344 = vadd.f32 %v1306, %v1326
    %v1345 = vadd.f32 %v1307, %v1327
    %v1346 = vadd.f32 %v1308, %v1328
    %v1347 = vadd.f32 %v1309, %v1329
    %v1348 = vadd.f32 %v1310, %v1330
    %v1349 = vadd.f32 %v1311, %v1331
    %v1350 = vadd.f32 %v1312, %v1332
    %v1351 = vadd.f32 %v1313, %v1333
    %v1352 = vadd.f32 %v1314, %v1334
    %v1353 = vadd.f32 %v1315, %v1335
    %v1354 = vadd.f32 %v1316, %v1336
    %v1355 = vadd.f32 %v1317, %v1337
    %v1356 = vadd.f32 %v1318, %v1338
    %v1357 = vadd.f32 %v1319, %v1339
    %v1358 = vadd.f32 %v1320, %v1340
    %v1359 = vadd.f32 %v1321, %v1341
    %v1360 = vadd.f32 %v1322, %v1342
    %v1361 = vadd.f32 %v1323, %v1343
    %s1362 = sld [smem:[#allocation3 + $0x17]]
    %v1363 = vstv %s1362
    %v1364 = vmul.f32 %v87, %v1363
    %v1365 = vmul.f32 %v88, %v1363
    %v1366 = vmul.f32 %v89, %v1363
    %v1367 = vmul.f32 %v90, %v1363
    %v1368 = vmul.f32 %v91, %v1363
    %v1369 = vmul.f32 %v92, %v1363
    %v1370 = vmul.f32 %v93, %v1363
    %v1371 = vmul.f32 %v94, %v1363
    %v1372 = vmul.f32 %v95, %v1363
    %v1373 = vmul.f32 %v96, %v1363
    %v1374 = vmul.f32 %v97, %v1363
    %v1375 = vmul.f32 %v98, %v1363
    %v1376 = vmul.f32 %v99, %v1363
    %v1377 = vmul.f32 %v100, %v1363
    %v1378 = vmul.f32 %v101, %v1363
    %v1379 = vmul.f32 %v102, %v1363
    %v1380 = vmul.f32 %v103, %v1363
    %v1381 = vmul.f32 %v104, %v1363
    %v1382 = vadd.f32 %v1344, %v1364
    %v1383 = vadd.f32 %v1345, %v1365
    %v1384 = vadd.f32 %v1346, %v1366
    %v1385 = vadd.f32 %v1347, %v1367
    %v1386 = vadd.f32 %v1348, %v1368
    %v1387 = vadd.f32 %v1349, %v1369
    %v1388 = vadd.f32 %v1350, %v1370
    %v1389 = vadd.f32 %v1351, %v1371
    %v1390 = vadd.f32 %v1352, %v1372
    %v1391 = vadd.f32 %v1353, %v1373
    %v1392 = vadd.f32 %v1354, %v1374
    %v1393 = vadd.f32 %v1355, %v1375
    %v1394 = vadd.f32 %v1356, %v1376
    %v1395 = vadd.f32 %v1357, %v1377
    %v1396 = vadd.f32 %v1358, %v1378
    %v1397 = vadd.f32 %v1359, %v1379
    %v1398 = vadd.f32 %v1360, %v1380
    %v1399 = vadd.f32 %v1361, %v1381
    %s1400 = sld [smem:[#allocation3 + $0x18]]
    %v1401 = vstv %s1400
    %v1402 = vmul.f32 %v48, %v1401
    %v1403 = vmul.f32 %v49, %v1401
    %v1404 = vmul.f32 %v50, %v1401
    %v1405 = vmul.f32 %v51, %v1401
    %v1406 = vmul.f32 %v52, %v1401
    %v1407 = vmul.f32 %v53, %v1401
    %v1408 = vmul.f32 %v54, %v1401
    %v1409 = vmul.f32 %v55, %v1401
    %v1410 = vmul.f32 %v56, %v1401
    %v1411 = vmul.f32 %v57, %v1401
    %v1412 = vmul.f32 %v58, %v1401
    %v1413 = vmul.f32 %v59, %v1401
    %v1414 = vmul.f32 %v60, %v1401
    %v1415 = vmul.f32 %v61, %v1401
    %v1416 = vmul.f32 %v62, %v1401
    %v1417 = vmul.f32 %v63, %v1401
    %v1418 = vmul.f32 %v64, %v1401
    %v1419 = vmul.f32 %v65, %v1401
    %v1420 = vadd.f32 %v1382, %v1402
    %v1421 = vadd.f32 %v1383, %v1403
    %v1422 = vadd.f32 %v1384, %v1404
    %v1423 = vadd.f32 %v1385, %v1405
    %v1424 = vadd.f32 %v1386, %v1406
    %v1425 = vadd.f32 %v1387, %v1407
    %v1426 = vadd.f32 %v1388, %v1408
    %v1427 = vadd.f32 %v1389, %v1409
    %v1428 = vadd.f32 %v1390, %v1410
    %v1429 = vadd.f32 %v1391, %v1411
    %v1430 = vadd.f32 %v1392, %v1412
    %v1431 = vadd.f32 %v1393, %v1413
    %v1432 = vadd.f32 %v1394, %v1414
    %v1433 = vadd.f32 %v1395, %v1415
    %v1434 = vadd.f32 %v1396, %v1416
    %v1435 = vadd.f32 %v1397, %v1417
    %v1436 = vadd.f32 %v1398, %v1418
    %v1437 = vadd.f32 %v1399, %v1419
    %s1438 = sld [smem:[#allocation3 + $0x19]]
    %v1439 = vstv %s1438
    %v1440 = vmul.f32 %v68, %v1439
    %v1441 = vmul.f32 %v69, %v1439
    %v1442 = vmul.f32 %v70, %v1439
    %v1443 = vmul.f32 %v71, %v1439
    %v1444 = vmul.f32 %v72, %v1439
    %v1445 = vmul.f32 %v73, %v1439
    %v1446 = vmul.f32 %v74, %v1439
    %v1447 = vmul.f32 %v75, %v1439
    %v1448 = vmul.f32 %v76, %v1439
    %v1449 = vmul.f32 %v77, %v1439
    %v1450 = vmul.f32 %v78, %v1439
    %v1451 = vmul.f32 %v79, %v1439
    %v1452 = vmul.f32 %v80, %v1439
    %v1453 = vmul.f32 %v81, %v1439
    %v1454 = vmul.f32 %v82, %v1439
    %v1455 = vmul.f32 %v83, %v1439
    %v1456 = vmul.f32 %v84, %v1439
    %v1457 = vmul.f32 %v85, %v1439
    %v1458 = vadd.f32 %v1420, %v1440
    %v1459 = vadd.f32 %v1421, %v1441
    %v1460 = vadd.f32 %v1422, %v1442
    %v1461 = vadd.f32 %v1423, %v1443
    %v1462 = vadd.f32 %v1424, %v1444
    %v1463 = vadd.f32 %v1425, %v1445
    %v1464 = vadd.f32 %v1426, %v1446
    %v1465 = vadd.f32 %v1427, %v1447
    %v1466 = vadd.f32 %v1428, %v1448
    %v1467 = vadd.f32 %v1429, %v1449
    %v1468 = vadd.f32 %v1430, %v1450
    %v1469 = vadd.f32 %v1431, %v1451
    %v1470 = vadd.f32 %v1432, %v1452
    %v1471 = vadd.f32 %v1433, %v1453
    %v1472 = vadd.f32 %v1434, %v1454
    %v1473 = vadd.f32 %v1435, %v1455
    %v1474 = vadd.f32 %v1436, %v1456
    %v1475 = vadd.f32 %v1437, %v1457
    %s1476 = sld [smem:[#allocation3 + $0x1a]]
    %v1477 = vstv %s1476
    %v1478 = vmul.f32 %v88, %v1477
    %v1479 = vmul.f32 %v89, %v1477
    %v1480 = vmul.f32 %v90, %v1477
    %v1481 = vmul.f32 %v91, %v1477
    %v1482 = vmul.f32 %v92, %v1477
    %v1483 = vmul.f32 %v93, %v1477
    %v1484 = vmul.f32 %v94, %v1477
    %v1485 = vmul.f32 %v95, %v1477
    %v1486 = vmul.f32 %v96, %v1477
    %v1487 = vmul.f32 %v97, %v1477
    %v1488 = vmul.f32 %v98, %v1477
    %v1489 = vmul.f32 %v99, %v1477
    %v1490 = vmul.f32 %v100, %v1477
    %v1491 = vmul.f32 %v101, %v1477
    %v1492 = vmul.f32 %v102, %v1477
    %v1493 = vmul.f32 %v103, %v1477
    %v1494 = vmul.f32 %v104, %v1477
    %v1495 = vmul.f32 %v105, %v1477
    %v1496 = vadd.f32 %v1458, %v1478
    %v1497 = vadd.f32 %v1459, %v1479
    %v1498 = vadd.f32 %v1460, %v1480
    %v1499 = vadd.f32 %v1461, %v1481
    %v1500 = vadd.f32 %v1462, %v1482
    %v1501 = vadd.f32 %v1463, %v1483
    %v1502 = vadd.f32 %v1464, %v1484
    %v1503 = vadd.f32 %v1465, %v1485
    %v1504 = vadd.f32 %v1466, %v1486
    %v1505 = vadd.f32 %v1467, %v1487
    %v1506 = vadd.f32 %v1468, %v1488
    %v1507 = vadd.f32 %v1469, %v1489
    %v1508 = vadd.f32 %v1470, %v1490
    %v1509 = vadd.f32 %v1471, %v1491
    %v1510 = vadd.f32 %v1472, %v1492
    %v1511 = vadd.f32 %v1473, %v1493
    %v1512 = vadd.f32 %v1474, %v1494
    %v1513 = vadd.f32 %v1475, %v1495
    %s1514 = sld [smem:[#allocation5 + $0x2]]
    %v1515 = vstv %s1514
    %v1516 = vadd.f32 %v1496, %v1515
    %v1517 = vadd.f32 %v1497, %v1515
    %v1518 = vadd.f32 %v1498, %v1515
    %v1519 = vadd.f32 %v1499, %v1515
    %v1520 = vadd.f32 %v1500, %v1515
    %v1521 = vadd.f32 %v1501, %v1515
    %v1522 = vadd.f32 %v1502, %v1515
    %v1523 = vadd.f32 %v1503, %v1515
    %v1524 = vadd.f32 %v1504, %v1515
    %v1525 = vadd.f32 %v1505, %v1515
    %v1526 = vadd.f32 %v1506, %v1515
    %v1527 = vadd.f32 %v1507, %v1515
    %v1528 = vadd.f32 %v1508, %v1515
    %v1529 = vadd.f32 %v1509, %v1515
    %v1530 = vadd.f32 %v1510, %v1515
    %v1531 = vadd.f32 %v1511, %v1515
    %v1532 = vadd.f32 %v1512, %v1515
    %v1533 = vadd.f32 %v1513, %v1515
    %v1534 = vmax.f32 %v1516, 0.0
    %v1535 = vmax.f32 %v1517, 0.0
    %v1536 = vmax.f32 %v1518, 0.0
    %v1537 = vmax.f32 %v1519, 0.0
    %v1538 = vmax.f32 %v1520, 0.0
    %v1539 = vmax.f32 %v1521, 0.0
    %v1540 = vmax.f32 %v1522, 0.0
    %v1541 = vmax.f32 %v1523, 0.0
    %v1542 = vmax.f32 %v1524, 0.0
    %v1543 = vmax.f32 %v1525, 0.0
    %v1544 = vmax.f32 %v1526, 0.0
    %v1545 = vmax.f32 %v1527, 0.0
    %v1546 = vmax.f32 %v1528, 0.0
    %v1547 = vmax.f32 %v1529, 0.0
    %v1548 = vmax.f32 %v1530, 0.0
    %v1549 = vmax.f32 %v1531, 0.0
    %v1550 = vmax.f32 %v1532, 0.0
    %v1551 = vmax.f32 %v1533, 0.0
    %v1552 = vmax.f32 %v1534, %v1535
    %v1553 = vmax.f32 %v1536, %v1537
    %v1554 = vmax.f32 %v1538, %v1539
    %v1555 = vmax.f32 %v1540, %v1541
    %v1556 = vmax.f32 %v1542, %v1543
    %v1557 = vmax.f32 %v1544, %v1545
    %v1558 = vmax.f32 %v1546, %v1547
    %v1559 = vmax.f32 %v1548, %v1549
    %v1560 = vmax.f32 %v1550, %v1551
    %v1570 = vrot.slane %v1552, 1
    %v1571 = vrot.slane %v1553, 1
    %v1572 = vrot.slane %v1554, 1
    %v1573 = vrot.slane %v1555, 1
    %v1574 = vrot.slane %v1556, 1
    %v1575 = vrot.slane %v1557, 1
    %v1576 = vrot.slane %v1558, 1
    %v1577 = vrot.slane %v1559, 1
    %v1578 = vrot.slane %v1560, 1
    %v1588 = vmax.f32 %v1552, %v1570
    %v1589 = vmax.f32 %v1553, %v1571
    %v1590 = vmax.f32 %v1554, %v1572
    %v1591 = vmax.f32 %v1555, %v1573
    %v1592 = vmax.f32 %v1556, %v1574
    %v1593 = vmax.f32 %v1557, %v1575
    %v1594 = vmax.f32 %v1558, %v1576
    %v1595 = vmax.f32 %v1559, %v1577
    %v1596 = vmax.f32 %v1560, %v1578
    %1598 = vset.pattern.permute.xlu0 0
    %1599 = vperm.xlu0 %1598, %v124
    %v1600 = vpop.permute.xlu0 %1599
    %1603 = vset.pattern.permute.xlu0 0
    %1604 = vperm.xlu0 %1603, %v125
    %v1605 = vpop.permute.xlu0 %1604
    %1608 = vset.pattern.permute.xlu0 0
    %1609 = vperm.xlu0 %1608, %v126
    %v1610 = vpop.permute.xlu0 %1609
    %1613 = vset.pattern.permute.xlu0 0
    %1614 = vperm.xlu0 %1613, %v127
    %v1615 = vpop.permute.xlu0 %1614
    %1618 = vset.pattern.permute.xlu0 0
    %1619 = vperm.xlu0 %1618, %v128
    %v1620 = vpop.permute.xlu0 %1619
    %1623 = vset.pattern.permute.xlu0 0
    %1624 = vperm.xlu0 %1623, %v129
    %v1625 = vpop.permute.xlu0 %1624
    %1628 = vset.pattern.permute.xlu0 0
    %1629 = vperm.xlu0 %1628, %v130
    %v1630 = vpop.permute.xlu0 %1629
    %1633 = vset.pattern.permute.xlu0 0
    %1634 = vperm.xlu0 %1633, %v131
    %v1635 = vpop.permute.xlu0 %1634
    %1638 = vset.pattern.permute.xlu0 0
    %1639 = vperm.xlu0 %1638, %v132
    %v1640 = vpop.permute.xlu0 %1639
    %v1642 = vmul.f32 %v1588, %v1600
    %v1643 = vmul.f32 %v1589, %v1605
    %v1644 = vmul.f32 %v1590, %v1610
    %v1645 = vmul.f32 %v1591, %v1615
    %v1646 = vmul.f32 %v1592, %v1620
    %v1647 = vmul.f32 %v1593, %v1625
    %v1648 = vmul.f32 %v1594, %v1630
    %v1649 = vmul.f32 %v1595, %v1635
    %v1650 = vmul.f32 %v1596, %v1640
    %v1651 = vadd.f32 %v1181, %v1642
    %v1652 = vadd.f32 %v1182, %v1643
    %v1653 = vadd.f32 %v1183, %v1644
    %v1654 = vadd.f32 %v1184, %v1645
    %v1655 = vadd.f32 %v1185, %v1646
    %v1656 = vadd.f32 %v1186, %v1647
    %v1657 = vadd.f32 %v1187, %v1648
    %v1658 = vadd.f32 %v1188, %v1649
    %v1659 = vadd.f32 %v1189, %v1650
    %s1660 = sld [smem:[#allocation3 + $0x1b]]
    %v1661 = vstv %s1660
    %v1662 = vmul.f32 %v46, %v1661
    %v1663 = vmul.f32 %v47, %v1661
    %v1664 = vmul.f32 %v48, %v1661
    %v1665 = vmul.f32 %v49, %v1661
    %v1666 = vmul.f32 %v50, %v1661
    %v1667 = vmul.f32 %v51, %v1661
    %v1668 = vmul.f32 %v52, %v1661
    %v1669 = vmul.f32 %v53, %v1661
    %v1670 = vmul.f32 %v54, %v1661
    %v1671 = vmul.f32 %v55, %v1661
    %v1672 = vmul.f32 %v56, %v1661
    %v1673 = vmul.f32 %v57, %v1661
    %v1674 = vmul.f32 %v58, %v1661
    %v1675 = vmul.f32 %v59, %v1661
    %v1676 = vmul.f32 %v60, %v1661
    %v1677 = vmul.f32 %v61, %v1661
    %v1678 = vmul.f32 %v62, %v1661
    %v1679 = vmul.f32 %v63, %v1661
    %s1680 = sld [smem:[#allocation3 + $0x1c]]
    %v1681 = vstv %s1680
    %v1682 = vmul.f32 %v66, %v1681
    %v1683 = vmul.f32 %v67, %v1681
    %v1684 = vmul.f32 %v68, %v1681
    %v1685 = vmul.f32 %v69, %v1681
    %v1686 = vmul.f32 %v70, %v1681
    %v1687 = vmul.f32 %v71, %v1681
    %v1688 = vmul.f32 %v72, %v1681
    %v1689 = vmul.f32 %v73, %v1681
    %v1690 = vmul.f32 %v74, %v1681
    %v1691 = vmul.f32 %v75, %v1681
    %v1692 = vmul.f32 %v76, %v1681
    %v1693 = vmul.f32 %v77, %v1681
    %v1694 = vmul.f32 %v78, %v1681
    %v1695 = vmul.f32 %v79, %v1681
    %v1696 = vmul.f32 %v80, %v1681
    %v1697 = vmul.f32 %v81, %v1681
    %v1698 = vmul.f32 %v82, %v1681
    %v1699 = vmul.f32 %v83, %v1681
    %v1700 = vadd.f32 %v1662, %v1682
    %v1701 = vadd.f32 %v1663, %v1683
    %v1702 = vadd.f32 %v1664, %v1684
    %v1703 = vadd.f32 %v1665, %v1685
    %v1704 = vadd.f32 %v1666, %v1686
    %v1705 = vadd.f32 %v1667, %v1687
    %v1706 = vadd.f32 %v1668, %v1688
    %v1707 = vadd.f32 %v1669, %v1689
    %v1708 = vadd.f32 %v1670, %v1690
    %v1709 = vadd.f32 %v1671, %v1691
    %v1710 = vadd.f32 %v1672, %v1692
    %v1711 = vadd.f32 %v1673, %v1693
    %v1712 = vadd.f32 %v1674, %v1694
    %v1713 = vadd.f32 %v1675, %v1695
    %v1714 = vadd.f32 %v1676, %v1696
    %v1715 = vadd.f32 %v1677, %v1697
    %v1716 = vadd.f32 %v1678, %v1698
    %v1717 = vadd.f32 %v1679, %v1699
    %s1718 = sld [smem:[#allocation3 + $0x1d]]
    %v1719 = vstv %s1718
    %v1720 = vmul.f32 %v86, %v1719
    %v1721 = vmul.f32 %v87, %v1719
    %v1722 = vmul.f32 %v88, %v1719
    %v1723 = vmul.f32 %v89, %v1719
    %v1724 = vmul.f32 %v90, %v1719
    %v1725 = vmul.f32 %v91, %v1719
    %v1726 = vmul.f32 %v92, %v1719
    %v1727 = vmul.f32 %v93, %v1719
    %v1728 = vmul.f32 %v94, %v1719
    %v1729 = vmul.f32 %v95, %v1719
    %v1730 = vmul.f32 %v96, %v1719
    %v1731 = vmul.f32 %v97, %v1719
    %v1732 = vmul.f32 %v98, %v1719
    %v1733 = vmul.f32 %v99, %v1719
    %v1734 = vmul.f32 %v100, %v1719
    %v1735 = vmul.f32 %v101, %v1719
    %v1736 = vmul.f32 %v102, %v1719
    %v1737 = vmul.f32 %v103, %v1719
    %v1738 = vadd.f32 %v1700, %v1720
    %v1739 = vadd.f32 %v1701, %v1721
    %v1740 = vadd.f32 %v1702, %v1722
    %v1741 = vadd.f32 %v1703, %v1723
    %v1742 = vadd.f32 %v1704, %v1724
    %v1743 = vadd.f32 %v1705, %v1725
    %v1744 = vadd.f32 %v1706, %v1726
    %v1745 = vadd.f32 %v1707, %v1727
    %v1746 = vadd.f32 %v1708, %v1728
    %v1747 = vadd.f32 %v1709, %v1729
    %v1748 = vadd.f32 %v1710, %v1730
    %v1749 = vadd.f32 %v1711, %v1731
    %v1750 = vadd.f32 %v1712, %v1732
    %v1751 = vadd.f32 %v1713, %v1733
    %v1752 = vadd.f32 %v1714, %v1734
    %v1753 = vadd.f32 %v1715, %v1735
    %v1754 = vadd.f32 %v1716, %v1736
    %v1755 = vadd.f32 %v1717, %v1737
    %s1756 = sld [smem:[#allocation3 + $0x1e]]
    %v1757 = vstv %s1756
    %v1758 = vmul.f32 %v47, %v1757
    %v1759 = vmul.f32 %v48, %v1757
    %v1760 = vmul.f32 %v49, %v1757
    %v1761 = vmul.f32 %v50, %v1757
    %v1762 = vmul.f32 %v51, %v1757
    %v1763 = vmul.f32 %v52, %v1757
    %v1764 = vmul.f32 %v53, %v1757
    %v1765 = vmul.f32 %v54, %v1757
    %v1766 = vmul.f32 %v55, %v1757
    %v1767 = vmul.f32 %v56, %v1757
    %v1768 = vmul.f32 %v57, %v1757
    %v1769 = vmul.f32 %v58, %v1757
    %v1770 = vmul.f32 %v59, %v1757
    %v1771 = vmul.f32 %v60, %v1757
    %v1772 = vmul.f32 %v61, %v1757
    %v1773 = vmul.f32 %v62, %v1757
    %v1774 = vmul.f32 %v63, %v1757
    %v1775 = vmul.f32 %v64, %v1757
    %v1776 = vadd.f32 %v1738, %v1758
    %v1777 = vadd.f32 %v1739, %v1759
    %v1778 = vadd.f32 %v1740, %v1760
    %v1779 = vadd.f32 %v1741, %v1761
    %v1780 = vadd.f32 %v1742, %v1762
    %v1781 = vadd.f32 %v1743, %v1763
    %v1782 = vadd.f32 %v1744, %v1764
    %v1783 = vadd.f32 %v1745, %v1765
    %v1784 = vadd.f32 %v1746, %v1766
    %v1785 = vadd.f32 %v1747, %v1767
    %v1786 = vadd.f32 %v1748, %v1768
    %v1787 = vadd.f32 %v1749, %v1769
    %v1788 = vadd.f32 %v1750, %v1770
    %v1789 = vadd.f32 %v1751, %v1771
    %v1790 = vadd.f32 %v1752, %v1772
    %v1791 = vadd.f32 %v1753, %v1773
    %v1792 = vadd.f32 %v1754, %v1774
    %v1793 = vadd.f32 %v1755, %v1775
    %s1794 = sld [smem:[#allocation3 + $0x1f]]
    %v1795 = vstv %s1794
    %v1796 = vmul.f32 %v67, %v1795
    %v1797 = vmul.f32 %v68, %v1795
    %v1798 = vmul.f32 %v69, %v1795
    %v1799 = vmul.f32 %v70, %v1795
    %v1800 = vmul.f32 %v71, %v1795
    %v1801 = vmul.f32 %v72, %v1795
    %v1802 = vmul.f32 %v73, %v1795
    %v1803 = vmul.f32 %v74, %v1795
    %v1804 = vmul.f32 %v75, %v1795
    %v1805 = vmul.f32 %v76, %v1795
    %v1806 = vmul.f32 %v77, %v1795
    %v1807 = vmul.f32 %v78, %v1795
    %v1808 = vmul.f32 %v79, %v1795
    %v1809 = vmul.f32 %v80, %v1795
    %v1810 = vmul.f32 %v81, %v1795
    %v1811 = vmul.f32 %v82, %v1795
    %v1812 = vmul.f32 %v83, %v1795
    %v1813 = vmul.f32 %v84, %v1795
    %v1814 = vadd.f32 %v1776, %v1796
    %v1815 = vadd.f32 %v1777, %v1797
    %v1816 = vadd.f32 %v1778, %v1798
    %v1817 = vadd.f32 %v1779, %v1799
    %v1818 = vadd.f32 %v1780, %v1800
    %v1819 = vadd.f32 %v1781, %v1801
    %v1820 = vadd.f32 %v1782, %v1802
    %v1821 = vadd.f32 %v1783, %v1803
    %v1822 = vadd.f32 %v1784, %v1804
    %v1823 = vadd.f32 %v1785, %v1805
    %v1824 = vadd.f32 %v1786, %v1806
    %v1825 = vadd.f32 %v1787, %v1807
    %v1826 = vadd.f32 %v1788, %v1808
    %v1827 = vadd.f32 %v1789, %v1809
    %v1828 = vadd.f32 %v1790, %v1810
    %v1829 = vadd.f32 %v1791, %v1811
    %v1830 = vadd.f32 %v1792, %v1812
    %v1831 = vadd.f32 %v1793, %v1813
    %s1832 = sld [smem:[#allocation3 + $0x20]]
    %v1833 = vstv %s1832
    %v1834 = vmul.f32 %v87, %v1833
    %v1835 = vmul.f32 %v88, %v1833
    %v1836 = vmul.f32 %v89, %v1833
    %v1837 = vmul.f32 %v90, %v1833
    %v1838 = vmul.f32 %v91, %v1833
    %v1839 = vmul.f32 %v92, %v1833
    %v1840 = vmul.f32 %v93, %v1833
    %v1841 = vmul.f32 %v94, %v1833
    %v1842 = vmul.f32 %v95, %v1833
    %v1843 = vmul.f32 %v96, %v1833
    %v1844 = vmul.f32 %v97, %v1833
    %v1845 = vmul.f32 %v98, %v1833
    %v1846 = vmul.f32 %v99, %v1833
    %v1847 = vmul.f32 %v100, %v1833
    %v1848 = vmul.f32 %v101, %v1833
    %v1849 = vmul.f32 %v102, %v1833
    %v1850 = vmul.f32 %v103, %v1833
    %v1851 = vmul.f32 %v104, %v1833
    %v1852 = vadd.f32 %v1814, %v1834
    %v1853 = vadd.f32 %v1815, %v1835
    %v1854 = vadd.f32 %v1816, %v1836
    %v1855 = vadd.f32 %v1817, %v1837
    %v1856 = vadd.f32 %v1818, %v1838
    %v1857 = vadd.f32 %v1819, %v1839
    %v1858 = vadd.f32 %v1820, %v1840
    %v1859 = vadd.f32 %v1821, %v1841
    %v1860 = vadd.f32 %v1822, %v1842
    %v1861 = vadd.f32 %v1823, %v1843
    %v1862 = vadd.f32 %v1824, %v1844
    %v1863 = vadd.f32 %v1825, %v1845
    %v1864 = vadd.f32 %v1826, %v1846
    %v1865 = vadd.f32 %v1827, %v1847
    %v1866 = vadd.f32 %v1828, %v1848
    %v1867 = vadd.f32 %v1829, %v1849
    %v1868 = vadd.f32 %v1830, %v1850
    %v1869 = vadd.f32 %v1831, %v1851
    %s1870 = sld [smem:[#allocation3 + $0x21]]
    %v1871 = vstv %s1870
    %v1872 = vmul.f32 %v48, %v1871
    %v1873 = vmul.f32 %v49, %v1871
    %v1874 = vmul.f32 %v50, %v1871
    %v1875 = vmul.f32 %v51, %v1871
    %v1876 = vmul.f32 %v52, %v1871
    %v1877 = vmul.f32 %v53, %v1871
    %v1878 = vmul.f32 %v54, %v1871
    %v1879 = vmul.f32 %v55, %v1871
    %v1880 = vmul.f32 %v56, %v1871
    %v1881 = vmul.f32 %v57, %v1871
    %v1882 = vmul.f32 %v58, %v1871
    %v1883 = vmul.f32 %v59, %v1871
    %v1884 = vmul.f32 %v60, %v1871
    %v1885 = vmul.f32 %v61, %v1871
    %v1886 = vmul.f32 %v62, %v1871
    %v1887 = vmul.f32 %v63, %v1871
    %v1888 = vmul.f32 %v64, %v1871
    %v1889 = vmul.f32 %v65, %v1871
    %v1890 = vadd.f32 %v1852, %v1872
    %v1891 = vadd.f32 %v1853, %v1873
    %v1892 = vadd.f32 %v1854, %v1874
    %v1893 = vadd.f32 %v1855, %v1875
    %v1894 = vadd.f32 %v1856, %v1876
    %v1895 = vadd.f32 %v1857, %v1877
    %v1896 = vadd.f32 %v1858, %v1878
    %v1897 = vadd.f32 %v1859, %v1879
    %v1898 = vadd.f32 %v1860, %v1880
    %v1899 = vadd.f32 %v1861, %v1881
    %v1900 = vadd.f32 %v1862, %v1882
    %v1901 = vadd.f32 %v1863, %v1883
    %v1902 = vadd.f32 %v1864, %v1884
    %v1903 = vadd.f32 %v1865, %v1885
    %v1904 = vadd.f32 %v1866, %v1886
    %v1905 = vadd.f32 %v1867, %v1887
    %v1906 = vadd.f32 %v1868, %v1888
    %v1907 = vadd.f32 %v1869, %v1889
    %s1908 = sld [smem:[#allocation3 + $0x22]]
    %v1909 = vstv %s1908
    %v1910 = vmul.f32 %v68, %v1909
    %v1911 = vmul.f32 %v69, %v1909
    %v1912 = vmul.f32 %v70, %v1909
    %v1913 = vmul.f32 %v71, %v1909
    %v1914 = vmul.f32 %v72, %v1909
    %v1915 = vmul.f32 %v73, %v1909
    %v1916 = vmul.f32 %v74, %v1909
    %v1917 = vmul.f32 %v75, %v1909
    %v1918 = vmul.f32 %v76, %v1909
    %v1919 = vmul.f32 %v77, %v1909
    %v1920 = vmul.f32 %v78, %v1909
    %v1921 = vmul.f32 %v79, %v1909
    %v1922 = vmul.f32 %v80, %v1909
    %v1923 = vmul.f32 %v81, %v1909
    %v1924 = vmul.f32 %v82, %v1909
    %v1925 = vmul.f32 %v83, %v1909
    %v1926 = vmul.f32 %v84, %v1909
    %v1927 = vmul.f32 %v85, %v1909
    %v1928 = vadd.f32 %v1890, %v1910
    %v1929 = vadd.f32 %v1891, %v1911
    %v1930 = vadd.f32 %v1892, %v1912
    %v1931 = vadd.f32 %v1893, %v1913
    %v1932 = vadd.f32 %v1894, %v1914
    %v1933 = vadd.f32 %v1895, %v1915
    %v1934 = vadd.f32 %v1896, %v1916
    %v1935 = vadd.f32 %v1897, %v1917
    %v1936 = vadd.f32 %v1898, %v1918
    %v1937 = vadd.f32 %v1899, %v1919
    %v1938 = vadd.f32 %v1900, %v1920
    %v1939 = vadd.f32 %v1901, %v1921
    %v1940 = vadd.f32 %v1902, %v1922
    %v1941 = vadd.f32 %v1903, %v1923
    %v1942 = vadd.f32 %v1904, %v1924
    %v1943 = vadd.f32 %v1905, %v1925
    %v1944 = vadd.f32 %v1906, %v1926
    %v1945 = vadd.f32 %v1907, %v1927
    %s1946 = sld [smem:[#allocation3 + $0x23]]
    %v1947 = vstv %s1946
    %v1948 = vmul.f32 %v88, %v1947
    %v1949 = vmul.f32 %v89, %v1947
    %v1950 = vmul.f32 %v90, %v1947
    %v1951 = vmul.f32 %v91, %v1947
    %v1952 = vmul.f32 %v92, %v1947
    %v1953 = vmul.f32 %v93, %v1947
    %v1954 = vmul.f32 %v94, %v1947
    %v1955 = vmul.f32 %v95, %v1947
    %v1956 = vmul.f32 %v96, %v1947
    %v1957 = vmul.f32 %v97, %v1947
    %v1958 = vmul.f32 %v98, %v1947
    %v1959 = vmul.f32 %v99, %v1947
    %v1960 = vmul.f32 %v100, %v1947
    %v1961 = vmul.f32 %v101, %v1947
    %v1962 = vmul.f32 %v102, %v1947
    %v1963 = vmul.f32 %v103, %v1947
    %v1964 = vmul.f32 %v104, %v1947
    %v1965 = vmul.f32 %v105, %v1947
    %v1966 = vadd.f32 %v1928, %v1948
    %v1967 = vadd.f32 %v1929, %v1949
    %v1968 = vadd.f32 %v1930, %v1950
    %v1969 = vadd.f32 %v1931, %v1951
    %v1970 = vadd.f32 %v1932, %v1952
    %v1971 = vadd.f32 %v1933, %v1953
    %v1972 = vadd.f32 %v1934, %v1954
    %v1973 = vadd.f32 %v1935, %v1955
    %v1974 = vadd.f32 %v1936, %v1956
    %v1975 = vadd.f32 %v1937, %v1957
    %v1976 = vadd.f32 %v1938, %v1958
    %v1977 = vadd.f32 %v1939, %v1959
    %v1978 = vadd.f32 %v1940, %v1960
    %v1979 = vadd.f32 %v1941, %v1961
    %v1980 = vadd.f32 %v1942, %v1962
    %v1981 = vadd.f32 %v1943, %v1963
    %v1982 = vadd.f32 %v1944, %v1964
    %v1983 = vadd.f32 %v1945, %v1965
    %s1984 = sld [smem:[#allocation5 + $0x3]]
    %v1985 = vstv %s1984
    %v1986 = vadd.f32 %v1966, %v1985
    %v1987 = vadd.f32 %v1967, %v1985
    %v1988 = vadd.f32 %v1968, %v1985
    %v1989 = vadd.f32 %v1969, %v1985
    %v1990 = vadd.f32 %v1970, %v1985
    %v1991 = vadd.f32 %v1971, %v1985
    %v1992 = vadd.f32 %v1972, %v1985
    %v1993 = vadd.f32 %v1973, %v1985
    %v1994 = vadd.f32 %v1974, %v1985
    %v1995 = vadd.f32 %v1975, %v1985
    %v1996 = vadd.f32 %v1976, %v1985
    %v1997 = vadd.f32 %v1977, %v1985
    %v1998 = vadd.f32 %v1978, %v1985
    %v1999 = vadd.f32 %v1979, %v1985
    %v2000 = vadd.f32 %v1980, %v1985
    %v2001 = vadd.f32 %v1981, %v1985
    %v2002 = vadd.f32 %v1982, %v1985
    %v2003 = vadd.f32 %v1983, %v1985
    %v2004 = vmax.f32 %v1986, 0.0
    %v2005 = vmax.f32 %v1987, 0.0
    %v2006 = vmax.f32 %v1988, 0.0
    %v2007 = vmax.f32 %v1989, 0.0
    %v2008 = vmax.f32 %v1990, 0.0
    %v2009 = vmax.f32 %v1991, 0.0
    %v2010 = vmax.f32 %v1992, 0.0
    %v2011 = vmax.f32 %v1993, 0.0
    %v2012 = vmax.f32 %v1994, 0.0
    %v2013 = vmax.f32 %v1995, 0.0
    %v2014 = vmax.f32 %v1996, 0.0
    %v2015 = vmax.f32 %v1997, 0.0
    %v2016 = vmax.f32 %v1998, 0.0
    %v2017 = vmax.f32 %v1999, 0.0
    %v2018 = vmax.f32 %v2000, 0.0
    %v2019 = vmax.f32 %v2001, 0.0
    %v2020 = vmax.f32 %v2002, 0.0
    %v2021 = vmax.f32 %v2003, 0.0
    %v2022 = vmax.f32 %v2004, %v2005
    %v2023 = vmax.f32 %v2006, %v2007
    %v2024 = vmax.f32 %v2008, %v2009
    %v2025 = vmax.f32 %v2010, %v2011
    %v2026 = vmax.f32 %v2012, %v2013
    %v2027 = vmax.f32 %v2014, %v2015
    %v2028 = vmax.f32 %v2016, %v2017
    %v2029 = vmax.f32 %v2018, %v2019
    %v2030 = vmax.f32 %v2020, %v2021
    %v2040 = vrot.slane %v2022, 1
    %v2041 = vrot.slane %v2023, 1
    %v2042 = vrot.slane %v2024, 1
    %v2043 = vrot.slane %v2025, 1
    %v2044 = vrot.slane %v2026, 1
    %v2045 = vrot.slane %v2027, 1
    %v2046 = vrot.slane %v2028, 1
    %v2047 = vrot.slane %v2029, 1
    %v2048 = vrot.slane %v2030, 1
    %v2058 = vmax.f32 %v2022, %v2040
    %v2059 = vmax.f32 %v2023, %v2041
    %v2060 = vmax.f32 %v2024, %v2042
    %v2061 = vmax.f32 %v2025, %v2043
    %v2062 = vmax.f32 %v2026, %v2044
    %v2063 = vmax.f32 %v2027, %v2045
    %v2064 = vmax.f32 %v2028, %v2046
    %v2065 = vmax.f32 %v2029, %v2047
    %v2066 = vmax.f32 %v2030, %v2048
    %2068 = vset.pattern.permute.xlu0 0
    %2069 = vperm.xlu0 %2068, %v133
    %v2070 = vpop.permute.xlu0 %2069
    %2073 = vset.pattern.permute.xlu0 0
    %2074 = vperm.xlu0 %2073, %v134
    %v2075 = vpop.permute.xlu0 %2074
    %2078 = vset.pattern.permute.xlu0 0
    %2079 = vperm.xlu0 %2078, %v135
    %v2080 = vpop.permute.xlu0 %2079
    %2083 = vset.pattern.permute.xlu0 0
    %2084 = vperm.xlu0 %2083, %v136
    %v2085 = vpop.permute.xlu0 %2084
    %2088 = vset.pattern.permute.xlu0 0
    %2089 = vperm.xlu0 %2088, %v137
    %v2090 = vpop.permute.xlu0 %2089
    %2093 = vset.pattern.permute.xlu0 0
    %2094 = vperm.xlu0 %2093, %v138
    %v2095 = vpop.permute.xlu0 %2094
    %2098 = vset.pattern.permute.xlu0 0
    %2099 = vperm.xlu0 %2098, %v139
    %v2100 = vpop.permute.xlu0 %2099
    %2103 = vset.pattern.permute.xlu0 0
    %2104 = vperm.xlu0 %2103, %v140
    %v2105 = vpop.permute.xlu0 %2104
    %2108 = vset.pattern.permute.xlu0 0
    %2109 = vperm.xlu0 %2108, %v141
    %v2110 = vpop.permute.xlu0 %2109
    %v2112 = vmul.f32 %v2058, %v2070
    %v2113 = vmul.f32 %v2059, %v2075
    %v2114 = vmul.f32 %v2060, %v2080
    %v2115 = vmul.f32 %v2061, %v2085
    %v2116 = vmul.f32 %v2062, %v2090
    %v2117 = vmul.f32 %v2063, %v2095
    %v2118 = vmul.f32 %v2064, %v2100
    %v2119 = vmul.f32 %v2065, %v2105
    %v2120 = vmul.f32 %v2066, %v2110
    %v2121 = vadd.f32 %v1651, %v2112
    %v2122 = vadd.f32 %v1652, %v2113
    %v2123 = vadd.f32 %v1653, %v2114
    %v2124 = vadd.f32 %v1654, %v2115
    %v2125 = vadd.f32 %v1655, %v2116
    %v2126 = vadd.f32 %v1656, %v2117
    %v2127 = vadd.f32 %v1657, %v2118
    %v2128 = vadd.f32 %v1658, %v2119
    %v2129 = vadd.f32 %v1659, %v2120
    %s2130 = sld [smem:[#allocation3 + $0x24]]
    %v2131 = vstv %s2130
    %v2132 = vmul.f32 %v46, %v2131
    %v2133 = vmul.f32 %v47, %v2131
    %v2134 = vmul.f32 %v48, %v2131
    %v2135 = vmul.f32 %v49, %v2131
    %v2136 = vmul.f32 %v50, %v2131
    %v2137 = vmul.f32 %v51, %v2131
    %v2138 = vmul.f32 %v52, %v2131
    %v2139 = vmul.f32 %v53, %v2131
    %v2140 = vmul.f32 %v54, %v2131
    %v2141 = vmul.f32 %v55, %v2131
    %v2142 = vmul.f32 %v56, %v2131
    %v2143 = vmul.f32 %v57, %v2131
    %v2144 = vmul.f32 %v58, %v2131
    %v2145 = vmul.f32 %v59, %v2131
    %v2146 = vmul.f32 %v60, %v2131
    %v2147 = vmul.f32 %v61, %v2131
    %v2148 = vmul.f32 %v62, %v2131
    %v2149 = vmul.f32 %v63, %v2131
    %s2150 = sld [smem:[#allocation3 + $0x25]]
    %v2151 = vstv %s2150
    %v2152 = vmul.f32 %v66, %v2151
    %v2153 = vmul.f32 %v67, %v2151
    %v2154 = vmul.f32 %v68, %v2151
    %v2155 = vmul.f32 %v69, %v2151
    %v2156 = vmul.f32 %v70, %v2151
    %v2157 = vmul.f32 %v71, %v2151
    %v2158 = vmul.f32 %v72, %v2151
    %v2159 = vmul.f32 %v73, %v2151
    %v2160 = vmul.f32 %v74, %v2151
    %v2161 = vmul.f32 %v75, %v2151
    %v2162 = vmul.f32 %v76, %v2151
    %v2163 = vmul.f32 %v77, %v2151
    %v2164 = vmul.f32 %v78, %v2151
    %v2165 = vmul.f32 %v79, %v2151
    %v2166 = vmul.f32 %v80, %v2151
    %v2167 = vmul.f32 %v81, %v2151
    %v2168 = vmul.f32 %v82, %v2151
    %v2169 = vmul.f32 %v83, %v2151
    %v2170 = vadd.f32 %v2132, %v2152
    %v2171 = vadd.f32 %v2133, %v2153
    %v2172 = vadd.f32 %v2134, %v2154
    %v2173 = vadd.f32 %v2135, %v2155
    %v2174 = vadd.f32 %v2136, %v2156
    %v2175 = vadd.f32 %v2137, %v2157
    %v2176 = vadd.f32 %v2138, %v2158
    %v2177 = vadd.f32 %v2139, %v2159
    %v2178 = vadd.f32 %v2140, %v2160
    %v2179 = vadd.f32 %v2141, %v2161
    %v2180 = vadd.f32 %v2142, %v2162
    %v2181 = vadd.f32 %v2143, %v2163
    %v2182 = vadd.f32 %v2144, %v2164
    %v2183 = vadd.f32 %v2145, %v2165
    %v2184 = vadd.f32 %v2146, %v2166
    %v2185 = vadd.f32 %v2147, %v2167
    %v2186 = vadd.f32 %v2148, %v2168
    %v2187 = vadd.f32 %v2149, %v2169
    %s2188 = sld [smem:[#allocation3 + $0x26]]
    %v2189 = vstv %s2188
    %v2190 = vmul.f32 %v86, %v2189
    %v2191 = vmul.f32 %v87, %v2189
    %v2192 = vmul.f32 %v88, %v2189
    %v2193 = vmul.f32 %v89, %v2189
    %v2194 = vmul.f32 %v90, %v2189
    %v2195 = vmul.f32 %v91, %v2189
    %v2196 = vmul.f32 %v92, %v2189
    %v2197 = vmul.f32 %v93, %v2189
    %v2198 = vmul.f32 %v94, %v2189
    %v2199 = vmul.f32 %v95, %v2189
    %v2200 = vmul.f32 %v96, %v2189
    %v2201 = vmul.f32 %v97, %v2189
    %v2202 = vmul.f32 %v98, %v2189
    %v2203 = vmul.f32 %v99, %v2189
    %v2204 = vmul.f32 %v100, %v2189
    %v2205 = vmul.f32 %v101, %v2189
    %v2206 = vmul.f32 %v102, %v2189
    %v2207 = vmul.f32 %v103, %v2189
    %v2208 = vadd.f32 %v2170, %v2190
    %v2209 = vadd.f32 %v2171, %v2191
    %v2210 = vadd.f32 %v2172, %v2192
    %v2211 = vadd.f32 %v2173, %v2193
    %v2212 = vadd.f32 %v2174, %v2194
    %v2213 = vadd.f32 %v2175, %v2195
    %v2214 = vadd.f32 %v2176, %v2196
    %v2215 = vadd.f32 %v2177, %v2197
    %v2216 = vadd.f32 %v2178, %v2198
    %v2217 = vadd.f32 %v2179, %v2199
    %v2218 = vadd.f32 %v2180, %v2200
    %v2219 = vadd.f32 %v2181, %v2201
    %v2220 = vadd.f32 %v2182, %v2202
    %v2221 = vadd.f32 %v2183, %v2203
    %v2222 = vadd.f32 %v2184, %v2204
    %v2223 = vadd.f32 %v2185, %v2205
    %v2224 = vadd.f32 %v2186, %v2206
    %v2225 = vadd.f32 %v2187, %v2207
    %s2226 = sld [smem:[#allocation3 + $0x27]]
    %v2227 = vstv %s2226
    %v2228 = vmul.f32 %v47, %v2227
    %v2229 = vmul.f32 %v48, %v2227
    %v2230 = vmul.f32 %v49, %v2227
    %v2231 = vmul.f32 %v50, %v2227
    %v2232 = vmul.f32 %v51, %v2227
    %v2233 = vmul.f32 %v52, %v2227
    %v2234 = vmul.f32 %v53, %v2227
    %v2235 = vmul.f32 %v54, %v2227
    %v2236 = vmul.f32 %v55, %v2227
    %v2237 = vmul.f32 %v56, %v2227
    %v2238 = vmul.f32 %v57, %v2227
    %v2239 = vmul.f32 %v58, %v2227
    %v2240 = vmul.f32 %v59, %v2227
    %v2241 = vmul.f32 %v60, %v2227
    %v2242 = vmul.f32 %v61, %v2227
    %v2243 = vmul.f32 %v62, %v2227
    %v2244 = vmul.f32 %v63, %v2227
    %v2245 = vmul.f32 %v64, %v2227
    %v2246 = vadd.f32 %v2208, %v2228
    %v2247 = vadd.f32 %v2209, %v2229
    %v2248 = vadd.f32 %v2210, %v2230
    %v2249 = vadd.f32 %v2211, %v2231
    %v2250 = vadd.f32 %v2212, %v2232
    %v2251 = vadd.f32 %v2213, %v2233
    %v2252 = vadd.f32 %v2214, %v2234
    %v2253 = vadd.f32 %v2215, %v2235
    %v2254 = vadd.f32 %v2216, %v2236
    %v2255 = vadd.f32 %v2217, %v2237
    %v2256 = vadd.f32 %v2218, %v2238
    %v2257 = vadd.f32 %v2219, %v2239
    %v2258 = vadd.f32 %v2220, %v2240
    %v2259 = vadd.f32 %v2221, %v2241
    %v2260 = vadd.f32 %v2222, %v2242
    %v2261 = vadd.f32 %v2223, %v2243
    %v2262 = vadd.f32 %v2224, %v2244
    %v2263 = vadd.f32 %v2225, %v2245
    %s2264 = sld [smem:[#allocation3 + $0x28]]
    %v2265 = vstv %s2264
    %v2266 = vmul.f32 %v67, %v2265
    %v2267 = vmul.f32 %v68, %v2265
    %v2268 = vmul.f32 %v69, %v2265
    %v2269 = vmul.f32 %v70, %v2265
    %v2270 = vmul.f32 %v71, %v2265
    %v2271 = vmul.f32 %v72, %v2265
    %v2272 = vmul.f32 %v73, %v2265
    %v2273 = vmul.f32 %v74, %v2265
    %v2274 = vmul.f32 %v75, %v2265
    %v2275 = vmul.f32 %v76, %v2265
    %v2276 = vmul.f32 %v77, %v2265
    %v2277 = vmul.f32 %v78, %v2265
    %v2278 = vmul.f32 %v79, %v2265
    %v2279 = vmul.f32 %v80, %v2265
    %v2280 = vmul.f32 %v81, %v2265
    %v2281 = vmul.f32 %v82, %v2265
    %v2282 = vmul.f32 %v83, %v2265
    %v2283 = vmul.f32 %v84, %v2265
    %v2284 = vadd.f32 %v2246, %v2266
    %v2285 = vadd.f32 %v2247, %v2267
    %v2286 = vadd.f32 %v2248, %v2268
    %v2287 = vadd.f32 %v2249, %v2269
    %v2288 = vadd.f32 %v2250, %v2270
    %v2289 = vadd.f32 %v2251, %v2271
    %v2290 = vadd.f32 %v2252, %v2272
    %v2291 = vadd.f32 %v2253, %v2273
    %v2292 = vadd.f32 %v2254, %v2274
    %v2293 = vadd.f32 %v2255, %v2275
    %v2294 = vadd.f32 %v2256, %v2276
    %v2295 = vadd.f32 %v2257, %v2277
    %v2296 = vadd.f32 %v2258, %v2278
    %v2297 = vadd.f32 %v2259, %v2279
    %v2298 = vadd.f32 %v2260, %v2280
    %v2299 = vadd.f32 %v2261, %v2281
    %v2300 = vadd.f32 %v2262, %v2282
    %v2301 = vadd.f32 %v2263, %v2283
    %s2302 = sld [smem:[#allocation3 + $0x29]]
    %v2303 = vstv %s2302
    %v2304 = vmul.f32 %v87, %v2303
    %v2305 = vmul.f32 %v88, %v2303
    %v2306 = vmul.f32 %v89, %v2303
    %v2307 = vmul.f32 %v90, %v2303
    %v2308 = vmul.f32 %v91, %v2303
    %v2309 = vmul.f32 %v92, %v2303
    %v2310 = vmul.f32 %v93, %v2303
    %v2311 = vmul.f32 %v94, %v2303
    %v2312 = vmul.f32 %v95, %v2303
    %v2313 = vmul.f32 %v96, %v2303
    %v2314 = vmul.f32 %v97, %v2303
    %v2315 = vmul.f32 %v98, %v2303
    %v2316 = vmul.f32 %v99, %v2303
    %v2317 = vmul.f32 %v100, %v2303
    %v2318 = vmul.f32 %v101, %v2303
    %v2319 = vmul.f32 %v102, %v2303
    %v2320 = vmul.f32 %v103, %v2303
    %v2321 = vmul.f32 %v104, %v2303
    %v2322 = vadd.f32 %v2284, %v2304
    %v2323 = vadd.f32 %v2285, %v2305
    %v2324 = vadd.f32 %v2286, %v2306
    %v2325 = vadd.f32 %v2287, %v2307
    %v2326 = vadd.f32 %v2288, %v2308
    %v2327 = vadd.f32 %v2289, %v2309
    %v2328 = vadd.f32 %v2290, %v2310
    %v2329 = vadd.f32 %v2291, %v2311
    %v2330 = vadd.f32 %v2292, %v2312
    %v2331 = vadd.f32 %v2293, %v2313
    %v2332 = vadd.f32 %v2294, %v2314
    %v2333 = vadd.f32 %v2295, %v2315
    %v2334 = vadd.f32 %v2296, %v2316
    %v2335 = vadd.f32 %v2297, %v2317
    %v2336 = vadd.f32 %v2298, %v2318
    %v2337 = vadd.f32 %v2299, %v2319
    %v2338 = vadd.f32 %v2300, %v2320
    %v2339 = vadd.f32 %v2301, %v2321
    %s2340 = sld [smem:[#allocation3 + $0x2a]]
    %v2341 = vstv %s2340
    %v2342 = vmul.f32 %v48, %v2341
    %v2343 = vmul.f32 %v49, %v2341
    %v2344 = vmul.f32 %v50, %v2341
    %v2345 = vmul.f32 %v51, %v2341
    %v2346 = vmul.f32 %v52, %v2341
    %v2347 = vmul.f32 %v53, %v2341
    %v2348 = vmul.f32 %v54, %v2341
    %v2349 = vmul.f32 %v55, %v2341
    %v2350 = vmul.f32 %v56, %v2341
    %v2351 = vmul.f32 %v57, %v2341
    %v2352 = vmul.f32 %v58, %v2341
    %v2353 = vmul.f32 %v59, %v2341
    %v2354 = vmul.f32 %v60, %v2341
    %v2355 = vmul.f32 %v61, %v2341
    %v2356 = vmul.f32 %v62, %v2341
    %v2357 = vmul.f32 %v63, %v2341
    %v2358 = vmul.f32 %v64, %v2341
    %v2359 = vmul.f32 %v65, %v2341
    %v2360 = vadd.f32 %v2322, %v2342
    %v2361 = vadd.f32 %v2323, %v2343
    %v2362 = vadd.f32 %v2324, %v2344
    %v2363 = vadd.f32 %v2325, %v2345
    %v2364 = vadd.f32 %v2326, %v2346
    %v2365 = vadd.f32 %v2327, %v2347
    %v2366 = vadd.f32 %v2328, %v2348
    %v2367 = vadd.f32 %v2329, %v2349
    %v2368 = vadd.f32 %v2330, %v2350
    %v2369 = vadd.f32 %v2331, %v2351
    %v2370 = vadd.f32 %v2332, %v2352
    %v2371 = vadd.f32 %v2333, %v2353
    %v2372 = vadd.f32 %v2334, %v2354
    %v2373 = vadd.f32 %v2335, %v2355
    %v2374 = vadd.f32 %v2336, %v2356
    %v2375 = vadd.f32 %v2337, %v2357
    %v2376 = vadd.f32 %v2338, %v2358
    %v2377 = vadd.f32 %v2339, %v2359
    %s2378 = sld [smem:[#allocation3 + $0x2b]]
    %v2379 = vstv %s2378
    %v2380 = vmul.f32 %v68, %v2379
    %v2381 = vmul.f32 %v69, %v2379
    %v2382 = vmul.f32 %v70, %v2379
    %v2383 = vmul.f32 %v71, %v2379
    %v2384 = vmul.f32 %v72, %v2379
    %v2385 = vmul.f32 %v73, %v2379
    %v2386 = vmul.f32 %v74, %v2379
    %v2387 = vmul.f32 %v75, %v2379
    %v2388 = vmul.f32 %v76, %v2379
    %v2389 = vmul.f32 %v77, %v2379
    %v2390 = vmul.f32 %v78, %v2379
    %v2391 = vmul.f32 %v79, %v2379
    %v2392 = vmul.f32 %v80, %v2379
    %v2393 = vmul.f32 %v81, %v2379
    %v2394 = vmul.f32 %v82, %v2379
    %v2395 = vmul.f32 %v83, %v2379
    %v2396 = vmul.f32 %v84, %v2379
    %v2397 = vmul.f32 %v85, %v2379
    %v2398 = vadd.f32 %v2360, %v2380
    %v2399 = vadd.f32 %v2361, %v2381
    %v2400 = vadd.f32 %v2362, %v2382
    %v2401 = vadd.f32 %v2363, %v2383
    %v2402 = vadd.f32 %v2364, %v2384
    %v2403 = vadd.f32 %v2365, %v2385
    %v2404 = vadd.f32 %v2366, %v2386
    %v2405 = vadd.f32 %v2367, %v2387
    %v2406 = vadd.f32 %v2368, %v2388
    %v2407 = vadd.f32 %v2369, %v2389
    %v2408 = vadd.f32 %v2370, %v2390
    %v2409 = vadd.f32 %v2371, %v2391
    %v2410 = vadd.f32 %v2372, %v2392
    %v2411 = vadd.f32 %v2373, %v2393
    %v2412 = vadd.f32 %v2374, %v2394
    %v2413 = vadd.f32 %v2375, %v2395
    %v2414 = vadd.f32 %v2376, %v2396
    %v2415 = vadd.f32 %v2377, %v2397
    %s2416 = sld [smem:[#allocation3 + $0x2c]]
    %v2417 = vstv %s2416
    %v2418 = vmul.f32 %v88, %v2417
    %v2419 = vmul.f32 %v89, %v2417
    %v2420 = vmul.f32 %v90, %v2417
    %v2421 = vmul.f32 %v91, %v2417
    %v2422 = vmul.f32 %v92, %v2417
    %v2423 = vmul.f32 %v93, %v2417
    %v2424 = vmul.f32 %v94, %v2417
    %v2425 = vmul.f32 %v95, %v2417
    %v2426 = vmul.f32 %v96, %v2417
    %v2427 = vmul.f32 %v97, %v2417
    %v2428 = vmul.f32 %v98, %v2417
    %v2429 = vmul.f32 %v99, %v2417
    %v2430 = vmul.f32 %v100, %v2417
    %v2431 = vmul.f32 %v101, %v2417
    %v2432 = vmul.f32 %v102, %v2417
    %v2433 = vmul.f32 %v103, %v2417
    %v2434 = vmul.f32 %v104, %v2417
    %v2435 = vmul.f32 %v105, %v2417
    %v2436 = vadd.f32 %v2398, %v2418
    %v2437 = vadd.f32 %v2399, %v2419
    %v2438 = vadd.f32 %v2400, %v2420
    %v2439 = vadd.f32 %v2401, %v2421
    %v2440 = vadd.f32 %v2402, %v2422
    %v2441 = vadd.f32 %v2403, %v2423
    %v2442 = vadd.f32 %v2404, %v2424
    %v2443 = vadd.f32 %v2405, %v2425
    %v2444 = vadd.f32 %v2406, %v2426
    %v2445 = vadd.f32 %v2407, %v2427
    %v2446 = vadd.f32 %v2408, %v2428
    %v2447 = vadd.f32 %v2409, %v2429
    %v2448 = vadd.f32 %v2410, %v2430
    %v2449 = vadd.f32 %v2411, %v2431
    %v2450 = vadd.f32 %v2412, %v2432
    %v2451 = vadd.f32 %v2413, %v2433
    %v2452 = vadd.f32 %v2414, %v2434
    %v2453 = vadd.f32 %v2415, %v2435
    %s2454 = sld [smem:[#allocation5 + $0x4]]
    %v2455 = vstv %s2454
    %v2456 = vadd.f32 %v2436, %v2455
    %v2457 = vadd.f32 %v2437, %v2455
    %v2458 = vadd.f32 %v2438, %v2455
    %v2459 = vadd.f32 %v2439, %v2455
    %v2460 = vadd.f32 %v2440, %v2455
    %v2461 = vadd.f32 %v2441, %v2455
    %v2462 = vadd.f32 %v2442, %v2455
    %v2463 = vadd.f32 %v2443, %v2455
    %v2464 = vadd.f32 %v2444, %v2455
    %v2465 = vadd.f32 %v2445, %v2455
    %v2466 = vadd.f32 %v2446, %v2455
    %v2467 = vadd.f32 %v2447, %v2455
    %v2468 = vadd.f32 %v2448, %v2455
    %v2469 = vadd.f32 %v2449, %v2455
    %v2470 = vadd.f32 %v2450, %v2455
    %v2471 = vadd.f32 %v2451, %v2455
    %v2472 = vadd.f32 %v2452, %v2455
    %v2473 = vadd.f32 %v2453, %v2455
    %v2474 = vmax.f32 %v2456, 0.0
    %v2475 = vmax.f32 %v2457, 0.0
    %v2476 = vmax.f32 %v2458, 0.0
    %v2477 = vmax.f32 %v2459, 0.0
    %v2478 = vmax.f32 %v2460, 0.0
    %v2479 = vmax.f32 %v2461, 0.0
    %v2480 = vmax.f32 %v2462, 0.0
    %v2481 = vmax.f32 %v2463, 0.0
    %v2482 = vmax.f32 %v2464, 0.0
    %v2483 = vmax.f32 %v2465, 0.0
    %v2484 = vmax.f32 %v2466, 0.0
    %v2485 = vmax.f32 %v2467, 0.0
    %v2486 = vmax.f32 %v2468, 0.0
    %v2487 = vmax.f32 %v2469, 0.0
    %v2488 = vmax.f32 %v2470, 0.0
    %v2489 = vmax.f32 %v2471, 0.0
    %v2490 = vmax.f32 %v2472, 0.0
    %v2491 = vmax.f32 %v2473, 0.0
    %v2492 = vmax.f32 %v2474, %v2475
    %v2493 = vmax.f32 %v2476, %v2477
    %v2494 = vmax.f32 %v2478, %v2479
    %v2495 = vmax.f32 %v2480, %v2481
    %v2496 = vmax.f32 %v2482, %v2483
    %v2497 = vmax.f32 %v2484, %v2485
    %v2498 = vmax.f32 %v2486, %v2487
    %v2499 = vmax.f32 %v2488, %v2489
    %v2500 = vmax.f32 %v2490, %v2491
    %v2510 = vrot.slane %v2492, 1
    %v2511 = vrot.slane %v2493, 1
    %v2512 = vrot.slane %v2494, 1
    %v2513 = vrot.slane %v2495, 1
    %v2514 = vrot.slane %v2496, 1
    %v2515 = vrot.slane %v2497, 1
    %v2516 = vrot.slane %v2498, 1
    %v2517 = vrot.slane %v2499, 1
    %v2518 = vrot.slane %v2500, 1
    %v2528 = vmax.f32 %v2492, %v2510
    %v2529 = vmax.f32 %v2493, %v2511
    %v2530 = vmax.f32 %v2494, %v2512
    %v2531 = vmax.f32 %v2495, %v2513
    %v2532 = vmax.f32 %v2496, %v2514
    %v2533 = vmax.f32 %v2497, %v2515
    %v2534 = vmax.f32 %v2498, %v2516
    %v2535 = vmax.f32 %v2499, %v2517
    %v2536 = vmax.f32 %v2500, %v2518
    %2538 = vset.pattern.permute.xlu0 0
    %2539 = vperm.xlu0 %2538, %v142
    %v2540 = vpop.permute.xlu0 %2539
    %2543 = vset.pattern.permute.xlu0 0
    %2544 = vperm.xlu0 %2543, %v143
    %v2545 = vpop.permute.xlu0 %2544
    %2548 = vset.pattern.permute.xlu0 0
    %2549 = vperm.xlu0 %2548, %v144
    %v2550 = vpop.permute.xlu0 %2549
    %2553 = vset.pattern.permute.xlu0 0
    %2554 = vperm.xlu0 %2553, %v145
    %v2555 = vpop.permute.xlu0 %2554
    %2558 = vset.pattern.permute.xlu0 0
    %2559 = vperm.xlu0 %2558, %v146
    %v2560 = vpop.permute.xlu0 %2559
    %2563 = vset.pattern.permute.xlu0 0
    %2564 = vperm.xlu0 %2563, %v147
    %v2565 = vpop.permute.xlu0 %2564
    %2568 = vset.pattern.permute.xlu0 0
    %2569 = vperm.xlu0 %2568, %v148
    %v2570 = vpop.permute.xlu0 %2569
    %2573 = vset.pattern.permute.xlu0 0
    %2574 = vperm.xlu0 %2573, %v149
    %v2575 = vpop.permute.xlu0 %2574
    %2578 = vset.pattern.permute.xlu0 0
    %2579 = vperm.xlu0 %2578, %v150
    %v2580 = vpop.permute.xlu0 %2579
    %v2582 = vmul.f32 %v2528, %v2540
    %v2583 = vmul.f32 %v2529, %v2545
    %v2584 = vmul.f32 %v2530, %v2550
    %v2585 = vmul.f32 %v2531, %v2555
    %v2586 = vmul.f32 %v2532, %v2560
    %v2587 = vmul.f32 %v2533, %v2565
    %v2588 = vmul.f32 %v2534, %v2570
    %v2589 = vmul.f32 %v2535, %v2575
    %v2590 = vmul.f32 %v2536, %v2580
    %v2591 = vadd.f32 %v2121, %v2582
    %v2592 = vadd.f32 %v2122, %v2583
    %v2593 = vadd.f32 %v2123, %v2584
    %v2594 = vadd.f32 %v2124, %v2585
    %v2595 = vadd.f32 %v2125, %v2586
    %v2596 = vadd.f32 %v2126, %v2587
    %v2597 = vadd.f32 %v2127, %v2588
    %v2598 = vadd.f32 %v2128, %v2589
    %v2599 = vadd.f32 %v2129, %v2590
    %s2600 = sld [smem:[#allocation3 + $0x2d]]
    %v2601 = vstv %s2600
    %v2602 = vmul.f32 %v46, %v2601
    %v2603 = vmul.f32 %v47, %v2601
    %v2604 = vmul.f32 %v48, %v2601
    %v2605 = vmul.f32 %v49, %v2601
    %v2606 = vmul.f32 %v50, %v2601
    %v2607 = vmul.f32 %v51, %v2601
    %v2608 = vmul.f32 %v52, %v2601
    %v2609 = vmul.f32 %v53, %v2601
    %v2610 = vmul.f32 %v54, %v2601
    %v2611 = vmul.f32 %v55, %v2601
    %v2612 = vmul.f32 %v56, %v2601
    %v2613 = vmul.f32 %v57, %v2601
    %v2614 = vmul.f32 %v58, %v2601
    %v2615 = vmul.f32 %v59, %v2601
    %v2616 = vmul.f32 %v60, %v2601
    %v2617 = vmul.f32 %v61, %v2601
    %v2618 = vmul.f32 %v62, %v2601
    %v2619 = vmul.f32 %v63, %v2601
    %s2620 = sld [smem:[#allocation3 + $0x2e]]
    %v2621 = vstv %s2620
    %v2622 = vmul.f32 %v66, %v2621
    %v2623 = vmul.f32 %v67, %v2621
    %v2624 = vmul.f32 %v68, %v2621
    %v2625 = vmul.f32 %v69, %v2621
    %v2626 = vmul.f32 %v70, %v2621
    %v2627 = vmul.f32 %v71, %v2621
    %v2628 = vmul.f32 %v72, %v2621
    %v2629 = vmul.f32 %v73, %v2621
    %v2630 = vmul.f32 %v74, %v2621
    %v2631 = vmul.f32 %v75, %v2621
    %v2632 = vmul.f32 %v76, %v2621
    %v2633 = vmul.f32 %v77, %v2621
    %v2634 = vmul.f32 %v78, %v2621
    %v2635 = vmul.f32 %v79, %v2621
    %v2636 = vmul.f32 %v80, %v2621
    %v2637 = vmul.f32 %v81, %v2621
    %v2638 = vmul.f32 %v82, %v2621
    %v2639 = vmul.f32 %v83, %v2621
    %v2640 = vadd.f32 %v2602, %v2622
    %v2641 = vadd.f32 %v2603, %v2623
    %v2642 = vadd.f32 %v2604, %v2624
    %v2643 = vadd.f32 %v2605, %v2625
    %v2644 = vadd.f32 %v2606, %v2626
    %v2645 = vadd.f32 %v2607, %v2627
    %v2646 = vadd.f32 %v2608, %v2628
    %v2647 = vadd.f32 %v2609, %v2629
    %v2648 = vadd.f32 %v2610, %v2630
    %v2649 = vadd.f32 %v2611, %v2631
    %v2650 = vadd.f32 %v2612, %v2632
    %v2651 = vadd.f32 %v2613, %v2633
    %v2652 = vadd.f32 %v2614, %v2634
    %v2653 = vadd.f32 %v2615, %v2635
    %v2654 = vadd.f32 %v2616, %v2636
    %v2655 = vadd.f32 %v2617, %v2637
    %v2656 = vadd.f32 %v2618, %v2638
    %v2657 = vadd.f32 %v2619, %v2639
    %s2658 = sld [smem:[#allocation3 + $0x2f]]
    %v2659 = vstv %s2658
    %v2660 = vmul.f32 %v86, %v2659
    %v2661 = vmul.f32 %v87, %v2659
    %v2662 = vmul.f32 %v88, %v2659
    %v2663 = vmul.f32 %v89, %v2659
    %v2664 = vmul.f32 %v90, %v2659
    %v2665 = vmul.f32 %v91, %v2659
    %v2666 = vmul.f32 %v92, %v2659
    %v2667 = vmul.f32 %v93, %v2659
    %v2668 = vmul.f32 %v94, %v2659
    %v2669 = vmul.f32 %v95, %v2659
    %v2670 = vmul.f32 %v96, %v2659
    %v2671 = vmul.f32 %v97, %v2659
    %v2672 = vmul.f32 %v98, %v2659
    %v2673 = vmul.f32 %v99, %v2659
    %v2674 = vmul.f32 %v100, %v2659
    %v2675 = vmul.f32 %v101, %v2659
    %v2676 = vmul.f32 %v102, %v2659
    %v2677 = vmul.f32 %v103, %v2659
    %v2678 = vadd.f32 %v2640, %v2660
    %v2679 = vadd.f32 %v2641, %v2661
    %v2680 = vadd.f32 %v2642, %v2662
    %v2681 = vadd.f32 %v2643, %v2663
    %v2682 = vadd.f32 %v2644, %v2664
    %v2683 = vadd.f32 %v2645, %v2665
    %v2684 = vadd.f32 %v2646, %v2666
    %v2685 = vadd.f32 %v2647, %v2667
    %v2686 = vadd.f32 %v2648, %v2668
    %v2687 = vadd.f32 %v2649, %v2669
    %v2688 = vadd.f32 %v2650, %v2670
    %v2689 = vadd.f32 %v2651, %v2671
    %v2690 = vadd.f32 %v2652, %v2672
    %v2691 = vadd.f32 %v2653, %v2673
    %v2692 = vadd.f32 %v2654, %v2674
    %v2693 = vadd.f32 %v2655, %v2675
    %v2694 = vadd.f32 %v2656, %v2676
    %v2695 = vadd.f32 %v2657, %v2677
    %s2696 = sld [smem:[#allocation3 + $0x30]]
    %v2697 = vstv %s2696
    %v2698 = vmul.f32 %v47, %v2697
    %v2699 = vmul.f32 %v48, %v2697
    %v2700 = vmul.f32 %v49, %v2697
    %v2701 = vmul.f32 %v50, %v2697
    %v2702 = vmul.f32 %v51, %v2697
    %v2703 = vmul.f32 %v52, %v2697
    %v2704 = vmul.f32 %v53, %v2697
    %v2705 = vmul.f32 %v54, %v2697
    %v2706 = vmul.f32 %v55, %v2697
    %v2707 = vmul.f32 %v56, %v2697
    %v2708 = vmul.f32 %v57, %v2697
    %v2709 = vmul.f32 %v58, %v2697
    %v2710 = vmul.f32 %v59, %v2697
    %v2711 = vmul.f32 %v60, %v2697
    %v2712 = vmul.f32 %v61, %v2697
    %v2713 = vmul.f32 %v62, %v2697
    %v2714 = vmul.f32 %v63, %v2697
    %v2715 = vmul.f32 %v64, %v2697
    %v2716 = vadd.f32 %v2678, %v2698
    %v2717 = vadd.f32 %v2679, %v2699
    %v2718 = vadd.f32 %v2680, %v2700
    %v2719 = vadd.f32 %v2681, %v2701
    %v2720 = vadd.f32 %v2682, %v2702
    %v2721 = vadd.f32 %v2683, %v2703
    %v2722 = vadd.f32 %v2684, %v2704
    %v2723 = vadd.f32 %v2685, %v2705
    %v2724 = vadd.f32 %v2686, %v2706
    %v2725 = vadd.f32 %v2687, %v2707
    %v2726 = vadd.f32 %v2688, %v2708
    %v2727 = vadd.f32 %v2689, %v2709
    %v2728 = vadd.f32 %v2690, %v2710
    %v2729 = vadd.f32 %v2691, %v2711
    %v2730 = vadd.f32 %v2692, %v2712
    %v2731 = vadd.f32 %v2693, %v2713
    %v2732 = vadd.f32 %v2694, %v2714
    %v2733 = vadd.f32 %v2695, %v2715
    %s2734 = sld [smem:[#allocation3 + $0x31]]
    %v2735 = vstv %s2734
    %v2736 = vmul.f32 %v67, %v2735
    %v2737 = vmul.f32 %v68, %v2735
    %v2738 = vmul.f32 %v69, %v2735
    %v2739 = vmul.f32 %v70, %v2735
    %v2740 = vmul.f32 %v71, %v2735
    %v2741 = vmul.f32 %v72, %v2735
    %v2742 = vmul.f32 %v73, %v2735
    %v2743 = vmul.f32 %v74, %v2735
    %v2744 = vmul.f32 %v75, %v2735
    %v2745 = vmul.f32 %v76, %v2735
    %v2746 = vmul.f32 %v77, %v2735
    %v2747 = vmul.f32 %v78, %v2735
    %v2748 = vmul.f32 %v79, %v2735
    %v2749 = vmul.f32 %v80, %v2735
    %v2750 = vmul.f32 %v81, %v2735
    %v2751 = vmul.f32 %v82, %v2735
    %v2752 = vmul.f32 %v83, %v2735
    %v2753 = vmul.f32 %v84, %v2735
    %v2754 = vadd.f32 %v2716, %v2736
    %v2755 = vadd.f32 %v2717, %v2737
    %v2756 = vadd.f32 %v2718, %v2738
    %v2757 = vadd.f32 %v2719, %v2739
    %v2758 = vadd.f32 %v2720, %v2740
    %v2759 = vadd.f32 %v2721, %v2741
    %v2760 = vadd.f32 %v2722, %v2742
    %v2761 = vadd.f32 %v2723, %v2743
    %v2762 = vadd.f32 %v2724, %v2744
    %v2763 = vadd.f32 %v2725, %v2745
    %v2764 = vadd.f32 %v2726, %v2746
    %v2765 = vadd.f32 %v2727, %v2747
    %v2766 = vadd.f32 %v2728, %v2748
    %v2767 = vadd.f32 %v2729, %v2749
    %v2768 = vadd.f32 %v2730, %v2750
    %v2769 = vadd.f32 %v2731, %v2751
    %v2770 = vadd.f32 %v2732, %v2752
    %v2771 = vadd.f32 %v2733, %v2753
    %s2772 = sld [smem:[#allocation3 + $0x32]]
    %v2773 = vstv %s2772
    %v2774 = vmul.f32 %v87, %v2773
    %v2775 = vmul.f32 %v88, %v2773
    %v2776 = vmul.f32 %v89, %v2773
    %v2777 = vmul.f32 %v90, %v2773
    %v2778 = vmul.f32 %v91, %v2773
    %v2779 = vmul.f32 %v92, %v2773
    %v2780 = vmul.f32 %v93, %v2773
    %v2781 = vmul.f32 %v94, %v2773
    %v2782 = vmul.f32 %v95, %v2773
    %v2783 = vmul.f32 %v96, %v2773
    %v2784 = vmul.f32 %v97, %v2773
    %v2785 = vmul.f32 %v98, %v2773
    %v2786 = vmul.f32 %v99, %v2773
    %v2787 = vmul.f32 %v100, %v2773
    %v2788 = vmul.f32 %v101, %v2773
    %v2789 = vmul.f32 %v102, %v2773
    %v2790 = vmul.f32 %v103, %v2773
    %v2791 = vmul.f32 %v104, %v2773
    %v2792 = vadd.f32 %v2754, %v2774
    %v2793 = vadd.f32 %v2755, %v2775
    %v2794 = vadd.f32 %v2756, %v2776
    %v2795 = vadd.f32 %v2757, %v2777
    %v2796 = vadd.f32 %v2758, %v2778
    %v2797 = vadd.f32 %v2759, %v2779
    %v2798 = vadd.f32 %v2760, %v2780
    %v2799 = vadd.f32 %v2761, %v2781
    %v2800 = vadd.f32 %v2762, %v2782
    %v2801 = vadd.f32 %v2763, %v2783
    %v2802 = vadd.f32 %v2764, %v2784
    %v2803 = vadd.f32 %v2765, %v2785
    %v2804 = vadd.f32 %v2766, %v2786
    %v2805 = vadd.f32 %v2767, %v2787
    %v2806 = vadd.f32 %v2768, %v2788
    %v2807 = vadd.f32 %v2769, %v2789
    %v2808 = vadd.f32 %v2770, %v2790
    %v2809 = vadd.f32 %v2771, %v2791
    %s2810 = sld [smem:[#allocation3 + $0x33]]
    %v2811 = vstv %s2810
    %v2812 = vmul.f32 %v48, %v2811
    %v2813 = vmul.f32 %v49, %v2811
    %v2814 = vmul.f32 %v50, %v2811
    %v2815 = vmul.f32 %v51, %v2811
    %v2816 = vmul.f32 %v52, %v2811
    %v2817 = vmul.f32 %v53, %v2811
    %v2818 = vmul.f32 %v54, %v2811
    %v2819 = vmul.f32 %v55, %v2811
    %v2820 = vmul.f32 %v56, %v2811
    %v2821 = vmul.f32 %v57, %v2811
    %v2822 = vmul.f32 %v58, %v2811
    %v2823 = vmul.f32 %v59, %v2811
    %v2824 = vmul.f32 %v60, %v2811
    %v2825 = vmul.f32 %v61, %v2811
    %v2826 = vmul.f32 %v62, %v2811
    %v2827 = vmul.f32 %v63, %v2811
    %v2828 = vmul.f32 %v64, %v2811
    %v2829 = vmul.f32 %v65, %v2811
    %v2830 = vadd.f32 %v2792, %v2812
    %v2831 = vadd.f32 %v2793, %v2813
    %v2832 = vadd.f32 %v2794, %v2814
    %v2833 = vadd.f32 %v2795, %v2815
    %v2834 = vadd.f32 %v2796, %v2816
    %v2835 = vadd.f32 %v2797, %v2817
    %v2836 = vadd.f32 %v2798, %v2818
    %v2837 = vadd.f32 %v2799, %v2819
    %v2838 = vadd.f32 %v2800, %v2820
    %v2839 = vadd.f32 %v2801, %v2821
    %v2840 = vadd.f32 %v2802, %v2822
    %v2841 = vadd.f32 %v2803, %v2823
    %v2842 = vadd.f32 %v2804, %v2824
    %v2843 = vadd.f32 %v2805, %v2825
    %v2844 = vadd.f32 %v2806, %v2826
    %v2845 = vadd.f32 %v2807, %v2827
    %v2846 = vadd.f32 %v2808, %v2828
    %v2847 = vadd.f32 %v2809, %v2829
    %s2848 = sld [smem:[#allocation3 + $0x34]]
    %v2849 = vstv %s2848
    %v2850 = vmul.f32 %v68, %v2849
    %v2851 = vmul.f32 %v69, %v2849
    %v2852 = vmul.f32 %v70, %v2849
    %v2853 = vmul.f32 %v71, %v2849
    %v2854 = vmul.f32 %v72, %v2849
    %v2855 = vmul.f32 %v73, %v2849
    %v2856 = vmul.f32 %v74, %v2849
    %v2857 = vmul.f32 %v75, %v2849
    %v2858 = vmul.f32 %v76, %v2849
    %v2859 = vmul.f32 %v77, %v2849
    %v2860 = vmul.f32 %v78, %v2849
    %v2861 = vmul.f32 %v79, %v2849
    %v2862 = vmul.f32 %v80, %v2849
    %v2863 = vmul.f32 %v81, %v2849
    %v2864 = vmul.f32 %v82, %v2849
    %v2865 = vmul.f32 %v83, %v2849
    %v2866 = vmul.f32 %v84, %v2849
    %v2867 = vmul.f32 %v85, %v2849
    %v2868 = vadd.f32 %v2830, %v2850
    %v2869 = vadd.f32 %v2831, %v2851
    %v2870 = vadd.f32 %v2832, %v2852
    %v2871 = vadd.f32 %v2833, %v2853
    %v2872 = vadd.f32 %v2834, %v2854
    %v2873 = vadd.f32 %v2835, %v2855
    %v2874 = vadd.f32 %v2836, %v2856
    %v2875 = vadd.f32 %v2837, %v2857
    %v2876 = vadd.f32 %v2838, %v2858
    %v2877 = vadd.f32 %v2839, %v2859
    %v2878 = vadd.f32 %v2840, %v2860
    %v2879 = vadd.f32 %v2841, %v2861
    %v2880 = vadd.f32 %v2842, %v2862
    %v2881 = vadd.f32 %v2843, %v2863
    %v2882 = vadd.f32 %v2844, %v2864
    %v2883 = vadd.f32 %v2845, %v2865
    %v2884 = vadd.f32 %v2846, %v2866
    %v2885 = vadd.f32 %v2847, %v2867
    %s2886 = sld [smem:[#allocation3 + $0x35]]
    %v2887 = vstv %s2886
    %v2888 = vmul.f32 %v88, %v2887
    %v2889 = vmul.f32 %v89, %v2887
    %v2890 = vmul.f32 %v90, %v2887
    %v2891 = vmul.f32 %v91, %v2887
    %v2892 = vmul.f32 %v92, %v2887
    %v2893 = vmul.f32 %v93, %v2887
    %v2894 = vmul.f32 %v94, %v2887
    %v2895 = vmul.f32 %v95, %v2887
    %v2896 = vmul.f32 %v96, %v2887
    %v2897 = vmul.f32 %v97, %v2887
    %v2898 = vmul.f32 %v98, %v2887
    %v2899 = vmul.f32 %v99, %v2887
    %v2900 = vmul.f32 %v100, %v2887
    %v2901 = vmul.f32 %v101, %v2887
    %v2902 = vmul.f32 %v102, %v2887
    %v2903 = vmul.f32 %v103, %v2887
    %v2904 = vmul.f32 %v104, %v2887
    %v2905 = vmul.f32 %v105, %v2887
    %v2906 = vadd.f32 %v2868, %v2888
    %v2907 = vadd.f32 %v2869, %v2889
    %v2908 = vadd.f32 %v2870, %v2890
    %v2909 = vadd.f32 %v2871, %v2891
    %v2910 = vadd.f32 %v2872, %v2892
    %v2911 = vadd.f32 %v2873, %v2893
    %v2912 = vadd.f32 %v2874, %v2894
    %v2913 = vadd.f32 %v2875, %v2895
    %v2914 = vadd.f32 %v2876, %v2896
    %v2915 = vadd.f32 %v2877, %v2897
    %v2916 = vadd.f32 %v2878, %v2898
    %v2917 = vadd.f32 %v2879, %v2899
    %v2918 = vadd.f32 %v2880, %v2900
    %v2919 = vadd.f32 %v2881, %v2901
    %v2920 = vadd.f32 %v2882, %v2902
    %v2921 = vadd.f32 %v2883, %v2903
    %v2922 = vadd.f32 %v2884, %v2904
    %v2923 = vadd.f32 %v2885, %v2905
    %s2924 = sld [smem:[#allocation5 + $0x5]]
    %v2925 = vstv %s2924
    %v2926 = vadd.f32 %v2906, %v2925
    %v2927 = vadd.f32 %v2907, %v2925
    %v2928 = vadd.f32 %v2908, %v2925
    %v2929 = vadd.f32 %v2909, %v2925
    %v2930 = vadd.f32 %v2910, %v2925
    %v2931 = vadd.f32 %v2911, %v2925
    %v2932 = vadd.f32 %v2912, %v2925
    %v2933 = vadd.f32 %v2913, %v2925
    %v2934 = vadd.f32 %v2914, %v2925
    %v2935 = vadd.f32 %v2915, %v2925
    %v2936 = vadd.f32 %v2916, %v2925
    %v2937 = vadd.f32 %v2917, %v2925
    %v2938 = vadd.f32 %v2918, %v2925
    %v2939 = vadd.f32 %v2919, %v2925
    %v2940 = vadd.f32 %v2920, %v2925
    %v2941 = vadd.f32 %v2921, %v2925
    %v2942 = vadd.f32 %v2922, %v2925
    %v2943 = vadd.f32 %v2923, %v2925
    %v2944 = vmax.f32 %v2926, 0.0
    %v2945 = vmax.f32 %v2927, 0.0
    %v2946 = vmax.f32 %v2928, 0.0
    %v2947 = vmax.f32 %v2929, 0.0
    %v2948 = vmax.f32 %v2930, 0.0
    %v2949 = vmax.f32 %v2931, 0.0
    %v2950 = vmax.f32 %v2932, 0.0
    %v2951 = vmax.f32 %v2933, 0.0
    %v2952 = vmax.f32 %v2934, 0.0
    %v2953 = vmax.f32 %v2935, 0.0
    %v2954 = vmax.f32 %v2936, 0.0
    %v2955 = vmax.f32 %v2937, 0.0
    %v2956 = vmax.f32 %v2938, 0.0
    %v2957 = vmax.f32 %v2939, 0.0
    %v2958 = vmax.f32 %v2940, 0.0
    %v2959 = vmax.f32 %v2941, 0.0
    %v2960 = vmax.f32 %v2942, 0.0
    %v2961 = vmax.f32 %v2943, 0.0
    %v2962 = vmax.f32 %v2944, %v2945
    %v2963 = vmax.f32 %v2946, %v2947
    %v2964 = vmax.f32 %v2948, %v2949
    %v2965 = vmax.f32 %v2950, %v2951
    %v2966 = vmax.f32 %v2952, %v2953
    %v2967 = vmax.f32 %v2954, %v2955
    %v2968 = vmax.f32 %v2956, %v2957
    %v2969 = vmax.f32 %v2958, %v2959
    %v2970 = vmax.f32 %v2960, %v2961
    %v2980 = vrot.slane %v2962, 1
    %v2981 = vrot.slane %v2963, 1
    %v2982 = vrot.slane %v2964, 1
    %v2983 = vrot.slane %v2965, 1
    %v2984 = vrot.slane %v2966, 1
    %v2985 = vrot.slane %v2967, 1
    %v2986 = vrot.slane %v2968, 1
    %v2987 = vrot.slane %v2969, 1
    %v2988 = vrot.slane %v2970, 1
    %v2998 = vmax.f32 %v2962, %v2980
    %v2999 = vmax.f32 %v2963, %v2981
    %v3000 = vmax.f32 %v2964, %v2982
    %v3001 = vmax.f32 %v2965, %v2983
    %v3002 = vmax.f32 %v2966, %v2984
    %v3003 = vmax.f32 %v2967, %v2985
    %v3004 = vmax.f32 %v2968, %v2986
    %v3005 = vmax.f32 %v2969, %v2987
    %v3006 = vmax.f32 %v2970, %v2988
    %3008 = vset.pattern.permute.xlu0 0
    %3009 = vperm.xlu0 %3008, %v151
    %v3010 = vpop.permute.xlu0 %3009
    %3013 = vset.pattern.permute.xlu0 0
    %3014 = vperm.xlu0 %3013, %v152
    %v3015 = vpop.permute.xlu0 %3014
    %3018 = vset.pattern.permute.xlu0 0
    %3019 = vperm.xlu0 %3018, %v153
    %v3020 = vpop.permute.xlu0 %3019
    %3023 = vset.pattern.permute.xlu0 0
    %3024 = vperm.xlu0 %3023, %v154
    %v3025 = vpop.permute.xlu0 %3024
    %3028 = vset.pattern.permute.xlu0 0
    %3029 = vperm.xlu0 %3028, %v155
    %v3030 = vpop.permute.xlu0 %3029
    %3033 = vset.pattern.permute.xlu0 0
    %3034 = vperm.xlu0 %3033, %v156
    %v3035 = vpop.permute.xlu0 %3034
    %3038 = vset.pattern.permute.xlu0 0
    %3039 = vperm.xlu0 %3038, %v157
    %v3040 = vpop.permute.xlu0 %3039
    %3043 = vset.pattern.permute.xlu0 0
    %3044 = vperm.xlu0 %3043, %v158
    %v3045 = vpop.permute.xlu0 %3044
    %3048 = vset.pattern.permute.xlu0 0
    %3049 = vperm.xlu0 %3048, %v159
    %v3050 = vpop.permute.xlu0 %3049
    %v3052 = vmul.f32 %v2998, %v3010
    %v3053 = vmul.f32 %v2999, %v3015
    %v3054 = vmul.f32 %v3000, %v3020
    %v3055 = vmul.f32 %v3001, %v3025
    %v3056 = vmul.f32 %v3002, %v3030
    %v3057 = vmul.f32 %v3003, %v3035
    %v3058 = vmul.f32 %v3004, %v3040
    %v3059 = vmul.f32 %v3005, %v3045
    %v3060 = vmul.f32 %v3006, %v3050
    %v3061 = vadd.f32 %v2591, %v3052
    %v3062 = vadd.f32 %v2592, %v3053
    %v3063 = vadd.f32 %v2593, %v3054
    %v3064 = vadd.f32 %v2594, %v3055
    %v3065 = vadd.f32 %v2595, %v3056
    %v3066 = vadd.f32 %v2596, %v3057
    %v3067 = vadd.f32 %v2597, %v3058
    %v3068 = vadd.f32 %v2598, %v3059
    %v3069 = vadd.f32 %v2599, %v3060
    %s3070 = sld [smem:[#allocation3 + $0x36]]
    %v3071 = vstv %s3070
    %v3072 = vmul.f32 %v46, %v3071
    %v3073 = vmul.f32 %v47, %v3071
    %v3074 = vmul.f32 %v48, %v3071
    %v3075 = vmul.f32 %v49, %v3071
    %v3076 = vmul.f32 %v50, %v3071
    %v3077 = vmul.f32 %v51, %v3071
    %v3078 = vmul.f32 %v52, %v3071
    %v3079 = vmul.f32 %v53, %v3071
    %v3080 = vmul.f32 %v54, %v3071
    %v3081 = vmul.f32 %v55, %v3071
    %v3082 = vmul.f32 %v56, %v3071
    %v3083 = vmul.f32 %v57, %v3071
    %v3084 = vmul.f32 %v58, %v3071
    %v3085 = vmul.f32 %v59, %v3071
    %v3086 = vmul.f32 %v60, %v3071
    %v3087 = vmul.f32 %v61, %v3071
    %v3088 = vmul.f32 %v62, %v3071
    %v3089 = vmul.f32 %v63, %v3071
    %s3090 = sld [smem:[#allocation3 + $0x37]]
    %v3091 = vstv %s3090
    %v3092 = vmul.f32 %v66, %v3091
    %v3093 = vmul.f32 %v67, %v3091
    %v3094 = vmul.f32 %v68, %v3091
    %v3095 = vmul.f32 %v69, %v3091
    %v3096 = vmul.f32 %v70, %v3091
    %v3097 = vmul.f32 %v71, %v3091
    %v3098 = vmul.f32 %v72, %v3091
    %v3099 = vmul.f32 %v73, %v3091
    %v3100 = vmul.f32 %v74, %v3091
    %v3101 = vmul.f32 %v75, %v3091
    %v3102 = vmul.f32 %v76, %v3091
    %v3103 = vmul.f32 %v77, %v3091
    %v3104 = vmul.f32 %v78, %v3091
    %v3105 = vmul.f32 %v79, %v3091
    %v3106 = vmul.f32 %v80, %v3091
    %v3107 = vmul.f32 %v81, %v3091
    %v3108 = vmul.f32 %v82, %v3091
    %v3109 = vmul.f32 %v83, %v3091
    %v3110 = vadd.f32 %v3072, %v3092
    %v3111 = vadd.f32 %v3073, %v3093
    %v3112 = vadd.f32 %v3074, %v3094
    %v3113 = vadd.f32 %v3075, %v3095
    %v3114 = vadd.f32 %v3076, %v3096
    %v3115 = vadd.f32 %v3077, %v3097
    %v3116 = vadd.f32 %v3078, %v3098
    %v3117 = vadd.f32 %v3079, %v3099
    %v3118 = vadd.f32 %v3080, %v3100
    %v3119 = vadd.f32 %v3081, %v3101
    %v3120 = vadd.f32 %v3082, %v3102
    %v3121 = vadd.f32 %v3083, %v3103
    %v3122 = vadd.f32 %v3084, %v3104
    %v3123 = vadd.f32 %v3085, %v3105
    %v3124 = vadd.f32 %v3086, %v3106
    %v3125 = vadd.f32 %v3087, %v3107
    %v3126 = vadd.f32 %v3088, %v3108
    %v3127 = vadd.f32 %v3089, %v3109
    %s3128 = sld [smem:[#allocation3 + $0x38]]
    %v3129 = vstv %s3128
    %v3130 = vmul.f32 %v86, %v3129
    %v3131 = vmul.f32 %v87, %v3129
    %v3132 = vmul.f32 %v88, %v3129
    %v3133 = vmul.f32 %v89, %v3129
    %v3134 = vmul.f32 %v90, %v3129
    %v3135 = vmul.f32 %v91, %v3129
    %v3136 = vmul.f32 %v92, %v3129
    %v3137 = vmul.f32 %v93, %v3129
    %v3138 = vmul.f32 %v94, %v3129
    %v3139 = vmul.f32 %v95, %v3129
    %v3140 = vmul.f32 %v96, %v3129
    %v3141 = vmul.f32 %v97, %v3129
    %v3142 = vmul.f32 %v98, %v3129
    %v3143 = vmul.f32 %v99, %v3129
    %v3144 = vmul.f32 %v100, %v3129
    %v3145 = vmul.f32 %v101, %v3129
    %v3146 = vmul.f32 %v102, %v3129
    %v3147 = vmul.f32 %v103, %v3129
    %v3148 = vadd.f32 %v3110, %v3130
    %v3149 = vadd.f32 %v3111, %v3131
    %v3150 = vadd.f32 %v3112, %v3132
    %v3151 = vadd.f32 %v3113, %v3133
    %v3152 = vadd.f32 %v3114, %v3134
    %v3153 = vadd.f32 %v3115, %v3135
    %v3154 = vadd.f32 %v3116, %v3136
    %v3155 = vadd.f32 %v3117, %v3137
    %v3156 = vadd.f32 %v3118, %v3138
    %v3157 = vadd.f32 %v3119, %v3139
    %v3158 = vadd.f32 %v3120, %v3140
    %v3159 = vadd.f32 %v3121, %v3141
    %v3160 = vadd.f32 %v3122, %v3142
    %v3161 = vadd.f32 %v3123, %v3143
    %v3162 = vadd.f32 %v3124, %v3144
    %v3163 = vadd.f32 %v3125, %v3145
    %v3164 = vadd.f32 %v3126, %v3146
    %v3165 = vadd.f32 %v3127, %v3147
    %s3166 = sld [smem:[#allocation3 + $0x39]]
    %v3167 = vstv %s3166
    %v3168 = vmul.f32 %v47, %v3167
    %v3169 = vmul.f32 %v48, %v3167
    %v3170 = vmul.f32 %v49, %v3167
    %v3171 = vmul.f32 %v50, %v3167
    %v3172 = vmul.f32 %v51, %v3167
    %v3173 = vmul.f32 %v52, %v3167
    %v3174 = vmul.f32 %v53, %v3167
    %v3175 = vmul.f32 %v54, %v3167
    %v3176 = vmul.f32 %v55, %v3167
    %v3177 = vmul.f32 %v56, %v3167
    %v3178 = vmul.f32 %v57, %v3167
    %v3179 = vmul.f32 %v58, %v3167
    %v3180 = vmul.f32 %v59, %v3167
    %v3181 = vmul.f32 %v60, %v3167
    %v3182 = vmul.f32 %v61, %v3167
    %v3183 = vmul.f32 %v62, %v3167
    %v3184 = vmul.f32 %v63, %v3167
    %v3185 = vmul.f32 %v64, %v3167
    %v3186 = vadd.f32 %v3148, %v3168
    %v3187 = vadd.f32 %v3149, %v3169
    %v3188 = vadd.f32 %v3150, %v3170
    %v3189 = vadd.f32 %v3151, %v3171
    %v3190 = vadd.f32 %v3152, %v3172
    %v3191 = vadd.f32 %v3153, %v3173
    %v3192 = vadd.f32 %v3154, %v3174
    %v3193 = vadd.f32 %v3155, %v3175
    %v3194 = vadd.f32 %v3156, %v3176
    %v3195 = vadd.f32 %v3157, %v3177
    %v3196 = vadd.f32 %v3158, %v3178
    %v3197 = vadd.f32 %v3159, %v3179
    %v3198 = vadd.f32 %v3160, %v3180
    %v3199 = vadd.f32 %v3161, %v3181
    %v3200 = vadd.f32 %v3162, %v3182
    %v3201 = vadd.f32 %v3163, %v3183
    %v3202 = vadd.f32 %v3164, %v3184
    %v3203 = vadd.f32 %v3165, %v3185
    %s3204 = sld [smem:[#allocation3 + $0x3a]]
    %v3205 = vstv %s3204
    %v3206 = vmul.f32 %v67, %v3205
    %v3207 = vmul.f32 %v68, %v3205
    %v3208 = vmul.f32 %v69, %v3205
    %v3209 = vmul.f32 %v70, %v3205
    %v3210 = vmul.f32 %v71, %v3205
    %v3211 = vmul.f32 %v72, %v3205
    %v3212 = vmul.f32 %v73, %v3205
    %v3213 = vmul.f32 %v74, %v3205
    %v3214 = vmul.f32 %v75, %v3205
    %v3215 = vmul.f32 %v76, %v3205
    %v3216 = vmul.f32 %v77, %v3205
    %v3217 = vmul.f32 %v78, %v3205
    %v3218 = vmul.f32 %v79, %v3205
    %v3219 = vmul.f32 %v80, %v3205
    %v3220 = vmul.f32 %v81, %v3205
    %v3221 = vmul.f32 %v82, %v3205
    %v3222 = vmul.f32 %v83, %v3205
    %v3223 = vmul.f32 %v84, %v3205
    %v3224 = vadd.f32 %v3186, %v3206
    %v3225 = vadd.f32 %v3187, %v3207
    %v3226 = vadd.f32 %v3188, %v3208
    %v3227 = vadd.f32 %v3189, %v3209
    %v3228 = vadd.f32 %v3190, %v3210
    %v3229 = vadd.f32 %v3191, %v3211
    %v3230 = vadd.f32 %v3192, %v3212
    %v3231 = vadd.f32 %v3193, %v3213
    %v3232 = vadd.f32 %v3194, %v3214
    %v3233 = vadd.f32 %v3195, %v3215
    %v3234 = vadd.f32 %v3196, %v3216
    %v3235 = vadd.f32 %v3197, %v3217
    %v3236 = vadd.f32 %v3198, %v3218
    %v3237 = vadd.f32 %v3199, %v3219
    %v3238 = vadd.f32 %v3200, %v3220
    %v3239 = vadd.f32 %v3201, %v3221
    %v3240 = vadd.f32 %v3202, %v3222
    %v3241 = vadd.f32 %v3203, %v3223
    %s3242 = sld [smem:[#allocation3 + $0x3b]]
    %v3243 = vstv %s3242
    %v3244 = vmul.f32 %v87, %v3243
    %v3245 = vmul.f32 %v88, %v3243
    %v3246 = vmul.f32 %v89, %v3243
    %v3247 = vmul.f32 %v90, %v3243
    %v3248 = vmul.f32 %v91, %v3243
    %v3249 = vmul.f32 %v92, %v3243
    %v3250 = vmul.f32 %v93, %v3243
    %v3251 = vmul.f32 %v94, %v3243
    %v3252 = vmul.f32 %v95, %v3243
    %v3253 = vmul.f32 %v96, %v3243
    %v3254 = vmul.f32 %v97, %v3243
    %v3255 = vmul.f32 %v98, %v3243
    %v3256 = vmul.f32 %v99, %v3243
    %v3257 = vmul.f32 %v100, %v3243
    %v3258 = vmul.f32 %v101, %v3243
    %v3259 = vmul.f32 %v102, %v3243
    %v3260 = vmul.f32 %v103, %v3243
    %v3261 = vmul.f32 %v104, %v3243
    %v3262 = vadd.f32 %v3224, %v3244
    %v3263 = vadd.f32 %v3225, %v3245
    %v3264 = vadd.f32 %v3226, %v3246
    %v3265 = vadd.f32 %v3227, %v3247
    %v3266 = vadd.f32 %v3228, %v3248
    %v3267 = vadd.f32 %v3229, %v3249
    %v3268 = vadd.f32 %v3230, %v3250
    %v3269 = vadd.f32 %v3231, %v3251
    %v3270 = vadd.f32 %v3232, %v3252
    %v3271 = vadd.f32 %v3233, %v3253
    %v3272 = vadd.f32 %v3234, %v3254
    %v3273 = vadd.f32 %v3235, %v3255
    %v3274 = vadd.f32 %v3236, %v3256
    %v3275 = vadd.f32 %v3237, %v3257
    %v3276 = vadd.f32 %v3238, %v3258
    %v3277 = vadd.f32 %v3239, %v3259
    %v3278 = vadd.f32 %v3240, %v3260
    %v3279 = vadd.f32 %v3241, %v3261
    %s3280 = sld [smem:[#allocation3 + $0x3c]]
    %v3281 = vstv %s3280
    %v3282 = vmul.f32 %v48, %v3281
    %v3283 = vmul.f32 %v49, %v3281
    %v3284 = vmul.f32 %v50, %v3281
    %v3285 = vmul.f32 %v51, %v3281
    %v3286 = vmul.f32 %v52, %v3281
    %v3287 = vmul.f32 %v53, %v3281
    %v3288 = vmul.f32 %v54, %v3281
    %v3289 = vmul.f32 %v55, %v3281
    %v3290 = vmul.f32 %v56, %v3281
    %v3291 = vmul.f32 %v57, %v3281
    %v3292 = vmul.f32 %v58, %v3281
    %v3293 = vmul.f32 %v59, %v3281
    %v3294 = vmul.f32 %v60, %v3281
    %v3295 = vmul.f32 %v61, %v3281
    %v3296 = vmul.f32 %v62, %v3281
    %v3297 = vmul.f32 %v63, %v3281
    %v3298 = vmul.f32 %v64, %v3281
    %v3299 = vmul.f32 %v65, %v3281
    %v3300 = vadd.f32 %v3262, %v3282
    %v3301 = vadd.f32 %v3263, %v3283
    %v3302 = vadd.f32 %v3264, %v3284
    %v3303 = vadd.f32 %v3265, %v3285
    %v3304 = vadd.f32 %v3266, %v3286
    %v3305 = vadd.f32 %v3267, %v3287
    %v3306 = vadd.f32 %v3268, %v3288
    %v3307 = vadd.f32 %v3269, %v3289
    %v3308 = vadd.f32 %v3270, %v3290
    %v3309 = vadd.f32 %v3271, %v3291
    %v3310 = vadd.f32 %v3272, %v3292
    %v3311 = vadd.f32 %v3273, %v3293
    %v3312 = vadd.f32 %v3274, %v3294
    %v3313 = vadd.f32 %v3275, %v3295
    %v3314 = vadd.f32 %v3276, %v3296
    %v3315 = vadd.f32 %v3277, %v3297
    %v3316 = vadd.f32 %v3278, %v3298
    %v3317 = vadd.f32 %v3279, %v3299
    %s3318 = sld [smem:[#allocation3 + $0x3d]]
    %v3319 = vstv %s3318
    %v3320 = vmul.f32 %v68, %v3319
    %v3321 = vmul.f32 %v69, %v3319
    %v3322 = vmul.f32 %v70, %v3319
    %v3323 = vmul.f32 %v71, %v3319
    %v3324 = vmul.f32 %v72, %v3319
    %v3325 = vmul.f32 %v73, %v3319
    %v3326 = vmul.f32 %v74, %v3319
    %v3327 = vmul.f32 %v75, %v3319
    %v3328 = vmul.f32 %v76, %v3319
    %v3329 = vmul.f32 %v77, %v3319
    %v3330 = vmul.f32 %v78, %v3319
    %v3331 = vmul.f32 %v79, %v3319
    %v3332 = vmul.f32 %v80, %v3319
    %v3333 = vmul.f32 %v81, %v3319
    %v3334 = vmul.f32 %v82, %v3319
    %v3335 = vmul.f32 %v83, %v3319
    %v3336 = vmul.f32 %v84, %v3319
    %v3337 = vmul.f32 %v85, %v3319
    %v3338 = vadd.f32 %v3300, %v3320
    %v3339 = vadd.f32 %v3301, %v3321
    %v3340 = vadd.f32 %v3302, %v3322
    %v3341 = vadd.f32 %v3303, %v3323
    %v3342 = vadd.f32 %v3304, %v3324
    %v3343 = vadd.f32 %v3305, %v3325
    %v3344 = vadd.f32 %v3306, %v3326
    %v3345 = vadd.f32 %v3307, %v3327
    %v3346 = vadd.f32 %v3308, %v3328
    %v3347 = vadd.f32 %v3309, %v3329
    %v3348 = vadd.f32 %v3310, %v3330
    %v3349 = vadd.f32 %v3311, %v3331
    %v3350 = vadd.f32 %v3312, %v3332
    %v3351 = vadd.f32 %v3313, %v3333
    %v3352 = vadd.f32 %v3314, %v3334
    %v3353 = vadd.f32 %v3315, %v3335
    %v3354 = vadd.f32 %v3316, %v3336
    %v3355 = vadd.f32 %v3317, %v3337
    %s3356 = sld [smem:[#allocation3 + $0x3e]]
    %v3357 = vstv %s3356
    %v3358 = vmul.f32 %v88, %v3357
    %v3359 = vmul.f32 %v89, %v3357
    %v3360 = vmul.f32 %v90, %v3357
    %v3361 = vmul.f32 %v91, %v3357
    %v3362 = vmul.f32 %v92, %v3357
    %v3363 = vmul.f32 %v93, %v3357
    %v3364 = vmul.f32 %v94, %v3357
    %v3365 = vmul.f32 %v95, %v3357
    %v3366 = vmul.f32 %v96, %v3357
    %v3367 = vmul.f32 %v97, %v3357
    %v3368 = vmul.f32 %v98, %v3357
    %v3369 = vmul.f32 %v99, %v3357
    %v3370 = vmul.f32 %v100, %v3357
    %v3371 = vmul.f32 %v101, %v3357
    %v3372 = vmul.f32 %v102, %v3357
    %v3373 = vmul.f32 %v103, %v3357
    %v3374 = vmul.f32 %v104, %v3357
    %v3375 = vmul.f32 %v105, %v3357
    %v3376 = vadd.f32 %v3338, %v3358
    %v3377 = vadd.f32 %v3339, %v3359
    %v3378 = vadd.f32 %v3340, %v3360
    %v3379 = vadd.f32 %v3341, %v3361
    %v3380 = vadd.f32 %v3342, %v3362
    %v3381 = vadd.f32 %v3343, %v3363
    %v3382 = vadd.f32 %v3344, %v3364
    %v3383 = vadd.f32 %v3345, %v3365
    %v3384 = vadd.f32 %v3346, %v3366
    %v3385 = vadd.f32 %v3347, %v3367
    %v3386 = vadd.f32 %v3348, %v3368
    %v3387 = vadd.f32 %v3349, %v3369
    %v3388 = vadd.f32 %v3350, %v3370
    %v3389 = vadd.f32 %v3351, %v3371
    %v3390 = vadd.f32 %v3352, %v3372
    %v3391 = vadd.f32 %v3353, %v3373
    %v3392 = vadd.f32 %v3354, %v3374
    %v3393 = vadd.f32 %v3355, %v3375
    %s3394 = sld [smem:[#allocation5 + $0x6]]
    %v3395 = vstv %s3394
    %v3396 = vadd.f32 %v3376, %v3395
    %v3397 = vadd.f32 %v3377, %v3395
    %v3398 = vadd.f32 %v3378, %v3395
    %v3399 = vadd.f32 %v3379, %v3395
    %v3400 = vadd.f32 %v3380, %v3395
    %v3401 = vadd.f32 %v3381, %v3395
    %v3402 = vadd.f32 %v3382, %v3395
    %v3403 = vadd.f32 %v3383, %v3395
    %v3404 = vadd.f32 %v3384, %v3395
    %v3405 = vadd.f32 %v3385, %v3395
    %v3406 = vadd.f32 %v3386, %v3395
    %v3407 = vadd.f32 %v3387, %v3395
    %v3408 = vadd.f32 %v3388, %v3395
    %v3409 = vadd.f32 %v3389, %v3395
    %v3410 = vadd.f32 %v3390, %v3395
    %v3411 = vadd.f32 %v3391, %v3395
    %v3412 = vadd.f32 %v3392, %v3395
    %v3413 = vadd.f32 %v3393, %v3395
    %v3414 = vmax.f32 %v3396, 0.0
    %v3415 = vmax.f32 %v3397, 0.0
    %v3416 = vmax.f32 %v3398, 0.0
    %v3417 = vmax.f32 %v3399, 0.0
    %v3418 = vmax.f32 %v3400, 0.0
    %v3419 = vmax.f32 %v3401, 0.0
    %v3420 = vmax.f32 %v3402, 0.0
    %v3421 = vmax.f32 %v3403, 0.0
    %v3422 = vmax.f32 %v3404, 0.0
    %v3423 = vmax.f32 %v3405, 0.0
    %v3424 = vmax.f32 %v3406, 0.0
    %v3425 = vmax.f32 %v3407, 0.0
    %v3426 = vmax.f32 %v3408, 0.0
    %v3427 = vmax.f32 %v3409, 0.0
    %v3428 = vmax.f32 %v3410, 0.0
    %v3429 = vmax.f32 %v3411, 0.0
    %v3430 = vmax.f32 %v3412, 0.0
    %v3431 = vmax.f32 %v3413, 0.0
    %v3432 = vmax.f32 %v3414, %v3415
    %v3433 = vmax.f32 %v3416, %v3417
    %v3434 = vmax.f32 %v3418, %v3419
    %v3435 = vmax.f32 %v3420, %v3421
    %v3436 = vmax.f32 %v3422, %v3423
    %v3437 = vmax.f32 %v3424, %v3425
    %v3438 = vmax.f32 %v3426, %v3427
    %v3439 = vmax.f32 %v3428, %v3429
    %v3440 = vmax.f32 %v3430, %v3431
    %v3450 = vrot.slane %v3432, 1
    %v3451 = vrot.slane %v3433, 1
    %v3452 = vrot.slane %v3434, 1
    %v3453 = vrot.slane %v3435, 1
    %v3454 = vrot.slane %v3436, 1
    %v3455 = vrot.slane %v3437, 1
    %v3456 = vrot.slane %v3438, 1
    %v3457 = vrot.slane %v3439, 1
    %v3458 = vrot.slane %v3440, 1
    %v3468 = vmax.f32 %v3432, %v3450
    %v3469 = vmax.f32 %v3433, %v3451
    %v3470 = vmax.f32 %v3434, %v3452
    %v3471 = vmax.f32 %v3435, %v3453
    %v3472 = vmax.f32 %v3436, %v3454
    %v3473 = vmax.f32 %v3437, %v3455
    %v3474 = vmax.f32 %v3438, %v3456
    %v3475 = vmax.f32 %v3439, %v3457
    %v3476 = vmax.f32 %v3440, %v3458
    %3478 = vset.pattern.permute.xlu0 0
    %3479 = vperm.xlu0 %3478, %v160
    %v3480 = vpop.permute.xlu0 %3479
    %3483 = vset.pattern.permute.xlu0 0
    %3484 = vperm.xlu0 %3483, %v161
    %v3485 = vpop.permute.xlu0 %3484
    %3488 = vset.pattern.permute.xlu0 0
    %3489 = vperm.xlu0 %3488, %v162
    %v3490 = vpop.permute.xlu0 %3489
    %3493 = vset.pattern.permute.xlu0 0
    %3494 = vperm.xlu0 %3493, %v163
    %v3495 = vpop.permute.xlu0 %3494
    %3498 = vset.pattern.permute.xlu0 0
    %3499 = vperm.xlu0 %3498, %v164
    %v3500 = vpop.permute.xlu0 %3499
    %3503 = vset.pattern.permute.xlu0 0
    %3504 = vperm.xlu0 %3503, %v165
    %v3505 = vpop.permute.xlu0 %3504
    %3508 = vset.pattern.permute.xlu0 0
    %3509 = vperm.xlu0 %3508, %v166
    %v3510 = vpop.permute.xlu0 %3509
    %3513 = vset.pattern.permute.xlu0 0
    %3514 = vperm.xlu0 %3513, %v167
    %v3515 = vpop.permute.xlu0 %3514
    %3518 = vset.pattern.permute.xlu0 0
    %3519 = vperm.xlu0 %3518, %v168
    %v3520 = vpop.permute.xlu0 %3519
    %v3522 = vmul.f32 %v3468, %v3480
    %v3523 = vmul.f32 %v3469, %v3485
    %v3524 = vmul.f32 %v3470, %v3490
    %v3525 = vmul.f32 %v3471, %v3495
    %v3526 = vmul.f32 %v3472, %v3500
    %v3527 = vmul.f32 %v3473, %v3505
    %v3528 = vmul.f32 %v3474, %v3510
    %v3529 = vmul.f32 %v3475, %v3515
    %v3530 = vmul.f32 %v3476, %v3520
    %v3531 = vadd.f32 %v3061, %v3522
    %v3532 = vadd.f32 %v3062, %v3523
    %v3533 = vadd.f32 %v3063, %v3524
    %v3534 = vadd.f32 %v3064, %v3525
    %v3535 = vadd.f32 %v3065, %v3526
    %v3536 = vadd.f32 %v3066, %v3527
    %v3537 = vadd.f32 %v3067, %v3528
    %v3538 = vadd.f32 %v3068, %v3529
    %v3539 = vadd.f32 %v3069, %v3530
    %s3540 = sld [smem:[#allocation3 + $0x3f]]
    %v3541 = vstv %s3540
    %v3542 = vmul.f32 %v46, %v3541
    %v3543 = vmul.f32 %v47, %v3541
    %v3544 = vmul.f32 %v48, %v3541
    %v3545 = vmul.f32 %v49, %v3541
    %v3546 = vmul.f32 %v50, %v3541
    %v3547 = vmul.f32 %v51, %v3541
    %v3548 = vmul.f32 %v52, %v3541
    %v3549 = vmul.f32 %v53, %v3541
    %v3550 = vmul.f32 %v54, %v3541
    %v3551 = vmul.f32 %v55, %v3541
    %v3552 = vmul.f32 %v56, %v3541
    %v3553 = vmul.f32 %v57, %v3541
    %v3554 = vmul.f32 %v58, %v3541
    %v3555 = vmul.f32 %v59, %v3541
    %v3556 = vmul.f32 %v60, %v3541
    %v3557 = vmul.f32 %v61, %v3541
    %v3558 = vmul.f32 %v62, %v3541
    %v3559 = vmul.f32 %v63, %v3541
    %s3560 = sld [smem:[#allocation3 + $0x40]]
    %v3561 = vstv %s3560
    %v3562 = vmul.f32 %v66, %v3561
    %v3563 = vmul.f32 %v67, %v3561
    %v3564 = vmul.f32 %v68, %v3561
    %v3565 = vmul.f32 %v69, %v3561
    %v3566 = vmul.f32 %v70, %v3561
    %v3567 = vmul.f32 %v71, %v3561
    %v3568 = vmul.f32 %v72, %v3561
    %v3569 = vmul.f32 %v73, %v3561
    %v3570 = vmul.f32 %v74, %v3561
    %v3571 = vmul.f32 %v75, %v3561
    %v3572 = vmul.f32 %v76, %v3561
    %v3573 = vmul.f32 %v77, %v3561
    %v3574 = vmul.f32 %v78, %v3561
    %v3575 = vmul.f32 %v79, %v3561
    %v3576 = vmul.f32 %v80, %v3561
    %v3577 = vmul.f32 %v81, %v3561
    %v3578 = vmul.f32 %v82, %v3561
    %v3579 = vmul.f32 %v83, %v3561
    %v3580 = vadd.f32 %v3542, %v3562
    %v3581 = vadd.f32 %v3543, %v3563
    %v3582 = vadd.f32 %v3544, %v3564
    %v3583 = vadd.f32 %v3545, %v3565
    %v3584 = vadd.f32 %v3546, %v3566
    %v3585 = vadd.f32 %v3547, %v3567
    %v3586 = vadd.f32 %v3548, %v3568
    %v3587 = vadd.f32 %v3549, %v3569
    %v3588 = vadd.f32 %v3550, %v3570
    %v3589 = vadd.f32 %v3551, %v3571
    %v3590 = vadd.f32 %v3552, %v3572
    %v3591 = vadd.f32 %v3553, %v3573
    %v3592 = vadd.f32 %v3554, %v3574
    %v3593 = vadd.f32 %v3555, %v3575
    %v3594 = vadd.f32 %v3556, %v3576
    %v3595 = vadd.f32 %v3557, %v3577
    %v3596 = vadd.f32 %v3558, %v3578
    %v3597 = vadd.f32 %v3559, %v3579
    %s3598 = sld [smem:[#allocation3 + $0x41]]
    %v3599 = vstv %s3598
    %v3600 = vmul.f32 %v86, %v3599
    %v3601 = vmul.f32 %v87, %v3599
    %v3602 = vmul.f32 %v88, %v3599
    %v3603 = vmul.f32 %v89, %v3599
    %v3604 = vmul.f32 %v90, %v3599
    %v3605 = vmul.f32 %v91, %v3599
    %v3606 = vmul.f32 %v92, %v3599
    %v3607 = vmul.f32 %v93, %v3599
    %v3608 = vmul.f32 %v94, %v3599
    %v3609 = vmul.f32 %v95, %v3599
    %v3610 = vmul.f32 %v96, %v3599
    %v3611 = vmul.f32 %v97, %v3599
    %v3612 = vmul.f32 %v98, %v3599
    %v3613 = vmul.f32 %v99, %v3599
    %v3614 = vmul.f32 %v100, %v3599
    %v3615 = vmul.f32 %v101, %v3599
    %v3616 = vmul.f32 %v102, %v3599
    %v3617 = vmul.f32 %v103, %v3599
    %v3618 = vadd.f32 %v3580, %v3600
    %v3619 = vadd.f32 %v3581, %v3601
    %v3620 = vadd.f32 %v3582, %v3602
    %v3621 = vadd.f32 %v3583, %v3603
    %v3622 = vadd.f32 %v3584, %v3604
    %v3623 = vadd.f32 %v3585, %v3605
    %v3624 = vadd.f32 %v3586, %v3606
    %v3625 = vadd.f32 %v3587, %v3607
    %v3626 = vadd.f32 %v3588, %v3608
    %v3627 = vadd.f32 %v3589, %v3609
    %v3628 = vadd.f32 %v3590, %v3610
    %v3629 = vadd.f32 %v3591, %v3611
    %v3630 = vadd.f32 %v3592, %v3612
    %v3631 = vadd.f32 %v3593, %v3613
    %v3632 = vadd.f32 %v3594, %v3614
    %v3633 = vadd.f32 %v3595, %v3615
    %v3634 = vadd.f32 %v3596, %v3616
    %v3635 = vadd.f32 %v3597, %v3617
    %s3636 = sld [smem:[#allocation3 + $0x42]]
    %v3637 = vstv %s3636
    %v3638 = vmul.f32 %v47, %v3637
    %v3639 = vmul.f32 %v48, %v3637
    %v3640 = vmul.f32 %v49, %v3637
    %v3641 = vmul.f32 %v50, %v3637
    %v3642 = vmul.f32 %v51, %v3637
    %v3643 = vmul.f32 %v52, %v3637
    %v3644 = vmul.f32 %v53, %v3637
    %v3645 = vmul.f32 %v54, %v3637
    %v3646 = vmul.f32 %v55, %v3637
    %v3647 = vmul.f32 %v56, %v3637
    %v3648 = vmul.f32 %v57, %v3637
    %v3649 = vmul.f32 %v58, %v3637
    %v3650 = vmul.f32 %v59, %v3637
    %v3651 = vmul.f32 %v60, %v3637
    %v3652 = vmul.f32 %v61, %v3637
    %v3653 = vmul.f32 %v62, %v3637
    %v3654 = vmul.f32 %v63, %v3637
    %v3655 = vmul.f32 %v64, %v3637
    %v3656 = vadd.f32 %v3618, %v3638
    %v3657 = vadd.f32 %v3619, %v3639
    %v3658 = vadd.f32 %v3620, %v3640
    %v3659 = vadd.f32 %v3621, %v3641
    %v3660 = vadd.f32 %v3622, %v3642
    %v3661 = vadd.f32 %v3623, %v3643
    %v3662 = vadd.f32 %v3624, %v3644
    %v3663 = vadd.f32 %v3625, %v3645
    %v3664 = vadd.f32 %v3626, %v3646
    %v3665 = vadd.f32 %v3627, %v3647
    %v3666 = vadd.f32 %v3628, %v3648
    %v3667 = vadd.f32 %v3629, %v3649
    %v3668 = vadd.f32 %v3630, %v3650
    %v3669 = vadd.f32 %v3631, %v3651
    %v3670 = vadd.f32 %v3632, %v3652
    %v3671 = vadd.f32 %v3633, %v3653
    %v3672 = vadd.f32 %v3634, %v3654
    %v3673 = vadd.f32 %v3635, %v3655
    %s3674 = sld [smem:[#allocation3 + $0x43]]
    %v3675 = vstv %s3674
    %v3676 = vmul.f32 %v67, %v3675
    %v3677 = vmul.f32 %v68, %v3675
    %v3678 = vmul.f32 %v69, %v3675
    %v3679 = vmul.f32 %v70, %v3675
    %v3680 = vmul.f32 %v71, %v3675
    %v3681 = vmul.f32 %v72, %v3675
    %v3682 = vmul.f32 %v73, %v3675
    %v3683 = vmul.f32 %v74, %v3675
    %v3684 = vmul.f32 %v75, %v3675
    %v3685 = vmul.f32 %v76, %v3675
    %v3686 = vmul.f32 %v77, %v3675
    %v3687 = vmul.f32 %v78, %v3675
    %v3688 = vmul.f32 %v79, %v3675
    %v3689 = vmul.f32 %v80, %v3675
    %v3690 = vmul.f32 %v81, %v3675
    %v3691 = vmul.f32 %v82, %v3675
    %v3692 = vmul.f32 %v83, %v3675
    %v3693 = vmul.f32 %v84, %v3675
    %v3694 = vadd.f32 %v3656, %v3676
    %v3695 = vadd.f32 %v3657, %v3677
    %v3696 = vadd.f32 %v3658, %v3678
    %v3697 = vadd.f32 %v3659, %v3679
    %v3698 = vadd.f32 %v3660, %v3680
    %v3699 = vadd.f32 %v3661, %v3681
    %v3700 = vadd.f32 %v3662, %v3682
    %v3701 = vadd.f32 %v3663, %v3683
    %v3702 = vadd.f32 %v3664, %v3684
    %v3703 = vadd.f32 %v3665, %v3685
    %v3704 = vadd.f32 %v3666, %v3686
    %v3705 = vadd.f32 %v3667, %v3687
    %v3706 = vadd.f32 %v3668, %v3688
    %v3707 = vadd.f32 %v3669, %v3689
    %v3708 = vadd.f32 %v3670, %v3690
    %v3709 = vadd.f32 %v3671, %v3691
    %v3710 = vadd.f32 %v3672, %v3692
    %v3711 = vadd.f32 %v3673, %v3693
    %s3712 = sld [smem:[#allocation3 + $0x44]]
    %v3713 = vstv %s3712
    %v3714 = vmul.f32 %v87, %v3713
    %v3715 = vmul.f32 %v88, %v3713
    %v3716 = vmul.f32 %v89, %v3713
    %v3717 = vmul.f32 %v90, %v3713
    %v3718 = vmul.f32 %v91, %v3713
    %v3719 = vmul.f32 %v92, %v3713
    %v3720 = vmul.f32 %v93, %v3713
    %v3721 = vmul.f32 %v94, %v3713
    %v3722 = vmul.f32 %v95, %v3713
    %v3723 = vmul.f32 %v96, %v3713
    %v3724 = vmul.f32 %v97, %v3713
    %v3725 = vmul.f32 %v98, %v3713
    %v3726 = vmul.f32 %v99, %v3713
    %v3727 = vmul.f32 %v100, %v3713
    %v3728 = vmul.f32 %v101, %v3713
    %v3729 = vmul.f32 %v102, %v3713
    %v3730 = vmul.f32 %v103, %v3713
    %v3731 = vmul.f32 %v104, %v3713
    %v3732 = vadd.f32 %v3694, %v3714
    %v3733 = vadd.f32 %v3695, %v3715
    %v3734 = vadd.f32 %v3696, %v3716
    %v3735 = vadd.f32 %v3697, %v3717
    %v3736 = vadd.f32 %v3698, %v3718
    %v3737 = vadd.f32 %v3699, %v3719
    %v3738 = vadd.f32 %v3700, %v3720
    %v3739 = vadd.f32 %v3701, %v3721
    %v3740 = vadd.f32 %v3702, %v3722
    %v3741 = vadd.f32 %v3703, %v3723
    %v3742 = vadd.f32 %v3704, %v3724
    %v3743 = vadd.f32 %v3705, %v3725
    %v3744 = vadd.f32 %v3706, %v3726
    %v3745 = vadd.f32 %v3707, %v3727
    %v3746 = vadd.f32 %v3708, %v3728
    %v3747 = vadd.f32 %v3709, %v3729
    %v3748 = vadd.f32 %v3710, %v3730
    %v3749 = vadd.f32 %v3711, %v3731
    %s3750 = sld [smem:[#allocation3 + $0x45]]
    %v3751 = vstv %s3750
    %v3752 = vmul.f32 %v48, %v3751
    %v3753 = vmul.f32 %v49, %v3751
    %v3754 = vmul.f32 %v50, %v3751
    %v3755 = vmul.f32 %v51, %v3751
    %v3756 = vmul.f32 %v52, %v3751
    %v3757 = vmul.f32 %v53, %v3751
    %v3758 = vmul.f32 %v54, %v3751
    %v3759 = vmul.f32 %v55, %v3751
    %v3760 = vmul.f32 %v56, %v3751
    %v3761 = vmul.f32 %v57, %v3751
    %v3762 = vmul.f32 %v58, %v3751
    %v3763 = vmul.f32 %v59, %v3751
    %v3764 = vmul.f32 %v60, %v3751
    %v3765 = vmul.f32 %v61, %v3751
    %v3766 = vmul.f32 %v62, %v3751
    %v3767 = vmul.f32 %v63, %v3751
    %v3768 = vmul.f32 %v64, %v3751
    %v3769 = vmul.f32 %v65, %v3751
    %v3770 = vadd.f32 %v3732, %v3752
    %v3771 = vadd.f32 %v3733, %v3753
    %v3772 = vadd.f32 %v3734, %v3754
    %v3773 = vadd.f32 %v3735, %v3755
    %v3774 = vadd.f32 %v3736, %v3756
    %v3775 = vadd.f32 %v3737, %v3757
    %v3776 = vadd.f32 %v3738, %v3758
    %v3777 = vadd.f32 %v3739, %v3759
    %v3778 = vadd.f32 %v3740, %v3760
    %v3779 = vadd.f32 %v3741, %v3761
    %v3780 = vadd.f32 %v3742, %v3762
    %v3781 = vadd.f32 %v3743, %v3763
    %v3782 = vadd.f32 %v3744, %v3764
    %v3783 = vadd.f32 %v3745, %v3765
    %v3784 = vadd.f32 %v3746, %v3766
    %v3785 = vadd.f32 %v3747, %v3767
    %v3786 = vadd.f32 %v3748, %v3768
    %v3787 = vadd.f32 %v3749, %v3769
    %s3788 = sld [smem:[#allocation3 + $0x46]]
    %v3789 = vstv %s3788
    %v3790 = vmul.f32 %v68, %v3789
    %v3791 = vmul.f32 %v69, %v3789
    %v3792 = vmul.f32 %v70, %v3789
    %v3793 = vmul.f32 %v71, %v3789
    %v3794 = vmul.f32 %v72, %v3789
    %v3795 = vmul.f32 %v73, %v3789
    %v3796 = vmul.f32 %v74, %v3789
    %v3797 = vmul.f32 %v75, %v3789
    %v3798 = vmul.f32 %v76, %v3789
    %v3799 = vmul.f32 %v77, %v3789
    %v3800 = vmul.f32 %v78, %v3789
    %v3801 = vmul.f32 %v79, %v3789
    %v3802 = vmul.f32 %v80, %v3789
    %v3803 = vmul.f32 %v81, %v3789
    %v3804 = vmul.f32 %v82, %v3789
    %v3805 = vmul.f32 %v83, %v3789
    %v3806 = vmul.f32 %v84, %v3789
    %v3807 = vmul.f32 %v85, %v3789
    %v3808 = vadd.f32 %v3770, %v3790
    %v3809 = vadd.f32 %v3771, %v3791
    %v3810 = vadd.f32 %v3772, %v3792
    %v3811 = vadd.f32 %v3773, %v3793
    %v3812 = vadd.f32 %v3774, %v3794
    %v3813 = vadd.f32 %v3775, %v3795
    %v3814 = vadd.f32 %v3776, %v3796
    %v3815 = vadd.f32 %v3777, %v3797
    %v3816 = vadd.f32 %v3778, %v3798
    %v3817 = vadd.f32 %v3779, %v3799
    %v3818 = vadd.f32 %v3780, %v3800
    %v3819 = vadd.f32 %v3781, %v3801
    %v3820 = vadd.f32 %v3782, %v3802
    %v3821 = vadd.f32 %v3783, %v3803
    %v3822 = vadd.f32 %v3784, %v3804
    %v3823 = vadd.f32 %v3785, %v3805
    %v3824 = vadd.f32 %v3786, %v3806
    %v3825 = vadd.f32 %v3787, %v3807
    %s3826 = sld [smem:[#allocation3 + $0x47]]
    %v3827 = vstv %s3826
    %v3828 = vmul.f32 %v88, %v3827
    %v3829 = vmul.f32 %v89, %v3827
    %v3830 = vmul.f32 %v90, %v3827
    %v3831 = vmul.f32 %v91, %v3827
    %v3832 = vmul.f32 %v92, %v3827
    %v3833 = vmul.f32 %v93, %v3827
    %v3834 = vmul.f32 %v94, %v3827
    %v3835 = vmul.f32 %v95, %v3827
    %v3836 = vmul.f32 %v96, %v3827
    %v3837 = vmul.f32 %v97, %v3827
    %v3838 = vmul.f32 %v98, %v3827
    %v3839 = vmul.f32 %v99, %v3827
    %v3840 = vmul.f32 %v100, %v3827
    %v3841 = vmul.f32 %v101, %v3827
    %v3842 = vmul.f32 %v102, %v3827
    %v3843 = vmul.f32 %v103, %v3827
    %v3844 = vmul.f32 %v104, %v3827
    %v3845 = vmul.f32 %v105, %v3827
    %v3846 = vadd.f32 %v3808, %v3828
    %v3847 = vadd.f32 %v3809, %v3829
    %v3848 = vadd.f32 %v3810, %v3830
    %v3849 = vadd.f32 %v3811, %v3831
    %v3850 = vadd.f32 %v3812, %v3832
    %v3851 = vadd.f32 %v3813, %v3833
    %v3852 = vadd.f32 %v3814, %v3834
    %v3853 = vadd.f32 %v3815, %v3835
    %v3854 = vadd.f32 %v3816, %v3836
    %v3855 = vadd.f32 %v3817, %v3837
    %v3856 = vadd.f32 %v3818, %v3838
    %v3857 = vadd.f32 %v3819, %v3839
    %v3858 = vadd.f32 %v3820, %v3840
    %v3859 = vadd.f32 %v3821, %v3841
    %v3860 = vadd.f32 %v3822, %v3842
    %v3861 = vadd.f32 %v3823, %v3843
    %v3862 = vadd.f32 %v3824, %v3844
    %v3863 = vadd.f32 %v3825, %v3845
    %s3864 = sld [smem:[#allocation5 + $0x7]]
    %v3865 = vstv %s3864
    %v3866 = vadd.f32 %v3846, %v3865
    %v3867 = vadd.f32 %v3847, %v3865
    %v3868 = vadd.f32 %v3848, %v3865
    %v3869 = vadd.f32 %v3849, %v3865
    %v3870 = vadd.f32 %v3850, %v3865
    %v3871 = vadd.f32 %v3851, %v3865
    %v3872 = vadd.f32 %v3852, %v3865
    %v3873 = vadd.f32 %v3853, %v3865
    %v3874 = vadd.f32 %v3854, %v3865
    %v3875 = vadd.f32 %v3855, %v3865
    %v3876 = vadd.f32 %v3856, %v3865
    %v3877 = vadd.f32 %v3857, %v3865
    %v3878 = vadd.f32 %v3858, %v3865
    %v3879 = vadd.f32 %v3859, %v3865
    %v3880 = vadd.f32 %v3860, %v3865
    %v3881 = vadd.f32 %v3861, %v3865
    %v3882 = vadd.f32 %v3862, %v3865
    %v3883 = vadd.f32 %v3863, %v3865
    %v3884 = vmax.f32 %v3866, 0.0
    %v3885 = vmax.f32 %v3867, 0.0
    %v3886 = vmax.f32 %v3868, 0.0
    %v3887 = vmax.f32 %v3869, 0.0
    %v3888 = vmax.f32 %v3870, 0.0
    %v3889 = vmax.f32 %v3871, 0.0
    %v3890 = vmax.f32 %v3872, 0.0
    %v3891 = vmax.f32 %v3873, 0.0
    %v3892 = vmax.f32 %v3874, 0.0
    %v3893 = vmax.f32 %v3875, 0.0
    %v3894 = vmax.f32 %v3876, 0.0
    %v3895 = vmax.f32 %v3877, 0.0
    %v3896 = vmax.f32 %v3878, 0.0
    %v3897 = vmax.f32 %v3879, 0.0
    %v3898 = vmax.f32 %v3880, 0.0
    %v3899 = vmax.f32 %v3881, 0.0
    %v3900 = vmax.f32 %v3882, 0.0
    %v3901 = vmax.f32 %v3883, 0.0
    %v3902 = vmax.f32 %v3884, %v3885
    %v3903 = vmax.f32 %v3886, %v3887
    %v3904 = vmax.f32 %v3888, %v3889
    %v3905 = vmax.f32 %v3890, %v3891
    %v3906 = vmax.f32 %v3892, %v3893
    %v3907 = vmax.f32 %v3894, %v3895
    %v3908 = vmax.f32 %v3896, %v3897
    %v3909 = vmax.f32 %v3898, %v3899
    %v3910 = vmax.f32 %v3900, %v3901
    %v3920 = vrot.slane %v3902, 1
    %v3921 = vrot.slane %v3903, 1
    %v3922 = vrot.slane %v3904, 1
    %v3923 = vrot.slane %v3905, 1
    %v3924 = vrot.slane %v3906, 1
    %v3925 = vrot.slane %v3907, 1
    %v3926 = vrot.slane %v3908, 1
    %v3927 = vrot.slane %v3909, 1
    %v3928 = vrot.slane %v3910, 1
    %v3938 = vmax.f32 %v3902, %v3920
    %v3939 = vmax.f32 %v3903, %v3921
    %v3940 = vmax.f32 %v3904, %v3922
    %v3941 = vmax.f32 %v3905, %v3923
    %v3942 = vmax.f32 %v3906, %v3924
    %v3943 = vmax.f32 %v3907, %v3925
    %v3944 = vmax.f32 %v3908, %v3926
    %v3945 = vmax.f32 %v3909, %v3927
    %v3946 = vmax.f32 %v3910, %v3928
    %3948 = vset.pattern.permute.xlu0 0
    %3949 = vperm.xlu0 %3948, %v169
    %v3950 = vpop.permute.xlu0 %3949
    %3953 = vset.pattern.permute.xlu0 0
    %3954 = vperm.xlu0 %3953, %v170
    %v3955 = vpop.permute.xlu0 %3954
    %3958 = vset.pattern.permute.xlu0 0
    %3959 = vperm.xlu0 %3958, %v171
    %v3960 = vpop.permute.xlu0 %3959
    %3963 = vset.pattern.permute.xlu0 0
    %3964 = vperm.xlu0 %3963, %v172
    %v3965 = vpop.permute.xlu0 %3964
    %3968 = vset.pattern.permute.xlu0 0
    %3969 = vperm.xlu0 %3968, %v173
    %v3970 = vpop.permute.xlu0 %3969
    %3973 = vset.pattern.permute.xlu0 0
    %3974 = vperm.xlu0 %3973, %v174
    %v3975 = vpop.permute.xlu0 %3974
    %3978 = vset.pattern.permute.xlu0 0
    %3979 = vperm.xlu0 %3978, %v175
    %v3980 = vpop.permute.xlu0 %3979
    %3983 = vset.pattern.permute.xlu0 0
    %3984 = vperm.xlu0 %3983, %v176
    %v3985 = vpop.permute.xlu0 %3984
    %3988 = vset.pattern.permute.xlu0 0
    %3989 = vperm.xlu0 %3988, %v177
    %v3990 = vpop.permute.xlu0 %3989
    %v3992 = vmul.f32 %v3938, %v3950
    %v3993 = vmul.f32 %v3939, %v3955
    %v3994 = vmul.f32 %v3940, %v3960
    %v3995 = vmul.f32 %v3941, %v3965
    %v3996 = vmul.f32 %v3942, %v3970
    %v3997 = vmul.f32 %v3943, %v3975
    %v3998 = vmul.f32 %v3944, %v3980
    %v3999 = vmul.f32 %v3945, %v3985
    %v4000 = vmul.f32 %v3946, %v3990
    %v4001 = vadd.f32 %v3531, %v3992
    %v4002 = vadd.f32 %v3532, %v3993
    %v4003 = vadd.f32 %v3533, %v3994
    %v4004 = vadd.f32 %v3534, %v3995
    %v4005 = vadd.f32 %v3535, %v3996
    %v4006 = vadd.f32 %v3536, %v3997
    %v4007 = vadd.f32 %v3537, %v3998
    %v4008 = vadd.f32 %v3538, %v3999
    %v4009 = vadd.f32 %v3539, %v4000
    %s4010 = sld [smem:[#allocation3 + $0x48]]
    %v4011 = vstv %s4010
    %v4012 = vmul.f32 %v46, %v4011
    %v4013 = vmul.f32 %v47, %v4011
    %v4014 = vmul.f32 %v48, %v4011
    %v4015 = vmul.f32 %v49, %v4011
    %v4016 = vmul.f32 %v50, %v4011
    %v4017 = vmul.f32 %v51, %v4011
    %v4018 = vmul.f32 %v52, %v4011
    %v4019 = vmul.f32 %v53, %v4011
    %v4020 = vmul.f32 %v54, %v4011
    %v4021 = vmul.f32 %v55, %v4011
    %v4022 = vmul.f32 %v56, %v4011
    %v4023 = vmul.f32 %v57, %v4011
    %v4024 = vmul.f32 %v58, %v4011
    %v4025 = vmul.f32 %v59, %v4011
    %v4026 = vmul.f32 %v60, %v4011
    %v4027 = vmul.f32 %v61, %v4011
    %v4028 = vmul.f32 %v62, %v4011
    %v4029 = vmul.f32 %v63, %v4011
    %s4030 = sld [smem:[#allocation3 + $0x49]]
    %v4031 = vstv %s4030
    %v4032 = vmul.f32 %v66, %v4031
    %v4033 = vmul.f32 %v67, %v4031
    %v4034 = vmul.f32 %v68, %v4031
    %v4035 = vmul.f32 %v69, %v4031
    %v4036 = vmul.f32 %v70, %v4031
    %v4037 = vmul.f32 %v71, %v4031
    %v4038 = vmul.f32 %v72, %v4031
    %v4039 = vmul.f32 %v73, %v4031
    %v4040 = vmul.f32 %v74, %v4031
    %v4041 = vmul.f32 %v75, %v4031
    %v4042 = vmul.f32 %v76, %v4031
    %v4043 = vmul.f32 %v77, %v4031
    %v4044 = vmul.f32 %v78, %v4031
    %v4045 = vmul.f32 %v79, %v4031
    %v4046 = vmul.f32 %v80, %v4031
    %v4047 = vmul.f32 %v81, %v4031
    %v4048 = vmul.f32 %v82, %v4031
    %v4049 = vmul.f32 %v83, %v4031
    %v4050 = vadd.f32 %v4012, %v4032
    %v4051 = vadd.f32 %v4013, %v4033
    %v4052 = vadd.f32 %v4014, %v4034
    %v4053 = vadd.f32 %v4015, %v4035
    %v4054 = vadd.f32 %v4016, %v4036
    %v4055 = vadd.f32 %v4017, %v4037
    %v4056 = vadd.f32 %v4018, %v4038
    %v4057 = vadd.f32 %v4019, %v4039
    %v4058 = vadd.f32 %v4020, %v4040
    %v4059 = vadd.f32 %v4021, %v4041
    %v4060 = vadd.f32 %v4022, %v4042
    %v4061 = vadd.f32 %v4023, %v4043
    %v4062 = vadd.f32 %v4024, %v4044
    %v4063 = vadd.f32 %v4025, %v4045
    %v4064 = vadd.f32 %v4026, %v4046
    %v4065 = vadd.f32 %v4027, %v4047
    %v4066 = vadd.f32 %v4028, %v4048
    %v4067 = vadd.f32 %v4029, %v4049
    %s4068 = sld [smem:[#allocation3 + $0x4a]]
    %v4069 = vstv %s4068
    %v4070 = vmul.f32 %v86, %v4069
    %v4071 = vmul.f32 %v87, %v4069
    %v4072 = vmul.f32 %v88, %v4069
    %v4073 = vmul.f32 %v89, %v4069
    %v4074 = vmul.f32 %v90, %v4069
    %v4075 = vmul.f32 %v91, %v4069
    %v4076 = vmul.f32 %v92, %v4069
    %v4077 = vmul.f32 %v93, %v4069
    %v4078 = vmul.f32 %v94, %v4069
    %v4079 = vmul.f32 %v95, %v4069
    %v4080 = vmul.f32 %v96, %v4069
    %v4081 = vmul.f32 %v97, %v4069
    %v4082 = vmul.f32 %v98, %v4069
    %v4083 = vmul.f32 %v99, %v4069
    %v4084 = vmul.f32 %v100, %v4069
    %v4085 = vmul.f32 %v101, %v4069
    %v4086 = vmul.f32 %v102, %v4069
    %v4087 = vmul.f32 %v103, %v4069
    %v4088 = vadd.f32 %v4050, %v4070
    %v4089 = vadd.f32 %v4051, %v4071
    %v4090 = vadd.f32 %v4052, %v4072
    %v4091 = vadd.f32 %v4053, %v4073
    %v4092 = vadd.f32 %v4054, %v4074
    %v4093 = vadd.f32 %v4055, %v4075
    %v4094 = vadd.f32 %v4056, %v4076
    %v4095 = vadd.f32 %v4057, %v4077
    %v4096 = vadd.f32 %v4058, %v4078
    %v4097 = vadd.f32 %v4059, %v4079
    %v4098 = vadd.f32 %v4060, %v4080
    %v4099 = vadd.f32 %v4061, %v4081
    %v4100 = vadd.f32 %v4062, %v4082
    %v4101 = vadd.f32 %v4063, %v4083
    %v4102 = vadd.f32 %v4064, %v4084
    %v4103 = vadd.f32 %v4065, %v4085
    %v4104 = vadd.f32 %v4066, %v4086
    %v4105 = vadd.f32 %v4067, %v4087
    %s4106 = sld [smem:[#allocation3 + $0x4b]]
    %v4107 = vstv %s4106
    %v4108 = vmul.f32 %v47, %v4107
    %v4109 = vmul.f32 %v48, %v4107
    %v4110 = vmul.f32 %v49, %v4107
    %v4111 = vmul.f32 %v50, %v4107
    %v4112 = vmul.f32 %v51, %v4107
    %v4113 = vmul.f32 %v52, %v4107
    %v4114 = vmul.f32 %v53, %v4107
    %v4115 = vmul.f32 %v54, %v4107
    %v4116 = vmul.f32 %v55, %v4107
    %v4117 = vmul.f32 %v56, %v4107
    %v4118 = vmul.f32 %v57, %v4107
    %v4119 = vmul.f32 %v58, %v4107
    %v4120 = vmul.f32 %v59, %v4107
    %v4121 = vmul.f32 %v60, %v4107
    %v4122 = vmul.f32 %v61, %v4107
    %v4123 = vmul.f32 %v62, %v4107
    %v4124 = vmul.f32 %v63, %v4107
    %v4125 = vmul.f32 %v64, %v4107
    %v4126 = vadd.f32 %v4088, %v4108
    %v4127 = vadd.f32 %v4089, %v4109
    %v4128 = vadd.f32 %v4090, %v4110
    %v4129 = vadd.f32 %v4091, %v4111
    %v4130 = vadd.f32 %v4092, %v4112
    %v4131 = vadd.f32 %v4093, %v4113
    %v4132 = vadd.f32 %v4094, %v4114
    %v4133 = vadd.f32 %v4095, %v4115
    %v4134 = vadd.f32 %v4096, %v4116
    %v4135 = vadd.f32 %v4097, %v4117
    %v4136 = vadd.f32 %v4098, %v4118
    %v4137 = vadd.f32 %v4099, %v4119
    %v4138 = vadd.f32 %v4100, %v4120
    %v4139 = vadd.f32 %v4101, %v4121
    %v4140 = vadd.f32 %v4102, %v4122
    %v4141 = vadd.f32 %v4103, %v4123
    %v4142 = vadd.f32 %v4104, %v4124
    %v4143 = vadd.f32 %v4105, %v4125
    %s4144 = sld [smem:[#allocation3 + $0x4c]]
    %v4145 = vstv %s4144
    %v4146 = vmul.f32 %v67, %v4145
    %v4147 = vmul.f32 %v68, %v4145
    %v4148 = vmul.f32 %v69, %v4145
    %v4149 = vmul.f32 %v70, %v4145
    %v4150 = vmul.f32 %v71, %v4145
    %v4151 = vmul.f32 %v72, %v4145
    %v4152 = vmul.f32 %v73, %v4145
    %v4153 = vmul.f32 %v74, %v4145
    %v4154 = vmul.f32 %v75, %v4145
    %v4155 = vmul.f32 %v76, %v4145
    %v4156 = vmul.f32 %v77, %v4145
    %v4157 = vmul.f32 %v78, %v4145
    %v4158 = vmul.f32 %v79, %v4145
    %v4159 = vmul.f32 %v80, %v4145
    %v4160 = vmul.f32 %v81, %v4145
    %v4161 = vmul.f32 %v82, %v4145
    %v4162 = vmul.f32 %v83, %v4145
    %v4163 = vmul.f32 %v84, %v4145
    %v4164 = vadd.f32 %v4126, %v4146
    %v4165 = vadd.f32 %v4127, %v4147
    %v4166 = vadd.f32 %v4128, %v4148
    %v4167 = vadd.f32 %v4129, %v4149
    %v4168 = vadd.f32 %v4130, %v4150
    %v4169 = vadd.f32 %v4131, %v4151
    %v4170 = vadd.f32 %v4132, %v4152
    %v4171 = vadd.f32 %v4133, %v4153
    %v4172 = vadd.f32 %v4134, %v4154
    %v4173 = vadd.f32 %v4135, %v4155
    %v4174 = vadd.f32 %v4136, %v4156
    %v4175 = vadd.f32 %v4137, %v4157
    %v4176 = vadd.f32 %v4138, %v4158
    %v4177 = vadd.f32 %v4139, %v4159
    %v4178 = vadd.f32 %v4140, %v4160
    %v4179 = vadd.f32 %v4141, %v4161
    %v4180 = vadd.f32 %v4142, %v4162
    %v4181 = vadd.f32 %v4143, %v4163
    %s4182 = sld [smem:[#allocation3 + $0x4d]]
    %v4183 = vstv %s4182
    %v4184 = vmul.f32 %v87, %v4183
    %v4185 = vmul.f32 %v88, %v4183
    %v4186 = vmul.f32 %v89, %v4183
    %v4187 = vmul.f32 %v90, %v4183
    %v4188 = vmul.f32 %v91, %v4183
    %v4189 = vmul.f32 %v92, %v4183
    %v4190 = vmul.f32 %v93, %v4183
    %v4191 = vmul.f32 %v94, %v4183
    %v4192 = vmul.f32 %v95, %v4183
    %v4193 = vmul.f32 %v96, %v4183
    %v4194 = vmul.f32 %v97, %v4183
    %v4195 = vmul.f32 %v98, %v4183
    %v4196 = vmul.f32 %v99, %v4183
    %v4197 = vmul.f32 %v100, %v4183
    %v4198 = vmul.f32 %v101, %v4183
    %v4199 = vmul.f32 %v102, %v4183
    %v4200 = vmul.f32 %v103, %v4183
    %v4201 = vmul.f32 %v104, %v4183
    %v4202 = vadd.f32 %v4164, %v4184
    %v4203 = vadd.f32 %v4165, %v4185
    %v4204 = vadd.f32 %v4166, %v4186
    %v4205 = vadd.f32 %v4167, %v4187
    %v4206 = vadd.f32 %v4168, %v4188
    %v4207 = vadd.f32 %v4169, %v4189
    %v4208 = vadd.f32 %v4170, %v4190
    %v4209 = vadd.f32 %v4171, %v4191
    %v4210 = vadd.f32 %v4172, %v4192
    %v4211 = vadd.f32 %v4173, %v4193
    %v4212 = vadd.f32 %v4174, %v4194
    %v4213 = vadd.f32 %v4175, %v4195
    %v4214 = vadd.f32 %v4176, %v4196
    %v4215 = vadd.f32 %v4177, %v4197
    %v4216 = vadd.f32 %v4178, %v4198
    %v4217 = vadd.f32 %v4179, %v4199
    %v4218 = vadd.f32 %v4180, %v4200
    %v4219 = vadd.f32 %v4181, %v4201
    %s4220 = sld [smem:[#allocation3 + $0x4e]]
    %v4221 = vstv %s4220
    %v4222 = vmul.f32 %v48, %v4221
    %v4223 = vmul.f32 %v49, %v4221
    %v4224 = vmul.f32 %v50, %v4221
    %v4225 = vmul.f32 %v51, %v4221
    %v4226 = vmul.f32 %v52, %v4221
    %v4227 = vmul.f32 %v53, %v4221
    %v4228 = vmul.f32 %v54, %v4221
    %v4229 = vmul.f32 %v55, %v4221
    %v4230 = vmul.f32 %v56, %v4221
    %v4231 = vmul.f32 %v57, %v4221
    %v4232 = vmul.f32 %v58, %v4221
    %v4233 = vmul.f32 %v59, %v4221
    %v4234 = vmul.f32 %v60, %v4221
    %v4235 = vmul.f32 %v61, %v4221
    %v4236 = vmul.f32 %v62, %v4221
    %v4237 = vmul.f32 %v63, %v4221
    %v4238 = vmul.f32 %v64, %v4221
    %v4239 = vmul.f32 %v65, %v4221
    %v4240 = vadd.f32 %v4202, %v4222
    %v4241 = vadd.f32 %v4203, %v4223
    %v4242 = vadd.f32 %v4204, %v4224
    %v4243 = vadd.f32 %v4205, %v4225
    %v4244 = vadd.f32 %v4206, %v4226
    %v4245 = vadd.f32 %v4207, %v4227
    %v4246 = vadd.f32 %v4208, %v4228
    %v4247 = vadd.f32 %v4209, %v4229
    %v4248 = vadd.f32 %v4210, %v4230
    %v4249 = vadd.f32 %v4211, %v4231
    %v4250 = vadd.f32 %v4212, %v4232
    %v4251 = vadd.f32 %v4213, %v4233
    %v4252 = vadd.f32 %v4214, %v4234
    %v4253 = vadd.f32 %v4215, %v4235
    %v4254 = vadd.f32 %v4216, %v4236
    %v4255 = vadd.f32 %v4217, %v4237
    %v4256 = vadd.f32 %v4218, %v4238
    %v4257 = vadd.f32 %v4219, %v4239
    %s4258 = sld [smem:[#allocation3 + $0x4f]]
    %v4259 = vstv %s4258
    %v4260 = vmul.f32 %v68, %v4259
    %v4261 = vmul.f32 %v69, %v4259
    %v4262 = vmul.f32 %v70, %v4259
    %v4263 = vmul.f32 %v71, %v4259
    %v4264 = vmul.f32 %v72, %v4259
    %v4265 = vmul.f32 %v73, %v4259
    %v4266 = vmul.f32 %v74, %v4259
    %v4267 = vmul.f32 %v75, %v4259
    %v4268 = vmul.f32 %v76, %v4259
    %v4269 = vmul.f32 %v77, %v4259
    %v4270 = vmul.f32 %v78, %v4259
    %v4271 = vmul.f32 %v79, %v4259
    %v4272 = vmul.f32 %v80, %v4259
    %v4273 = vmul.f32 %v81, %v4259
    %v4274 = vmul.f32 %v82, %v4259
    %v4275 = vmul.f32 %v83, %v4259
    %v4276 = vmul.f32 %v84, %v4259
    %v4277 = vmul.f32 %v85, %v4259
    %v4278 = vadd.f32 %v4240, %v4260
    %v4279 = vadd.f32 %v4241, %v4261
    %v4280 = vadd.f32 %v4242, %v4262
    %v4281 = vadd.f32 %v4243, %v4263
    %v4282 = vadd.f32 %v4244, %v4264
    %v4283 = vadd.f32 %v4245, %v4265
    %v4284 = vadd.f32 %v4246, %v4266
    %v4285 = vadd.f32 %v4247, %v4267
    %v4286 = vadd.f32 %v4248, %v4268
    %v4287 = vadd.f32 %v4249, %v4269
    %v4288 = vadd.f32 %v4250, %v4270
    %v4289 = vadd.f32 %v4251, %v4271
    %v4290 = vadd.f32 %v4252, %v4272
    %v4291 = vadd.f32 %v4253, %v4273
    %v4292 = vadd.f32 %v4254, %v4274
    %v4293 = vadd.f32 %v4255, %v4275
    %v4294 = vadd.f32 %v4256, %v4276
    %v4295 = vadd.f32 %v4257, %v4277
    %s4296 = sld [smem:[#allocation3 + $0x50]]
    %v4297 = vstv %s4296
    %v4298 = vmul.f32 %v88, %v4297
    %v4299 = vmul.f32 %v89, %v4297
    %v4300 = vmul.f32 %v90, %v4297
    %v4301 = vmul.f32 %v91, %v4297
    %v4302 = vmul.f32 %v92, %v4297
    %v4303 = vmul.f32 %v93, %v4297
    %v4304 = vmul.f32 %v94, %v4297
    %v4305 = vmul.f32 %v95, %v4297
    %v4306 = vmul.f32 %v96, %v4297
    %v4307 = vmul.f32 %v97, %v4297
    %v4308 = vmul.f32 %v98, %v4297
    %v4309 = vmul.f32 %v99, %v4297
    %v4310 = vmul.f32 %v100, %v4297
    %v4311 = vmul.f32 %v101, %v4297
    %v4312 = vmul.f32 %v102, %v4297
    %v4313 = vmul.f32 %v103, %v4297
    %v4314 = vmul.f32 %v104, %v4297
    %v4315 = vmul.f32 %v105, %v4297
    %v4316 = vadd.f32 %v4278, %v4298
    %v4317 = vadd.f32 %v4279, %v4299
    %v4318 = vadd.f32 %v4280, %v4300
    %v4319 = vadd.f32 %v4281, %v4301
    %v4320 = vadd.f32 %v4282, %v4302
    %v4321 = vadd.f32 %v4283, %v4303
    %v4322 = vadd.f32 %v4284, %v4304
    %v4323 = vadd.f32 %v4285, %v4305
    %v4324 = vadd.f32 %v4286, %v4306
    %v4325 = vadd.f32 %v4287, %v4307
    %v4326 = vadd.f32 %v4288, %v4308
    %v4327 = vadd.f32 %v4289, %v4309
    %v4328 = vadd.f32 %v4290, %v4310
    %v4329 = vadd.f32 %v4291, %v4311
    %v4330 = vadd.f32 %v4292, %v4312
    %v4331 = vadd.f32 %v4293, %v4313
    %v4332 = vadd.f32 %v4294, %v4314
    %v4333 = vadd.f32 %v4295, %v4315
    %s4334 = sld [smem:[#allocation5 + $0x8]]
    %v4335 = vstv %s4334
    %v4336 = vadd.f32 %v4316, %v4335
    %v4337 = vadd.f32 %v4317, %v4335
    %v4338 = vadd.f32 %v4318, %v4335
    %v4339 = vadd.f32 %v4319, %v4335
    %v4340 = vadd.f32 %v4320, %v4335
    %v4341 = vadd.f32 %v4321, %v4335
    %v4342 = vadd.f32 %v4322, %v4335
    %v4343 = vadd.f32 %v4323, %v4335
    %v4344 = vadd.f32 %v4324, %v4335
    %v4345 = vadd.f32 %v4325, %v4335
    %v4346 = vadd.f32 %v4326, %v4335
    %v4347 = vadd.f32 %v4327, %v4335
    %v4348 = vadd.f32 %v4328, %v4335
    %v4349 = vadd.f32 %v4329, %v4335
    %v4350 = vadd.f32 %v4330, %v4335
    %v4351 = vadd.f32 %v4331, %v4335
    %v4352 = vadd.f32 %v4332, %v4335
    %v4353 = vadd.f32 %v4333, %v4335
    %v4354 = vmax.f32 %v4336, 0.0
    %v4355 = vmax.f32 %v4337, 0.0
    %v4356 = vmax.f32 %v4338, 0.0
    %v4357 = vmax.f32 %v4339, 0.0
    %v4358 = vmax.f32 %v4340, 0.0
    %v4359 = vmax.f32 %v4341, 0.0
    %v4360 = vmax.f32 %v4342, 0.0
    %v4361 = vmax.f32 %v4343, 0.0
    %v4362 = vmax.f32 %v4344, 0.0
    %v4363 = vmax.f32 %v4345, 0.0
    %v4364 = vmax.f32 %v4346, 0.0
    %v4365 = vmax.f32 %v4347, 0.0
    %v4366 = vmax.f32 %v4348, 0.0
    %v4367 = vmax.f32 %v4349, 0.0
    %v4368 = vmax.f32 %v4350, 0.0
    %v4369 = vmax.f32 %v4351, 0.0
    %v4370 = vmax.f32 %v4352, 0.0
    %v4371 = vmax.f32 %v4353, 0.0
    %v4372 = vmax.f32 %v4354, %v4355
    %v4373 = vmax.f32 %v4356, %v4357
    %v4374 = vmax.f32 %v4358, %v4359
    %v4375 = vmax.f32 %v4360, %v4361
    %v4376 = vmax.f32 %v4362, %v4363
    %v4377 = vmax.f32 %v4364, %v4365
    %v4378 = vmax.f32 %v4366, %v4367
    %v4379 = vmax.f32 %v4368, %v4369
    %v4380 = vmax.f32 %v4370, %v4371
    %v4390 = vrot.slane %v4372, 1
    %v4391 = vrot.slane %v4373, 1
    %v4392 = vrot.slane %v4374, 1
    %v4393 = vrot.slane %v4375, 1
    %v4394 = vrot.slane %v4376, 1
    %v4395 = vrot.slane %v4377, 1
    %v4396 = vrot.slane %v4378, 1
    %v4397 = vrot.slane %v4379, 1
    %v4398 = vrot.slane %v4380, 1
    %v4408 = vmax.f32 %v4372, %v4390
    %v4409 = vmax.f32 %v4373, %v4391
    %v4410 = vmax.f32 %v4374, %v4392
    %v4411 = vmax.f32 %v4375, %v4393
    %v4412 = vmax.f32 %v4376, %v4394
    %v4413 = vmax.f32 %v4377, %v4395
    %v4414 = vmax.f32 %v4378, %v4396
    %v4415 = vmax.f32 %v4379, %v4397
    %v4416 = vmax.f32 %v4380, %v4398
    %4418 = vset.pattern.permute.xlu0 0
    %4419 = vperm.xlu0 %4418, %v178
    %v4420 = vpop.permute.xlu0 %4419
    %4423 = vset.pattern.permute.xlu0 0
    %4424 = vperm.xlu0 %4423, %v179
    %v4425 = vpop.permute.xlu0 %4424
    %4428 = vset.pattern.permute.xlu0 0
    %4429 = vperm.xlu0 %4428, %v180
    %v4430 = vpop.permute.xlu0 %4429
    %4433 = vset.pattern.permute.xlu0 0
    %4434 = vperm.xlu0 %4433, %v181
    %v4435 = vpop.permute.xlu0 %4434
    %4438 = vset.pattern.permute.xlu0 0
    %4439 = vperm.xlu0 %4438, %v182
    %v4440 = vpop.permute.xlu0 %4439
    %4443 = vset.pattern.permute.xlu0 0
    %4444 = vperm.xlu0 %4443, %v183
    %v4445 = vpop.permute.xlu0 %4444
    %4448 = vset.pattern.permute.xlu0 0
    %4449 = vperm.xlu0 %4448, %v184
    %v4450 = vpop.permute.xlu0 %4449
    %4453 = vset.pattern.permute.xlu0 0
    %4454 = vperm.xlu0 %4453, %v185
    %v4455 = vpop.permute.xlu0 %4454
    %4458 = vset.pattern.permute.xlu0 0
    %4459 = vperm.xlu0 %4458, %v186
    %v4460 = vpop.permute.xlu0 %4459
    %v4462 = vmul.f32 %v4408, %v4420
    %v4463 = vmul.f32 %v4409, %v4425
    %v4464 = vmul.f32 %v4410, %v4430
    %v4465 = vmul.f32 %v4411, %v4435
    %v4466 = vmul.f32 %v4412, %v4440
    %v4467 = vmul.f32 %v4413, %v4445
    %v4468 = vmul.f32 %v4414, %v4450
    %v4469 = vmul.f32 %v4415, %v4455
    %v4470 = vmul.f32 %v4416, %v4460
    %v4471 = vadd.f32 %v4001, %v4462
    %v4472 = vadd.f32 %v4002, %v4463
    %v4473 = vadd.f32 %v4003, %v4464
    %v4474 = vadd.f32 %v4004, %v4465
    %v4475 = vadd.f32 %v4005, %v4466
    %v4476 = vadd.f32 %v4006, %v4467
    %v4477 = vadd.f32 %v4007, %v4468
    %v4478 = vadd.f32 %v4008, %v4469
    %v4479 = vadd.f32 %v4009, %v4470
    %s4480 = sld [smem:[#allocation3 + $0x51]]
    %v4481 = vstv %s4480
    %v4482 = vmul.f32 %v46, %v4481
    %v4483 = vmul.f32 %v47, %v4481
    %v4484 = vmul.f32 %v48, %v4481
    %v4485 = vmul.f32 %v49, %v4481
    %v4486 = vmul.f32 %v50, %v4481
    %v4487 = vmul.f32 %v51, %v4481
    %v4488 = vmul.f32 %v52, %v4481
    %v4489 = vmul.f32 %v53, %v4481
    %v4490 = vmul.f32 %v54, %v4481
    %v4491 = vmul.f32 %v55, %v4481
    %v4492 = vmul.f32 %v56, %v4481
    %v4493 = vmul.f32 %v57, %v4481
    %v4494 = vmul.f32 %v58, %v4481
    %v4495 = vmul.f32 %v59, %v4481
    %v4496 = vmul.f32 %v60, %v4481
    %v4497 = vmul.f32 %v61, %v4481
    %v4498 = vmul.f32 %v62, %v4481
    %v4499 = vmul.f32 %v63, %v4481
    %s4500 = sld [smem:[#allocation3 + $0x52]]
    %v4501 = vstv %s4500
    %v4502 = vmul.f32 %v66, %v4501
    %v4503 = vmul.f32 %v67, %v4501
    %v4504 = vmul.f32 %v68, %v4501
    %v4505 = vmul.f32 %v69, %v4501
    %v4506 = vmul.f32 %v70, %v4501
    %v4507 = vmul.f32 %v71, %v4501
    %v4508 = vmul.f32 %v72, %v4501
    %v4509 = vmul.f32 %v73, %v4501
    %v4510 = vmul.f32 %v74, %v4501
    %v4511 = vmul.f32 %v75, %v4501
    %v4512 = vmul.f32 %v76, %v4501
    %v4513 = vmul.f32 %v77, %v4501
    %v4514 = vmul.f32 %v78, %v4501
    %v4515 = vmul.f32 %v79, %v4501
    %v4516 = vmul.f32 %v80, %v4501
    %v4517 = vmul.f32 %v81, %v4501
    %v4518 = vmul.f32 %v82, %v4501
    %v4519 = vmul.f32 %v83, %v4501
    %v4520 = vadd.f32 %v4482, %v4502
    %v4521 = vadd.f32 %v4483, %v4503
    %v4522 = vadd.f32 %v4484, %v4504
    %v4523 = vadd.f32 %v4485, %v4505
    %v4524 = vadd.f32 %v4486, %v4506
    %v4525 = vadd.f32 %v4487, %v4507
    %v4526 = vadd.f32 %v4488, %v4508
    %v4527 = vadd.f32 %v4489, %v4509
    %v4528 = vadd.f32 %v4490, %v4510
    %v4529 = vadd.f32 %v4491, %v4511
    %v4530 = vadd.f32 %v4492, %v4512
    %v4531 = vadd.f32 %v4493, %v4513
    %v4532 = vadd.f32 %v4494, %v4514
    %v4533 = vadd.f32 %v4495, %v4515
    %v4534 = vadd.f32 %v4496, %v4516
    %v4535 = vadd.f32 %v4497, %v4517
    %v4536 = vadd.f32 %v4498, %v4518
    %v4537 = vadd.f32 %v4499, %v4519
    %s4538 = sld [smem:[#allocation3 + $0x53]]
    %v4539 = vstv %s4538
    %v4540 = vmul.f32 %v86, %v4539
    %v4541 = vmul.f32 %v87, %v4539
    %v4542 = vmul.f32 %v88, %v4539
    %v4543 = vmul.f32 %v89, %v4539
    %v4544 = vmul.f32 %v90, %v4539
    %v4545 = vmul.f32 %v91, %v4539
    %v4546 = vmul.f32 %v92, %v4539
    %v4547 = vmul.f32 %v93, %v4539
    %v4548 = vmul.f32 %v94, %v4539
    %v4549 = vmul.f32 %v95, %v4539
    %v4550 = vmul.f32 %v96, %v4539
    %v4551 = vmul.f32 %v97, %v4539
    %v4552 = vmul.f32 %v98, %v4539
    %v4553 = vmul.f32 %v99, %v4539
    %v4554 = vmul.f32 %v100, %v4539
    %v4555 = vmul.f32 %v101, %v4539
    %v4556 = vmul.f32 %v102, %v4539
    %v4557 = vmul.f32 %v103, %v4539
    %v4558 = vadd.f32 %v4520, %v4540
    %v4559 = vadd.f32 %v4521, %v4541
    %v4560 = vadd.f32 %v4522, %v4542
    %v4561 = vadd.f32 %v4523, %v4543
    %v4562 = vadd.f32 %v4524, %v4544
    %v4563 = vadd.f32 %v4525, %v4545
    %v4564 = vadd.f32 %v4526, %v4546
    %v4565 = vadd.f32 %v4527, %v4547
    %v4566 = vadd.f32 %v4528, %v4548
    %v4567 = vadd.f32 %v4529, %v4549
    %v4568 = vadd.f32 %v4530, %v4550
    %v4569 = vadd.f32 %v4531, %v4551
    %v4570 = vadd.f32 %v4532, %v4552
    %v4571 = vadd.f32 %v4533, %v4553
    %v4572 = vadd.f32 %v4534, %v4554
    %v4573 = vadd.f32 %v4535, %v4555
    %v4574 = vadd.f32 %v4536, %v4556
    %v4575 = vadd.f32 %v4537, %v4557
    %s4576 = sld [smem:[#allocation3 + $0x54]]
    %v4577 = vstv %s4576
    %v4578 = vmul.f32 %v47, %v4577
    %v4579 = vmul.f32 %v48, %v4577
    %v4580 = vmul.f32 %v49, %v4577
    %v4581 = vmul.f32 %v50, %v4577
    %v4582 = vmul.f32 %v51, %v4577
    %v4583 = vmul.f32 %v52, %v4577
    %v4584 = vmul.f32 %v53, %v4577
    %v4585 = vmul.f32 %v54, %v4577
    %v4586 = vmul.f32 %v55, %v4577
    %v4587 = vmul.f32 %v56, %v4577
    %v4588 = vmul.f32 %v57, %v4577
    %v4589 = vmul.f32 %v58, %v4577
    %v4590 = vmul.f32 %v59, %v4577
    %v4591 = vmul.f32 %v60, %v4577
    %v4592 = vmul.f32 %v61, %v4577
    %v4593 = vmul.f32 %v62, %v4577
    %v4594 = vmul.f32 %v63, %v4577
    %v4595 = vmul.f32 %v64, %v4577
    %v4596 = vadd.f32 %v4558, %v4578
    %v4597 = vadd.f32 %v4559, %v4579
    %v4598 = vadd.f32 %v4560, %v4580
    %v4599 = vadd.f32 %v4561, %v4581
    %v4600 = vadd.f32 %v4562, %v4582
    %v4601 = vadd.f32 %v4563, %v4583
    %v4602 = vadd.f32 %v4564, %v4584
    %v4603 = vadd.f32 %v4565, %v4585
    %v4604 = vadd.f32 %v4566, %v4586
    %v4605 = vadd.f32 %v4567, %v4587
    %v4606 = vadd.f32 %v4568, %v4588
    %v4607 = vadd.f32 %v4569, %v4589
    %v4608 = vadd.f32 %v4570, %v4590
    %v4609 = vadd.f32 %v4571, %v4591
    %v4610 = vadd.f32 %v4572, %v4592
    %v4611 = vadd.f32 %v4573, %v4593
    %v4612 = vadd.f32 %v4574, %v4594
    %v4613 = vadd.f32 %v4575, %v4595
    %s4614 = sld [smem:[#allocation3 + $0x55]]
    %v4615 = vstv %s4614
    %v4616 = vmul.f32 %v67, %v4615
    %v4617 = vmul.f32 %v68, %v4615
    %v4618 = vmul.f32 %v69, %v4615
    %v4619 = vmul.f32 %v70, %v4615
    %v4620 = vmul.f32 %v71, %v4615
    %v4621 = vmul.f32 %v72, %v4615
    %v4622 = vmul.f32 %v73, %v4615
    %v4623 = vmul.f32 %v74, %v4615
    %v4624 = vmul.f32 %v75, %v4615
    %v4625 = vmul.f32 %v76, %v4615
    %v4626 = vmul.f32 %v77, %v4615
    %v4627 = vmul.f32 %v78, %v4615
    %v4628 = vmul.f32 %v79, %v4615
    %v4629 = vmul.f32 %v80, %v4615
    %v4630 = vmul.f32 %v81, %v4615
    %v4631 = vmul.f32 %v82, %v4615
    %v4632 = vmul.f32 %v83, %v4615
    %v4633 = vmul.f32 %v84, %v4615
    %v4634 = vadd.f32 %v4596, %v4616
    %v4635 = vadd.f32 %v4597, %v4617
    %v4636 = vadd.f32 %v4598, %v4618
    %v4637 = vadd.f32 %v4599, %v4619
    %v4638 = vadd.f32 %v4600, %v4620
    %v4639 = vadd.f32 %v4601, %v4621
    %v4640 = vadd.f32 %v4602, %v4622
    %v4641 = vadd.f32 %v4603, %v4623
    %v4642 = vadd.f32 %v4604, %v4624
    %v4643 = vadd.f32 %v4605, %v4625
    %v4644 = vadd.f32 %v4606, %v4626
    %v4645 = vadd.f32 %v4607, %v4627
    %v4646 = vadd.f32 %v4608, %v4628
    %v4647 = vadd.f32 %v4609, %v4629
    %v4648 = vadd.f32 %v4610, %v4630
    %v4649 = vadd.f32 %v4611, %v4631
    %v4650 = vadd.f32 %v4612, %v4632
    %v4651 = vadd.f32 %v4613, %v4633
    %s4652 = sld [smem:[#allocation3 + $0x56]]
    %v4653 = vstv %s4652
    %v4654 = vmul.f32 %v87, %v4653
    %v4655 = vmul.f32 %v88, %v4653
    %v4656 = vmul.f32 %v89, %v4653
    %v4657 = vmul.f32 %v90, %v4653
    %v4658 = vmul.f32 %v91, %v4653
    %v4659 = vmul.f32 %v92, %v4653
    %v4660 = vmul.f32 %v93, %v4653
    %v4661 = vmul.f32 %v94, %v4653
    %v4662 = vmul.f32 %v95, %v4653
    %v4663 = vmul.f32 %v96, %v4653
    %v4664 = vmul.f32 %v97, %v4653
    %v4665 = vmul.f32 %v98, %v4653
    %v4666 = vmul.f32 %v99, %v4653
    %v4667 = vmul.f32 %v100, %v4653
    %v4668 = vmul.f32 %v101, %v4653
    %v4669 = vmul.f32 %v102, %v4653
    %v4670 = vmul.f32 %v103, %v4653
    %v4671 = vmul.f32 %v104, %v4653
    %v4672 = vadd.f32 %v4634, %v4654
    %v4673 = vadd.f32 %v4635, %v4655
    %v4674 = vadd.f32 %v4636, %v4656
    %v4675 = vadd.f32 %v4637, %v4657
    %v4676 = vadd.f32 %v4638, %v4658
    %v4677 = vadd.f32 %v4639, %v4659
    %v4678 = vadd.f32 %v4640, %v4660
    %v4679 = vadd.f32 %v4641, %v4661
    %v4680 = vadd.f32 %v4642, %v4662
    %v4681 = vadd.f32 %v4643, %v4663
    %v4682 = vadd.f32 %v4644, %v4664
    %v4683 = vadd.f32 %v4645, %v4665
    %v4684 = vadd.f32 %v4646, %v4666
    %v4685 = vadd.f32 %v4647, %v4667
    %v4686 = vadd.f32 %v4648, %v4668
    %v4687 = vadd.f32 %v4649, %v4669
    %v4688 = vadd.f32 %v4650, %v4670
    %v4689 = vadd.f32 %v4651, %v4671
    %s4690 = sld [smem:[#allocation3 + $0x57]]
    %v4691 = vstv %s4690
    %v4692 = vmul.f32 %v48, %v4691
    %v4693 = vmul.f32 %v49, %v4691
    %v4694 = vmul.f32 %v50, %v4691
    %v4695 = vmul.f32 %v51, %v4691
    %v4696 = vmul.f32 %v52, %v4691
    %v4697 = vmul.f32 %v53, %v4691
    %v4698 = vmul.f32 %v54, %v4691
    %v4699 = vmul.f32 %v55, %v4691
    %v4700 = vmul.f32 %v56, %v4691
    %v4701 = vmul.f32 %v57, %v4691
    %v4702 = vmul.f32 %v58, %v4691
    %v4703 = vmul.f32 %v59, %v4691
    %v4704 = vmul.f32 %v60, %v4691
    %v4705 = vmul.f32 %v61, %v4691
    %v4706 = vmul.f32 %v62, %v4691
    %v4707 = vmul.f32 %v63, %v4691
    %v4708 = vmul.f32 %v64, %v4691
    %v4709 = vmul.f32 %v65, %v4691
    %v4710 = vadd.f32 %v4672, %v4692
    %v4711 = vadd.f32 %v4673, %v4693
    %v4712 = vadd.f32 %v4674, %v4694
    %v4713 = vadd.f32 %v4675, %v4695
    %v4714 = vadd.f32 %v4676, %v4696
    %v4715 = vadd.f32 %v4677, %v4697
    %v4716 = vadd.f32 %v4678, %v4698
    %v4717 = vadd.f32 %v4679, %v4699
    %v4718 = vadd.f32 %v4680, %v4700
    %v4719 = vadd.f32 %v4681, %v4701
    %v4720 = vadd.f32 %v4682, %v4702
    %v4721 = vadd.f32 %v4683, %v4703
    %v4722 = vadd.f32 %v4684, %v4704
    %v4723 = vadd.f32 %v4685, %v4705
    %v4724 = vadd.f32 %v4686, %v4706
    %v4725 = vadd.f32 %v4687, %v4707
    %v4726 = vadd.f32 %v4688, %v4708
    %v4727 = vadd.f32 %v4689, %v4709
    %s4728 = sld [smem:[#allocation3 + $0x58]]
    %v4729 = vstv %s4728
    %v4730 = vmul.f32 %v68, %v4729
    %v4731 = vmul.f32 %v69, %v4729
    %v4732 = vmul.f32 %v70, %v4729
    %v4733 = vmul.f32 %v71, %v4729
    %v4734 = vmul.f32 %v72, %v4729
    %v4735 = vmul.f32 %v73, %v4729
    %v4736 = vmul.f32 %v74, %v4729
    %v4737 = vmul.f32 %v75, %v4729
    %v4738 = vmul.f32 %v76, %v4729
    %v4739 = vmul.f32 %v77, %v4729
    %v4740 = vmul.f32 %v78, %v4729
    %v4741 = vmul.f32 %v79, %v4729
    %v4742 = vmul.f32 %v80, %v4729
    %v4743 = vmul.f32 %v81, %v4729
    %v4744 = vmul.f32 %v82, %v4729
    %v4745 = vmul.f32 %v83, %v4729
    %v4746 = vmul.f32 %v84, %v4729
    %v4747 = vmul.f32 %v85, %v4729
    %v4748 = vadd.f32 %v4710, %v4730
    %v4749 = vadd.f32 %v4711, %v4731
    %v4750 = vadd.f32 %v4712, %v4732
    %v4751 = vadd.f32 %v4713, %v4733
    %v4752 = vadd.f32 %v4714, %v4734
    %v4753 = vadd.f32 %v4715, %v4735
    %v4754 = vadd.f32 %v4716, %v4736
    %v4755 = vadd.f32 %v4717, %v4737
    %v4756 = vadd.f32 %v4718, %v4738
    %v4757 = vadd.f32 %v4719, %v4739
    %v4758 = vadd.f32 %v4720, %v4740
    %v4759 = vadd.f32 %v4721, %v4741
    %v4760 = vadd.f32 %v4722, %v4742
    %v4761 = vadd.f32 %v4723, %v4743
    %v4762 = vadd.f32 %v4724, %v4744
    %v4763 = vadd.f32 %v4725, %v4745
    %v4764 = vadd.f32 %v4726, %v4746
    %v4765 = vadd.f32 %v4727, %v4747
    %s4766 = sld [smem:[#allocation3 + $0x59]]
    %v4767 = vstv %s4766
    %v4768 = vmul.f32 %v88, %v4767
    %v4769 = vmul.f32 %v89, %v4767
    %v4770 = vmul.f32 %v90, %v4767
    %v4771 = vmul.f32 %v91, %v4767
    %v4772 = vmul.f32 %v92, %v4767
    %v4773 = vmul.f32 %v93, %v4767
    %v4774 = vmul.f32 %v94, %v4767
    %v4775 = vmul.f32 %v95, %v4767
    %v4776 = vmul.f32 %v96, %v4767
    %v4777 = vmul.f32 %v97, %v4767
    %v4778 = vmul.f32 %v98, %v4767
    %v4779 = vmul.f32 %v99, %v4767
    %v4780 = vmul.f32 %v100, %v4767
    %v4781 = vmul.f32 %v101, %v4767
    %v4782 = vmul.f32 %v102, %v4767
    %v4783 = vmul.f32 %v103, %v4767
    %v4784 = vmul.f32 %v104, %v4767
    %v4785 = vmul.f32 %v105, %v4767
    %v4786 = vadd.f32 %v4748, %v4768
    %v4787 = vadd.f32 %v4749, %v4769
    %v4788 = vadd.f32 %v4750, %v4770
    %v4789 = vadd.f32 %v4751, %v4771
    %v4790 = vadd.f32 %v4752, %v4772
    %v4791 = vadd.f32 %v4753, %v4773
    %v4792 = vadd.f32 %v4754, %v4774
    %v4793 = vadd.f32 %v4755, %v4775
    %v4794 = vadd.f32 %v4756, %v4776
    %v4795 = vadd.f32 %v4757, %v4777
    %v4796 = vadd.f32 %v4758, %v4778
    %v4797 = vadd.f32 %v4759, %v4779
    %v4798 = vadd.f32 %v4760, %v4780
    %v4799 = vadd.f32 %v4761, %v4781
    %v4800 = vadd.f32 %v4762, %v4782
    %v4801 = vadd.f32 %v4763, %v4783
    %v4802 = vadd.f32 %v4764, %v4784
    %v4803 = vadd.f32 %v4765, %v4785
    %s4804 = sld [smem:[#allocation5 + $0x9]]
    %v4805 = vstv %s4804
    %v4806 = vadd.f32 %v4786, %v4805
    %v4807 = vadd.f32 %v4787, %v4805
    %v4808 = vadd.f32 %v4788, %v4805
    %v4809 = vadd.f32 %v4789, %v4805
    %v4810 = vadd.f32 %v4790, %v4805
    %v4811 = vadd.f32 %v4791, %v4805
    %v4812 = vadd.f32 %v4792, %v4805
    %v4813 = vadd.f32 %v4793, %v4805
    %v4814 = vadd.f32 %v4794, %v4805
    %v4815 = vadd.f32 %v4795, %v4805
    %v4816 = vadd.f32 %v4796, %v4805
    %v4817 = vadd.f32 %v4797, %v4805
    %v4818 = vadd.f32 %v4798, %v4805
    %v4819 = vadd.f32 %v4799, %v4805
    %v4820 = vadd.f32 %v4800, %v4805
    %v4821 = vadd.f32 %v4801, %v4805
    %v4822 = vadd.f32 %v4802, %v4805
    %v4823 = vadd.f32 %v4803, %v4805
    %v4824 = vmax.f32 %v4806, 0.0
    %v4825 = vmax.f32 %v4807, 0.0
    %v4826 = vmax.f32 %v4808, 0.0
    %v4827 = vmax.f32 %v4809, 0.0
    %v4828 = vmax.f32 %v4810, 0.0
    %v4829 = vmax.f32 %v4811, 0.0
    %v4830 = vmax.f32 %v4812, 0.0
    %v4831 = vmax.f32 %v4813, 0.0
    %v4832 = vmax.f32 %v4814, 0.0
    %v4833 = vmax.f32 %v4815, 0.0
    %v4834 = vmax.f32 %v4816, 0.0
    %v4835 = vmax.f32 %v4817, 0.0
    %v4836 = vmax.f32 %v4818, 0.0
    %v4837 = vmax.f32 %v4819, 0.0
    %v4838 = vmax.f32 %v4820, 0.0
    %v4839 = vmax.f32 %v4821, 0.0
    %v4840 = vmax.f32 %v4822, 0.0
    %v4841 = vmax.f32 %v4823, 0.0
    %v4842 = vmax.f32 %v4824, %v4825
    %v4843 = vmax.f32 %v4826, %v4827
    %v4844 = vmax.f32 %v4828, %v4829
    %v4845 = vmax.f32 %v4830, %v4831
    %v4846 = vmax.f32 %v4832, %v4833
    %v4847 = vmax.f32 %v4834, %v4835
    %v4848 = vmax.f32 %v4836, %v4837
    %v4849 = vmax.f32 %v4838, %v4839
    %v4850 = vmax.f32 %v4840, %v4841
    %v4860 = vrot.slane %v4842, 1
    %v4861 = vrot.slane %v4843, 1
    %v4862 = vrot.slane %v4844, 1
    %v4863 = vrot.slane %v4845, 1
    %v4864 = vrot.slane %v4846, 1
    %v4865 = vrot.slane %v4847, 1
    %v4866 = vrot.slane %v4848, 1
    %v4867 = vrot.slane %v4849, 1
    %v4868 = vrot.slane %v4850, 1
    %v4878 = vmax.f32 %v4842, %v4860
    %v4879 = vmax.f32 %v4843, %v4861
    %v4880 = vmax.f32 %v4844, %v4862
    %v4881 = vmax.f32 %v4845, %v4863
    %v4882 = vmax.f32 %v4846, %v4864
    %v4883 = vmax.f32 %v4847, %v4865
    %v4884 = vmax.f32 %v4848, %v4866
    %v4885 = vmax.f32 %v4849, %v4867
    %v4886 = vmax.f32 %v4850, %v4868
    %4888 = vset.pattern.permute.xlu0 0
    %4889 = vperm.xlu0 %4888, %v187
    %v4890 = vpop.permute.xlu0 %4889
    %4893 = vset.pattern.permute.xlu0 0
    %4894 = vperm.xlu0 %4893, %v188
    %v4895 = vpop.permute.xlu0 %4894
    %4898 = vset.pattern.permute.xlu0 0
    %4899 = vperm.xlu0 %4898, %v189
    %v4900 = vpop.permute.xlu0 %4899
    %4903 = vset.pattern.permute.xlu0 0
    %4904 = vperm.xlu0 %4903, %v190
    %v4905 = vpop.permute.xlu0 %4904
    %4908 = vset.pattern.permute.xlu0 0
    %4909 = vperm.xlu0 %4908, %v191
    %v4910 = vpop.permute.xlu0 %4909
    %4913 = vset.pattern.permute.xlu0 0
    %4914 = vperm.xlu0 %4913, %v192
    %v4915 = vpop.permute.xlu0 %4914
    %4918 = vset.pattern.permute.xlu0 0
    %4919 = vperm.xlu0 %4918, %v193
    %v4920 = vpop.permute.xlu0 %4919
    %4923 = vset.pattern.permute.xlu0 0
    %4924 = vperm.xlu0 %4923, %v194
    %v4925 = vpop.permute.xlu0 %4924
    %4928 = vset.pattern.permute.xlu0 0
    %4929 = vperm.xlu0 %4928, %v195
    %v4930 = vpop.permute.xlu0 %4929
    %v4932 = vmul.f32 %v4878, %v4890
    %v4933 = vmul.f32 %v4879, %v4895
    %v4934 = vmul.f32 %v4880, %v4900
    %v4935 = vmul.f32 %v4881, %v4905
    %v4936 = vmul.f32 %v4882, %v4910
    %v4937 = vmul.f32 %v4883, %v4915
    %v4938 = vmul.f32 %v4884, %v4920
    %v4939 = vmul.f32 %v4885, %v4925
    %v4940 = vmul.f32 %v4886, %v4930
    %v4941 = vadd.f32 %v4471, %v4932
    %v4942 = vadd.f32 %v4472, %v4933
    %v4943 = vadd.f32 %v4473, %v4934
    %v4944 = vadd.f32 %v4474, %v4935
    %v4945 = vadd.f32 %v4475, %v4936
    %v4946 = vadd.f32 %v4476, %v4937
    %v4947 = vadd.f32 %v4477, %v4938
    %v4948 = vadd.f32 %v4478, %v4939
    %v4949 = vadd.f32 %v4479, %v4940
    %s4950 = sld [smem:[#allocation3 + $0x5a]]
    %v4951 = vstv %s4950
    %v4952 = vmul.f32 %v46, %v4951
    %v4953 = vmul.f32 %v47, %v4951
    %v4954 = vmul.f32 %v48, %v4951
    %v4955 = vmul.f32 %v49, %v4951
    %v4956 = vmul.f32 %v50, %v4951
    %v4957 = vmul.f32 %v51, %v4951
    %v4958 = vmul.f32 %v52, %v4951
    %v4959 = vmul.f32 %v53, %v4951
    %v4960 = vmul.f32 %v54, %v4951
    %v4961 = vmul.f32 %v55, %v4951
    %v4962 = vmul.f32 %v56, %v4951
    %v4963 = vmul.f32 %v57, %v4951
    %v4964 = vmul.f32 %v58, %v4951
    %v4965 = vmul.f32 %v59, %v4951
    %v4966 = vmul.f32 %v60, %v4951
    %v4967 = vmul.f32 %v61, %v4951
    %v4968 = vmul.f32 %v62, %v4951
    %v4969 = vmul.f32 %v63, %v4951
    %s4970 = sld [smem:[#allocation3 + $0x5b]]
    %v4971 = vstv %s4970
    %v4972 = vmul.f32 %v66, %v4971
    %v4973 = vmul.f32 %v67, %v4971
    %v4974 = vmul.f32 %v68, %v4971
    %v4975 = vmul.f32 %v69, %v4971
    %v4976 = vmul.f32 %v70, %v4971
    %v4977 = vmul.f32 %v71, %v4971
    %v4978 = vmul.f32 %v72, %v4971
    %v4979 = vmul.f32 %v73, %v4971
    %v4980 = vmul.f32 %v74, %v4971
    %v4981 = vmul.f32 %v75, %v4971
    %v4982 = vmul.f32 %v76, %v4971
    %v4983 = vmul.f32 %v77, %v4971
    %v4984 = vmul.f32 %v78, %v4971
    %v4985 = vmul.f32 %v79, %v4971
    %v4986 = vmul.f32 %v80, %v4971
    %v4987 = vmul.f32 %v81, %v4971
    %v4988 = vmul.f32 %v82, %v4971
    %v4989 = vmul.f32 %v83, %v4971
    %v4990 = vadd.f32 %v4952, %v4972
    %v4991 = vadd.f32 %v4953, %v4973
    %v4992 = vadd.f32 %v4954, %v4974
    %v4993 = vadd.f32 %v4955, %v4975
    %v4994 = vadd.f32 %v4956, %v4976
    %v4995 = vadd.f32 %v4957, %v4977
    %v4996 = vadd.f32 %v4958, %v4978
    %v4997 = vadd.f32 %v4959, %v4979
    %v4998 = vadd.f32 %v4960, %v4980
    %v4999 = vadd.f32 %v4961, %v4981
    %v5000 = vadd.f32 %v4962, %v4982
    %v5001 = vadd.f32 %v4963, %v4983
    %v5002 = vadd.f32 %v4964, %v4984
    %v5003 = vadd.f32 %v4965, %v4985
    %v5004 = vadd.f32 %v4966, %v4986
    %v5005 = vadd.f32 %v4967, %v4987
    %v5006 = vadd.f32 %v4968, %v4988
    %v5007 = vadd.f32 %v4969, %v4989
    %s5008 = sld [smem:[#allocation3 + $0x5c]]
    %v5009 = vstv %s5008
    %v5010 = vmul.f32 %v86, %v5009
    %v5011 = vmul.f32 %v87, %v5009
    %v5012 = vmul.f32 %v88, %v5009
    %v5013 = vmul.f32 %v89, %v5009
    %v5014 = vmul.f32 %v90, %v5009
    %v5015 = vmul.f32 %v91, %v5009
    %v5016 = vmul.f32 %v92, %v5009
    %v5017 = vmul.f32 %v93, %v5009
    %v5018 = vmul.f32 %v94, %v5009
    %v5019 = vmul.f32 %v95, %v5009
    %v5020 = vmul.f32 %v96, %v5009
    %v5021 = vmul.f32 %v97, %v5009
    %v5022 = vmul.f32 %v98, %v5009
    %v5023 = vmul.f32 %v99, %v5009
    %v5024 = vmul.f32 %v100, %v5009
    %v5025 = vmul.f32 %v101, %v5009
    %v5026 = vmul.f32 %v102, %v5009
    %v5027 = vmul.f32 %v103, %v5009
    %v5028 = vadd.f32 %v4990, %v5010
    %v5029 = vadd.f32 %v4991, %v5011
    %v5030 = vadd.f32 %v4992, %v5012
    %v5031 = vadd.f32 %v4993, %v5013
    %v5032 = vadd.f32 %v4994, %v5014
    %v5033 = vadd.f32 %v4995, %v5015
    %v5034 = vadd.f32 %v4996, %v5016
    %v5035 = vadd.f32 %v4997, %v5017
    %v5036 = vadd.f32 %v4998, %v5018
    %v5037 = vadd.f32 %v4999, %v5019
    %v5038 = vadd.f32 %v5000, %v5020
    %v5039 = vadd.f32 %v5001, %v5021
    %v5040 = vadd.f32 %v5002, %v5022
    %v5041 = vadd.f32 %v5003, %v5023
    %v5042 = vadd.f32 %v5004, %v5024
    %v5043 = vadd.f32 %v5005, %v5025
    %v5044 = vadd.f32 %v5006, %v5026
    %v5045 = vadd.f32 %v5007, %v5027
    %s5046 = sld [smem:[#allocation3 + $0x5d]]
    %v5047 = vstv %s5046
    %v5048 = vmul.f32 %v47, %v5047
    %v5049 = vmul.f32 %v48, %v5047
    %v5050 = vmul.f32 %v49, %v5047
    %v5051 = vmul.f32 %v50, %v5047
    %v5052 = vmul.f32 %v51, %v5047
    %v5053 = vmul.f32 %v52, %v5047
    %v5054 = vmul.f32 %v53, %v5047
    %v5055 = vmul.f32 %v54, %v5047
    %v5056 = vmul.f32 %v55, %v5047
    %v5057 = vmul.f32 %v56, %v5047
    %v5058 = vmul.f32 %v57, %v5047
    %v5059 = vmul.f32 %v58, %v5047
    %v5060 = vmul.f32 %v59, %v5047
    %v5061 = vmul.f32 %v60, %v5047
    %v5062 = vmul.f32 %v61, %v5047
    %v5063 = vmul.f32 %v62, %v5047
    %v5064 = vmul.f32 %v63, %v5047
    %v5065 = vmul.f32 %v64, %v5047
    %v5066 = vadd.f32 %v5028, %v5048
    %v5067 = vadd.f32 %v5029, %v5049
    %v5068 = vadd.f32 %v5030, %v5050
    %v5069 = vadd.f32 %v5031, %v5051
    %v5070 = vadd.f32 %v5032, %v5052
    %v5071 = vadd.f32 %v5033, %v5053
    %v5072 = vadd.f32 %v5034, %v5054
    %v5073 = vadd.f32 %v5035, %v5055
    %v5074 = vadd.f32 %v5036, %v5056
    %v5075 = vadd.f32 %v5037, %v5057
    %v5076 = vadd.f32 %v5038, %v5058
    %v5077 = vadd.f32 %v5039, %v5059
    %v5078 = vadd.f32 %v5040, %v5060
    %v5079 = vadd.f32 %v5041, %v5061
    %v5080 = vadd.f32 %v5042, %v5062
    %v5081 = vadd.f32 %v5043, %v5063
    %v5082 = vadd.f32 %v5044, %v5064
    %v5083 = vadd.f32 %v5045, %v5065
    %s5084 = sld [smem:[#allocation3 + $0x5e]]
    %v5085 = vstv %s5084
    %v5086 = vmul.f32 %v67, %v5085
    %v5087 = vmul.f32 %v68, %v5085
    %v5088 = vmul.f32 %v69, %v5085
    %v5089 = vmul.f32 %v70, %v5085
    %v5090 = vmul.f32 %v71, %v5085
    %v5091 = vmul.f32 %v72, %v5085
    %v5092 = vmul.f32 %v73, %v5085
    %v5093 = vmul.f32 %v74, %v5085
    %v5094 = vmul.f32 %v75, %v5085
    %v5095 = vmul.f32 %v76, %v5085
    %v5096 = vmul.f32 %v77, %v5085
    %v5097 = vmul.f32 %v78, %v5085
    %v5098 = vmul.f32 %v79, %v5085
    %v5099 = vmul.f32 %v80, %v5085
    %v5100 = vmul.f32 %v81, %v5085
    %v5101 = vmul.f32 %v82, %v5085
    %v5102 = vmul.f32 %v83, %v5085
    %v5103 = vmul.f32 %v84, %v5085
    %v5104 = vadd.f32 %v5066, %v5086
    %v5105 = vadd.f32 %v5067, %v5087
    %v5106 = vadd.f32 %v5068, %v5088
    %v5107 = vadd.f32 %v5069, %v5089
    %v5108 = vadd.f32 %v5070, %v5090
    %v5109 = vadd.f32 %v5071, %v5091
    %v5110 = vadd.f32 %v5072, %v5092
    %v5111 = vadd.f32 %v5073, %v5093
    %v5112 = vadd.f32 %v5074, %v5094
    %v5113 = vadd.f32 %v5075, %v5095
    %v5114 = vadd.f32 %v5076, %v5096
    %v5115 = vadd.f32 %v5077, %v5097
    %v5116 = vadd.f32 %v5078, %v5098
    %v5117 = vadd.f32 %v5079, %v5099
    %v5118 = vadd.f32 %v5080, %v5100
    %v5119 = vadd.f32 %v5081, %v5101
    %v5120 = vadd.f32 %v5082, %v5102
    %v5121 = vadd.f32 %v5083, %v5103
    %s5122 = sld [smem:[#allocation3 + $0x5f]]
    %v5123 = vstv %s5122
    %v5124 = vmul.f32 %v87, %v5123
    %v5125 = vmul.f32 %v88, %v5123
    %v5126 = vmul.f32 %v89, %v5123
    %v5127 = vmul.f32 %v90, %v5123
    %v5128 = vmul.f32 %v91, %v5123
    %v5129 = vmul.f32 %v92, %v5123
    %v5130 = vmul.f32 %v93, %v5123
    %v5131 = vmul.f32 %v94, %v5123
    %v5132 = vmul.f32 %v95, %v5123
    %v5133 = vmul.f32 %v96, %v5123
    %v5134 = vmul.f32 %v97, %v5123
    %v5135 = vmul.f32 %v98, %v5123
    %v5136 = vmul.f32 %v99, %v5123
    %v5137 = vmul.f32 %v100, %v5123
    %v5138 = vmul.f32 %v101, %v5123
    %v5139 = vmul.f32 %v102, %v5123
    %v5140 = vmul.f32 %v103, %v5123
    %v5141 = vmul.f32 %v104, %v5123
    %v5142 = vadd.f32 %v5104, %v5124
    %v5143 = vadd.f32 %v5105, %v5125
    %v5144 = vadd.f32 %v5106, %v5126
    %v5145 = vadd.f32 %v5107, %v5127
    %v5146 = vadd.f32 %v5108, %v5128
    %v5147 = vadd.f32 %v5109, %v5129
    %v5148 = vadd.f32 %v5110, %v5130
    %v5149 = vadd.f32 %v5111, %v5131
    %v5150 = vadd.f32 %v5112, %v5132
    %v5151 = vadd.f32 %v5113, %v5133
    %v5152 = vadd.f32 %v5114, %v5134
    %v5153 = vadd.f32 %v5115, %v5135
    %v5154 = vadd.f32 %v5116, %v5136
    %v5155 = vadd.f32 %v5117, %v5137
    %v5156 = vadd.f32 %v5118, %v5138
    %v5157 = vadd.f32 %v5119, %v5139
    %v5158 = vadd.f32 %v5120, %v5140
    %v5159 = vadd.f32 %v5121, %v5141
    %s5160 = sld [smem:[#allocation3 + $0x60]]
    %v5161 = vstv %s5160
    %v5162 = vmul.f32 %v48, %v5161
    %v5163 = vmul.f32 %v49, %v5161
    %v5164 = vmul.f32 %v50, %v5161
    %v5165 = vmul.f32 %v51, %v5161
    %v5166 = vmul.f32 %v52, %v5161
    %v5167 = vmul.f32 %v53, %v5161
    %v5168 = vmul.f32 %v54, %v5161
    %v5169 = vmul.f32 %v55, %v5161
    %v5170 = vmul.f32 %v56, %v5161
    %v5171 = vmul.f32 %v57, %v5161
    %v5172 = vmul.f32 %v58, %v5161
    %v5173 = vmul.f32 %v59, %v5161
    %v5174 = vmul.f32 %v60, %v5161
    %v5175 = vmul.f32 %v61, %v5161
    %v5176 = vmul.f32 %v62, %v5161
    %v5177 = vmul.f32 %v63, %v5161
    %v5178 = vmul.f32 %v64, %v5161
    %v5179 = vmul.f32 %v65, %v5161
    %v5180 = vadd.f32 %v5142, %v5162
    %v5181 = vadd.f32 %v5143, %v5163
    %v5182 = vadd.f32 %v5144, %v5164
    %v5183 = vadd.f32 %v5145, %v5165
    %v5184 = vadd.f32 %v5146, %v5166
    %v5185 = vadd.f32 %v5147, %v5167
    %v5186 = vadd.f32 %v5148, %v5168
    %v5187 = vadd.f32 %v5149, %v5169
    %v5188 = vadd.f32 %v5150, %v5170
    %v5189 = vadd.f32 %v5151, %v5171
    %v5190 = vadd.f32 %v5152, %v5172
    %v5191 = vadd.f32 %v5153, %v5173
    %v5192 = vadd.f32 %v5154, %v5174
    %v5193 = vadd.f32 %v5155, %v5175
    %v5194 = vadd.f32 %v5156, %v5176
    %v5195 = vadd.f32 %v5157, %v5177
    %v5196 = vadd.f32 %v5158, %v5178
    %v5197 = vadd.f32 %v5159, %v5179
    %s5198 = sld [smem:[#allocation3 + $0x61]]
    %v5199 = vstv %s5198
    %v5200 = vmul.f32 %v68, %v5199
    %v5201 = vmul.f32 %v69, %v5199
    %v5202 = vmul.f32 %v70, %v5199
    %v5203 = vmul.f32 %v71, %v5199
    %v5204 = vmul.f32 %v72, %v5199
    %v5205 = vmul.f32 %v73, %v5199
    %v5206 = vmul.f32 %v74, %v5199
    %v5207 = vmul.f32 %v75, %v5199
    %v5208 = vmul.f32 %v76, %v5199
    %v5209 = vmul.f32 %v77, %v5199
    %v5210 = vmul.f32 %v78, %v5199
    %v5211 = vmul.f32 %v79, %v5199
    %v5212 = vmul.f32 %v80, %v5199
    %v5213 = vmul.f32 %v81, %v5199
    %v5214 = vmul.f32 %v82, %v5199
    %v5215 = vmul.f32 %v83, %v5199
    %v5216 = vmul.f32 %v84, %v5199
    %v5217 = vmul.f32 %v85, %v5199
    %v5218 = vadd.f32 %v5180, %v5200
    %v5219 = vadd.f32 %v5181, %v5201
    %v5220 = vadd.f32 %v5182, %v5202
    %v5221 = vadd.f32 %v5183, %v5203
    %v5222 = vadd.f32 %v5184, %v5204
    %v5223 = vadd.f32 %v5185, %v5205
    %v5224 = vadd.f32 %v5186, %v5206
    %v5225 = vadd.f32 %v5187, %v5207
    %v5226 = vadd.f32 %v5188, %v5208
    %v5227 = vadd.f32 %v5189, %v5209
    %v5228 = vadd.f32 %v5190, %v5210
    %v5229 = vadd.f32 %v5191, %v5211
    %v5230 = vadd.f32 %v5192, %v5212
    %v5231 = vadd.f32 %v5193, %v5213
    %v5232 = vadd.f32 %v5194, %v5214
    %v5233 = vadd.f32 %v5195, %v5215
    %v5234 = vadd.f32 %v5196, %v5216
    %v5235 = vadd.f32 %v5197, %v5217
    %s5236 = sld [smem:[#allocation3 + $0x62]]
    %v5237 = vstv %s5236
    %v5238 = vmul.f32 %v88, %v5237
    %v5239 = vmul.f32 %v89, %v5237
    %v5240 = vmul.f32 %v90, %v5237
    %v5241 = vmul.f32 %v91, %v5237
    %v5242 = vmul.f32 %v92, %v5237
    %v5243 = vmul.f32 %v93, %v5237
    %v5244 = vmul.f32 %v94, %v5237
    %v5245 = vmul.f32 %v95, %v5237
    %v5246 = vmul.f32 %v96, %v5237
    %v5247 = vmul.f32 %v97, %v5237
    %v5248 = vmul.f32 %v98, %v5237
    %v5249 = vmul.f32 %v99, %v5237
    %v5250 = vmul.f32 %v100, %v5237
    %v5251 = vmul.f32 %v101, %v5237
    %v5252 = vmul.f32 %v102, %v5237
    %v5253 = vmul.f32 %v103, %v5237
    %v5254 = vmul.f32 %v104, %v5237
    %v5255 = vmul.f32 %v105, %v5237
    %v5256 = vadd.f32 %v5218, %v5238
    %v5257 = vadd.f32 %v5219, %v5239
    %v5258 = vadd.f32 %v5220, %v5240
    %v5259 = vadd.f32 %v5221, %v5241
    %v5260 = vadd.f32 %v5222, %v5242
    %v5261 = vadd.f32 %v5223, %v5243
    %v5262 = vadd.f32 %v5224, %v5244
    %v5263 = vadd.f32 %v5225, %v5245
    %v5264 = vadd.f32 %v5226, %v5246
    %v5265 = vadd.f32 %v5227, %v5247
    %v5266 = vadd.f32 %v5228, %v5248
    %v5267 = vadd.f32 %v5229, %v5249
    %v5268 = vadd.f32 %v5230, %v5250
    %v5269 = vadd.f32 %v5231, %v5251
    %v5270 = vadd.f32 %v5232, %v5252
    %v5271 = vadd.f32 %v5233, %v5253
    %v5272 = vadd.f32 %v5234, %v5254
    %v5273 = vadd.f32 %v5235, %v5255
    %s5274 = sld [smem:[#allocation5 + $0xa]]
    %v5275 = vstv %s5274
    %v5276 = vadd.f32 %v5256, %v5275
    %v5277 = vadd.f32 %v5257, %v5275
    %v5278 = vadd.f32 %v5258, %v5275
    %v5279 = vadd.f32 %v5259, %v5275
    %v5280 = vadd.f32 %v5260, %v5275
    %v5281 = vadd.f32 %v5261, %v5275
    %v5282 = vadd.f32 %v5262, %v5275
    %v5283 = vadd.f32 %v5263, %v5275
    %v5284 = vadd.f32 %v5264, %v5275
    %v5285 = vadd.f32 %v5265, %v5275
    %v5286 = vadd.f32 %v5266, %v5275
    %v5287 = vadd.f32 %v5267, %v5275
    %v5288 = vadd.f32 %v5268, %v5275
    %v5289 = vadd.f32 %v5269, %v5275
    %v5290 = vadd.f32 %v5270, %v5275
    %v5291 = vadd.f32 %v5271, %v5275
    %v5292 = vadd.f32 %v5272, %v5275
    %v5293 = vadd.f32 %v5273, %v5275
    %v5294 = vmax.f32 %v5276, 0.0
    %v5295 = vmax.f32 %v5277, 0.0
    %v5296 = vmax.f32 %v5278, 0.0
    %v5297 = vmax.f32 %v5279, 0.0
    %v5298 = vmax.f32 %v5280, 0.0
    %v5299 = vmax.f32 %v5281, 0.0
    %v5300 = vmax.f32 %v5282, 0.0
    %v5301 = vmax.f32 %v5283, 0.0
    %v5302 = vmax.f32 %v5284, 0.0
    %v5303 = vmax.f32 %v5285, 0.0
    %v5304 = vmax.f32 %v5286, 0.0
    %v5305 = vmax.f32 %v5287, 0.0
    %v5306 = vmax.f32 %v5288, 0.0
    %v5307 = vmax.f32 %v5289, 0.0
    %v5308 = vmax.f32 %v5290, 0.0
    %v5309 = vmax.f32 %v5291, 0.0
    %v5310 = vmax.f32 %v5292, 0.0
    %v5311 = vmax.f32 %v5293, 0.0
    %v5312 = vmax.f32 %v5294, %v5295
    %v5313 = vmax.f32 %v5296, %v5297
    %v5314 = vmax.f32 %v5298, %v5299
    %v5315 = vmax.f32 %v5300, %v5301
    %v5316 = vmax.f32 %v5302, %v5303
    %v5317 = vmax.f32 %v5304, %v5305
    %v5318 = vmax.f32 %v5306, %v5307
    %v5319 = vmax.f32 %v5308, %v5309
    %v5320 = vmax.f32 %v5310, %v5311
    %v5330 = vrot.slane %v5312, 1
    %v5331 = vrot.slane %v5313, 1
    %v5332 = vrot.slane %v5314, 1
    %v5333 = vrot.slane %v5315, 1
    %v5334 = vrot.slane %v5316, 1
    %v5335 = vrot.slane %v5317, 1
    %v5336 = vrot.slane %v5318, 1
    %v5337 = vrot.slane %v5319, 1
    %v5338 = vrot.slane %v5320, 1
    %v5348 = vmax.f32 %v5312, %v5330
    %v5349 = vmax.f32 %v5313, %v5331
    %v5350 = vmax.f32 %v5314, %v5332
    %v5351 = vmax.f32 %v5315, %v5333
    %v5352 = vmax.f32 %v5316, %v5334
    %v5353 = vmax.f32 %v5317, %v5335
    %v5354 = vmax.f32 %v5318, %v5336
    %v5355 = vmax.f32 %v5319, %v5337
    %v5356 = vmax.f32 %v5320, %v5338
    %5358 = vset.pattern.permute.xlu0 0
    %5359 = vperm.xlu0 %5358, %v196
    %v5360 = vpop.permute.xlu0 %5359
    %5363 = vset.pattern.permute.xlu0 0
    %5364 = vperm.xlu0 %5363, %v197
    %v5365 = vpop.permute.xlu0 %5364
    %5368 = vset.pattern.permute.xlu0 0
    %5369 = vperm.xlu0 %5368, %v198
    %v5370 = vpop.permute.xlu0 %5369
    %5373 = vset.pattern.permute.xlu0 0
    %5374 = vperm.xlu0 %5373, %v199
    %v5375 = vpop.permute.xlu0 %5374
    %5378 = vset.pattern.permute.xlu0 0
    %5379 = vperm.xlu0 %5378, %v200
    %v5380 = vpop.permute.xlu0 %5379
    %5383 = vset.pattern.permute.xlu0 0
    %5384 = vperm.xlu0 %5383, %v201
    %v5385 = vpop.permute.xlu0 %5384
    %5388 = vset.pattern.permute.xlu0 0
    %5389 = vperm.xlu0 %5388, %v202
    %v5390 = vpop.permute.xlu0 %5389
    %5393 = vset.pattern.permute.xlu0 0
    %5394 = vperm.xlu0 %5393, %v203
    %v5395 = vpop.permute.xlu0 %5394
    %5398 = vset.pattern.permute.xlu0 0
    %5399 = vperm.xlu0 %5398, %v204
    %v5400 = vpop.permute.xlu0 %5399
    %v5402 = vmul.f32 %v5348, %v5360
    %v5403 = vmul.f32 %v5349, %v5365
    %v5404 = vmul.f32 %v5350, %v5370
    %v5405 = vmul.f32 %v5351, %v5375
    %v5406 = vmul.f32 %v5352, %v5380
    %v5407 = vmul.f32 %v5353, %v5385
    %v5408 = vmul.f32 %v5354, %v5390
    %v5409 = vmul.f32 %v5355, %v5395
    %v5410 = vmul.f32 %v5356, %v5400
    %v5411 = vadd.f32 %v4941, %v5402
    %v5412 = vadd.f32 %v4942, %v5403
    %v5413 = vadd.f32 %v4943, %v5404
    %v5414 = vadd.f32 %v4944, %v5405
    %v5415 = vadd.f32 %v4945, %v5406
    %v5416 = vadd.f32 %v4946, %v5407
    %v5417 = vadd.f32 %v4947, %v5408
    %v5418 = vadd.f32 %v4948, %v5409
    %v5419 = vadd.f32 %v4949, %v5410
    %s5420 = sld [smem:[#allocation3 + $0x63]]
    %v5421 = vstv %s5420
    %v5422 = vmul.f32 %v46, %v5421
    %v5423 = vmul.f32 %v47, %v5421
    %v5424 = vmul.f32 %v48, %v5421
    %v5425 = vmul.f32 %v49, %v5421
    %v5426 = vmul.f32 %v50, %v5421
    %v5427 = vmul.f32 %v51, %v5421
    %v5428 = vmul.f32 %v52, %v5421
    %v5429 = vmul.f32 %v53, %v5421
    %v5430 = vmul.f32 %v54, %v5421
    %v5431 = vmul.f32 %v55, %v5421
    %v5432 = vmul.f32 %v56, %v5421
    %v5433 = vmul.f32 %v57, %v5421
    %v5434 = vmul.f32 %v58, %v5421
    %v5435 = vmul.f32 %v59, %v5421
    %v5436 = vmul.f32 %v60, %v5421
    %v5437 = vmul.f32 %v61, %v5421
    %v5438 = vmul.f32 %v62, %v5421
    %v5439 = vmul.f32 %v63, %v5421
    %s5440 = sld [smem:[#allocation3 + $0x64]]
    %v5441 = vstv %s5440
    %v5442 = vmul.f32 %v66, %v5441
    %v5443 = vmul.f32 %v67, %v5441
    %v5444 = vmul.f32 %v68, %v5441
    %v5445 = vmul.f32 %v69, %v5441
    %v5446 = vmul.f32 %v70, %v5441
    %v5447 = vmul.f32 %v71, %v5441
    %v5448 = vmul.f32 %v72, %v5441
    %v5449 = vmul.f32 %v73, %v5441
    %v5450 = vmul.f32 %v74, %v5441
    %v5451 = vmul.f32 %v75, %v5441
    %v5452 = vmul.f32 %v76, %v5441
    %v5453 = vmul.f32 %v77, %v5441
    %v5454 = vmul.f32 %v78, %v5441
    %v5455 = vmul.f32 %v79, %v5441
    %v5456 = vmul.f32 %v80, %v5441
    %v5457 = vmul.f32 %v81, %v5441
    %v5458 = vmul.f32 %v82, %v5441
    %v5459 = vmul.f32 %v83, %v5441
    %v5460 = vadd.f32 %v5422, %v5442
    %v5461 = vadd.f32 %v5423, %v5443
    %v5462 = vadd.f32 %v5424, %v5444
    %v5463 = vadd.f32 %v5425, %v5445
    %v5464 = vadd.f32 %v5426, %v5446
    %v5465 = vadd.f32 %v5427, %v5447
    %v5466 = vadd.f32 %v5428, %v5448
    %v5467 = vadd.f32 %v5429, %v5449
    %v5468 = vadd.f32 %v5430, %v5450
    %v5469 = vadd.f32 %v5431, %v5451
    %v5470 = vadd.f32 %v5432, %v5452
    %v5471 = vadd.f32 %v5433, %v5453
    %v5472 = vadd.f32 %v5434, %v5454
    %v5473 = vadd.f32 %v5435, %v5455
    %v5474 = vadd.f32 %v5436, %v5456
    %v5475 = vadd.f32 %v5437, %v5457
    %v5476 = vadd.f32 %v5438, %v5458
    %v5477 = vadd.f32 %v5439, %v5459
    %s5478 = sld [smem:[#allocation3 + $0x65]]
    %v5479 = vstv %s5478
    %v5480 = vmul.f32 %v86, %v5479
    %v5481 = vmul.f32 %v87, %v5479
    %v5482 = vmul.f32 %v88, %v5479
    %v5483 = vmul.f32 %v89, %v5479
    %v5484 = vmul.f32 %v90, %v5479
    %v5485 = vmul.f32 %v91, %v5479
    %v5486 = vmul.f32 %v92, %v5479
    %v5487 = vmul.f32 %v93, %v5479
    %v5488 = vmul.f32 %v94, %v5479
    %v5489 = vmul.f32 %v95, %v5479
    %v5490 = vmul.f32 %v96, %v5479
    %v5491 = vmul.f32 %v97, %v5479
    %v5492 = vmul.f32 %v98, %v5479
    %v5493 = vmul.f32 %v99, %v5479
    %v5494 = vmul.f32 %v100, %v5479
    %v5495 = vmul.f32 %v101, %v5479
    %v5496 = vmul.f32 %v102, %v5479
    %v5497 = vmul.f32 %v103, %v5479
    %v5498 = vadd.f32 %v5460, %v5480
    %v5499 = vadd.f32 %v5461, %v5481
    %v5500 = vadd.f32 %v5462, %v5482
    %v5501 = vadd.f32 %v5463, %v5483
    %v5502 = vadd.f32 %v5464, %v5484
    %v5503 = vadd.f32 %v5465, %v5485
    %v5504 = vadd.f32 %v5466, %v5486
    %v5505 = vadd.f32 %v5467, %v5487
    %v5506 = vadd.f32 %v5468, %v5488
    %v5507 = vadd.f32 %v5469, %v5489
    %v5508 = vadd.f32 %v5470, %v5490
    %v5509 = vadd.f32 %v5471, %v5491
    %v5510 = vadd.f32 %v5472, %v5492
    %v5511 = vadd.f32 %v5473, %v5493
    %v5512 = vadd.f32 %v5474, %v5494
    %v5513 = vadd.f32 %v5475, %v5495
    %v5514 = vadd.f32 %v5476, %v5496
    %v5515 = vadd.f32 %v5477, %v5497
    %s5516 = sld [smem:[#allocation3 + $0x66]]
    %v5517 = vstv %s5516
    %v5518 = vmul.f32 %v47, %v5517
    %v5519 = vmul.f32 %v48, %v5517
    %v5520 = vmul.f32 %v49, %v5517
    %v5521 = vmul.f32 %v50, %v5517
    %v5522 = vmul.f32 %v51, %v5517
    %v5523 = vmul.f32 %v52, %v5517
    %v5524 = vmul.f32 %v53, %v5517
    %v5525 = vmul.f32 %v54, %v5517
    %v5526 = vmul.f32 %v55, %v5517
    %v5527 = vmul.f32 %v56, %v5517
    %v5528 = vmul.f32 %v57, %v5517
    %v5529 = vmul.f32 %v58, %v5517
    %v5530 = vmul.f32 %v59, %v5517
    %v5531 = vmul.f32 %v60, %v5517
    %v5532 = vmul.f32 %v61, %v5517
    %v5533 = vmul.f32 %v62, %v5517
    %v5534 = vmul.f32 %v63, %v5517
    %v5535 = vmul.f32 %v64, %v5517
    %v5536 = vadd.f32 %v5498, %v5518
    %v5537 = vadd.f32 %v5499, %v5519
    %v5538 = vadd.f32 %v5500, %v5520
    %v5539 = vadd.f32 %v5501, %v5521
    %v5540 = vadd.f32 %v5502, %v5522
    %v5541 = vadd.f32 %v5503, %v5523
    %v5542 = vadd.f32 %v5504, %v5524
    %v5543 = vadd.f32 %v5505, %v5525
    %v5544 = vadd.f32 %v5506, %v5526
    %v5545 = vadd.f32 %v5507, %v5527
    %v5546 = vadd.f32 %v5508, %v5528
    %v5547 = vadd.f32 %v5509, %v5529
    %v5548 = vadd.f32 %v5510, %v5530
    %v5549 = vadd.f32 %v5511, %v5531
    %v5550 = vadd.f32 %v5512, %v5532
    %v5551 = vadd.f32 %v5513, %v5533
    %v5552 = vadd.f32 %v5514, %v5534
    %v5553 = vadd.f32 %v5515, %v5535
    %s5554 = sld [smem:[#allocation3 + $0x67]]
    %v5555 = vstv %s5554
    %v5556 = vmul.f32 %v67, %v5555
    %v5557 = vmul.f32 %v68, %v5555
    %v5558 = vmul.f32 %v69, %v5555
    %v5559 = vmul.f32 %v70, %v5555
    %v5560 = vmul.f32 %v71, %v5555
    %v5561 = vmul.f32 %v72, %v5555
    %v5562 = vmul.f32 %v73, %v5555
    %v5563 = vmul.f32 %v74, %v5555
    %v5564 = vmul.f32 %v75, %v5555
    %v5565 = vmul.f32 %v76, %v5555
    %v5566 = vmul.f32 %v77, %v5555
    %v5567 = vmul.f32 %v78, %v5555
    %v5568 = vmul.f32 %v79, %v5555
    %v5569 = vmul.f32 %v80, %v5555
    %v5570 = vmul.f32 %v81, %v5555
    %v5571 = vmul.f32 %v82, %v5555
    %v5572 = vmul.f32 %v83, %v5555
    %v5573 = vmul.f32 %v84, %v5555
    %v5574 = vadd.f32 %v5536, %v5556
    %v5575 = vadd.f32 %v5537, %v5557
    %v5576 = vadd.f32 %v5538, %v5558
    %v5577 = vadd.f32 %v5539, %v5559
    %v5578 = vadd.f32 %v5540, %v5560
    %v5579 = vadd.f32 %v5541, %v5561
    %v5580 = vadd.f32 %v5542, %v5562
    %v5581 = vadd.f32 %v5543, %v5563
    %v5582 = vadd.f32 %v5544, %v5564
    %v5583 = vadd.f32 %v5545, %v5565
    %v5584 = vadd.f32 %v5546, %v5566
    %v5585 = vadd.f32 %v5547, %v5567
    %v5586 = vadd.f32 %v5548, %v5568
    %v5587 = vadd.f32 %v5549, %v5569
    %v5588 = vadd.f32 %v5550, %v5570
    %v5589 = vadd.f32 %v5551, %v5571
    %v5590 = vadd.f32 %v5552, %v5572
    %v5591 = vadd.f32 %v5553, %v5573
    %s5592 = sld [smem:[#allocation3 + $0x68]]
    %v5593 = vstv %s5592
    %v5594 = vmul.f32 %v87, %v5593
    %v5595 = vmul.f32 %v88, %v5593
    %v5596 = vmul.f32 %v89, %v5593
    %v5597 = vmul.f32 %v90, %v5593
    %v5598 = vmul.f32 %v91, %v5593
    %v5599 = vmul.f32 %v92, %v5593
    %v5600 = vmul.f32 %v93, %v5593
    %v5601 = vmul.f32 %v94, %v5593
    %v5602 = vmul.f32 %v95, %v5593
    %v5603 = vmul.f32 %v96, %v5593
    %v5604 = vmul.f32 %v97, %v5593
    %v5605 = vmul.f32 %v98, %v5593
    %v5606 = vmul.f32 %v99, %v5593
    %v5607 = vmul.f32 %v100, %v5593
    %v5608 = vmul.f32 %v101, %v5593
    %v5609 = vmul.f32 %v102, %v5593
    %v5610 = vmul.f32 %v103, %v5593
    %v5611 = vmul.f32 %v104, %v5593
    %v5612 = vadd.f32 %v5574, %v5594
    %v5613 = vadd.f32 %v5575, %v5595
    %v5614 = vadd.f32 %v5576, %v5596
    %v5615 = vadd.f32 %v5577, %v5597
    %v5616 = vadd.f32 %v5578, %v5598
    %v5617 = vadd.f32 %v5579, %v5599
    %v5618 = vadd.f32 %v5580, %v5600
    %v5619 = vadd.f32 %v5581, %v5601
    %v5620 = vadd.f32 %v5582, %v5602
    %v5621 = vadd.f32 %v5583, %v5603
    %v5622 = vadd.f32 %v5584, %v5604
    %v5623 = vadd.f32 %v5585, %v5605
    %v5624 = vadd.f32 %v5586, %v5606
    %v5625 = vadd.f32 %v5587, %v5607
    %v5626 = vadd.f32 %v5588, %v5608
    %v5627 = vadd.f32 %v5589, %v5609
    %v5628 = vadd.f32 %v5590, %v5610
    %v5629 = vadd.f32 %v5591, %v5611
    %s5630 = sld [smem:[#allocation3 + $0x69]]
    %v5631 = vstv %s5630
    %v5632 = vmul.f32 %v48, %v5631
    %v5633 = vmul.f32 %v49, %v5631
    %v5634 = vmul.f32 %v50, %v5631
    %v5635 = vmul.f32 %v51, %v5631
    %v5636 = vmul.f32 %v52, %v5631
    %v5637 = vmul.f32 %v53, %v5631
    %v5638 = vmul.f32 %v54, %v5631
    %v5639 = vmul.f32 %v55, %v5631
    %v5640 = vmul.f32 %v56, %v5631
    %v5641 = vmul.f32 %v57, %v5631
    %v5642 = vmul.f32 %v58, %v5631
    %v5643 = vmul.f32 %v59, %v5631
    %v5644 = vmul.f32 %v60, %v5631
    %v5645 = vmul.f32 %v61, %v5631
    %v5646 = vmul.f32 %v62, %v5631
    %v5647 = vmul.f32 %v63, %v5631
    %v5648 = vmul.f32 %v64, %v5631
    %v5649 = vmul.f32 %v65, %v5631
    %v5650 = vadd.f32 %v5612, %v5632
    %v5651 = vadd.f32 %v5613, %v5633
    %v5652 = vadd.f32 %v5614, %v5634
    %v5653 = vadd.f32 %v5615, %v5635
    %v5654 = vadd.f32 %v5616, %v5636
    %v5655 = vadd.f32 %v5617, %v5637
    %v5656 = vadd.f32 %v5618, %v5638
    %v5657 = vadd.f32 %v5619, %v5639
    %v5658 = vadd.f32 %v5620, %v5640
    %v5659 = vadd.f32 %v5621, %v5641
    %v5660 = vadd.f32 %v5622, %v5642
    %v5661 = vadd.f32 %v5623, %v5643
    %v5662 = vadd.f32 %v5624, %v5644
    %v5663 = vadd.f32 %v5625, %v5645
    %v5664 = vadd.f32 %v5626, %v5646
    %v5665 = vadd.f32 %v5627, %v5647
    %v5666 = vadd.f32 %v5628, %v5648
    %v5667 = vadd.f32 %v5629, %v5649
    %s5668 = sld [smem:[#allocation3 + $0x6a]]
    %v5669 = vstv %s5668
    %v5670 = vmul.f32 %v68, %v5669
    %v5671 = vmul.f32 %v69, %v5669
    %v5672 = vmul.f32 %v70, %v5669
    %v5673 = vmul.f32 %v71, %v5669
    %v5674 = vmul.f32 %v72, %v5669
    %v5675 = vmul.f32 %v73, %v5669
    %v5676 = vmul.f32 %v74, %v5669
    %v5677 = vmul.f32 %v75, %v5669
    %v5678 = vmul.f32 %v76, %v5669
    %v5679 = vmul.f32 %v77, %v5669
    %v5680 = vmul.f32 %v78, %v5669
    %v5681 = vmul.f32 %v79, %v5669
    %v5682 = vmul.f32 %v80, %v5669
    %v5683 = vmul.f32 %v81, %v5669
    %v5684 = vmul.f32 %v82, %v5669
    %v5685 = vmul.f32 %v83, %v5669
    %v5686 = vmul.f32 %v84, %v5669
    %v5687 = vmul.f32 %v85, %v5669
    %v5688 = vadd.f32 %v5650, %v5670
    %v5689 = vadd.f32 %v5651, %v5671
    %v5690 = vadd.f32 %v5652, %v5672
    %v5691 = vadd.f32 %v5653, %v5673
    %v5692 = vadd.f32 %v5654, %v5674
    %v5693 = vadd.f32 %v5655, %v5675
    %v5694 = vadd.f32 %v5656, %v5676
    %v5695 = vadd.f32 %v5657, %v5677
    %v5696 = vadd.f32 %v5658, %v5678
    %v5697 = vadd.f32 %v5659, %v5679
    %v5698 = vadd.f32 %v5660, %v5680
    %v5699 = vadd.f32 %v5661, %v5681
    %v5700 = vadd.f32 %v5662, %v5682
    %v5701 = vadd.f32 %v5663, %v5683
    %v5702 = vadd.f32 %v5664, %v5684
    %v5703 = vadd.f32 %v5665, %v5685
    %v5704 = vadd.f32 %v5666, %v5686
    %v5705 = vadd.f32 %v5667, %v5687
    %s5706 = sld [smem:[#allocation3 + $0x6b]]
    %v5707 = vstv %s5706
    %v5708 = vmul.f32 %v88, %v5707
    %v5709 = vmul.f32 %v89, %v5707
    %v5710 = vmul.f32 %v90, %v5707
    %v5711 = vmul.f32 %v91, %v5707
    %v5712 = vmul.f32 %v92, %v5707
    %v5713 = vmul.f32 %v93, %v5707
    %v5714 = vmul.f32 %v94, %v5707
    %v5715 = vmul.f32 %v95, %v5707
    %v5716 = vmul.f32 %v96, %v5707
    %v5717 = vmul.f32 %v97, %v5707
    %v5718 = vmul.f32 %v98, %v5707
    %v5719 = vmul.f32 %v99, %v5707
    %v5720 = vmul.f32 %v100, %v5707
    %v5721 = vmul.f32 %v101, %v5707
    %v5722 = vmul.f32 %v102, %v5707
    %v5723 = vmul.f32 %v103, %v5707
    %v5724 = vmul.f32 %v104, %v5707
    %v5725 = vmul.f32 %v105, %v5707
    %v5726 = vadd.f32 %v5688, %v5708
    %v5727 = vadd.f32 %v5689, %v5709
    %v5728 = vadd.f32 %v5690, %v5710
    %v5729 = vadd.f32 %v5691, %v5711
    %v5730 = vadd.f32 %v5692, %v5712
    %v5731 = vadd.f32 %v5693, %v5713
    %v5732 = vadd.f32 %v5694, %v5714
    %v5733 = vadd.f32 %v5695, %v5715
    %v5734 = vadd.f32 %v5696, %v5716
    %v5735 = vadd.f32 %v5697, %v5717
    %v5736 = vadd.f32 %v5698, %v5718
    %v5737 = vadd.f32 %v5699, %v5719
    %v5738 = vadd.f32 %v5700, %v5720
    %v5739 = vadd.f32 %v5701, %v5721
    %v5740 = vadd.f32 %v5702, %v5722
    %v5741 = vadd.f32 %v5703, %v5723
    %v5742 = vadd.f32 %v5704, %v5724
    %v5743 = vadd.f32 %v5705, %v5725
    %s5744 = sld [smem:[#allocation5 + $0xb]]
    %v5745 = vstv %s5744
    %v5746 = vadd.f32 %v5726, %v5745
    %v5747 = vadd.f32 %v5727, %v5745
    %v5748 = vadd.f32 %v5728, %v5745
    %v5749 = vadd.f32 %v5729, %v5745
    %v5750 = vadd.f32 %v5730, %v5745
    %v5751 = vadd.f32 %v5731, %v5745
    %v5752 = vadd.f32 %v5732, %v5745
    %v5753 = vadd.f32 %v5733, %v5745
    %v5754 = vadd.f32 %v5734, %v5745
    %v5755 = vadd.f32 %v5735, %v5745
    %v5756 = vadd.f32 %v5736, %v5745
    %v5757 = vadd.f32 %v5737, %v5745
    %v5758 = vadd.f32 %v5738, %v5745
    %v5759 = vadd.f32 %v5739, %v5745
    %v5760 = vadd.f32 %v5740, %v5745
    %v5761 = vadd.f32 %v5741, %v5745
    %v5762 = vadd.f32 %v5742, %v5745
    %v5763 = vadd.f32 %v5743, %v5745
    %v5764 = vmax.f32 %v5746, 0.0
    %v5765 = vmax.f32 %v5747, 0.0
    %v5766 = vmax.f32 %v5748, 0.0
    %v5767 = vmax.f32 %v5749, 0.0
    %v5768 = vmax.f32 %v5750, 0.0
    %v5769 = vmax.f32 %v5751, 0.0
    %v5770 = vmax.f32 %v5752, 0.0
    %v5771 = vmax.f32 %v5753, 0.0
    %v5772 = vmax.f32 %v5754, 0.0
    %v5773 = vmax.f32 %v5755, 0.0
    %v5774 = vmax.f32 %v5756, 0.0
    %v5775 = vmax.f32 %v5757, 0.0
    %v5776 = vmax.f32 %v5758, 0.0
    %v5777 = vmax.f32 %v5759, 0.0
    %v5778 = vmax.f32 %v5760, 0.0
    %v5779 = vmax.f32 %v5761, 0.0
    %v5780 = vmax.f32 %v5762, 0.0
    %v5781 = vmax.f32 %v5763, 0.0
    %v5782 = vmax.f32 %v5764, %v5765
    %v5783 = vmax.f32 %v5766, %v5767
    %v5784 = vmax.f32 %v5768, %v5769
    %v5785 = vmax.f32 %v5770, %v5771
    %v5786 = vmax.f32 %v5772, %v5773
    %v5787 = vmax.f32 %v5774, %v5775
    %v5788 = vmax.f32 %v5776, %v5777
    %v5789 = vmax.f32 %v5778, %v5779
    %v5790 = vmax.f32 %v5780, %v5781
    %v5800 = vrot.slane %v5782, 1
    %v5801 = vrot.slane %v5783, 1
    %v5802 = vrot.slane %v5784, 1
    %v5803 = vrot.slane %v5785, 1
    %v5804 = vrot.slane %v5786, 1
    %v5805 = vrot.slane %v5787, 1
    %v5806 = vrot.slane %v5788, 1
    %v5807 = vrot.slane %v5789, 1
    %v5808 = vrot.slane %v5790, 1
    %v5818 = vmax.f32 %v5782, %v5800
    %v5819 = vmax.f32 %v5783, %v5801
    %v5820 = vmax.f32 %v5784, %v5802
    %v5821 = vmax.f32 %v5785, %v5803
    %v5822 = vmax.f32 %v5786, %v5804
    %v5823 = vmax.f32 %v5787, %v5805
    %v5824 = vmax.f32 %v5788, %v5806
    %v5825 = vmax.f32 %v5789, %v5807
    %v5826 = vmax.f32 %v5790, %v5808
    %5828 = vset.pattern.permute.xlu0 0
    %5829 = vperm.xlu0 %5828, %v205
    %v5830 = vpop.permute.xlu0 %5829
    %5833 = vset.pattern.permute.xlu0 0
    %5834 = vperm.xlu0 %5833, %v206
    %v5835 = vpop.permute.xlu0 %5834
    %5838 = vset.pattern.permute.xlu0 0
    %5839 = vperm.xlu0 %5838, %v207
    %v5840 = vpop.permute.xlu0 %5839
    %5843 = vset.pattern.permute.xlu0 0
    %5844 = vperm.xlu0 %5843, %v208
    %v5845 = vpop.permute.xlu0 %5844
    %5848 = vset.pattern.permute.xlu0 0
    %5849 = vperm.xlu0 %5848, %v209
    %v5850 = vpop.permute.xlu0 %5849
    %5853 = vset.pattern.permute.xlu0 0
    %5854 = vperm.xlu0 %5853, %v210
    %v5855 = vpop.permute.xlu0 %5854
    %5858 = vset.pattern.permute.xlu0 0
    %5859 = vperm.xlu0 %5858, %v211
    %v5860 = vpop.permute.xlu0 %5859
    %5863 = vset.pattern.permute.xlu0 0
    %5864 = vperm.xlu0 %5863, %v212
    %v5865 = vpop.permute.xlu0 %5864
    %5868 = vset.pattern.permute.xlu0 0
    %5869 = vperm.xlu0 %5868, %v213
    %v5870 = vpop.permute.xlu0 %5869
    %v5872 = vmul.f32 %v5818, %v5830
    %v5873 = vmul.f32 %v5819, %v5835
    %v5874 = vmul.f32 %v5820, %v5840
    %v5875 = vmul.f32 %v5821, %v5845
    %v5876 = vmul.f32 %v5822, %v5850
    %v5877 = vmul.f32 %v5823, %v5855
    %v5878 = vmul.f32 %v5824, %v5860
    %v5879 = vmul.f32 %v5825, %v5865
    %v5880 = vmul.f32 %v5826, %v5870
    %v5881 = vadd.f32 %v5411, %v5872
    %v5882 = vadd.f32 %v5412, %v5873
    %v5883 = vadd.f32 %v5413, %v5874
    %v5884 = vadd.f32 %v5414, %v5875
    %v5885 = vadd.f32 %v5415, %v5876
    %v5886 = vadd.f32 %v5416, %v5877
    %v5887 = vadd.f32 %v5417, %v5878
    %v5888 = vadd.f32 %v5418, %v5879
    %v5889 = vadd.f32 %v5419, %v5880
    %s5890 = sld [smem:[#allocation3 + $0x6c]]
    %v5891 = vstv %s5890
    %v5892 = vmul.f32 %v46, %v5891
    %v5893 = vmul.f32 %v47, %v5891
    %v5894 = vmul.f32 %v48, %v5891
    %v5895 = vmul.f32 %v49, %v5891
    %v5896 = vmul.f32 %v50, %v5891
    %v5897 = vmul.f32 %v51, %v5891
    %v5898 = vmul.f32 %v52, %v5891
    %v5899 = vmul.f32 %v53, %v5891
    %v5900 = vmul.f32 %v54, %v5891
    %v5901 = vmul.f32 %v55, %v5891
    %v5902 = vmul.f32 %v56, %v5891
    %v5903 = vmul.f32 %v57, %v5891
    %v5904 = vmul.f32 %v58, %v5891
    %v5905 = vmul.f32 %v59, %v5891
    %v5906 = vmul.f32 %v60, %v5891
    %v5907 = vmul.f32 %v61, %v5891
    %v5908 = vmul.f32 %v62, %v5891
    %v5909 = vmul.f32 %v63, %v5891
    %s5910 = sld [smem:[#allocation3 + $0x6d]]
    %v5911 = vstv %s5910
    %v5912 = vmul.f32 %v66, %v5911
    %v5913 = vmul.f32 %v67, %v5911
    %v5914 = vmul.f32 %v68, %v5911
    %v5915 = vmul.f32 %v69, %v5911
    %v5916 = vmul.f32 %v70, %v5911
    %v5917 = vmul.f32 %v71, %v5911
    %v5918 = vmul.f32 %v72, %v5911
    %v5919 = vmul.f32 %v73, %v5911
    %v5920 = vmul.f32 %v74, %v5911
    %v5921 = vmul.f32 %v75, %v5911
    %v5922 = vmul.f32 %v76, %v5911
    %v5923 = vmul.f32 %v77, %v5911
    %v5924 = vmul.f32 %v78, %v5911
    %v5925 = vmul.f32 %v79, %v5911
    %v5926 = vmul.f32 %v80, %v5911
    %v5927 = vmul.f32 %v81, %v5911
    %v5928 = vmul.f32 %v82, %v5911
    %v5929 = vmul.f32 %v83, %v5911
    %v5930 = vadd.f32 %v5892, %v5912
    %v5931 = vadd.f32 %v5893, %v5913
    %v5932 = vadd.f32 %v5894, %v5914
    %v5933 = vadd.f32 %v5895, %v5915
    %v5934 = vadd.f32 %v5896, %v5916
    %v5935 = vadd.f32 %v5897, %v5917
    %v5936 = vadd.f32 %v5898, %v5918
    %v5937 = vadd.f32 %v5899, %v5919
    %v5938 = vadd.f32 %v5900, %v5920
    %v5939 = vadd.f32 %v5901, %v5921
    %v5940 = vadd.f32 %v5902, %v5922
    %v5941 = vadd.f32 %v5903, %v5923
    %v5942 = vadd.f32 %v5904, %v5924
    %v5943 = vadd.f32 %v5905, %v5925
    %v5944 = vadd.f32 %v5906, %v5926
    %v5945 = vadd.f32 %v5907, %v5927
    %v5946 = vadd.f32 %v5908, %v5928
    %v5947 = vadd.f32 %v5909, %v5929
    %s5948 = sld [smem:[#allocation3 + $0x6e]]
    %v5949 = vstv %s5948
    %v5950 = vmul.f32 %v86, %v5949
    %v5951 = vmul.f32 %v87, %v5949
    %v5952 = vmul.f32 %v88, %v5949
    %v5953 = vmul.f32 %v89, %v5949
    %v5954 = vmul.f32 %v90, %v5949
    %v5955 = vmul.f32 %v91, %v5949
    %v5956 = vmul.f32 %v92, %v5949
    %v5957 = vmul.f32 %v93, %v5949
    %v5958 = vmul.f32 %v94, %v5949
    %v5959 = vmul.f32 %v95, %v5949
    %v5960 = vmul.f32 %v96, %v5949
    %v5961 = vmul.f32 %v97, %v5949
    %v5962 = vmul.f32 %v98, %v5949
    %v5963 = vmul.f32 %v99, %v5949
    %v5964 = vmul.f32 %v100, %v5949
    %v5965 = vmul.f32 %v101, %v5949
    %v5966 = vmul.f32 %v102, %v5949
    %v5967 = vmul.f32 %v103, %v5949
    %v5968 = vadd.f32 %v5930, %v5950
    %v5969 = vadd.f32 %v5931, %v5951
    %v5970 = vadd.f32 %v5932, %v5952
    %v5971 = vadd.f32 %v5933, %v5953
    %v5972 = vadd.f32 %v5934, %v5954
    %v5973 = vadd.f32 %v5935, %v5955
    %v5974 = vadd.f32 %v5936, %v5956
    %v5975 = vadd.f32 %v5937, %v5957
    %v5976 = vadd.f32 %v5938, %v5958
    %v5977 = vadd.f32 %v5939, %v5959
    %v5978 = vadd.f32 %v5940, %v5960
    %v5979 = vadd.f32 %v5941, %v5961
    %v5980 = vadd.f32 %v5942, %v5962
    %v5981 = vadd.f32 %v5943, %v5963
    %v5982 = vadd.f32 %v5944, %v5964
    %v5983 = vadd.f32 %v5945, %v5965
    %v5984 = vadd.f32 %v5946, %v5966
    %v5985 = vadd.f32 %v5947, %v5967
    %s5986 = sld [smem:[#allocation3 + $0x6f]]
    %v5987 = vstv %s5986
    %v5988 = vmul.f32 %v47, %v5987
    %v5989 = vmul.f32 %v48, %v5987
    %v5990 = vmul.f32 %v49, %v5987
    %v5991 = vmul.f32 %v50, %v5987
    %v5992 = vmul.f32 %v51, %v5987
    %v5993 = vmul.f32 %v52, %v5987
    %v5994 = vmul.f32 %v53, %v5987
    %v5995 = vmul.f32 %v54, %v5987
    %v5996 = vmul.f32 %v55, %v5987
    %v5997 = vmul.f32 %v56, %v5987
    %v5998 = vmul.f32 %v57, %v5987
    %v5999 = vmul.f32 %v58, %v5987
    %v6000 = vmul.f32 %v59, %v5987
    %v6001 = vmul.f32 %v60, %v5987
    %v6002 = vmul.f32 %v61, %v5987
    %v6003 = vmul.f32 %v62, %v5987
    %v6004 = vmul.f32 %v63, %v5987
    %v6005 = vmul.f32 %v64, %v5987
    %v6006 = vadd.f32 %v5968, %v5988
    %v6007 = vadd.f32 %v5969, %v5989
    %v6008 = vadd.f32 %v5970, %v5990
    %v6009 = vadd.f32 %v5971, %v5991
    %v6010 = vadd.f32 %v5972, %v5992
    %v6011 = vadd.f32 %v5973, %v5993
    %v6012 = vadd.f32 %v5974, %v5994
    %v6013 = vadd.f32 %v5975, %v5995
    %v6014 = vadd.f32 %v5976, %v5996
    %v6015 = vadd.f32 %v5977, %v5997
    %v6016 = vadd.f32 %v5978, %v5998
    %v6017 = vadd.f32 %v5979, %v5999
    %v6018 = vadd.f32 %v5980, %v6000
    %v6019 = vadd.f32 %v5981, %v6001
    %v6020 = vadd.f32 %v5982, %v6002
    %v6021 = vadd.f32 %v5983, %v6003
    %v6022 = vadd.f32 %v5984, %v6004
    %v6023 = vadd.f32 %v5985, %v6005
    %s6024 = sld [smem:[#allocation3 + $0x70]]
    %v6025 = vstv %s6024
    %v6026 = vmul.f32 %v67, %v6025
    %v6027 = vmul.f32 %v68, %v6025
    %v6028 = vmul.f32 %v69, %v6025
    %v6029 = vmul.f32 %v70, %v6025
    %v6030 = vmul.f32 %v71, %v6025
    %v6031 = vmul.f32 %v72, %v6025
    %v6032 = vmul.f32 %v73, %v6025
    %v6033 = vmul.f32 %v74, %v6025
    %v6034 = vmul.f32 %v75, %v6025
    %v6035 = vmul.f32 %v76, %v6025
    %v6036 = vmul.f32 %v77, %v6025
    %v6037 = vmul.f32 %v78, %v6025
    %v6038 = vmul.f32 %v79, %v6025
    %v6039 = vmul.f32 %v80, %v6025
    %v6040 = vmul.f32 %v81, %v6025
    %v6041 = vmul.f32 %v82, %v6025
    %v6042 = vmul.f32 %v83, %v6025
    %v6043 = vmul.f32 %v84, %v6025
    %v6044 = vadd.f32 %v6006, %v6026
    %v6045 = vadd.f32 %v6007, %v6027
    %v6046 = vadd.f32 %v6008, %v6028
    %v6047 = vadd.f32 %v6009, %v6029
    %v6048 = vadd.f32 %v6010, %v6030
    %v6049 = vadd.f32 %v6011, %v6031
    %v6050 = vadd.f32 %v6012, %v6032
    %v6051 = vadd.f32 %v6013, %v6033
    %v6052 = vadd.f32 %v6014, %v6034
    %v6053 = vadd.f32 %v6015, %v6035
    %v6054 = vadd.f32 %v6016, %v6036
    %v6055 = vadd.f32 %v6017, %v6037
    %v6056 = vadd.f32 %v6018, %v6038
    %v6057 = vadd.f32 %v6019, %v6039
    %v6058 = vadd.f32 %v6020, %v6040
    %v6059 = vadd.f32 %v6021, %v6041
    %v6060 = vadd.f32 %v6022, %v6042
    %v6061 = vadd.f32 %v6023, %v6043
    %s6062 = sld [smem:[#allocation3 + $0x71]]
    %v6063 = vstv %s6062
    %v6064 = vmul.f32 %v87, %v6063
    %v6065 = vmul.f32 %v88, %v6063
    %v6066 = vmul.f32 %v89, %v6063
    %v6067 = vmul.f32 %v90, %v6063
    %v6068 = vmul.f32 %v91, %v6063
    %v6069 = vmul.f32 %v92, %v6063
    %v6070 = vmul.f32 %v93, %v6063
    %v6071 = vmul.f32 %v94, %v6063
    %v6072 = vmul.f32 %v95, %v6063
    %v6073 = vmul.f32 %v96, %v6063
    %v6074 = vmul.f32 %v97, %v6063
    %v6075 = vmul.f32 %v98, %v6063
    %v6076 = vmul.f32 %v99, %v6063
    %v6077 = vmul.f32 %v100, %v6063
    %v6078 = vmul.f32 %v101, %v6063
    %v6079 = vmul.f32 %v102, %v6063
    %v6080 = vmul.f32 %v103, %v6063
    %v6081 = vmul.f32 %v104, %v6063
    %v6082 = vadd.f32 %v6044, %v6064
    %v6083 = vadd.f32 %v6045, %v6065
    %v6084 = vadd.f32 %v6046, %v6066
    %v6085 = vadd.f32 %v6047, %v6067
    %v6086 = vadd.f32 %v6048, %v6068
    %v6087 = vadd.f32 %v6049, %v6069
    %v6088 = vadd.f32 %v6050, %v6070
    %v6089 = vadd.f32 %v6051, %v6071
    %v6090 = vadd.f32 %v6052, %v6072
    %v6091 = vadd.f32 %v6053, %v6073
    %v6092 = vadd.f32 %v6054, %v6074
    %v6093 = vadd.f32 %v6055, %v6075
    %v6094 = vadd.f32 %v6056, %v6076
    %v6095 = vadd.f32 %v6057, %v6077
    %v6096 = vadd.f32 %v6058, %v6078
    %v6097 = vadd.f32 %v6059, %v6079
    %v6098 = vadd.f32 %v6060, %v6080
    %v6099 = vadd.f32 %v6061, %v6081
    %s6100 = sld [smem:[#allocation3 + $0x72]]
    %v6101 = vstv %s6100
    %v6102 = vmul.f32 %v48, %v6101
    %v6103 = vmul.f32 %v49, %v6101
    %v6104 = vmul.f32 %v50, %v6101
    %v6105 = vmul.f32 %v51, %v6101
    %v6106 = vmul.f32 %v52, %v6101
    %v6107 = vmul.f32 %v53, %v6101
    %v6108 = vmul.f32 %v54, %v6101
    %v6109 = vmul.f32 %v55, %v6101
    %v6110 = vmul.f32 %v56, %v6101
    %v6111 = vmul.f32 %v57, %v6101
    %v6112 = vmul.f32 %v58, %v6101
    %v6113 = vmul.f32 %v59, %v6101
    %v6114 = vmul.f32 %v60, %v6101
    %v6115 = vmul.f32 %v61, %v6101
    %v6116 = vmul.f32 %v62, %v6101
    %v6117 = vmul.f32 %v63, %v6101
    %v6118 = vmul.f32 %v64, %v6101
    %v6119 = vmul.f32 %v65, %v6101
    %v6120 = vadd.f32 %v6082, %v6102
    %v6121 = vadd.f32 %v6083, %v6103
    %v6122 = vadd.f32 %v6084, %v6104
    %v6123 = vadd.f32 %v6085, %v6105
    %v6124 = vadd.f32 %v6086, %v6106
    %v6125 = vadd.f32 %v6087, %v6107
    %v6126 = vadd.f32 %v6088, %v6108
    %v6127 = vadd.f32 %v6089, %v6109
    %v6128 = vadd.f32 %v6090, %v6110
    %v6129 = vadd.f32 %v6091, %v6111
    %v6130 = vadd.f32 %v6092, %v6112
    %v6131 = vadd.f32 %v6093, %v6113
    %v6132 = vadd.f32 %v6094, %v6114
    %v6133 = vadd.f32 %v6095, %v6115
    %v6134 = vadd.f32 %v6096, %v6116
    %v6135 = vadd.f32 %v6097, %v6117
    %v6136 = vadd.f32 %v6098, %v6118
    %v6137 = vadd.f32 %v6099, %v6119
    %s6138 = sld [smem:[#allocation3 + $0x73]]
    %v6139 = vstv %s6138
    %v6140 = vmul.f32 %v68, %v6139
    %v6141 = vmul.f32 %v69, %v6139
    %v6142 = vmul.f32 %v70, %v6139
    %v6143 = vmul.f32 %v71, %v6139
    %v6144 = vmul.f32 %v72, %v6139
    %v6145 = vmul.f32 %v73, %v6139
    %v6146 = vmul.f32 %v74, %v6139
    %v6147 = vmul.f32 %v75, %v6139
    %v6148 = vmul.f32 %v76, %v6139
    %v6149 = vmul.f32 %v77, %v6139
    %v6150 = vmul.f32 %v78, %v6139
    %v6151 = vmul.f32 %v79, %v6139
    %v6152 = vmul.f32 %v80, %v6139
    %v6153 = vmul.f32 %v81, %v6139
    %v6154 = vmul.f32 %v82, %v6139
    %v6155 = vmul.f32 %v83, %v6139
    %v6156 = vmul.f32 %v84, %v6139
    %v6157 = vmul.f32 %v85, %v6139
    %v6158 = vadd.f32 %v6120, %v6140
    %v6159 = vadd.f32 %v6121, %v6141
    %v6160 = vadd.f32 %v6122, %v6142
    %v6161 = vadd.f32 %v6123, %v6143
    %v6162 = vadd.f32 %v6124, %v6144
    %v6163 = vadd.f32 %v6125, %v6145
    %v6164 = vadd.f32 %v6126, %v6146
    %v6165 = vadd.f32 %v6127, %v6147
    %v6166 = vadd.f32 %v6128, %v6148
    %v6167 = vadd.f32 %v6129, %v6149
    %v6168 = vadd.f32 %v6130, %v6150
    %v6169 = vadd.f32 %v6131, %v6151
    %v6170 = vadd.f32 %v6132, %v6152
    %v6171 = vadd.f32 %v6133, %v6153
    %v6172 = vadd.f32 %v6134, %v6154
    %v6173 = vadd.f32 %v6135, %v6155
    %v6174 = vadd.f32 %v6136, %v6156
    %v6175 = vadd.f32 %v6137, %v6157
    %s6176 = sld [smem:[#allocation3 + $0x74]]
    %v6177 = vstv %s6176
    %v6178 = vmul.f32 %v88, %v6177
    %v6179 = vmul.f32 %v89, %v6177
    %v6180 = vmul.f32 %v90, %v6177
    %v6181 = vmul.f32 %v91, %v6177
    %v6182 = vmul.f32 %v92, %v6177
    %v6183 = vmul.f32 %v93, %v6177
    %v6184 = vmul.f32 %v94, %v6177
    %v6185 = vmul.f32 %v95, %v6177
    %v6186 = vmul.f32 %v96, %v6177
    %v6187 = vmul.f32 %v97, %v6177
    %v6188 = vmul.f32 %v98, %v6177
    %v6189 = vmul.f32 %v99, %v6177
    %v6190 = vmul.f32 %v100, %v6177
    %v6191 = vmul.f32 %v101, %v6177
    %v6192 = vmul.f32 %v102, %v6177
    %v6193 = vmul.f32 %v103, %v6177
    %v6194 = vmul.f32 %v104, %v6177
    %v6195 = vmul.f32 %v105, %v6177
    %v6196 = vadd.f32 %v6158, %v6178
    %v6197 = vadd.f32 %v6159, %v6179
    %v6198 = vadd.f32 %v6160, %v6180
    %v6199 = vadd.f32 %v6161, %v6181
    %v6200 = vadd.f32 %v6162, %v6182
    %v6201 = vadd.f32 %v6163, %v6183
    %v6202 = vadd.f32 %v6164, %v6184
    %v6203 = vadd.f32 %v6165, %v6185
    %v6204 = vadd.f32 %v6166, %v6186
    %v6205 = vadd.f32 %v6167, %v6187
    %v6206 = vadd.f32 %v6168, %v6188
    %v6207 = vadd.f32 %v6169, %v6189
    %v6208 = vadd.f32 %v6170, %v6190
    %v6209 = vadd.f32 %v6171, %v6191
    %v6210 = vadd.f32 %v6172, %v6192
    %v6211 = vadd.f32 %v6173, %v6193
    %v6212 = vadd.f32 %v6174, %v6194
    %v6213 = vadd.f32 %v6175, %v6195
    %s6214 = sld [smem:[#allocation5 + $0xc]]
    %v6215 = vstv %s6214
    %v6216 = vadd.f32 %v6196, %v6215
    %v6217 = vadd.f32 %v6197, %v6215
    %v6218 = vadd.f32 %v6198, %v6215
    %v6219 = vadd.f32 %v6199, %v6215
    %v6220 = vadd.f32 %v6200, %v6215
    %v6221 = vadd.f32 %v6201, %v6215
    %v6222 = vadd.f32 %v6202, %v6215
    %v6223 = vadd.f32 %v6203, %v6215
    %v6224 = vadd.f32 %v6204, %v6215
    %v6225 = vadd.f32 %v6205, %v6215
    %v6226 = vadd.f32 %v6206, %v6215
    %v6227 = vadd.f32 %v6207, %v6215
    %v6228 = vadd.f32 %v6208, %v6215
    %v6229 = vadd.f32 %v6209, %v6215
    %v6230 = vadd.f32 %v6210, %v6215
    %v6231 = vadd.f32 %v6211, %v6215
    %v6232 = vadd.f32 %v6212, %v6215
    %v6233 = vadd.f32 %v6213, %v6215
    %v6234 = vmax.f32 %v6216, 0.0
    %v6235 = vmax.f32 %v6217, 0.0
    %v6236 = vmax.f32 %v6218, 0.0
    %v6237 = vmax.f32 %v6219, 0.0
    %v6238 = vmax.f32 %v6220, 0.0
    %v6239 = vmax.f32 %v6221, 0.0
    %v6240 = vmax.f32 %v6222, 0.0
    %v6241 = vmax.f32 %v6223, 0.0
    %v6242 = vmax.f32 %v6224, 0.0
    %v6243 = vmax.f32 %v6225, 0.0
    %v6244 = vmax.f32 %v6226, 0.0
    %v6245 = vmax.f32 %v6227, 0.0
    %v6246 = vmax.f32 %v6228, 0.0
    %v6247 = vmax.f32 %v6229, 0.0
    %v6248 = vmax.f32 %v6230, 0.0
    %v6249 = vmax.f32 %v6231, 0.0
    %v6250 = vmax.f32 %v6232, 0.0
    %v6251 = vmax.f32 %v6233, 0.0
    %v6252 = vmax.f32 %v6234, %v6235
    %v6253 = vmax.f32 %v6236, %v6237
    %v6254 = vmax.f32 %v6238, %v6239
    %v6255 = vmax.f32 %v6240, %v6241
    %v6256 = vmax.f32 %v6242, %v6243
    %v6257 = vmax.f32 %v6244, %v6245
    %v6258 = vmax.f32 %v6246, %v6247
    %v6259 = vmax.f32 %v6248, %v6249
    %v6260 = vmax.f32 %v6250, %v6251
    %v6270 = vrot.slane %v6252, 1
    %v6271 = vrot.slane %v6253, 1
    %v6272 = vrot.slane %v6254, 1
    %v6273 = vrot.slane %v6255, 1
    %v6274 = vrot.slane %v6256, 1
    %v6275 = vrot.slane %v6257, 1
    %v6276 = vrot.slane %v6258, 1
    %v6277 = vrot.slane %v6259, 1
    %v6278 = vrot.slane %v6260, 1
    %v6288 = vmax.f32 %v6252, %v6270
    %v6289 = vmax.f32 %v6253, %v6271
    %v6290 = vmax.f32 %v6254, %v6272
    %v6291 = vmax.f32 %v6255, %v6273
    %v6292 = vmax.f32 %v6256, %v6274
    %v6293 = vmax.f32 %v6257, %v6275
    %v6294 = vmax.f32 %v6258, %v6276
    %v6295 = vmax.f32 %v6259, %v6277
    %v6296 = vmax.f32 %v6260, %v6278
    %6298 = vset.pattern.permute.xlu0 0
    %6299 = vperm.xlu0 %6298, %v214
    %v6300 = vpop.permute.xlu0 %6299
    %6303 = vset.pattern.permute.xlu0 0
    %6304 = vperm.xlu0 %6303, %v215
    %v6305 = vpop.permute.xlu0 %6304
    %6308 = vset.pattern.permute.xlu0 0
    %6309 = vperm.xlu0 %6308, %v216
    %v6310 = vpop.permute.xlu0 %6309
    %6313 = vset.pattern.permute.xlu0 0
    %6314 = vperm.xlu0 %6313, %v217
    %v6315 = vpop.permute.xlu0 %6314
    %6318 = vset.pattern.permute.xlu0 0
    %6319 = vperm.xlu0 %6318, %v218
    %v6320 = vpop.permute.xlu0 %6319
    %6323 = vset.pattern.permute.xlu0 0
    %6324 = vperm.xlu0 %6323, %v219
    %v6325 = vpop.permute.xlu0 %6324
    %6328 = vset.pattern.permute.xlu0 0
    %6329 = vperm.xlu0 %6328, %v220
    %v6330 = vpop.permute.xlu0 %6329
    %6333 = vset.pattern.permute.xlu0 0
    %6334 = vperm.xlu0 %6333, %v221
    %v6335 = vpop.permute.xlu0 %6334
    %6338 = vset.pattern.permute.xlu0 0
    %6339 = vperm.xlu0 %6338, %v222
    %v6340 = vpop.permute.xlu0 %6339
    %v6342 = vmul.f32 %v6288, %v6300
    %v6343 = vmul.f32 %v6289, %v6305
    %v6344 = vmul.f32 %v6290, %v6310
    %v6345 = vmul.f32 %v6291, %v6315
    %v6346 = vmul.f32 %v6292, %v6320
    %v6347 = vmul.f32 %v6293, %v6325
    %v6348 = vmul.f32 %v6294, %v6330
    %v6349 = vmul.f32 %v6295, %v6335
    %v6350 = vmul.f32 %v6296, %v6340
    %v6351 = vadd.f32 %v5881, %v6342
    %v6352 = vadd.f32 %v5882, %v6343
    %v6353 = vadd.f32 %v5883, %v6344
    %v6354 = vadd.f32 %v5884, %v6345
    %v6355 = vadd.f32 %v5885, %v6346
    %v6356 = vadd.f32 %v5886, %v6347
    %v6357 = vadd.f32 %v5887, %v6348
    %v6358 = vadd.f32 %v5888, %v6349
    %v6359 = vadd.f32 %v5889, %v6350
    %s6360 = sld [smem:[#allocation3 + $0x75]]
    %v6361 = vstv %s6360
    %v6362 = vmul.f32 %v46, %v6361
    %v6363 = vmul.f32 %v47, %v6361
    %v6364 = vmul.f32 %v48, %v6361
    %v6365 = vmul.f32 %v49, %v6361
    %v6366 = vmul.f32 %v50, %v6361
    %v6367 = vmul.f32 %v51, %v6361
    %v6368 = vmul.f32 %v52, %v6361
    %v6369 = vmul.f32 %v53, %v6361
    %v6370 = vmul.f32 %v54, %v6361
    %v6371 = vmul.f32 %v55, %v6361
    %v6372 = vmul.f32 %v56, %v6361
    %v6373 = vmul.f32 %v57, %v6361
    %v6374 = vmul.f32 %v58, %v6361
    %v6375 = vmul.f32 %v59, %v6361
    %v6376 = vmul.f32 %v60, %v6361
    %v6377 = vmul.f32 %v61, %v6361
    %v6378 = vmul.f32 %v62, %v6361
    %v6379 = vmul.f32 %v63, %v6361
    %s6380 = sld [smem:[#allocation3 + $0x76]]
    %v6381 = vstv %s6380
    %v6382 = vmul.f32 %v66, %v6381
    %v6383 = vmul.f32 %v67, %v6381
    %v6384 = vmul.f32 %v68, %v6381
    %v6385 = vmul.f32 %v69, %v6381
    %v6386 = vmul.f32 %v70, %v6381
    %v6387 = vmul.f32 %v71, %v6381
    %v6388 = vmul.f32 %v72, %v6381
    %v6389 = vmul.f32 %v73, %v6381
    %v6390 = vmul.f32 %v74, %v6381
    %v6391 = vmul.f32 %v75, %v6381
    %v6392 = vmul.f32 %v76, %v6381
    %v6393 = vmul.f32 %v77, %v6381
    %v6394 = vmul.f32 %v78, %v6381
    %v6395 = vmul.f32 %v79, %v6381
    %v6396 = vmul.f32 %v80, %v6381
    %v6397 = vmul.f32 %v81, %v6381
    %v6398 = vmul.f32 %v82, %v6381
    %v6399 = vmul.f32 %v83, %v6381
    %v6400 = vadd.f32 %v6362, %v6382
    %v6401 = vadd.f32 %v6363, %v6383
    %v6402 = vadd.f32 %v6364, %v6384
    %v6403 = vadd.f32 %v6365, %v6385
    %v6404 = vadd.f32 %v6366, %v6386
    %v6405 = vadd.f32 %v6367, %v6387
    %v6406 = vadd.f32 %v6368, %v6388
    %v6407 = vadd.f32 %v6369, %v6389
    %v6408 = vadd.f32 %v6370, %v6390
    %v6409 = vadd.f32 %v6371, %v6391
    %v6410 = vadd.f32 %v6372, %v6392
    %v6411 = vadd.f32 %v6373, %v6393
    %v6412 = vadd.f32 %v6374, %v6394
    %v6413 = vadd.f32 %v6375, %v6395
    %v6414 = vadd.f32 %v6376, %v6396
    %v6415 = vadd.f32 %v6377, %v6397
    %v6416 = vadd.f32 %v6378, %v6398
    %v6417 = vadd.f32 %v6379, %v6399
    %s6418 = sld [smem:[#allocation3 + $0x77]]
    %v6419 = vstv %s6418
    %v6420 = vmul.f32 %v86, %v6419
    %v6421 = vmul.f32 %v87, %v6419
    %v6422 = vmul.f32 %v88, %v6419
    %v6423 = vmul.f32 %v89, %v6419
    %v6424 = vmul.f32 %v90, %v6419
    %v6425 = vmul.f32 %v91, %v6419
    %v6426 = vmul.f32 %v92, %v6419
    %v6427 = vmul.f32 %v93, %v6419
    %v6428 = vmul.f32 %v94, %v6419
    %v6429 = vmul.f32 %v95, %v6419
    %v6430 = vmul.f32 %v96, %v6419
    %v6431 = vmul.f32 %v97, %v6419
    %v6432 = vmul.f32 %v98, %v6419
    %v6433 = vmul.f32 %v99, %v6419
    %v6434 = vmul.f32 %v100, %v6419
    %v6435 = vmul.f32 %v101, %v6419
    %v6436 = vmul.f32 %v102, %v6419
    %v6437 = vmul.f32 %v103, %v6419
    %v6438 = vadd.f32 %v6400, %v6420
    %v6439 = vadd.f32 %v6401, %v6421
    %v6440 = vadd.f32 %v6402, %v6422
    %v6441 = vadd.f32 %v6403, %v6423
    %v6442 = vadd.f32 %v6404, %v6424
    %v6443 = vadd.f32 %v6405, %v6425
    %v6444 = vadd.f32 %v6406, %v6426
    %v6445 = vadd.f32 %v6407, %v6427
    %v6446 = vadd.f32 %v6408, %v6428
    %v6447 = vadd.f32 %v6409, %v6429
    %v6448 = vadd.f32 %v6410, %v6430
    %v6449 = vadd.f32 %v6411, %v6431
    %v6450 = vadd.f32 %v6412, %v6432
    %v6451 = vadd.f32 %v6413, %v6433
    %v6452 = vadd.f32 %v6414, %v6434
    %v6453 = vadd.f32 %v6415, %v6435
    %v6454 = vadd.f32 %v6416, %v6436
    %v6455 = vadd.f32 %v6417, %v6437
    %s6456 = sld [smem:[#allocation3 + $0x78]]
    %v6457 = vstv %s6456
    %v6458 = vmul.f32 %v47, %v6457
    %v6459 = vmul.f32 %v48, %v6457
    %v6460 = vmul.f32 %v49, %v6457
    %v6461 = vmul.f32 %v50, %v6457
    %v6462 = vmul.f32 %v51, %v6457
    %v6463 = vmul.f32 %v52, %v6457
    %v6464 = vmul.f32 %v53, %v6457
    %v6465 = vmul.f32 %v54, %v6457
    %v6466 = vmul.f32 %v55, %v6457
    %v6467 = vmul.f32 %v56, %v6457
    %v6468 = vmul.f32 %v57, %v6457
    %v6469 = vmul.f32 %v58, %v6457
    %v6470 = vmul.f32 %v59, %v6457
    %v6471 = vmul.f32 %v60, %v6457
    %v6472 = vmul.f32 %v61, %v6457
    %v6473 = vmul.f32 %v62, %v6457
    %v6474 = vmul.f32 %v63, %v6457
    %v6475 = vmul.f32 %v64, %v6457
    %v6476 = vadd.f32 %v6438, %v6458
    %v6477 = vadd.f32 %v6439, %v6459
    %v6478 = vadd.f32 %v6440, %v6460
    %v6479 = vadd.f32 %v6441, %v6461
    %v6480 = vadd.f32 %v6442, %v6462
    %v6481 = vadd.f32 %v6443, %v6463
    %v6482 = vadd.f32 %v6444, %v6464
    %v6483 = vadd.f32 %v6445, %v6465
    %v6484 = vadd.f32 %v6446, %v6466
    %v6485 = vadd.f32 %v6447, %v6467
    %v6486 = vadd.f32 %v6448, %v6468
    %v6487 = vadd.f32 %v6449, %v6469
    %v6488 = vadd.f32 %v6450, %v6470
    %v6489 = vadd.f32 %v6451, %v6471
    %v6490 = vadd.f32 %v6452, %v6472
    %v6491 = vadd.f32 %v6453, %v6473
    %v6492 = vadd.f32 %v6454, %v6474
    %v6493 = vadd.f32 %v6455, %v6475
    %s6494 = sld [smem:[#allocation3 + $0x79]]
    %v6495 = vstv %s6494
    %v6496 = vmul.f32 %v67, %v6495
    %v6497 = vmul.f32 %v68, %v6495
    %v6498 = vmul.f32 %v69, %v6495
    %v6499 = vmul.f32 %v70, %v6495
    %v6500 = vmul.f32 %v71, %v6495
    %v6501 = vmul.f32 %v72, %v6495
    %v6502 = vmul.f32 %v73, %v6495
    %v6503 = vmul.f32 %v74, %v6495
    %v6504 = vmul.f32 %v75, %v6495
    %v6505 = vmul.f32 %v76, %v6495
    %v6506 = vmul.f32 %v77, %v6495
    %v6507 = vmul.f32 %v78, %v6495
    %v6508 = vmul.f32 %v79, %v6495
    %v6509 = vmul.f32 %v80, %v6495
    %v6510 = vmul.f32 %v81, %v6495
    %v6511 = vmul.f32 %v82, %v6495
    %v6512 = vmul.f32 %v83, %v6495
    %v6513 = vmul.f32 %v84, %v6495
    %v6514 = vadd.f32 %v6476, %v6496
    %v6515 = vadd.f32 %v6477, %v6497
    %v6516 = vadd.f32 %v6478, %v6498
    %v6517 = vadd.f32 %v6479, %v6499
    %v6518 = vadd.f32 %v6480, %v6500
    %v6519 = vadd.f32 %v6481, %v6501
    %v6520 = vadd.f32 %v6482, %v6502
    %v6521 = vadd.f32 %v6483, %v6503
    %v6522 = vadd.f32 %v6484, %v6504
    %v6523 = vadd.f32 %v6485, %v6505
    %v6524 = vadd.f32 %v6486, %v6506
    %v6525 = vadd.f32 %v6487, %v6507
    %v6526 = vadd.f32 %v6488, %v6508
    %v6527 = vadd.f32 %v6489, %v6509
    %v6528 = vadd.f32 %v6490, %v6510
    %v6529 = vadd.f32 %v6491, %v6511
    %v6530 = vadd.f32 %v6492, %v6512
    %v6531 = vadd.f32 %v6493, %v6513
    %s6532 = sld [smem:[#allocation3 + $0x7a]]
    %v6533 = vstv %s6532
    %v6534 = vmul.f32 %v87, %v6533
    %v6535 = vmul.f32 %v88, %v6533
    %v6536 = vmul.f32 %v89, %v6533
    %v6537 = vmul.f32 %v90, %v6533
    %v6538 = vmul.f32 %v91, %v6533
    %v6539 = vmul.f32 %v92, %v6533
    %v6540 = vmul.f32 %v93, %v6533
    %v6541 = vmul.f32 %v94, %v6533
    %v6542 = vmul.f32 %v95, %v6533
    %v6543 = vmul.f32 %v96, %v6533
    %v6544 = vmul.f32 %v97, %v6533
    %v6545 = vmul.f32 %v98, %v6533
    %v6546 = vmul.f32 %v99, %v6533
    %v6547 = vmul.f32 %v100, %v6533
    %v6548 = vmul.f32 %v101, %v6533
    %v6549 = vmul.f32 %v102, %v6533
    %v6550 = vmul.f32 %v103, %v6533
    %v6551 = vmul.f32 %v104, %v6533
    %v6552 = vadd.f32 %v6514, %v6534
    %v6553 = vadd.f32 %v6515, %v6535
    %v6554 = vadd.f32 %v6516, %v6536
    %v6555 = vadd.f32 %v6517, %v6537
    %v6556 = vadd.f32 %v6518, %v6538
    %v6557 = vadd.f32 %v6519, %v6539
    %v6558 = vadd.f32 %v6520, %v6540
    %v6559 = vadd.f32 %v6521, %v6541
    %v6560 = vadd.f32 %v6522, %v6542
    %v6561 = vadd.f32 %v6523, %v6543
    %v6562 = vadd.f32 %v6524, %v6544
    %v6563 = vadd.f32 %v6525, %v6545
    %v6564 = vadd.f32 %v6526, %v6546
    %v6565 = vadd.f32 %v6527, %v6547
    %v6566 = vadd.f32 %v6528, %v6548
    %v6567 = vadd.f32 %v6529, %v6549
    %v6568 = vadd.f32 %v6530, %v6550
    %v6569 = vadd.f32 %v6531, %v6551
    %s6570 = sld [smem:[#allocation3 + $0x7b]]
    %v6571 = vstv %s6570
    %v6572 = vmul.f32 %v48, %v6571
    %v6573 = vmul.f32 %v49, %v6571
    %v6574 = vmul.f32 %v50, %v6571
    %v6575 = vmul.f32 %v51, %v6571
    %v6576 = vmul.f32 %v52, %v6571
    %v6577 = vmul.f32 %v53, %v6571
    %v6578 = vmul.f32 %v54, %v6571
    %v6579 = vmul.f32 %v55, %v6571
    %v6580 = vmul.f32 %v56, %v6571
    %v6581 = vmul.f32 %v57, %v6571
    %v6582 = vmul.f32 %v58, %v6571
    %v6583 = vmul.f32 %v59, %v6571
    %v6584 = vmul.f32 %v60, %v6571
    %v6585 = vmul.f32 %v61, %v6571
    %v6586 = vmul.f32 %v62, %v6571
    %v6587 = vmul.f32 %v63, %v6571
    %v6588 = vmul.f32 %v64, %v6571
    %v6589 = vmul.f32 %v65, %v6571
    %v6590 = vadd.f32 %v6552, %v6572
    %v6591 = vadd.f32 %v6553, %v6573
    %v6592 = vadd.f32 %v6554, %v6574
    %v6593 = vadd.f32 %v6555, %v6575
    %v6594 = vadd.f32 %v6556, %v6576
    %v6595 = vadd.f32 %v6557, %v6577
    %v6596 = vadd.f32 %v6558, %v6578
    %v6597 = vadd.f32 %v6559, %v6579
    %v6598 = vadd.f32 %v6560, %v6580
    %v6599 = vadd.f32 %v6561, %v6581
    %v6600 = vadd.f32 %v6562, %v6582
    %v6601 = vadd.f32 %v6563, %v6583
    %v6602 = vadd.f32 %v6564, %v6584
    %v6603 = vadd.f32 %v6565, %v6585
    %v6604 = vadd.f32 %v6566, %v6586
    %v6605 = vadd.f32 %v6567, %v6587
    %v6606 = vadd.f32 %v6568, %v6588
    %v6607 = vadd.f32 %v6569, %v6589
    %s6608 = sld [smem:[#allocation3 + $0x7c]]
    %v6609 = vstv %s6608
    %v6610 = vmul.f32 %v68, %v6609
    %v6611 = vmul.f32 %v69, %v6609
    %v6612 = vmul.f32 %v70, %v6609
    %v6613 = vmul.f32 %v71, %v6609
    %v6614 = vmul.f32 %v72, %v6609
    %v6615 = vmul.f32 %v73, %v6609
    %v6616 = vmul.f32 %v74, %v6609
    %v6617 = vmul.f32 %v75, %v6609
    %v6618 = vmul.f32 %v76, %v6609
    %v6619 = vmul.f32 %v77, %v6609
    %v6620 = vmul.f32 %v78, %v6609
    %v6621 = vmul.f32 %v79, %v6609
    %v6622 = vmul.f32 %v80, %v6609
    %v6623 = vmul.f32 %v81, %v6609
    %v6624 = vmul.f32 %v82, %v6609
    %v6625 = vmul.f32 %v83, %v6609
    %v6626 = vmul.f32 %v84, %v6609
    %v6627 = vmul.f32 %v85, %v6609
    %v6628 = vadd.f32 %v6590, %v6610
    %v6629 = vadd.f32 %v6591, %v6611
    %v6630 = vadd.f32 %v6592, %v6612
    %v6631 = vadd.f32 %v6593, %v6613
    %v6632 = vadd.f32 %v6594, %v6614
    %v6633 = vadd.f32 %v6595, %v6615
    %v6634 = vadd.f32 %v6596, %v6616
    %v6635 = vadd.f32 %v6597, %v6617
    %v6636 = vadd.f32 %v6598, %v6618
    %v6637 = vadd.f32 %v6599, %v6619
    %v6638 = vadd.f32 %v6600, %v6620
    %v6639 = vadd.f32 %v6601, %v6621
    %v6640 = vadd.f32 %v6602, %v6622
    %v6641 = vadd.f32 %v6603, %v6623
    %v6642 = vadd.f32 %v6604, %v6624
    %v6643 = vadd.f32 %v6605, %v6625
    %v6644 = vadd.f32 %v6606, %v6626
    %v6645 = vadd.f32 %v6607, %v6627
    %s6646 = sld [smem:[#allocation3 + $0x7d]]
    %v6647 = vstv %s6646
    %v6648 = vmul.f32 %v88, %v6647
    %v6649 = vmul.f32 %v89, %v6647
    %v6650 = vmul.f32 %v90, %v6647
    %v6651 = vmul.f32 %v91, %v6647
    %v6652 = vmul.f32 %v92, %v6647
    %v6653 = vmul.f32 %v93, %v6647
    %v6654 = vmul.f32 %v94, %v6647
    %v6655 = vmul.f32 %v95, %v6647
    %v6656 = vmul.f32 %v96, %v6647
    %v6657 = vmul.f32 %v97, %v6647
    %v6658 = vmul.f32 %v98, %v6647
    %v6659 = vmul.f32 %v99, %v6647
    %v6660 = vmul.f32 %v100, %v6647
    %v6661 = vmul.f32 %v101, %v6647
    %v6662 = vmul.f32 %v102, %v6647
    %v6663 = vmul.f32 %v103, %v6647
    %v6664 = vmul.f32 %v104, %v6647
    %v6665 = vmul.f32 %v105, %v6647
    %v6666 = vadd.f32 %v6628, %v6648
    %v6667 = vadd.f32 %v6629, %v6649
    %v6668 = vadd.f32 %v6630, %v6650
    %v6669 = vadd.f32 %v6631, %v6651
    %v6670 = vadd.f32 %v6632, %v6652
    %v6671 = vadd.f32 %v6633, %v6653
    %v6672 = vadd.f32 %v6634, %v6654
    %v6673 = vadd.f32 %v6635, %v6655
    %v6674 = vadd.f32 %v6636, %v6656
    %v6675 = vadd.f32 %v6637, %v6657
    %v6676 = vadd.f32 %v6638, %v6658
    %v6677 = vadd.f32 %v6639, %v6659
    %v6678 = vadd.f32 %v6640, %v6660
    %v6679 = vadd.f32 %v6641, %v6661
    %v6680 = vadd.f32 %v6642, %v6662
    %v6681 = vadd.f32 %v6643, %v6663
    %v6682 = vadd.f32 %v6644, %v6664
    %v6683 = vadd.f32 %v6645, %v6665
    %s6684 = sld [smem:[#allocation5 + $0xd]]
    %v6685 = vstv %s6684
    %v6686 = vadd.f32 %v6666, %v6685
    %v6687 = vadd.f32 %v6667, %v6685
    %v6688 = vadd.f32 %v6668, %v6685
    %v6689 = vadd.f32 %v6669, %v6685
    %v6690 = vadd.f32 %v6670, %v6685
    %v6691 = vadd.f32 %v6671, %v6685
    %v6692 = vadd.f32 %v6672, %v6685
    %v6693 = vadd.f32 %v6673, %v6685
    %v6694 = vadd.f32 %v6674, %v6685
    %v6695 = vadd.f32 %v6675, %v6685
    %v6696 = vadd.f32 %v6676, %v6685
    %v6697 = vadd.f32 %v6677, %v6685
    %v6698 = vadd.f32 %v6678, %v6685
    %v6699 = vadd.f32 %v6679, %v6685
    %v6700 = vadd.f32 %v6680, %v6685
    %v6701 = vadd.f32 %v6681, %v6685
    %v6702 = vadd.f32 %v6682, %v6685
    %v6703 = vadd.f32 %v6683, %v6685
    %v6704 = vmax.f32 %v6686, 0.0
    %v6705 = vmax.f32 %v6687, 0.0
    %v6706 = vmax.f32 %v6688, 0.0
    %v6707 = vmax.f32 %v6689, 0.0
    %v6708 = vmax.f32 %v6690, 0.0
    %v6709 = vmax.f32 %v6691, 0.0
    %v6710 = vmax.f32 %v6692, 0.0
    %v6711 = vmax.f32 %v6693, 0.0
    %v6712 = vmax.f32 %v6694, 0.0
    %v6713 = vmax.f32 %v6695, 0.0
    %v6714 = vmax.f32 %v6696, 0.0
    %v6715 = vmax.f32 %v6697, 0.0
    %v6716 = vmax.f32 %v6698, 0.0
    %v6717 = vmax.f32 %v6699, 0.0
    %v6718 = vmax.f32 %v6700, 0.0
    %v6719 = vmax.f32 %v6701, 0.0
    %v6720 = vmax.f32 %v6702, 0.0
    %v6721 = vmax.f32 %v6703, 0.0
    %v6722 = vmax.f32 %v6704, %v6705
    %v6723 = vmax.f32 %v6706, %v6707
    %v6724 = vmax.f32 %v6708, %v6709
    %v6725 = vmax.f32 %v6710, %v6711
    %v6726 = vmax.f32 %v6712, %v6713
    %v6727 = vmax.f32 %v6714, %v6715
    %v6728 = vmax.f32 %v6716, %v6717
    %v6729 = vmax.f32 %v6718, %v6719
    %v6730 = vmax.f32 %v6720, %v6721
    %v6740 = vrot.slane %v6722, 1
    %v6741 = vrot.slane %v6723, 1
    %v6742 = vrot.slane %v6724, 1
    %v6743 = vrot.slane %v6725, 1
    %v6744 = vrot.slane %v6726, 1
    %v6745 = vrot.slane %v6727, 1
    %v6746 = vrot.slane %v6728, 1
    %v6747 = vrot.slane %v6729, 1
    %v6748 = vrot.slane %v6730, 1
    %v6758 = vmax.f32 %v6722, %v6740
    %v6759 = vmax.f32 %v6723, %v6741
    %v6760 = vmax.f32 %v6724, %v6742
    %v6761 = vmax.f32 %v6725, %v6743
    %v6762 = vmax.f32 %v6726, %v6744
    %v6763 = vmax.f32 %v6727, %v6745
    %v6764 = vmax.f32 %v6728, %v6746
    %v6765 = vmax.f32 %v6729, %v6747
    %v6766 = vmax.f32 %v6730, %v6748
    %6768 = vset.pattern.permute.xlu0 0
    %6769 = vperm.xlu0 %6768, %v223
    %v6770 = vpop.permute.xlu0 %6769
    %6773 = vset.pattern.permute.xlu0 0
    %6774 = vperm.xlu0 %6773, %v224
    %v6775 = vpop.permute.xlu0 %6774
    %6778 = vset.pattern.permute.xlu0 0
    %6779 = vperm.xlu0 %6778, %v225
    %v6780 = vpop.permute.xlu0 %6779
    %6783 = vset.pattern.permute.xlu0 0
    %6784 = vperm.xlu0 %6783, %v226
    %v6785 = vpop.permute.xlu0 %6784
    %6788 = vset.pattern.permute.xlu0 0
    %6789 = vperm.xlu0 %6788, %v227
    %v6790 = vpop.permute.xlu0 %6789
    %6793 = vset.pattern.permute.xlu0 0
    %6794 = vperm.xlu0 %6793, %v228
    %v6795 = vpop.permute.xlu0 %6794
    %6798 = vset.pattern.permute.xlu0 0
    %6799 = vperm.xlu0 %6798, %v229
    %v6800 = vpop.permute.xlu0 %6799
    %6803 = vset.pattern.permute.xlu0 0
    %6804 = vperm.xlu0 %6803, %v230
    %v6805 = vpop.permute.xlu0 %6804
    %6808 = vset.pattern.permute.xlu0 0
    %6809 = vperm.xlu0 %6808, %v231
    %v6810 = vpop.permute.xlu0 %6809
    %v6812 = vmul.f32 %v6758, %v6770
    %v6813 = vmul.f32 %v6759, %v6775
    %v6814 = vmul.f32 %v6760, %v6780
    %v6815 = vmul.f32 %v6761, %v6785
    %v6816 = vmul.f32 %v6762, %v6790
    %v6817 = vmul.f32 %v6763, %v6795
    %v6818 = vmul.f32 %v6764, %v6800
    %v6819 = vmul.f32 %v6765, %v6805
    %v6820 = vmul.f32 %v6766, %v6810
    %v6821 = vadd.f32 %v6351, %v6812
    %v6822 = vadd.f32 %v6352, %v6813
    %v6823 = vadd.f32 %v6353, %v6814
    %v6824 = vadd.f32 %v6354, %v6815
    %v6825 = vadd.f32 %v6355, %v6816
    %v6826 = vadd.f32 %v6356, %v6817
    %v6827 = vadd.f32 %v6357, %v6818
    %v6828 = vadd.f32 %v6358, %v6819
    %v6829 = vadd.f32 %v6359, %v6820
    %s6830 = sld [smem:[#allocation3 + $0x7e]]
    %v6831 = vstv %s6830
    %v6832 = vmul.f32 %v46, %v6831
    %v6833 = vmul.f32 %v47, %v6831
    %v6834 = vmul.f32 %v48, %v6831
    %v6835 = vmul.f32 %v49, %v6831
    %v6836 = vmul.f32 %v50, %v6831
    %v6837 = vmul.f32 %v51, %v6831
    %v6838 = vmul.f32 %v52, %v6831
    %v6839 = vmul.f32 %v53, %v6831
    %v6840 = vmul.f32 %v54, %v6831
    %v6841 = vmul.f32 %v55, %v6831
    %v6842 = vmul.f32 %v56, %v6831
    %v6843 = vmul.f32 %v57, %v6831
    %v6844 = vmul.f32 %v58, %v6831
    %v6845 = vmul.f32 %v59, %v6831
    %v6846 = vmul.f32 %v60, %v6831
    %v6847 = vmul.f32 %v61, %v6831
    %v6848 = vmul.f32 %v62, %v6831
    %v6849 = vmul.f32 %v63, %v6831
    %s6850 = sld [smem:[#allocation3 + $0x7f]]
    %v6851 = vstv %s6850
    %v6852 = vmul.f32 %v66, %v6851
    %v6853 = vmul.f32 %v67, %v6851
    %v6854 = vmul.f32 %v68, %v6851
    %v6855 = vmul.f32 %v69, %v6851
    %v6856 = vmul.f32 %v70, %v6851
    %v6857 = vmul.f32 %v71, %v6851
    %v6858 = vmul.f32 %v72, %v6851
    %v6859 = vmul.f32 %v73, %v6851
    %v6860 = vmul.f32 %v74, %v6851
    %v6861 = vmul.f32 %v75, %v6851
    %v6862 = vmul.f32 %v76, %v6851
    %v6863 = vmul.f32 %v77, %v6851
    %v6864 = vmul.f32 %v78, %v6851
    %v6865 = vmul.f32 %v79, %v6851
    %v6866 = vmul.f32 %v80, %v6851
    %v6867 = vmul.f32 %v81, %v6851
    %v6868 = vmul.f32 %v82, %v6851
    %v6869 = vmul.f32 %v83, %v6851
    %v6870 = vadd.f32 %v6832, %v6852
    %v6871 = vadd.f32 %v6833, %v6853
    %v6872 = vadd.f32 %v6834, %v6854
    %v6873 = vadd.f32 %v6835, %v6855
    %v6874 = vadd.f32 %v6836, %v6856
    %v6875 = vadd.f32 %v6837, %v6857
    %v6876 = vadd.f32 %v6838, %v6858
    %v6877 = vadd.f32 %v6839, %v6859
    %v6878 = vadd.f32 %v6840, %v6860
    %v6879 = vadd.f32 %v6841, %v6861
    %v6880 = vadd.f32 %v6842, %v6862
    %v6881 = vadd.f32 %v6843, %v6863
    %v6882 = vadd.f32 %v6844, %v6864
    %v6883 = vadd.f32 %v6845, %v6865
    %v6884 = vadd.f32 %v6846, %v6866
    %v6885 = vadd.f32 %v6847, %v6867
    %v6886 = vadd.f32 %v6848, %v6868
    %v6887 = vadd.f32 %v6849, %v6869
    %s6888 = sld [smem:[#allocation3 + $0x80]]
    %v6889 = vstv %s6888
    %v6890 = vmul.f32 %v86, %v6889
    %v6891 = vmul.f32 %v87, %v6889
    %v6892 = vmul.f32 %v88, %v6889
    %v6893 = vmul.f32 %v89, %v6889
    %v6894 = vmul.f32 %v90, %v6889
    %v6895 = vmul.f32 %v91, %v6889
    %v6896 = vmul.f32 %v92, %v6889
    %v6897 = vmul.f32 %v93, %v6889
    %v6898 = vmul.f32 %v94, %v6889
    %v6899 = vmul.f32 %v95, %v6889
    %v6900 = vmul.f32 %v96, %v6889
    %v6901 = vmul.f32 %v97, %v6889
    %v6902 = vmul.f32 %v98, %v6889
    %v6903 = vmul.f32 %v99, %v6889
    %v6904 = vmul.f32 %v100, %v6889
    %v6905 = vmul.f32 %v101, %v6889
    %v6906 = vmul.f32 %v102, %v6889
    %v6907 = vmul.f32 %v103, %v6889
    %v6908 = vadd.f32 %v6870, %v6890
    %v6909 = vadd.f32 %v6871, %v6891
    %v6910 = vadd.f32 %v6872, %v6892
    %v6911 = vadd.f32 %v6873, %v6893
    %v6912 = vadd.f32 %v6874, %v6894
    %v6913 = vadd.f32 %v6875, %v6895
    %v6914 = vadd.f32 %v6876, %v6896
    %v6915 = vadd.f32 %v6877, %v6897
    %v6916 = vadd.f32 %v6878, %v6898
    %v6917 = vadd.f32 %v6879, %v6899
    %v6918 = vadd.f32 %v6880, %v6900
    %v6919 = vadd.f32 %v6881, %v6901
    %v6920 = vadd.f32 %v6882, %v6902
    %v6921 = vadd.f32 %v6883, %v6903
    %v6922 = vadd.f32 %v6884, %v6904
    %v6923 = vadd.f32 %v6885, %v6905
    %v6924 = vadd.f32 %v6886, %v6906
    %v6925 = vadd.f32 %v6887, %v6907
    %s6926 = sld [smem:[#allocation3 + $0x81]]
    %v6927 = vstv %s6926
    %v6928 = vmul.f32 %v47, %v6927
    %v6929 = vmul.f32 %v48, %v6927
    %v6930 = vmul.f32 %v49, %v6927
    %v6931 = vmul.f32 %v50, %v6927
    %v6932 = vmul.f32 %v51, %v6927
    %v6933 = vmul.f32 %v52, %v6927
    %v6934 = vmul.f32 %v53, %v6927
    %v6935 = vmul.f32 %v54, %v6927
    %v6936 = vmul.f32 %v55, %v6927
    %v6937 = vmul.f32 %v56, %v6927
    %v6938 = vmul.f32 %v57, %v6927
    %v6939 = vmul.f32 %v58, %v6927
    %v6940 = vmul.f32 %v59, %v6927
    %v6941 = vmul.f32 %v60, %v6927
    %v6942 = vmul.f32 %v61, %v6927
    %v6943 = vmul.f32 %v62, %v6927
    %v6944 = vmul.f32 %v63, %v6927
    %v6945 = vmul.f32 %v64, %v6927
    %v6946 = vadd.f32 %v6908, %v6928
    %v6947 = vadd.f32 %v6909, %v6929
    %v6948 = vadd.f32 %v6910, %v6930
    %v6949 = vadd.f32 %v6911, %v6931
    %v6950 = vadd.f32 %v6912, %v6932
    %v6951 = vadd.f32 %v6913, %v6933
    %v6952 = vadd.f32 %v6914, %v6934
    %v6953 = vadd.f32 %v6915, %v6935
    %v6954 = vadd.f32 %v6916, %v6936
    %v6955 = vadd.f32 %v6917, %v6937
    %v6956 = vadd.f32 %v6918, %v6938
    %v6957 = vadd.f32 %v6919, %v6939
    %v6958 = vadd.f32 %v6920, %v6940
    %v6959 = vadd.f32 %v6921, %v6941
    %v6960 = vadd.f32 %v6922, %v6942
    %v6961 = vadd.f32 %v6923, %v6943
    %v6962 = vadd.f32 %v6924, %v6944
    %v6963 = vadd.f32 %v6925, %v6945
    %s6964 = sld [smem:[#allocation3 + $0x82]]
    %v6965 = vstv %s6964
    %v6966 = vmul.f32 %v67, %v6965
    %v6967 = vmul.f32 %v68, %v6965
    %v6968 = vmul.f32 %v69, %v6965
    %v6969 = vmul.f32 %v70, %v6965
    %v6970 = vmul.f32 %v71, %v6965
    %v6971 = vmul.f32 %v72, %v6965
    %v6972 = vmul.f32 %v73, %v6965
    %v6973 = vmul.f32 %v74, %v6965
    %v6974 = vmul.f32 %v75, %v6965
    %v6975 = vmul.f32 %v76, %v6965
    %v6976 = vmul.f32 %v77, %v6965
    %v6977 = vmul.f32 %v78, %v6965
    %v6978 = vmul.f32 %v79, %v6965
    %v6979 = vmul.f32 %v80, %v6965
    %v6980 = vmul.f32 %v81, %v6965
    %v6981 = vmul.f32 %v82, %v6965
    %v6982 = vmul.f32 %v83, %v6965
    %v6983 = vmul.f32 %v84, %v6965
    %v6984 = vadd.f32 %v6946, %v6966
    %v6985 = vadd.f32 %v6947, %v6967
    %v6986 = vadd.f32 %v6948, %v6968
    %v6987 = vadd.f32 %v6949, %v6969
    %v6988 = vadd.f32 %v6950, %v6970
    %v6989 = vadd.f32 %v6951, %v6971
    %v6990 = vadd.f32 %v6952, %v6972
    %v6991 = vadd.f32 %v6953, %v6973
    %v6992 = vadd.f32 %v6954, %v6974
    %v6993 = vadd.f32 %v6955, %v6975
    %v6994 = vadd.f32 %v6956, %v6976
    %v6995 = vadd.f32 %v6957, %v6977
    %v6996 = vadd.f32 %v6958, %v6978
    %v6997 = vadd.f32 %v6959, %v6979
    %v6998 = vadd.f32 %v6960, %v6980
    %v6999 = vadd.f32 %v6961, %v6981
    %v7000 = vadd.f32 %v6962, %v6982
    %v7001 = vadd.f32 %v6963, %v6983
    %s7002 = sld [smem:[#allocation3 + $0x83]]
    %v7003 = vstv %s7002
    %v7004 = vmul.f32 %v87, %v7003
    %v7005 = vmul.f32 %v88, %v7003
    %v7006 = vmul.f32 %v89, %v7003
    %v7007 = vmul.f32 %v90, %v7003
    %v7008 = vmul.f32 %v91, %v7003
    %v7009 = vmul.f32 %v92, %v7003
    %v7010 = vmul.f32 %v93, %v7003
    %v7011 = vmul.f32 %v94, %v7003
    %v7012 = vmul.f32 %v95, %v7003
    %v7013 = vmul.f32 %v96, %v7003
    %v7014 = vmul.f32 %v97, %v7003
    %v7015 = vmul.f32 %v98, %v7003
    %v7016 = vmul.f32 %v99, %v7003
    %v7017 = vmul.f32 %v100, %v7003
    %v7018 = vmul.f32 %v101, %v7003
    %v7019 = vmul.f32 %v102, %v7003
    %v7020 = vmul.f32 %v103, %v7003
    %v7021 = vmul.f32 %v104, %v7003
    %v7022 = vadd.f32 %v6984, %v7004
    %v7023 = vadd.f32 %v6985, %v7005
    %v7024 = vadd.f32 %v6986, %v7006
    %v7025 = vadd.f32 %v6987, %v7007
    %v7026 = vadd.f32 %v6988, %v7008
    %v7027 = vadd.f32 %v6989, %v7009
    %v7028 = vadd.f32 %v6990, %v7010
    %v7029 = vadd.f32 %v6991, %v7011
    %v7030 = vadd.f32 %v6992, %v7012
    %v7031 = vadd.f32 %v6993, %v7013
    %v7032 = vadd.f32 %v6994, %v7014
    %v7033 = vadd.f32 %v6995, %v7015
    %v7034 = vadd.f32 %v6996, %v7016
    %v7035 = vadd.f32 %v6997, %v7017
    %v7036 = vadd.f32 %v6998, %v7018
    %v7037 = vadd.f32 %v6999, %v7019
    %v7038 = vadd.f32 %v7000, %v7020
    %v7039 = vadd.f32 %v7001, %v7021
    %s7040 = sld [smem:[#allocation3 + $0x84]]
    %v7041 = vstv %s7040
    %v7042 = vmul.f32 %v48, %v7041
    %v7043 = vmul.f32 %v49, %v7041
    %v7044 = vmul.f32 %v50, %v7041
    %v7045 = vmul.f32 %v51, %v7041
    %v7046 = vmul.f32 %v52, %v7041
    %v7047 = vmul.f32 %v53, %v7041
    %v7048 = vmul.f32 %v54, %v7041
    %v7049 = vmul.f32 %v55, %v7041
    %v7050 = vmul.f32 %v56, %v7041
    %v7051 = vmul.f32 %v57, %v7041
    %v7052 = vmul.f32 %v58, %v7041
    %v7053 = vmul.f32 %v59, %v7041
    %v7054 = vmul.f32 %v60, %v7041
    %v7055 = vmul.f32 %v61, %v7041
    %v7056 = vmul.f32 %v62, %v7041
    %v7057 = vmul.f32 %v63, %v7041
    %v7058 = vmul.f32 %v64, %v7041
    %v7059 = vmul.f32 %v65, %v7041
    %v7060 = vadd.f32 %v7022, %v7042
    %v7061 = vadd.f32 %v7023, %v7043
    %v7062 = vadd.f32 %v7024, %v7044
    %v7063 = vadd.f32 %v7025, %v7045
    %v7064 = vadd.f32 %v7026, %v7046
    %v7065 = vadd.f32 %v7027, %v7047
    %v7066 = vadd.f32 %v7028, %v7048
    %v7067 = vadd.f32 %v7029, %v7049
    %v7068 = vadd.f32 %v7030, %v7050
    %v7069 = vadd.f32 %v7031, %v7051
    %v7070 = vadd.f32 %v7032, %v7052
    %v7071 = vadd.f32 %v7033, %v7053
    %v7072 = vadd.f32 %v7034, %v7054
    %v7073 = vadd.f32 %v7035, %v7055
    %v7074 = vadd.f32 %v7036, %v7056
    %v7075 = vadd.f32 %v7037, %v7057
    %v7076 = vadd.f32 %v7038, %v7058
    %v7077 = vadd.f32 %v7039, %v7059
    %s7078 = sld [smem:[#allocation3 + $0x85]]
    %v7079 = vstv %s7078
    %v7080 = vmul.f32 %v68, %v7079
    %v7081 = vmul.f32 %v69, %v7079
    %v7082 = vmul.f32 %v70, %v7079
    %v7083 = vmul.f32 %v71, %v7079
    %v7084 = vmul.f32 %v72, %v7079
    %v7085 = vmul.f32 %v73, %v7079
    %v7086 = vmul.f32 %v74, %v7079
    %v7087 = vmul.f32 %v75, %v7079
    %v7088 = vmul.f32 %v76, %v7079
    %v7089 = vmul.f32 %v77, %v7079
    %v7090 = vmul.f32 %v78, %v7079
    %v7091 = vmul.f32 %v79, %v7079
    %v7092 = vmul.f32 %v80, %v7079
    %v7093 = vmul.f32 %v81, %v7079
    %v7094 = vmul.f32 %v82, %v7079
    %v7095 = vmul.f32 %v83, %v7079
    %v7096 = vmul.f32 %v84, %v7079
    %v7097 = vmul.f32 %v85, %v7079
    %v7098 = vadd.f32 %v7060, %v7080
    %v7099 = vadd.f32 %v7061, %v7081
    %v7100 = vadd.f32 %v7062, %v7082
    %v7101 = vadd.f32 %v7063, %v7083
    %v7102 = vadd.f32 %v7064, %v7084
    %v7103 = vadd.f32 %v7065, %v7085
    %v7104 = vadd.f32 %v7066, %v7086
    %v7105 = vadd.f32 %v7067, %v7087
    %v7106 = vadd.f32 %v7068, %v7088
    %v7107 = vadd.f32 %v7069, %v7089
    %v7108 = vadd.f32 %v7070, %v7090
    %v7109 = vadd.f32 %v7071, %v7091
    %v7110 = vadd.f32 %v7072, %v7092
    %v7111 = vadd.f32 %v7073, %v7093
    %v7112 = vadd.f32 %v7074, %v7094
    %v7113 = vadd.f32 %v7075, %v7095
    %v7114 = vadd.f32 %v7076, %v7096
    %v7115 = vadd.f32 %v7077, %v7097
    %s7116 = sld [smem:[#allocation3 + $0x86]]
    %v7117 = vstv %s7116
    %v7118 = vmul.f32 %v88, %v7117
    %v7119 = vmul.f32 %v89, %v7117
    %v7120 = vmul.f32 %v90, %v7117
    %v7121 = vmul.f32 %v91, %v7117
    %v7122 = vmul.f32 %v92, %v7117
    %v7123 = vmul.f32 %v93, %v7117
    %v7124 = vmul.f32 %v94, %v7117
    %v7125 = vmul.f32 %v95, %v7117
    %v7126 = vmul.f32 %v96, %v7117
    %v7127 = vmul.f32 %v97, %v7117
    %v7128 = vmul.f32 %v98, %v7117
    %v7129 = vmul.f32 %v99, %v7117
    %v7130 = vmul.f32 %v100, %v7117
    %v7131 = vmul.f32 %v101, %v7117
    %v7132 = vmul.f32 %v102, %v7117
    %v7133 = vmul.f32 %v103, %v7117
    %v7134 = vmul.f32 %v104, %v7117
    %v7135 = vmul.f32 %v105, %v7117
    %v7136 = vadd.f32 %v7098, %v7118
    %v7137 = vadd.f32 %v7099, %v7119
    %v7138 = vadd.f32 %v7100, %v7120
    %v7139 = vadd.f32 %v7101, %v7121
    %v7140 = vadd.f32 %v7102, %v7122
    %v7141 = vadd.f32 %v7103, %v7123
    %v7142 = vadd.f32 %v7104, %v7124
    %v7143 = vadd.f32 %v7105, %v7125
    %v7144 = vadd.f32 %v7106, %v7126
    %v7145 = vadd.f32 %v7107, %v7127
    %v7146 = vadd.f32 %v7108, %v7128
    %v7147 = vadd.f32 %v7109, %v7129
    %v7148 = vadd.f32 %v7110, %v7130
    %v7149 = vadd.f32 %v7111, %v7131
    %v7150 = vadd.f32 %v7112, %v7132
    %v7151 = vadd.f32 %v7113, %v7133
    %v7152 = vadd.f32 %v7114, %v7134
    %v7153 = vadd.f32 %v7115, %v7135
    %s7154 = sld [smem:[#allocation5 + $0xe]]
    %v7155 = vstv %s7154
    %v7156 = vadd.f32 %v7136, %v7155
    %v7157 = vadd.f32 %v7137, %v7155
    %v7158 = vadd.f32 %v7138, %v7155
    %v7159 = vadd.f32 %v7139, %v7155
    %v7160 = vadd.f32 %v7140, %v7155
    %v7161 = vadd.f32 %v7141, %v7155
    %v7162 = vadd.f32 %v7142, %v7155
    %v7163 = vadd.f32 %v7143, %v7155
    %v7164 = vadd.f32 %v7144, %v7155
    %v7165 = vadd.f32 %v7145, %v7155
    %v7166 = vadd.f32 %v7146, %v7155
    %v7167 = vadd.f32 %v7147, %v7155
    %v7168 = vadd.f32 %v7148, %v7155
    %v7169 = vadd.f32 %v7149, %v7155
    %v7170 = vadd.f32 %v7150, %v7155
    %v7171 = vadd.f32 %v7151, %v7155
    %v7172 = vadd.f32 %v7152, %v7155
    %v7173 = vadd.f32 %v7153, %v7155
    %v7174 = vmax.f32 %v7156, 0.0
    %v7175 = vmax.f32 %v7157, 0.0
    %v7176 = vmax.f32 %v7158, 0.0
    %v7177 = vmax.f32 %v7159, 0.0
    %v7178 = vmax.f32 %v7160, 0.0
    %v7179 = vmax.f32 %v7161, 0.0
    %v7180 = vmax.f32 %v7162, 0.0
    %v7181 = vmax.f32 %v7163, 0.0
    %v7182 = vmax.f32 %v7164, 0.0
    %v7183 = vmax.f32 %v7165, 0.0
    %v7184 = vmax.f32 %v7166, 0.0
    %v7185 = vmax.f32 %v7167, 0.0
    %v7186 = vmax.f32 %v7168, 0.0
    %v7187 = vmax.f32 %v7169, 0.0
    %v7188 = vmax.f32 %v7170, 0.0
    %v7189 = vmax.f32 %v7171, 0.0
    %v7190 = vmax.f32 %v7172, 0.0
    %v7191 = vmax.f32 %v7173, 0.0
    %v7192 = vmax.f32 %v7174, %v7175
    %v7193 = vmax.f32 %v7176, %v7177
    %v7194 = vmax.f32 %v7178, %v7179
    %v7195 = vmax.f32 %v7180, %v7181
    %v7196 = vmax.f32 %v7182, %v7183
    %v7197 = vmax.f32 %v7184, %v7185
    %v7198 = vmax.f32 %v7186, %v7187
    %v7199 = vmax.f32 %v7188, %v7189
    %v7200 = vmax.f32 %v7190, %v7191
    %v7210 = vrot.slane %v7192, 1
    %v7211 = vrot.slane %v7193, 1
    %v7212 = vrot.slane %v7194, 1
    %v7213 = vrot.slane %v7195, 1
    %v7214 = vrot.slane %v7196, 1
    %v7215 = vrot.slane %v7197, 1
    %v7216 = vrot.slane %v7198, 1
    %v7217 = vrot.slane %v7199, 1
    %v7218 = vrot.slane %v7200, 1
    %v7228 = vmax.f32 %v7192, %v7210
    %v7229 = vmax.f32 %v7193, %v7211
    %v7230 = vmax.f32 %v7194, %v7212
    %v7231 = vmax.f32 %v7195, %v7213
    %v7232 = vmax.f32 %v7196, %v7214
    %v7233 = vmax.f32 %v7197, %v7215
    %v7234 = vmax.f32 %v7198, %v7216
    %v7235 = vmax.f32 %v7199, %v7217
    %v7236 = vmax.f32 %v7200, %v7218
    %7238 = vset.pattern.permute.xlu0 0
    %7239 = vperm.xlu0 %7238, %v232
    %v7240 = vpop.permute.xlu0 %7239
    %7243 = vset.pattern.permute.xlu0 0
    %7244 = vperm.xlu0 %7243, %v233
    %v7245 = vpop.permute.xlu0 %7244
    %7248 = vset.pattern.permute.xlu0 0
    %7249 = vperm.xlu0 %7248, %v234
    %v7250 = vpop.permute.xlu0 %7249
    %7253 = vset.pattern.permute.xlu0 0
    %7254 = vperm.xlu0 %7253, %v235
    %v7255 = vpop.permute.xlu0 %7254
    %7258 = vset.pattern.permute.xlu0 0
    %7259 = vperm.xlu0 %7258, %v236
    %v7260 = vpop.permute.xlu0 %7259
    %7263 = vset.pattern.permute.xlu0 0
    %7264 = vperm.xlu0 %7263, %v237
    %v7265 = vpop.permute.xlu0 %7264
    %7268 = vset.pattern.permute.xlu0 0
    %7269 = vperm.xlu0 %7268, %v238
    %v7270 = vpop.permute.xlu0 %7269
    %7273 = vset.pattern.permute.xlu0 0
    %7274 = vperm.xlu0 %7273, %v239
    %v7275 = vpop.permute.xlu0 %7274
    %7278 = vset.pattern.permute.xlu0 0
    %7279 = vperm.xlu0 %7278, %v240
    %v7280 = vpop.permute.xlu0 %7279
    %v7282 = vmul.f32 %v7228, %v7240
    %v7283 = vmul.f32 %v7229, %v7245
    %v7284 = vmul.f32 %v7230, %v7250
    %v7285 = vmul.f32 %v7231, %v7255
    %v7286 = vmul.f32 %v7232, %v7260
    %v7287 = vmul.f32 %v7233, %v7265
    %v7288 = vmul.f32 %v7234, %v7270
    %v7289 = vmul.f32 %v7235, %v7275
    %v7290 = vmul.f32 %v7236, %v7280
    %v7291 = vadd.f32 %v6821, %v7282
    %v7292 = vadd.f32 %v6822, %v7283
    %v7293 = vadd.f32 %v6823, %v7284
    %v7294 = vadd.f32 %v6824, %v7285
    %v7295 = vadd.f32 %v6825, %v7286
    %v7296 = vadd.f32 %v6826, %v7287
    %v7297 = vadd.f32 %v6827, %v7288
    %v7298 = vadd.f32 %v6828, %v7289
    %v7299 = vadd.f32 %v6829, %v7290
    %s7300 = sld [smem:[#allocation3 + $0x87]]
    %v7301 = vstv %s7300
    %v7302 = vmul.f32 %v46, %v7301
    %v7303 = vmul.f32 %v47, %v7301
    %v7304 = vmul.f32 %v48, %v7301
    %v7305 = vmul.f32 %v49, %v7301
    %v7306 = vmul.f32 %v50, %v7301
    %v7307 = vmul.f32 %v51, %v7301
    %v7308 = vmul.f32 %v52, %v7301
    %v7309 = vmul.f32 %v53, %v7301
    %v7310 = vmul.f32 %v54, %v7301
    %v7311 = vmul.f32 %v55, %v7301
    %v7312 = vmul.f32 %v56, %v7301
    %v7313 = vmul.f32 %v57, %v7301
    %v7314 = vmul.f32 %v58, %v7301
    %v7315 = vmul.f32 %v59, %v7301
    %v7316 = vmul.f32 %v60, %v7301
    %v7317 = vmul.f32 %v61, %v7301
    %v7318 = vmul.f32 %v62, %v7301
    %v7319 = vmul.f32 %v63, %v7301
    %s7320 = sld [smem:[#allocation3 + $0x88]]
    %v7321 = vstv %s7320
    %v7322 = vmul.f32 %v66, %v7321
    %v7323 = vmul.f32 %v67, %v7321
    %v7324 = vmul.f32 %v68, %v7321
    %v7325 = vmul.f32 %v69, %v7321
    %v7326 = vmul.f32 %v70, %v7321
    %v7327 = vmul.f32 %v71, %v7321
    %v7328 = vmul.f32 %v72, %v7321
    %v7329 = vmul.f32 %v73, %v7321
    %v7330 = vmul.f32 %v74, %v7321
    %v7331 = vmul.f32 %v75, %v7321
    %v7332 = vmul.f32 %v76, %v7321
    %v7333 = vmul.f32 %v77, %v7321
    %v7334 = vmul.f32 %v78, %v7321
    %v7335 = vmul.f32 %v79, %v7321
    %v7336 = vmul.f32 %v80, %v7321
    %v7337 = vmul.f32 %v81, %v7321
    %v7338 = vmul.f32 %v82, %v7321
    %v7339 = vmul.f32 %v83, %v7321
    %v7340 = vadd.f32 %v7302, %v7322
    %v7341 = vadd.f32 %v7303, %v7323
    %v7342 = vadd.f32 %v7304, %v7324
    %v7343 = vadd.f32 %v7305, %v7325
    %v7344 = vadd.f32 %v7306, %v7326
    %v7345 = vadd.f32 %v7307, %v7327
    %v7346 = vadd.f32 %v7308, %v7328
    %v7347 = vadd.f32 %v7309, %v7329
    %v7348 = vadd.f32 %v7310, %v7330
    %v7349 = vadd.f32 %v7311, %v7331
    %v7350 = vadd.f32 %v7312, %v7332
    %v7351 = vadd.f32 %v7313, %v7333
    %v7352 = vadd.f32 %v7314, %v7334
    %v7353 = vadd.f32 %v7315, %v7335
    %v7354 = vadd.f32 %v7316, %v7336
    %v7355 = vadd.f32 %v7317, %v7337
    %v7356 = vadd.f32 %v7318, %v7338
    %v7357 = vadd.f32 %v7319, %v7339
    %s7358 = sld [smem:[#allocation3 + $0x89]]
    %v7359 = vstv %s7358
    %v7360 = vmul.f32 %v86, %v7359
    %v7361 = vmul.f32 %v87, %v7359
    %v7362 = vmul.f32 %v88, %v7359
    %v7363 = vmul.f32 %v89, %v7359
    %v7364 = vmul.f32 %v90, %v7359
    %v7365 = vmul.f32 %v91, %v7359
    %v7366 = vmul.f32 %v92, %v7359
    %v7367 = vmul.f32 %v93, %v7359
    %v7368 = vmul.f32 %v94, %v7359
    %v7369 = vmul.f32 %v95, %v7359
    %v7370 = vmul.f32 %v96, %v7359
    %v7371 = vmul.f32 %v97, %v7359
    %v7372 = vmul.f32 %v98, %v7359
    %v7373 = vmul.f32 %v99, %v7359
    %v7374 = vmul.f32 %v100, %v7359
    %v7375 = vmul.f32 %v101, %v7359
    %v7376 = vmul.f32 %v102, %v7359
    %v7377 = vmul.f32 %v103, %v7359
    %v7378 = vadd.f32 %v7340, %v7360
    %v7379 = vadd.f32 %v7341, %v7361
    %v7380 = vadd.f32 %v7342, %v7362
    %v7381 = vadd.f32 %v7343, %v7363
    %v7382 = vadd.f32 %v7344, %v7364
    %v7383 = vadd.f32 %v7345, %v7365
    %v7384 = vadd.f32 %v7346, %v7366
    %v7385 = vadd.f32 %v7347, %v7367
    %v7386 = vadd.f32 %v7348, %v7368
    %v7387 = vadd.f32 %v7349, %v7369
    %v7388 = vadd.f32 %v7350, %v7370
    %v7389 = vadd.f32 %v7351, %v7371
    %v7390 = vadd.f32 %v7352, %v7372
    %v7391 = vadd.f32 %v7353, %v7373
    %v7392 = vadd.f32 %v7354, %v7374
    %v7393 = vadd.f32 %v7355, %v7375
    %v7394 = vadd.f32 %v7356, %v7376
    %v7395 = vadd.f32 %v7357, %v7377
    %s7396 = sld [smem:[#allocation3 + $0x8a]]
    %v7397 = vstv %s7396
    %v7398 = vmul.f32 %v47, %v7397
    %v7399 = vmul.f32 %v48, %v7397
    %v7400 = vmul.f32 %v49, %v7397
    %v7401 = vmul.f32 %v50, %v7397
    %v7402 = vmul.f32 %v51, %v7397
    %v7403 = vmul.f32 %v52, %v7397
    %v7404 = vmul.f32 %v53, %v7397
    %v7405 = vmul.f32 %v54, %v7397
    %v7406 = vmul.f32 %v55, %v7397
    %v7407 = vmul.f32 %v56, %v7397
    %v7408 = vmul.f32 %v57, %v7397
    %v7409 = vmul.f32 %v58, %v7397
    %v7410 = vmul.f32 %v59, %v7397
    %v7411 = vmul.f32 %v60, %v7397
    %v7412 = vmul.f32 %v61, %v7397
    %v7413 = vmul.f32 %v62, %v7397
    %v7414 = vmul.f32 %v63, %v7397
    %v7415 = vmul.f32 %v64, %v7397
    %v7416 = vadd.f32 %v7378, %v7398
    %v7417 = vadd.f32 %v7379, %v7399
    %v7418 = vadd.f32 %v7380, %v7400
    %v7419 = vadd.f32 %v7381, %v7401
    %v7420 = vadd.f32 %v7382, %v7402
    %v7421 = vadd.f32 %v7383, %v7403
    %v7422 = vadd.f32 %v7384, %v7404
    %v7423 = vadd.f32 %v7385, %v7405
    %v7424 = vadd.f32 %v7386, %v7406
    %v7425 = vadd.f32 %v7387, %v7407
    %v7426 = vadd.f32 %v7388, %v7408
    %v7427 = vadd.f32 %v7389, %v7409
    %v7428 = vadd.f32 %v7390, %v7410
    %v7429 = vadd.f32 %v7391, %v7411
    %v7430 = vadd.f32 %v7392, %v7412
    %v7431 = vadd.f32 %v7393, %v7413
    %v7432 = vadd.f32 %v7394, %v7414
    %v7433 = vadd.f32 %v7395, %v7415
    %s7434 = sld [smem:[#allocation3 + $0x8b]]
    %v7435 = vstv %s7434
    %v7436 = vmul.f32 %v67, %v7435
    %v7437 = vmul.f32 %v68, %v7435
    %v7438 = vmul.f32 %v69, %v7435
    %v7439 = vmul.f32 %v70, %v7435
    %v7440 = vmul.f32 %v71, %v7435
    %v7441 = vmul.f32 %v72, %v7435
    %v7442 = vmul.f32 %v73, %v7435
    %v7443 = vmul.f32 %v74, %v7435
    %v7444 = vmul.f32 %v75, %v7435
    %v7445 = vmul.f32 %v76, %v7435
    %v7446 = vmul.f32 %v77, %v7435
    %v7447 = vmul.f32 %v78, %v7435
    %v7448 = vmul.f32 %v79, %v7435
    %v7449 = vmul.f32 %v80, %v7435
    %v7450 = vmul.f32 %v81, %v7435
    %v7451 = vmul.f32 %v82, %v7435
    %v7452 = vmul.f32 %v83, %v7435
    %v7453 = vmul.f32 %v84, %v7435
    %v7454 = vadd.f32 %v7416, %v7436
    %v7455 = vadd.f32 %v7417, %v7437
    %v7456 = vadd.f32 %v7418, %v7438
    %v7457 = vadd.f32 %v7419, %v7439
    %v7458 = vadd.f32 %v7420, %v7440
    %v7459 = vadd.f32 %v7421, %v7441
    %v7460 = vadd.f32 %v7422, %v7442
    %v7461 = vadd.f32 %v7423, %v7443
    %v7462 = vadd.f32 %v7424, %v7444
    %v7463 = vadd.f32 %v7425, %v7445
    %v7464 = vadd.f32 %v7426, %v7446
    %v7465 = vadd.f32 %v7427, %v7447
    %v7466 = vadd.f32 %v7428, %v7448
    %v7467 = vadd.f32 %v7429, %v7449
    %v7468 = vadd.f32 %v7430, %v7450
    %v7469 = vadd.f32 %v7431, %v7451
    %v7470 = vadd.f32 %v7432, %v7452
    %v7471 = vadd.f32 %v7433, %v7453
    %s7472 = sld [smem:[#allocation3 + $0x8c]]
    %v7473 = vstv %s7472
    %v7474 = vmul.f32 %v87, %v7473
    %v7475 = vmul.f32 %v88, %v7473
    %v7476 = vmul.f32 %v89, %v7473
    %v7477 = vmul.f32 %v90, %v7473
    %v7478 = vmul.f32 %v91, %v7473
    %v7479 = vmul.f32 %v92, %v7473
    %v7480 = vmul.f32 %v93, %v7473
    %v7481 = vmul.f32 %v94, %v7473
    %v7482 = vmul.f32 %v95, %v7473
    %v7483 = vmul.f32 %v96, %v7473
    %v7484 = vmul.f32 %v97, %v7473
    %v7485 = vmul.f32 %v98, %v7473
    %v7486 = vmul.f32 %v99, %v7473
    %v7487 = vmul.f32 %v100, %v7473
    %v7488 = vmul.f32 %v101, %v7473
    %v7489 = vmul.f32 %v102, %v7473
    %v7490 = vmul.f32 %v103, %v7473
    %v7491 = vmul.f32 %v104, %v7473
    %v7492 = vadd.f32 %v7454, %v7474
    %v7493 = vadd.f32 %v7455, %v7475
    %v7494 = vadd.f32 %v7456, %v7476
    %v7495 = vadd.f32 %v7457, %v7477
    %v7496 = vadd.f32 %v7458, %v7478
    %v7497 = vadd.f32 %v7459, %v7479
    %v7498 = vadd.f32 %v7460, %v7480
    %v7499 = vadd.f32 %v7461, %v7481
    %v7500 = vadd.f32 %v7462, %v7482
    %v7501 = vadd.f32 %v7463, %v7483
    %v7502 = vadd.f32 %v7464, %v7484
    %v7503 = vadd.f32 %v7465, %v7485
    %v7504 = vadd.f32 %v7466, %v7486
    %v7505 = vadd.f32 %v7467, %v7487
    %v7506 = vadd.f32 %v7468, %v7488
    %v7507 = vadd.f32 %v7469, %v7489
    %v7508 = vadd.f32 %v7470, %v7490
    %v7509 = vadd.f32 %v7471, %v7491
    %s7510 = sld [smem:[#allocation3 + $0x8d]]
    %v7511 = vstv %s7510
    %v7512 = vmul.f32 %v48, %v7511
    %v7513 = vmul.f32 %v49, %v7511
    %v7514 = vmul.f32 %v50, %v7511
    %v7515 = vmul.f32 %v51, %v7511
    %v7516 = vmul.f32 %v52, %v7511
    %v7517 = vmul.f32 %v53, %v7511
    %v7518 = vmul.f32 %v54, %v7511
    %v7519 = vmul.f32 %v55, %v7511
    %v7520 = vmul.f32 %v56, %v7511
    %v7521 = vmul.f32 %v57, %v7511
    %v7522 = vmul.f32 %v58, %v7511
    %v7523 = vmul.f32 %v59, %v7511
    %v7524 = vmul.f32 %v60, %v7511
    %v7525 = vmul.f32 %v61, %v7511
    %v7526 = vmul.f32 %v62, %v7511
    %v7527 = vmul.f32 %v63, %v7511
    %v7528 = vmul.f32 %v64, %v7511
    %v7529 = vmul.f32 %v65, %v7511
    %v7530 = vadd.f32 %v7492, %v7512
    %v7531 = vadd.f32 %v7493, %v7513
    %v7532 = vadd.f32 %v7494, %v7514
    %v7533 = vadd.f32 %v7495, %v7515
    %v7534 = vadd.f32 %v7496, %v7516
    %v7535 = vadd.f32 %v7497, %v7517
    %v7536 = vadd.f32 %v7498, %v7518
    %v7537 = vadd.f32 %v7499, %v7519
    %v7538 = vadd.f32 %v7500, %v7520
    %v7539 = vadd.f32 %v7501, %v7521
    %v7540 = vadd.f32 %v7502, %v7522
    %v7541 = vadd.f32 %v7503, %v7523
    %v7542 = vadd.f32 %v7504, %v7524
    %v7543 = vadd.f32 %v7505, %v7525
    %v7544 = vadd.f32 %v7506, %v7526
    %v7545 = vadd.f32 %v7507, %v7527
    %v7546 = vadd.f32 %v7508, %v7528
    %v7547 = vadd.f32 %v7509, %v7529
    %s7548 = sld [smem:[#allocation3 + $0x8e]]
    %v7549 = vstv %s7548
    %v7550 = vmul.f32 %v68, %v7549
    %v7551 = vmul.f32 %v69, %v7549
    %v7552 = vmul.f32 %v70, %v7549
    %v7553 = vmul.f32 %v71, %v7549
    %v7554 = vmul.f32 %v72, %v7549
    %v7555 = vmul.f32 %v73, %v7549
    %v7556 = vmul.f32 %v74, %v7549
    %v7557 = vmul.f32 %v75, %v7549
    %v7558 = vmul.f32 %v76, %v7549
    %v7559 = vmul.f32 %v77, %v7549
    %v7560 = vmul.f32 %v78, %v7549
    %v7561 = vmul.f32 %v79, %v7549
    %v7562 = vmul.f32 %v80, %v7549
    %v7563 = vmul.f32 %v81, %v7549
    %v7564 = vmul.f32 %v82, %v7549
    %v7565 = vmul.f32 %v83, %v7549
    %v7566 = vmul.f32 %v84, %v7549
    %v7567 = vmul.f32 %v85, %v7549
    %v7568 = vadd.f32 %v7530, %v7550
    %v7569 = vadd.f32 %v7531, %v7551
    %v7570 = vadd.f32 %v7532, %v7552
    %v7571 = vadd.f32 %v7533, %v7553
    %v7572 = vadd.f32 %v7534, %v7554
    %v7573 = vadd.f32 %v7535, %v7555
    %v7574 = vadd.f32 %v7536, %v7556
    %v7575 = vadd.f32 %v7537, %v7557
    %v7576 = vadd.f32 %v7538, %v7558
    %v7577 = vadd.f32 %v7539, %v7559
    %v7578 = vadd.f32 %v7540, %v7560
    %v7579 = vadd.f32 %v7541, %v7561
    %v7580 = vadd.f32 %v7542, %v7562
    %v7581 = vadd.f32 %v7543, %v7563
    %v7582 = vadd.f32 %v7544, %v7564
    %v7583 = vadd.f32 %v7545, %v7565
    %v7584 = vadd.f32 %v7546, %v7566
    %v7585 = vadd.f32 %v7547, %v7567
    %s7586 = sld [smem:[#allocation3 + $0x8f]]
    %v7587 = vstv %s7586
    %v7588 = vmul.f32 %v88, %v7587
    %v7589 = vmul.f32 %v89, %v7587
    %v7590 = vmul.f32 %v90, %v7587
    %v7591 = vmul.f32 %v91, %v7587
    %v7592 = vmul.f32 %v92, %v7587
    %v7593 = vmul.f32 %v93, %v7587
    %v7594 = vmul.f32 %v94, %v7587
    %v7595 = vmul.f32 %v95, %v7587
    %v7596 = vmul.f32 %v96, %v7587
    %v7597 = vmul.f32 %v97, %v7587
    %v7598 = vmul.f32 %v98, %v7587
    %v7599 = vmul.f32 %v99, %v7587
    %v7600 = vmul.f32 %v100, %v7587
    %v7601 = vmul.f32 %v101, %v7587
    %v7602 = vmul.f32 %v102, %v7587
    %v7603 = vmul.f32 %v103, %v7587
    %v7604 = vmul.f32 %v104, %v7587
    %v7605 = vmul.f32 %v105, %v7587
    %v7606 = vadd.f32 %v7568, %v7588
    %v7607 = vadd.f32 %v7569, %v7589
    %v7608 = vadd.f32 %v7570, %v7590
    %v7609 = vadd.f32 %v7571, %v7591
    %v7610 = vadd.f32 %v7572, %v7592
    %v7611 = vadd.f32 %v7573, %v7593
    %v7612 = vadd.f32 %v7574, %v7594
    %v7613 = vadd.f32 %v7575, %v7595
    %v7614 = vadd.f32 %v7576, %v7596
    %v7615 = vadd.f32 %v7577, %v7597
    %v7616 = vadd.f32 %v7578, %v7598
    %v7617 = vadd.f32 %v7579, %v7599
    %v7618 = vadd.f32 %v7580, %v7600
    %v7619 = vadd.f32 %v7581, %v7601
    %v7620 = vadd.f32 %v7582, %v7602
    %v7621 = vadd.f32 %v7583, %v7603
    %v7622 = vadd.f32 %v7584, %v7604
    %v7623 = vadd.f32 %v7585, %v7605
    %s7624 = sld [smem:[#allocation5 + $0xf]]
    %v7625 = vstv %s7624
    %v7626 = vadd.f32 %v7606, %v7625
    %v7627 = vadd.f32 %v7607, %v7625
    %v7628 = vadd.f32 %v7608, %v7625
    %v7629 = vadd.f32 %v7609, %v7625
    %v7630 = vadd.f32 %v7610, %v7625
    %v7631 = vadd.f32 %v7611, %v7625
    %v7632 = vadd.f32 %v7612, %v7625
    %v7633 = vadd.f32 %v7613, %v7625
    %v7634 = vadd.f32 %v7614, %v7625
    %v7635 = vadd.f32 %v7615, %v7625
    %v7636 = vadd.f32 %v7616, %v7625
    %v7637 = vadd.f32 %v7617, %v7625
    %v7638 = vadd.f32 %v7618, %v7625
    %v7639 = vadd.f32 %v7619, %v7625
    %v7640 = vadd.f32 %v7620, %v7625
    %v7641 = vadd.f32 %v7621, %v7625
    %v7642 = vadd.f32 %v7622, %v7625
    %v7643 = vadd.f32 %v7623, %v7625
    %v7644 = vmax.f32 %v7626, 0.0
    %v7645 = vmax.f32 %v7627, 0.0
    %v7646 = vmax.f32 %v7628, 0.0
    %v7647 = vmax.f32 %v7629, 0.0
    %v7648 = vmax.f32 %v7630, 0.0
    %v7649 = vmax.f32 %v7631, 0.0
    %v7650 = vmax.f32 %v7632, 0.0
    %v7651 = vmax.f32 %v7633, 0.0
    %v7652 = vmax.f32 %v7634, 0.0
    %v7653 = vmax.f32 %v7635, 0.0
    %v7654 = vmax.f32 %v7636, 0.0
    %v7655 = vmax.f32 %v7637, 0.0
    %v7656 = vmax.f32 %v7638, 0.0
    %v7657 = vmax.f32 %v7639, 0.0
    %v7658 = vmax.f32 %v7640, 0.0
    %v7659 = vmax.f32 %v7641, 0.0
    %v7660 = vmax.f32 %v7642, 0.0
    %v7661 = vmax.f32 %v7643, 0.0
    %v7662 = vmax.f32 %v7644, %v7645
    %v7663 = vmax.f32 %v7646, %v7647
    %v7664 = vmax.f32 %v7648, %v7649
    %v7665 = vmax.f32 %v7650, %v7651
    %v7666 = vmax.f32 %v7652, %v7653
    %v7667 = vmax.f32 %v7654, %v7655
    %v7668 = vmax.f32 %v7656, %v7657
    %v7669 = vmax.f32 %v7658, %v7659
    %v7670 = vmax.f32 %v7660, %v7661
    %v7680 = vrot.slane %v7662, 1
    %v7681 = vrot.slane %v7663, 1
    %v7682 = vrot.slane %v7664, 1
    %v7683 = vrot.slane %v7665, 1
    %v7684 = vrot.slane %v7666, 1
    %v7685 = vrot.slane %v7667, 1
    %v7686 = vrot.slane %v7668, 1
    %v7687 = vrot.slane %v7669, 1
    %v7688 = vrot.slane %v7670, 1
    %v7698 = vmax.f32 %v7662, %v7680
    %v7699 = vmax.f32 %v7663, %v7681
    %v7700 = vmax.f32 %v7664, %v7682
    %v7701 = vmax.f32 %v7665, %v7683
    %v7702 = vmax.f32 %v7666, %v7684
    %v7703 = vmax.f32 %v7667, %v7685
    %v7704 = vmax.f32 %v7668, %v7686
    %v7705 = vmax.f32 %v7669, %v7687
    %v7706 = vmax.f32 %v7670, %v7688
    %7708 = vset.pattern.permute.xlu0 0
    %7709 = vperm.xlu0 %7708, %v241
    %v7710 = vpop.permute.xlu0 %7709
    %7713 = vset.pattern.permute.xlu0 0
    %7714 = vperm.xlu0 %7713, %v242
    %v7715 = vpop.permute.xlu0 %7714
    %7718 = vset.pattern.permute.xlu0 0
    %7719 = vperm.xlu0 %7718, %v243
    %v7720 = vpop.permute.xlu0 %7719
    %7723 = vset.pattern.permute.xlu0 0
    %7724 = vperm.xlu0 %7723, %v244
    %v7725 = vpop.permute.xlu0 %7724
    %7728 = vset.pattern.permute.xlu0 0
    %7729 = vperm.xlu0 %7728, %v245
    %v7730 = vpop.permute.xlu0 %7729
    %7733 = vset.pattern.permute.xlu0 0
    %7734 = vperm.xlu0 %7733, %v246
    %v7735 = vpop.permute.xlu0 %7734
    %7738 = vset.pattern.permute.xlu0 0
    %7739 = vperm.xlu0 %7738, %v247
    %v7740 = vpop.permute.xlu0 %7739
    %7743 = vset.pattern.permute.xlu0 0
    %7744 = vperm.xlu0 %7743, %v248
    %v7745 = vpop.permute.xlu0 %7744
    %7748 = vset.pattern.permute.xlu0 0
    %7749 = vperm.xlu0 %7748, %v249
    %v7750 = vpop.permute.xlu0 %7749
    %v7752 = vmul.f32 %v7698, %v7710
    %v7753 = vmul.f32 %v7699, %v7715
    %v7754 = vmul.f32 %v7700, %v7720
    %v7755 = vmul.f32 %v7701, %v7725
    %v7756 = vmul.f32 %v7702, %v7730
    %v7757 = vmul.f32 %v7703, %v7735
    %v7758 = vmul.f32 %v7704, %v7740
    %v7759 = vmul.f32 %v7705, %v7745
    %v7760 = vmul.f32 %v7706, %v7750
    %v7761 = vadd.f32 %v7291, %v7752
    %v7762 = vadd.f32 %v7292, %v7753
    %v7763 = vadd.f32 %v7293, %v7754
    %v7764 = vadd.f32 %v7294, %v7755
    %v7765 = vadd.f32 %v7295, %v7756
    %v7766 = vadd.f32 %v7296, %v7757
    %v7767 = vadd.f32 %v7297, %v7758
    %v7768 = vadd.f32 %v7298, %v7759
    %v7769 = vadd.f32 %v7299, %v7760
    %v7770 = vadd.f32 %v7761, %v7762
    %v7771 = vadd.f32 %v7770, %v7763
    %v7772 = vadd.f32 %v7771, %v7764
    %v7773 = vadd.f32 %v7772, %v7765
    %v7774 = vadd.f32 %v7773, %v7766
    %v7775 = vadd.f32 %v7774, %v7767
    %v7776 = vadd.f32 %v7775, %v7768
    %v7777 = vadd.f32 %v7776, %v7769
    %vm7778 = vcmask 1046528
    %v7779 = vsel %vm7778, %v7777, 0.0
    %v7780 = vrot.slane %v7779, 4
    %v7781 = vadd.f32 %v7779, %v7780
    %v7782 = vrot.slane %v7781, 2
    %v7783 = vadd.f32 %v7781, %v7782
    %v7784 = vrot.slane %v7783, 1
    %v7785 = vadd.f32 %v7783, %v7784
    %s7786 = sld [smem:[#allocation2]]
    %v7787 = vstv %s7786
    %v7788 = vadd.f32 %v7785, %v7787
    %v7789 = vxor.u32 %v7788, 2147483648
    %v7790 = vmul.f32 %v7789, 1.442695
    %v7791 = vpow.pop %v7790
    %v7792 = vadd.f32 %v7791, 1.0
    %v7793 = vrcp.pop %v7792
    %v7794 = vmul.f32 1.0, %v7793
    %7795 = vst [vmem:[%s5] sm:$0x1] %v7794
    // Predicated region
    $region30: #{simple_cnn2_forward.1} parent=1 // pred_check
      _
    $region31: #{simple_cnn2_forward.1} parent=1 // pred_check_branch
      %7797 = sbr.rel (0) target = $region33
    $region32: #{simple_cnn2_forward.1} parent=1 // pred_region
      _
    $region33: #{simple_cnn2_forward.1} parent=1 // pred_fallthru
      _
    // Predicated region
    $region34: #{simple_cnn2_forward.1} parent=1 // pred_check
      _
    $region35: #{simple_cnn2_forward.1} parent=1 // pred_check_branch
      %7799 = sbr.rel (0) target = $region37
    $region36: #{simple_cnn2_forward.1} parent=1 // pred_region
      _
    $region37: #{simple_cnn2_forward.1} parent=1 // pred_fallthru
      _
    %7800 = vsyncpa [#allocation4], 1
    %7801 = vsyncpa [#allocation6], 1

</llo_original>
